<compile_context>
chip_gen: v5e
topology: v5e:2x2
jax: 0.10.0
libtpu: 0.0.40
codegen_flags: <defaults>
</compile_context>

<pallas_src>
import functools

import numpy as np

import jax
import jax.numpy as jnp
from jax.experimental import pallas as pl
from jax.experimental.pallas import tpu as pltpu


_BN_EPS = 1e-5
# Scoped-VMEM cap: above the v5e (16 MiB) / v6e (32 MiB) scoped defaults so the larger
# K-adaptive tiles can double-buffer, but <= ~48 MiB so it is also safe on v7x (64 MiB/TC).
_VMEM_LIMIT = 48 * 1024 * 1024
# Below this total gather-matrix footprint the whole forward runs as ONE fused pallas_call.
_FUSED_GATHER_BYTES_MAX = 8 * 1024 * 1024


# ----------------------------- helpers (static) -----------------------------

def _round_up(x, m):
    return (x + m - 1) // m * m


def _pick_tm(m, k):
    """K-adaptive M tile: ~1 MiB bf16 patch tile, clamped to [512, 4096] and to the
    (128-rounded) problem size.  K=16 -> 4096, K=256 -> 2048, K=512 -> 1024, K>=2048 -> 512."""
    t = (1 << 20) // (2 * k)
    t = max(512, min(4096, t))
    t = min(t, _round_up(m, 128))
    return _round_up(t, 128)


def _conv_out_hw(h, w):
    # kernel=4, stride=2, pad=1
    return (h + 2 - 4) // 2 + 1, (w + 2 - 4) // 2 + 1


def _fused_gather_bytes(b, h, w, n_layers):
    """Total bf16 bytes of the tap-gather matrices for the fully fused single-kernel path."""
    total = 0
    for _ in range(n_layers):
        ho, wo = _conv_out_hw(h, w)
        if ho <= 0 or wo <= 0:
            return 1 << 62
        total += 16 * (b * h * w) * (b * ho * wo) * 2
        h, w = ho, wo
    return total


def _gather_mats_np(b, h, w):
    """0/1 gather matrices g[t, p_in, p_out] for a k=4,s=2,p=1 conv on a (b,h,w)-flattened,
    channel-major activation.  Padding locations simply have no 1 entry (-> gathered 0)."""
    ho, wo = _conv_out_hw(h, w)
    m_in, m_out = b * h * w, b * ho * wo
    g = np.zeros((16, m_in, m_out), np.float32)
    for i in range(4):
        for j in range(4):
            t = i * 4 + j
            for bb in range(b):
                for oy in range(ho):
                    hs = 2 * oy - 1 + i
                    if hs < 0 or hs >= h:
                        continue
                    for ox in range(wo):
                        ws = 2 * ox - 1 + j
                        if ws < 0 or ws >= w:
                            continue
                        g[t, (bb * h + hs) * w + ws, (bb * ho + oy) * wo + ox] = 1.0
    return g, ho, wo


def _full_block(shape):
    nd = len(shape)
    return pl.BlockSpec(shape, lambda i, _nd=nd: (0,) * _nd)


# ----------------------------- Pallas kernels -------------------------------

def _conv_stats_kernel(p_ref, w_ref, b_ref, y_ref, s_ref, ss_ref):
    """One M-tile of  y = W @ patches + b  plus per-tile BatchNorm partial statistics.

    p_ref : (K, tm)   bf16 patch tile (spatial on lanes -> lane-dense)
    w_ref : (N, K)    bf16 weights (resident, constant index_map)
    b_ref : (N, 1)    f32 bias (resident)
    y_ref : (N, tm)   bf16 pre-activation output (lane-dense store)
    s_ref : (1, N, 1) f32 per-tile sum(y)
    ss_ref: (1, N, 1) f32 per-tile sum((y - b)^2)   (bias-shifted second moment;
                      padded patch columns give y = b exactly, so they contribute 0)
    """
    y = jnp.dot(w_ref[...], p_ref[...], preferred_element_type=jnp.float32) + b_ref[...]
    y_ref[...] = y.astype(jnp.bfloat16)
    d = y - b_ref[...]
    s_ref[...] = jnp.sum(y, axis=1, keepdims=True)[None]
    ss_ref[...] = jnp.sum(d * d, axis=1, keepdims=True)[None]


def _bn_relu_conv1x1_kernel(a_ref, sc_ref, sh_ref, w_ref, b_ref, o_ref):
    """Fused prologue (BN affine + ReLU in f32) then the final 1x1 conv on the MXU."""
    a = jnp.maximum(a_ref[...].astype(jnp.float32) * sc_ref[...] + sh_ref[...], 0.0)
    o_ref[...] = jnp.dot(w_ref[...], a.astype(jnp.bfloat16),
                         preferred_element_type=jnp.float32) + b_ref[...]


def _fused_small_kernel(*refs, n_layers):
    """Whole encoder in one kernel (small-image regime, everything resident in VMEM).

    refs = [x (1,M0) bf16,
            (g (16,Mprev,Ml) bf16, w (Cout,16*Cin) bf16, b, gamma, beta (Cout,1) f32) * L,
            wf (E,CL) bf16, bf (E,1) f32, out (E,ML) f32]
    """
    x_ref = refs[0]
    wf_ref = refs[1 + 5 * n_layers]
    bf_ref = refs[2 + 5 * n_layers]
    o_ref = refs[-1]

    act = x_ref[...]                                  # (Cin, Mprev) bf16
    for l in range(n_layers):
        g_ref, w_ref, b_ref, ga_ref, be_ref = refs[1 + 5 * l: 6 + 5 * l]
        # im2col as 16 exact gather matmuls (0/1 matrices, f32 accumulate -> exact gather).
        taps = [jnp.dot(act, g_ref[t], preferred_element_type=jnp.float32)
                for t in range(16)]                   # each (Cin, Ml)
        patches = jnp.concatenate(taps, axis=0).astype(jnp.bfloat16)   # (16*Cin, Ml)
        y = jnp.dot(w_ref[...], patches, preferred_element_type=jnp.float32) + b_ref[...]
        # Training-mode BatchNorm, robust two-pass variance (all in f32, in VMEM).
        mean = jnp.mean(y, axis=1, keepdims=True)
        var = jnp.mean((y - mean) ** 2, axis=1, keepdims=True)
        scale = ga_ref[...] * jax.lax.rsqrt(var + _BN_EPS)
        shift = be_ref[...] - mean * scale
        act = jnp.maximum(y * scale + shift, 0.0).astype(jnp.bfloat16)

    o_ref[...] = jnp.dot(wf_ref[...], act, preferred_element_type=jnp.float32) + bf_ref[...]


# ----------------------------- pallas_call wrappers --------------------------

def _conv_with_bn_stats(patches, w_mat, bias_col, mp, tm):
    """patches: (K, Mp) bf16, w_mat: (N, K) bf16, bias_col: (N, 1) f32."""
    K = patches.shape[0]
    N = w_mat.shape[0]
    nt = mp // tm
    flops = 2 * N * K * mp
    bytes_acc = 2 * K * mp + 2 * N * K + 4 * N + 2 * N * mp + 8 * nt * N
    y, s, ss = pl.pallas_call(
        _conv_stats_kernel,
        grid=(nt,),
        in_specs=[
            pl.BlockSpec((K, tm), lambda m: (0, m)),   # patch tile (pipelined over M)
            pl.BlockSpec((N, K), lambda m: (0, 0)),    # weights resident in VMEM
            pl.BlockSpec((N, 1), lambda m: (0, 0)),    # bias resident
        ],
        out_specs=[
            pl.BlockSpec((N, tm), lambda m: (0, m)),       # lane-dense pre-activation
            pl.BlockSpec((1, N, 1), lambda m: (m, 0, 0)),  # per-tile partial sum
            pl.BlockSpec((1, N, 1), lambda m: (m, 0, 0)),  # per-tile partial shifted sumsq
        ],
        out_shape=[
            jax.ShapeDtypeStruct((N, mp), jnp.bfloat16),
            jax.ShapeDtypeStruct((nt, N, 1), jnp.float32),
            jax.ShapeDtypeStruct((nt, N, 1), jnp.float32),
        ],
        compiler_params=pltpu.CompilerParams(
            # No cross-tile state any more -> M axis is parallel (uses both v7x TCs).
            dimension_semantics=("parallel",),
            vmem_limit_bytes=_VMEM_LIMIT,
        ),
        cost_estimate=pl.CostEstimate(flops=flops, transcendentals=0,
                                      bytes_accessed=bytes_acc),
    )(patches, w_mat, bias_col)
    # Tiny cross-tile reduction of the partial statistics happens in XLA.
    return y, jnp.sum(s[:, :, 0], axis=0), jnp.sum(ss[:, :, 0], axis=0)


def _bn_relu_conv1x1(y, scale, shift, w_mat, bias_col, mp, tm):
    """y: (C, Mp) bf16 pre-activation, scale/shift: (C,1) f32, w_mat: (Ne, C) bf16."""
    C = y.shape[0]
    Ne = w_mat.shape[0]
    flops = 2 * Ne * C * mp + 3 * C * mp
    bytes_acc = 2 * C * mp + 8 * C + 2 * Ne * C + 4 * Ne + 4 * Ne * mp
    return pl.pallas_call(
        _bn_relu_conv1x1_kernel,
        grid=(mp // tm,),
        in_specs=[
            pl.BlockSpec((C, tm), lambda m: (0, m)),
            pl.BlockSpec((C, 1), lambda m: (0, 0)),
            pl.BlockSpec((C, 1), lambda m: (0, 0)),
            pl.BlockSpec((Ne, C), lambda m: (0, 0)),
            pl.BlockSpec((Ne, 1), lambda m: (0, 0)),
        ],
        out_specs=pl.BlockSpec((Ne, tm), lambda m: (0, m)),
        out_shape=jax.ShapeDtypeStruct((Ne, mp), jnp.float32),
        compiler_params=pltpu.CompilerParams(
            dimension_semantics=("parallel",),
            vmem_limit_bytes=_VMEM_LIMIT,
        ),
        cost_estimate=pl.CostEstimate(flops=flops, transcendentals=0,
                                      bytes_accessed=bytes_acc),
    )(y, scale, shift, w_mat, bias_col)


def _fused_small_forward(x, params):
    """Single fused pallas_call for the small-image regime."""
    B, H, W = x.shape
    n_layers = len(params["conv_bn"])

    inputs = [x.reshape(1, B * H * W).astype(jnp.bfloat16)]
    in_specs = [_full_block(inputs[0].shape)]

    h, w = H, W
    m_prev = B * H * W
    cout = None
    flops = 0
    for (wt, b, gamma, beta) in params["conv_bn"]:
        cout, cin, kh, kw = wt.shape
        g_np, h, w = _gather_mats_np(B, h, w)
        m_out = B * h * w
        g = jnp.asarray(g_np, dtype=jnp.bfloat16)     # 0/1 -> exact in bf16
        w_mat = wt.transpose(0, 2, 3, 1).reshape(cout, kh * kw * cin).astype(jnp.bfloat16)
        layer_inputs = [g, w_mat,
                        b.astype(jnp.float32)[:, None],
                        gamma.astype(jnp.float32)[:, None],
                        beta.astype(jnp.float32)[:, None]]
        inputs += layer_inputs
        in_specs += [_full_block(a.shape) for a in layer_inputs]
        flops += 2 * cin * m_prev * 16 * m_out + 2 * cout * 16 * cin * m_out
        m_prev = m_out

    wf, bf = params["final"]
    ne = wf.shape[0]
    wf_mat = wf.reshape(ne, cout).astype(jnp.bfloat16)
    bf_col = bf.astype(jnp.float32)[:, None]
    inputs += [wf_mat, bf_col]
    in_specs += [_full_block(wf_mat.shape), _full_block(bf_col.shape)]
    flops += 2 * ne * cout * m_prev

    bytes_acc = sum(int(a.size) * a.dtype.itemsize for a in inputs) + 4 * ne * m_prev
    out = pl.pallas_call(
        functools.partial(_fused_small_kernel, n_layers=n_layers),
        grid=(1,),
        in_specs=in_specs,
        out_specs=_full_block((ne, m_prev)),
        out_shape=jax.ShapeDtypeStruct((ne, m_prev), jnp.float32),
        compiler_params=pltpu.CompilerParams(
            dimension_semantics=("arbitrary",),
            vmem_limit_bytes=_VMEM_LIMIT,
        ),
        cost_estimate=pl.CostEstimate(flops=flops, transcendentals=8 * cout,
                                      bytes_accessed=bytes_acc),
    )(*inputs)
    # Back to NCHW only at the module boundary.
    return out.reshape(ne, B, h, w).transpose(1, 0, 2, 3)


# ------------------------------ tiled (large-image) path ----------------------

def _im2col_k4s2p1(x):
    """Channel-major im2col for kernel=4, stride=2, pad=1.

    x: (C, B, H, W) -> patches (16*C, B*Ho*Wo) with row order (tap, channel), matching
    weight.transpose(0,2,3,1).reshape(Cout, 16*Cin)."""
    C, B, H, W = x.shape
    k, s, p = 4, 2, 1
    Ho = (H + 2 * p - k) // s + 1
    Wo = (W + 2 * p - k) // s + 1
    xp = jnp.pad(x, ((0, 0), (0, 0), (p, p), (p, p)))
    taps = []
    for i in range(k):
        for j in range(k):
            taps.append(xp[:, :, i:i + s * (Ho - 1) + 1:s, j:j + s * (Wo - 1) + 1:s])
    pt = jnp.stack(taps, axis=0)                       # (16, C, B, Ho, Wo)
    return pt.reshape(k * k * C, B * Ho * Wo), Ho, Wo


def _tiled_forward(x, params):
    """x: (B, H, W) float32 -> (B, embedding_dim, H//8, W//8) float32 (PyTorch NCHW)."""
    B = x.shape[0]
    act = x[None, :, :, :].astype(jnp.bfloat16)        # unsqueeze(1), channel-major

    n_layers = len(params["conv_bn"])
    y = scale = shift = None
    M = Mp = tm = Ho = Wo = Cout = None
    for li, (w, b, gamma, beta) in enumerate(params["conv_bn"]):
        Cout, Cin, kh, kw = w.shape
        patches, Ho, Wo = _im2col_k4s2p1(act)          # (16*Cin, B*Ho*Wo) bf16
        K = kh * kw * Cin
        M = B * Ho * Wo
        tm = _pick_tm(M, K)
        Mp = _round_up(M, tm)
        if Mp != M:
            patches = jnp.pad(patches, ((0, 0), (0, Mp - M)))

        w_mat = w.transpose(0, 2, 3, 1).reshape(Cout, K).astype(jnp.bfloat16)
        bias = b.astype(jnp.float32)
        y, psum, pss = _conv_with_bn_stats(patches, w_mat, bias[:, None], Mp, tm)

        # BatchNorm batch statistics.  Padded columns produce exactly y = b, so:
        #   sum(y)       over valid columns = psum - (Mp-M)*b
        #   sum((y-b)^2) over valid columns = pss   (no correction needed)
        mean = (psum - (Mp - M) * bias) / M
        var = jnp.maximum(pss / M - (mean - bias) ** 2, 0.0)
        scale = gamma * jax.lax.rsqrt(var + _BN_EPS)
        shift = beta - mean * scale

        if li < n_layers - 1:
            # BN affine + ReLU folded into the next layer's patch construction, applied
            # BEFORE re-padding so padded activations are exactly zero (Conv2d semantics).
            a = jnp.maximum(
                y[:, :M].astype(jnp.float32) * scale[:, None] + shift[:, None], 0.0)
            act = a.astype(jnp.bfloat16).reshape(Cout, B, Ho, Wo)

    # Final 1x1 conv with the last layer's BN affine + ReLU fused in-kernel as a prologue.
    wf, bf = params["final"]
    Ne = wf.shape[0]
    wf_mat = wf.reshape(Ne, Cout).astype(jnp.bfloat16)
    out = _bn_relu_conv1x1(y, scale[:, None], shift[:, None], wf_mat,
                           bf[:, None].astype(jnp.float32), Mp, tm)
    out = out[:, :M].reshape(Ne, B, Ho, Wo).transpose(1, 0, 2, 3)
    return out


# ------------------------------ public forward --------------------------------

def vq_encoder_forward(x, params):
    """x: (B, H, W) float32 -> (B, embedding_dim, H//8, W//8) float32."""
    B, H, W = x.shape
    n_layers = len(params["conv_bn"])
    if _fused_gather_bytes(B, H, W, n_layers) <= _FUSED_GATHER_BYTES_MAX:
        return _fused_small_forward(x, params)
    return _tiled_forward(x, params)


# ------------------------------ parameters ------------------------------------

def init_params(key, in_channels=1, hidden_dims=(16, 32, 64), embedding_dim=32):
    """Deterministic synthetic params matching nn.Conv2d / nn.BatchNorm2d shapes."""
    params = {"conv_bn": [], "final": None}
    c = in_channels
    for h in hidden_dims:
        key, kw_, kb_ = jax.random.split(key, 3)
        fan_in = c * 4 * 4
        bound = 1.0 / float(fan_in) ** 0.5
        w = jax.random.uniform(kw_, (h, c, 4, 4), jnp.float32, -bound, bound)
        b = jax.random.uniform(kb_, (h,), jnp.float32, -bound, bound)
        gamma = jnp.ones((h,), jnp.float32)   # BatchNorm2d default init
        beta = jnp.zeros((h,), jnp.float32)
        params["conv_bn"].append((w, b, gamma, beta))
        c = h
    key, kw_, kb_ = jax.random.split(key, 3)
    bound = 1.0 / float(c) ** 0.5
    wf = jax.random.uniform(kw_, (embedding_dim, c, 1, 1), jnp.float32, -bound, bound)
    bf = jax.random.uniform(kb_, (embedding_dim,), jnp.float32, -bound, bound)
    params["final"] = (wf, bf)
    return params


if __name__ == "__main__":
    key = jax.random.PRNGKey(0)
    key, kx, kp = jax.random.split(key, 3)

    # Small config: in_channels=1 (forced by unsqueeze), hidden_dims=(16,32,64), embedding=32
    params = init_params(kp, in_channels=1, hidden_dims=(16, 32, 64), embedding_dim=32)

    # Input (B, H, W) = (2, 16, 16); the forward unsqueezes the channel dim itself.
    x = jax.random.normal(kx, (2, 16, 16), dtype=jnp.float32)

    # Default path at this size: the single fully fused pallas_call.
    out = jax.block_until_ready(jax.jit(vq_encoder_forward)(x, params))
    assert out.shape == (2, 32, 2, 2), out.shape
    assert out.dtype == jnp.float32
    assert bool(jnp.all(jnp.isfinite(out)))

    # Also exercise the tiled multi-kernel path (used for larger images) and cross-check.
    out_tiled = jax.block_until_ready(jax.jit(_tiled_forward)(x, params))
    assert out_tiled.shape == out.shape
    max_diff = float(jnp.max(jnp.abs(out - out_tiled)))
    assert max_diff < 0.3, max_diff   # bf16-vs-f32 BN application tolerance

    print("KERNEL_OK")
</pallas_src>

<mosaic_0001>
module attributes {stable_mosaic.version = 11 : i64} {
  func.func @_fused_small_kernel(%arg0: i32, %arg1: memref<1x512xbf16, #tpu.memory_space<vmem>>, %arg2: memref<16x512x128xbf16, #tpu.memory_space<vmem>>, %arg3: memref<16x16xbf16, #tpu.memory_space<vmem>>, %arg4: memref<16x1xf32, #tpu.memory_space<vmem>>, %arg5: memref<16x1xf32, #tpu.memory_space<vmem>>, %arg6: memref<16x1xf32, #tpu.memory_space<vmem>>, %arg7: memref<16x128x32xbf16, #tpu.memory_space<vmem>>, %arg8: memref<32x256xbf16, #tpu.memory_space<vmem>>, %arg9: memref<32x1xf32, #tpu.memory_space<vmem>>, %arg10: memref<32x1xf32, #tpu.memory_space<vmem>>, %arg11: memref<32x1xf32, #tpu.memory_space<vmem>>, %arg12: memref<16x32x8xbf16, #tpu.memory_space<vmem>>, %arg13: memref<64x512xbf16, #tpu.memory_space<vmem>>, %arg14: memref<64x1xf32, #tpu.memory_space<vmem>>, %arg15: memref<64x1xf32, #tpu.memory_space<vmem>>, %arg16: memref<64x1xf32, #tpu.memory_space<vmem>>, %arg17: memref<32x64xbf16, #tpu.memory_space<vmem>>, %arg18: memref<32x1xf32, #tpu.memory_space<vmem>>, %arg19: memref<32x8xf32, #tpu.memory_space<vmem>>) attributes {dimension_semantics = [#tpu.dimension_semantics<arbitrary>], iteration_bounds = array<i64: 1>, scalar_prefetch = 0 : i64, scratch_operands = 0 : i64, tpu.core_type = #tpu.core_type<tc>, window_params = [{pipeline_mode = #tpu.pipeline_mode<synchronous>, transform_indices = @transform_0, window_bounds = array<i64: 1, 512>}, {pipeline_mode = #tpu.pipeline_mode<synchronous>, transform_indices = @transform_1, window_bounds = array<i64: 16, 512, 128>}, {pipeline_mode = #tpu.pipeline_mode<synchronous>, transform_indices = @transform_2, window_bounds = array<i64: 16, 16>}, {pipeline_mode = #tpu.pipeline_mode<synchronous>, transform_indices = @transform_3, window_bounds = array<i64: 16, 1>}, {pipeline_mode = #tpu.pipeline_mode<synchronous>, transform_indices = @transform_4, window_bounds = array<i64: 16, 1>}, {pipeline_mode = #tpu.pipeline_mode<synchronous>, transform_indices = @transform_5, window_bounds = array<i64: 16, 1>}, {pipeline_mode = #tpu.pipeline_mode<synchronous>, transform_indices = @transform_6, window_bounds = array<i64: 16, 128, 32>}, {pipeline_mode = #tpu.pipeline_mode<synchronous>, transform_indices = @transform_7, window_bounds = array<i64: 32, 256>}, {pipeline_mode = #tpu.pipeline_mode<synchronous>, transform_indices = @transform_8, window_bounds = array<i64: 32, 1>}, {pipeline_mode = #tpu.pipeline_mode<synchronous>, transform_indices = @transform_9, window_bounds = array<i64: 32, 1>}, {pipeline_mode = #tpu.pipeline_mode<synchronous>, transform_indices = @transform_10, window_bounds = array<i64: 32, 1>}, {pipeline_mode = #tpu.pipeline_mode<synchronous>, transform_indices = @transform_11, window_bounds = array<i64: 16, 32, 8>}, {pipeline_mode = #tpu.pipeline_mode<synchronous>, transform_indices = @transform_12, window_bounds = array<i64: 64, 512>}, {pipeline_mode = #tpu.pipeline_mode<synchronous>, transform_indices = @transform_13, window_bounds = array<i64: 64, 1>}, {pipeline_mode = #tpu.pipeline_mode<synchronous>, transform_indices = @transform_14, window_bounds = array<i64: 64, 1>}, {pipeline_mode = #tpu.pipeline_mode<synchronous>, transform_indices = @transform_15, window_bounds = array<i64: 64, 1>}, {pipeline_mode = #tpu.pipeline_mode<synchronous>, transform_indices = @transform_16, window_bounds = array<i64: 32, 64>}, {pipeline_mode = #tpu.pipeline_mode<synchronous>, transform_indices = @transform_17, window_bounds = array<i64: 32, 1>}, {pipeline_mode = #tpu.pipeline_mode<synchronous>, transform_indices = @transform_18, window_bounds = array<i64: 32, 8>}]} {
    %c0 = arith.constant 0 : index
    %c0_0 = arith.constant 0 : index
    %0 = vector.load %arg1[%c0, %c0_0] : memref<1x512xbf16, #tpu.memory_space<vmem>>, vector<1x512xbf16>
    %c0_1 = arith.constant 0 : index
    %c0_2 = arith.constant 0 : index
    %c0_3 = arith.constant 0 : index
    %1 = vector.load %arg2[%c0_1, %c0_2, %c0_3] : memref<16x512x128xbf16, #tpu.memory_space<vmem>>, vector<1x512x128xbf16>
    %2 = vector.shape_cast %1 : vector<1x512x128xbf16> to vector<512x128xbf16>
    %cst = arith.constant dense<0.000000e+00> : vector<1x128xf32>
    %3 = tpu.matmul %0, %2, %cst {dimension_numbers = #tpu.dot_dimension_numbers<[1], [0], [0], [1], [0, 0, 1, 1], [], []>} : vector<1x512xbf16>, vector<512x128xbf16>, vector<1x128xf32> -> vector<1x128xf32>
    %c1 = arith.constant 1 : index
    %c0_4 = arith.constant 0 : index
    %c0_5 = arith.constant 0 : index
    %4 = vector.load %arg2[%c1, %c0_4, %c0_5] : memref<16x512x128xbf16, #tpu.memory_space<vmem>>, vector<1x512x128xbf16>
    %5 = vector.shape_cast %4 : vector<1x512x128xbf16> to vector<512x128xbf16>
    %cst_6 = arith.constant dense<0.000000e+00> : vector<1x128xf32>
    %6 = tpu.matmul %0, %5, %cst_6 {dimension_numbers = #tpu.dot_dimension_numbers<[1], [0], [0], [1], [0, 0, 1, 1], [], []>} : vector<1x512xbf16>, vector<512x128xbf16>, vector<1x128xf32> -> vector<1x128xf32>
    %c2 = arith.constant 2 : index
    %c0_7 = arith.constant 0 : index
    %c0_8 = arith.constant 0 : index
    %7 = vector.load %arg2[%c2, %c0_7, %c0_8] : memref<16x512x128xbf16, #tpu.memory_space<vmem>>, vector<1x512x128xbf16>
    %8 = vector.shape_cast %7 : vector<1x512x128xbf16> to vector<512x128xbf16>
    %cst_9 = arith.constant dense<0.000000e+00> : vector<1x128xf32>
    %9 = tpu.matmul %0, %8, %cst_9 {dimension_numbers = #tpu.dot_dimension_numbers<[1], [0], [0], [1], [0, 0, 1, 1], [], []>} : vector<1x512xbf16>, vector<512x128xbf16>, vector<1x128xf32> -> vector<1x128xf32>
    %c3 = arith.constant 3 : index
    %c0_10 = arith.constant 0 : index
    %c0_11 = arith.constant 0 : index
    %10 = vector.load %arg2[%c3, %c0_10, %c0_11] : memref<16x512x128xbf16, #tpu.memory_space<vmem>>, vector<1x512x128xbf16>
    %11 = vector.shape_cast %10 : vector<1x512x128xbf16> to vector<512x128xbf16>
    %cst_12 = arith.constant dense<0.000000e+00> : vector<1x128xf32>
    %12 = tpu.matmul %0, %11, %cst_12 {dimension_numbers = #tpu.dot_dimension_numbers<[1], [0], [0], [1], [0, 0, 1, 1], [], []>} : vector<1x512xbf16>, vector<512x128xbf16>, vector<1x128xf32> -> vector<1x128xf32>
    %c4 = arith.constant 4 : index
    %c0_13 = arith.constant 0 : index
    %c0_14 = arith.constant 0 : index
    %13 = vector.load %arg2[%c4, %c0_13, %c0_14] : memref<16x512x128xbf16, #tpu.memory_space<vmem>>, vector<1x512x128xbf16>
    %14 = vector.shape_cast %13 : vector<1x512x128xbf16> to vector<512x128xbf16>
    %cst_15 = arith.constant dense<0.000000e+00> : vector<1x128xf32>
    %15 = tpu.matmul %0, %14, %cst_15 {dimension_numbers = #tpu.dot_dimension_numbers<[1], [0], [0], [1], [0, 0, 1, 1], [], []>} : vector<1x512xbf16>, vector<512x128xbf16>, vector<1x128xf32> -> vector<1x128xf32>
    %c5 = arith.constant 5 : index
    %c0_16 = arith.constant 0 : index
    %c0_17 = arith.constant 0 : index
    %16 = vector.load %arg2[%c5, %c0_16, %c0_17] : memref<16x512x128xbf16, #tpu.memory_space<vmem>>, vector<1x512x128xbf16>
    %17 = vector.shape_cast %16 : vector<1x512x128xbf16> to vector<512x128xbf16>
    %cst_18 = arith.constant dense<0.000000e+00> : vector<1x128xf32>
    %18 = tpu.matmul %0, %17, %cst_18 {dimension_numbers = #tpu.dot_dimension_numbers<[1], [0], [0], [1], [0, 0, 1, 1], [], []>} : vector<1x512xbf16>, vector<512x128xbf16>, vector<1x128xf32> -> vector<1x128xf32>
    %c6 = arith.constant 6 : index
    %c0_19 = arith.constant 0 : index
    %c0_20 = arith.constant 0 : index
    %19 = vector.load %arg2[%c6, %c0_19, %c0_20] : memref<16x512x128xbf16, #tpu.memory_space<vmem>>, vector<1x512x128xbf16>
    %20 = vector.shape_cast %19 : vector<1x512x128xbf16> to vector<512x128xbf16>
    %cst_21 = arith.constant dense<0.000000e+00> : vector<1x128xf32>
    %21 = tpu.matmul %0, %20, %cst_21 {dimension_numbers = #tpu.dot_dimension_numbers<[1], [0], [0], [1], [0, 0, 1, 1], [], []>} : vector<1x512xbf16>, vector<512x128xbf16>, vector<1x128xf32> -> vector<1x128xf32>
    %c7 = arith.constant 7 : index
    %c0_22 = arith.constant 0 : index
    %c0_23 = arith.constant 0 : index
    %22 = vector.load %arg2[%c7, %c0_22, %c0_23] : memref<16x512x128xbf16, #tpu.memory_space<vmem>>, vector<1x512x128xbf16>
    %23 = vector.shape_cast %22 : vector<1x512x128xbf16> to vector<512x128xbf16>
    %cst_24 = arith.constant dense<0.000000e+00> : vector<1x128xf32>
    %24 = tpu.matmul %0, %23, %cst_24 {dimension_numbers = #tpu.dot_dimension_numbers<[1], [0], [0], [1], [0, 0, 1, 1], [], []>} : vector<1x512xbf16>, vector<512x128xbf16>, vector<1x128xf32> -> vector<1x128xf32>
    %c8 = arith.constant 8 : index
    %c0_25 = arith.constant 0 : index
    %c0_26 = arith.constant 0 : index
    %25 = vector.load %arg2[%c8, %c0_25, %c0_26] : memref<16x512x128xbf16, #tpu.memory_space<vmem>>, vector<1x512x128xbf16>
    %26 = vector.shape_cast %25 : vector<1x512x128xbf16> to vector<512x128xbf16>
    %cst_27 = arith.constant dense<0.000000e+00> : vector<1x128xf32>
    %27 = tpu.matmul %0, %26, %cst_27 {dimension_numbers = #tpu.dot_dimension_numbers<[1], [0], [0], [1], [0, 0, 1, 1], [], []>} : vector<1x512xbf16>, vector<512x128xbf16>, vector<1x128xf32> -> vector<1x128xf32>
    %c9 = arith.constant 9 : index
    %c0_28 = arith.constant 0 : index
    %c0_29 = arith.constant 0 : index
    %28 = vector.load %arg2[%c9, %c0_28, %c0_29] : memref<16x512x128xbf16, #tpu.memory_space<vmem>>, vector<1x512x128xbf16>
    %29 = vector.shape_cast %28 : vector<1x512x128xbf16> to vector<512x128xbf16>
    %cst_30 = arith.constant dense<0.000000e+00> : vector<1x128xf32>
    %30 = tpu.matmul %0, %29, %cst_30 {dimension_numbers = #tpu.dot_dimension_numbers<[1], [0], [0], [1], [0, 0, 1, 1], [], []>} : vector<1x512xbf16>, vector<512x128xbf16>, vector<1x128xf32> -> vector<1x128xf32>
    %c10 = arith.constant 10 : index
    %c0_31 = arith.constant 0 : index
    %c0_32 = arith.constant 0 : index
    %31 = vector.load %arg2[%c10, %c0_31, %c0_32] : memref<16x512x128xbf16, #tpu.memory_space<vmem>>, vector<1x512x128xbf16>
    %32 = vector.shape_cast %31 : vector<1x512x128xbf16> to vector<512x128xbf16>
    %cst_33 = arith.constant dense<0.000000e+00> : vector<1x128xf32>
    %33 = tpu.matmul %0, %32, %cst_33 {dimension_numbers = #tpu.dot_dimension_numbers<[1], [0], [0], [1], [0, 0, 1, 1], [], []>} : vector<1x512xbf16>, vector<512x128xbf16>, vector<1x128xf32> -> vector<1x128xf32>
    %c11 = arith.constant 11 : index
    %c0_34 = arith.constant 0 : index
    %c0_35 = arith.constant 0 : index
    %34 = vector.load %arg2[%c11, %c0_34, %c0_35] : memref<16x512x128xbf16, #tpu.memory_space<vmem>>, vector<1x512x128xbf16>
    %35 = vector.shape_cast %34 : vector<1x512x128xbf16> to vector<512x128xbf16>
    %cst_36 = arith.constant dense<0.000000e+00> : vector<1x128xf32>
    %36 = tpu.matmul %0, %35, %cst_36 {dimension_numbers = #tpu.dot_dimension_numbers<[1], [0], [0], [1], [0, 0, 1, 1], [], []>} : vector<1x512xbf16>, vector<512x128xbf16>, vector<1x128xf32> -> vector<1x128xf32>
    %c12 = arith.constant 12 : index
    %c0_37 = arith.constant 0 : index
    %c0_38 = arith.constant 0 : index
    %37 = vector.load %arg2[%c12, %c0_37, %c0_38] : memref<16x512x128xbf16, #tpu.memory_space<vmem>>, vector<1x512x128xbf16>
    %38 = vector.shape_cast %37 : vector<1x512x128xbf16> to vector<512x128xbf16>
    %cst_39 = arith.constant dense<0.000000e+00> : vector<1x128xf32>
    %39 = tpu.matmul %0, %38, %cst_39 {dimension_numbers = #tpu.dot_dimension_numbers<[1], [0], [0], [1], [0, 0, 1, 1], [], []>} : vector<1x512xbf16>, vector<512x128xbf16>, vector<1x128xf32> -> vector<1x128xf32>
    %c13 = arith.constant 13 : index
    %c0_40 = arith.constant 0 : index
    %c0_41 = arith.constant 0 : index
    %40 = vector.load %arg2[%c13, %c0_40, %c0_41] : memref<16x512x128xbf16, #tpu.memory_space<vmem>>, vector<1x512x128xbf16>
    %41 = vector.shape_cast %40 : vector<1x512x128xbf16> to vector<512x128xbf16>
    %cst_42 = arith.constant dense<0.000000e+00> : vector<1x128xf32>
    %42 = tpu.matmul %0, %41, %cst_42 {dimension_numbers = #tpu.dot_dimension_numbers<[1], [0], [0], [1], [0, 0, 1, 1], [], []>} : vector<1x512xbf16>, vector<512x128xbf16>, vector<1x128xf32> -> vector<1x128xf32>
    %c14 = arith.constant 14 : index
    %c0_43 = arith.constant 0 : index
    %c0_44 = arith.constant 0 : index
    %43 = vector.load %arg2[%c14, %c0_43, %c0_44] : memref<16x512x128xbf16, #tpu.memory_space<vmem>>, vector<1x512x128xbf16>
    %44 = vector.shape_cast %43 : vector<1x512x128xbf16> to vector<512x128xbf16>
    %cst_45 = arith.constant dense<0.000000e+00> : vector<1x128xf32>
    %45 = tpu.matmul %0, %44, %cst_45 {dimension_numbers = #tpu.dot_dimension_numbers<[1], [0], [0], [1], [0, 0, 1, 1], [], []>} : vector<1x512xbf16>, vector<512x128xbf16>, vector<1x128xf32> -> vector<1x128xf32>
    %c15 = arith.constant 15 : index
    %c0_46 = arith.constant 0 : index
    %c0_47 = arith.constant 0 : index
    %46 = vector.load %arg2[%c15, %c0_46, %c0_47] : memref<16x512x128xbf16, #tpu.memory_space<vmem>>, vector<1x512x128xbf16>
    %47 = vector.shape_cast %46 : vector<1x512x128xbf16> to vector<512x128xbf16>
    %cst_48 = arith.constant dense<0.000000e+00> : vector<1x128xf32>
    %48 = tpu.matmul %0, %47, %cst_48 {dimension_numbers = #tpu.dot_dimension_numbers<[1], [0], [0], [1], [0, 0, 1, 1], [], []>} : vector<1x512xbf16>, vector<512x128xbf16>, vector<1x128xf32> -> vector<1x128xf32>
    %49 = tpu.concatenate %3, %6, %9, %12, %15, %18, %21, %24, %27, %30, %33, %36, %39, %42, %45, %48 in 0 : vector<1x128xf32>, vector<1x128xf32>, vector<1x128xf32>, vector<1x128xf32>, vector<1x128xf32>, vector<1x128xf32>, vector<1x128xf32>, vector<1x128xf32>, vector<1x128xf32>, vector<1x128xf32>, vector<1x128xf32>, vector<1x128xf32>, vector<1x128xf32>, vector<1x128xf32>, vector<1x128xf32>, vector<1x128xf32> -> vector<16x128xf32>
    %50 = arith.truncf %49 : vector<16x128xf32> to vector<16x128xbf16>
    %c0_49 = arith.constant 0 : index
    %c0_50 = arith.constant 0 : index
    %51 = vector.load %arg3[%c0_49, %c0_50] : memref<16x16xbf16, #tpu.memory_space<vmem>>, vector<16x16xbf16>
    %cst_51 = arith.constant dense<0.000000e+00> : vector<16x128xf32>
    %52 = tpu.matmul %51, %50, %cst_51 {dimension_numbers = #tpu.dot_dimension_numbers<[1], [0], [0], [1], [0, 0, 1, 1], [], []>} : vector<16x16xbf16>, vector<16x128xbf16>, vector<16x128xf32> -> vector<16x128xf32>
    %c0_52 = arith.constant 0 : index
    %c0_53 = arith.constant 0 : index
    %53 = vector.load %arg4[%c0_52, %c0_53] : memref<16x1xf32, #tpu.memory_space<vmem>>, vector<16x1xf32>
    %54 = vector.broadcast %53 : vector<16x1xf32> to vector<16x128xf32>
    %55 = arith.addf %52, %54 : vector<16x128xf32>
    %cst_54 = arith.constant dense<0.000000e+00> : vector<16xf32>
    %56 = vector.multi_reduction <add>, %55, %cst_54 [1] : vector<16x128xf32> to vector<16xf32>
    %57 = vector.shape_cast %56 : vector<16xf32> to vector<16x1xf32>
    %cst_55 = arith.constant 1.280000e+02 : f32
    %58 = vector.broadcast %cst_55 : f32 to vector<16x1xf32>
    %59 = arith.divf %57, %58 : vector<16x1xf32>
    %60 = vector.broadcast %59 : vector<16x1xf32> to vector<16x128xf32>
    %61 = arith.subf %55, %60 : vector<16x128xf32>
    %62 = arith.mulf %61, %61 : vector<16x128xf32>
    %cst_56 = arith.constant dense<0.000000e+00> : vector<16xf32>
    %63 = vector.multi_reduction <add>, %62, %cst_56 [1] : vector<16x128xf32> to vector<16xf32>
    %64 = vector.shape_cast %63 : vector<16xf32> to vector<16x1xf32>
    %cst_57 = arith.constant 1.280000e+02 : f32
    %65 = vector.broadcast %cst_57 : f32 to vector<16x1xf32>
    %66 = arith.divf %64, %65 : vector<16x1xf32>
    %c0_58 = arith.constant 0 : index
    %c0_59 = arith.constant 0 : index
    %67 = vector.load %arg5[%c0_58, %c0_59] : memref<16x1xf32, #tpu.memory_space<vmem>>, vector<16x1xf32>
    %cst_60 = arith.constant 9.99999974E-6 : f32
    %68 = vector.broadcast %cst_60 : f32 to vector<16x1xf32>
    %69 = arith.addf %66, %68 : vector<16x1xf32>
    %70 = math.rsqrt %69 : vector<16x1xf32>
    %71 = arith.mulf %67, %70 : vector<16x1xf32>
    %c0_61 = arith.constant 0 : index
    %c0_62 = arith.constant 0 : index
    %72 = vector.load %arg6[%c0_61, %c0_62] : memref<16x1xf32, #tpu.memory_space<vmem>>, vector<16x1xf32>
    %73 = arith.mulf %59, %71 : vector<16x1xf32>
    %74 = arith.subf %72, %73 : vector<16x1xf32>
    %75 = vector.broadcast %71 : vector<16x1xf32> to vector<16x128xf32>
    %76 = arith.mulf %55, %75 : vector<16x128xf32>
    %77 = vector.broadcast %74 : vector<16x1xf32> to vector<16x128xf32>
    %78 = arith.addf %76, %77 : vector<16x128xf32>
    %cst_63 = arith.constant 0.000000e+00 : f32
    %79 = vector.broadcast %cst_63 : f32 to vector<16x128xf32>
    %80 = arith.maximumf %78, %79 : vector<16x128xf32>
    %81 = arith.truncf %80 : vector<16x128xf32> to vector<16x128xbf16>
    %c0_64 = arith.constant 0 : index
    %c0_65 = arith.constant 0 : index
    %c0_66 = arith.constant 0 : index
    %82 = vector.load %arg7[%c0_64, %c0_65, %c0_66] : memref<16x128x32xbf16, #tpu.memory_space<vmem>>, vector<1x128x32xbf16>
    %83 = vector.shape_cast %82 : vector<1x128x32xbf16> to vector<128x32xbf16>
    %cst_67 = arith.constant dense<0.000000e+00> : vector<16x32xf32>
    %84 = tpu.matmul %81, %83, %cst_67 {dimension_numbers = #tpu.dot_dimension_numbers<[1], [0], [0], [1], [0, 0, 1, 1], [], []>} : vector<16x128xbf16>, vector<128x32xbf16>, vector<16x32xf32> -> vector<16x32xf32>
    %c1_68 = arith.constant 1 : index
    %c0_69 = arith.constant 0 : index
    %c0_70 = arith.constant 0 : index
    %85 = vector.load %arg7[%c1_68, %c0_69, %c0_70] : memref<16x128x32xbf16, #tpu.memory_space<vmem>>, vector<1x128x32xbf16>
    %86 = vector.shape_cast %85 : vector<1x128x32xbf16> to vector<128x32xbf16>
    %cst_71 = arith.constant dense<0.000000e+00> : vector<16x32xf32>
    %87 = tpu.matmul %81, %86, %cst_71 {dimension_numbers = #tpu.dot_dimension_numbers<[1], [0], [0], [1], [0, 0, 1, 1], [], []>} : vector<16x128xbf16>, vector<128x32xbf16>, vector<16x32xf32> -> vector<16x32xf32>
    %c2_72 = arith.constant 2 : index
    %c0_73 = arith.constant 0 : index
    %c0_74 = arith.constant 0 : index
    %88 = vector.load %arg7[%c2_72, %c0_73, %c0_74] : memref<16x128x32xbf16, #tpu.memory_space<vmem>>, vector<1x128x32xbf16>
    %89 = vector.shape_cast %88 : vector<1x128x32xbf16> to vector<128x32xbf16>
    %cst_75 = arith.constant dense<0.000000e+00> : vector<16x32xf32>
    %90 = tpu.matmul %81, %89, %cst_75 {dimension_numbers = #tpu.dot_dimension_numbers<[1], [0], [0], [1], [0, 0, 1, 1], [], []>} : vector<16x128xbf16>, vector<128x32xbf16>, vector<16x32xf32> -> vector<16x32xf32>
    %c3_76 = arith.constant 3 : index
    %c0_77 = arith.constant 0 : index
    %c0_78 = arith.constant 0 : index
    %91 = vector.load %arg7[%c3_76, %c0_77, %c0_78] : memref<16x128x32xbf16, #tpu.memory_space<vmem>>, vector<1x128x32xbf16>
    %92 = vector.shape_cast %91 : vector<1x128x32xbf16> to vector<128x32xbf16>
    %cst_79 = arith.constant dense<0.000000e+00> : vector<16x32xf32>
    %93 = tpu.matmul %81, %92, %cst_79 {dimension_numbers = #tpu.dot_dimension_numbers<[1], [0], [0], [1], [0, 0, 1, 1], [], []>} : vector<16x128xbf16>, vector<128x32xbf16>, vector<16x32xf32> -> vector<16x32xf32>
    %c4_80 = arith.constant 4 : index
    %c0_81 = arith.constant 0 : index
    %c0_82 = arith.constant 0 : index
    %94 = vector.load %arg7[%c4_80, %c0_81, %c0_82] : memref<16x128x32xbf16, #tpu.memory_space<vmem>>, vector<1x128x32xbf16>
    %95 = vector.shape_cast %94 : vector<1x128x32xbf16> to vector<128x32xbf16>
    %cst_83 = arith.constant dense<0.000000e+00> : vector<16x32xf32>
    %96 = tpu.matmul %81, %95, %cst_83 {dimension_numbers = #tpu.dot_dimension_numbers<[1], [0], [0], [1], [0, 0, 1, 1], [], []>} : vector<16x128xbf16>, vector<128x32xbf16>, vector<16x32xf32> -> vector<16x32xf32>
    %c5_84 = arith.constant 5 : index
    %c0_85 = arith.constant 0 : index
    %c0_86 = arith.constant 0 : index
    %97 = vector.load %arg7[%c5_84, %c0_85, %c0_86] : memref<16x128x32xbf16, #tpu.memory_space<vmem>>, vector<1x128x32xbf16>
    %98 = vector.shape_cast %97 : vector<1x128x32xbf16> to vector<128x32xbf16>
    %cst_87 = arith.constant dense<0.000000e+00> : vector<16x32xf32>
    %99 = tpu.matmul %81, %98, %cst_87 {dimension_numbers = #tpu.dot_dimension_numbers<[1], [0], [0], [1], [0, 0, 1, 1], [], []>} : vector<16x128xbf16>, vector<128x32xbf16>, vector<16x32xf32> -> vector<16x32xf32>
    %c6_88 = arith.constant 6 : index
    %c0_89 = arith.constant 0 : index
    %c0_90 = arith.constant 0 : index
    %100 = vector.load %arg7[%c6_88, %c0_89, %c0_90] : memref<16x128x32xbf16, #tpu.memory_space<vmem>>, vector<1x128x32xbf16>
    %101 = vector.shape_cast %100 : vector<1x128x32xbf16> to vector<128x32xbf16>
    %cst_91 = arith.constant dense<0.000000e+00> : vector<16x32xf32>
    %102 = tpu.matmul %81, %101, %cst_91 {dimension_numbers = #tpu.dot_dimension_numbers<[1], [0], [0], [1], [0, 0, 1, 1], [], []>} : vector<16x128xbf16>, vector<128x32xbf16>, vector<16x32xf32> -> vector<16x32xf32>
    %c7_92 = arith.constant 7 : index
    %c0_93 = arith.constant 0 : index
    %c0_94 = arith.constant 0 : index
    %103 = vector.load %arg7[%c7_92, %c0_93, %c0_94] : memref<16x128x32xbf16, #tpu.memory_space<vmem>>, vector<1x128x32xbf16>
    %104 = vector.shape_cast %103 : vector<1x128x32xbf16> to vector<128x32xbf16>
    %cst_95 = arith.constant dense<0.000000e+00> : vector<16x32xf32>
    %105 = tpu.matmul %81, %104, %cst_95 {dimension_numbers = #tpu.dot_dimension_numbers<[1], [0], [0], [1], [0, 0, 1, 1], [], []>} : vector<16x128xbf16>, vector<128x32xbf16>, vector<16x32xf32> -> vector<16x32xf32>
    %c8_96 = arith.constant 8 : index
    %c0_97 = arith.constant 0 : index
    %c0_98 = arith.constant 0 : index
    %106 = vector.load %arg7[%c8_96, %c0_97, %c0_98] : memref<16x128x32xbf16, #tpu.memory_space<vmem>>, vector<1x128x32xbf16>
    %107 = vector.shape_cast %106 : vector<1x128x32xbf16> to vector<128x32xbf16>
    %cst_99 = arith.constant dense<0.000000e+00> : vector<16x32xf32>
    %108 = tpu.matmul %81, %107, %cst_99 {dimension_numbers = #tpu.dot_dimension_numbers<[1], [0], [0], [1], [0, 0, 1, 1], [], []>} : vector<16x128xbf16>, vector<128x32xbf16>, vector<16x32xf32> -> vector<16x32xf32>
    %c9_100 = arith.constant 9 : index
    %c0_101 = arith.constant 0 : index
    %c0_102 = arith.constant 0 : index
    %109 = vector.load %arg7[%c9_100, %c0_101, %c0_102] : memref<16x128x32xbf16, #tpu.memory_space<vmem>>, vector<1x128x32xbf16>
    %110 = vector.shape_cast %109 : vector<1x128x32xbf16> to vector<128x32xbf16>
    %cst_103 = arith.constant dense<0.000000e+00> : vector<16x32xf32>
    %111 = tpu.matmul %81, %110, %cst_103 {dimension_numbers = #tpu.dot_dimension_numbers<[1], [0], [0], [1], [0, 0, 1, 1], [], []>} : vector<16x128xbf16>, vector<128x32xbf16>, vector<16x32xf32> -> vector<16x32xf32>
    %c10_104 = arith.constant 10 : index
    %c0_105 = arith.constant 0 : index
    %c0_106 = arith.constant 0 : index
    %112 = vector.load %arg7[%c10_104, %c0_105, %c0_106] : memref<16x128x32xbf16, #tpu.memory_space<vmem>>, vector<1x128x32xbf16>
    %113 = vector.shape_cast %112 : vector<1x128x32xbf16> to vector<128x32xbf16>
    %cst_107 = arith.constant dense<0.000000e+00> : vector<16x32xf32>
    %114 = tpu.matmul %81, %113, %cst_107 {dimension_numbers = #tpu.dot_dimension_numbers<[1], [0], [0], [1], [0, 0, 1, 1], [], []>} : vector<16x128xbf16>, vector<128x32xbf16>, vector<16x32xf32> -> vector<16x32xf32>
    %c11_108 = arith.constant 11 : index
    %c0_109 = arith.constant 0 : index
    %c0_110 = arith.constant 0 : index
    %115 = vector.load %arg7[%c11_108, %c0_109, %c0_110] : memref<16x128x32xbf16, #tpu.memory_space<vmem>>, vector<1x128x32xbf16>
    %116 = vector.shape_cast %115 : vector<1x128x32xbf16> to vector<128x32xbf16>
    %cst_111 = arith.constant dense<0.000000e+00> : vector<16x32xf32>
    %117 = tpu.matmul %81, %116, %cst_111 {dimension_numbers = #tpu.dot_dimension_numbers<[1], [0], [0], [1], [0, 0, 1, 1], [], []>} : vector<16x128xbf16>, vector<128x32xbf16>, vector<16x32xf32> -> vector<16x32xf32>
    %c12_112 = arith.constant 12 : index
    %c0_113 = arith.constant 0 : index
    %c0_114 = arith.constant 0 : index
    %118 = vector.load %arg7[%c12_112, %c0_113, %c0_114] : memref<16x128x32xbf16, #tpu.memory_space<vmem>>, vector<1x128x32xbf16>
    %119 = vector.shape_cast %118 : vector<1x128x32xbf16> to vector<128x32xbf16>
    %cst_115 = arith.constant dense<0.000000e+00> : vector<16x32xf32>
    %120 = tpu.matmul %81, %119, %cst_115 {dimension_numbers = #tpu.dot_dimension_numbers<[1], [0], [0], [1], [0, 0, 1, 1], [], []>} : vector<16x128xbf16>, vector<128x32xbf16>, vector<16x32xf32> -> vector<16x32xf32>
    %c13_116 = arith.constant 13 : index
    %c0_117 = arith.constant 0 : index
    %c0_118 = arith.constant 0 : index
    %121 = vector.load %arg7[%c13_116, %c0_117, %c0_118] : memref<16x128x32xbf16, #tpu.memory_space<vmem>>, vector<1x128x32xbf16>
    %122 = vector.shape_cast %121 : vector<1x128x32xbf16> to vector<128x32xbf16>
    %cst_119 = arith.constant dense<0.000000e+00> : vector<16x32xf32>
    %123 = tpu.matmul %81, %122, %cst_119 {dimension_numbers = #tpu.dot_dimension_numbers<[1], [0], [0], [1], [0, 0, 1, 1], [], []>} : vector<16x128xbf16>, vector<128x32xbf16>, vector<16x32xf32> -> vector<16x32xf32>
    %c14_120 = arith.constant 14 : index
    %c0_121 = arith.constant 0 : index
    %c0_122 = arith.constant 0 : index
    %124 = vector.load %arg7[%c14_120, %c0_121, %c0_122] : memref<16x128x32xbf16, #tpu.memory_space<vmem>>, vector<1x128x32xbf16>
    %125 = vector.shape_cast %124 : vector<1x128x32xbf16> to vector<128x32xbf16>
    %cst_123 = arith.constant dense<0.000000e+00> : vector<16x32xf32>
    %126 = tpu.matmul %81, %125, %cst_123 {dimension_numbers = #tpu.dot_dimension_numbers<[1], [0], [0], [1], [0, 0, 1, 1], [], []>} : vector<16x128xbf16>, vector<128x32xbf16>, vector<16x32xf32> -> vector<16x32xf32>
    %c15_124 = arith.constant 15 : index
    %c0_125 = arith.constant 0 : index
    %c0_126 = arith.constant 0 : index
    %127 = vector.load %arg7[%c15_124, %c0_125, %c0_126] : memref<16x128x32xbf16, #tpu.memory_space<vmem>>, vector<1x128x32xbf16>
    %128 = vector.shape_cast %127 : vector<1x128x32xbf16> to vector<128x32xbf16>
    %cst_127 = arith.constant dense<0.000000e+00> : vector<16x32xf32>
    %129 = tpu.matmul %81, %128, %cst_127 {dimension_numbers = #tpu.dot_dimension_numbers<[1], [0], [0], [1], [0, 0, 1, 1], [], []>} : vector<16x128xbf16>, vector<128x32xbf16>, vector<16x32xf32> -> vector<16x32xf32>
    %130 = tpu.concatenate %84, %87, %90, %93, %96, %99, %102, %105, %108, %111, %114, %117, %120, %123, %126, %129 in 0 : vector<16x32xf32>, vector<16x32xf32>, vector<16x32xf32>, vector<16x32xf32>, vector<16x32xf32>, vector<16x32xf32>, vector<16x32xf32>, vector<16x32xf32>, vector<16x32xf32>, vector<16x32xf32>, vector<16x32xf32>, vector<16x32xf32>, vector<16x32xf32>, vector<16x32xf32>, vector<16x32xf32>, vector<16x32xf32> -> vector<256x32xf32>
    %131 = arith.truncf %130 : vector<256x32xf32> to vector<256x32xbf16>
    %c0_128 = arith.constant 0 : index
    %c0_129 = arith.constant 0 : index
    %132 = vector.load %arg8[%c0_128, %c0_129] : memref<32x256xbf16, #tpu.memory_space<vmem>>, vector<32x256xbf16>
    %cst_130 = arith.constant dense<0.000000e+00> : vector<32x32xf32>
    %133 = tpu.matmul %132, %131, %cst_130 {dimension_numbers = #tpu.dot_dimension_numbers<[1], [0], [0], [1], [0, 0, 1, 1], [], []>} : vector<32x256xbf16>, vector<256x32xbf16>, vector<32x32xf32> -> vector<32x32xf32>
    %c0_131 = arith.constant 0 : index
    %c0_132 = arith.constant 0 : index
    %134 = vector.load %arg9[%c0_131, %c0_132] : memref<32x1xf32, #tpu.memory_space<vmem>>, vector<32x1xf32>
    %135 = vector.broadcast %134 : vector<32x1xf32> to vector<32x32xf32>
    %136 = arith.addf %133, %135 : vector<32x32xf32>
    %cst_133 = arith.constant dense<0.000000e+00> : vector<32xf32>
    %137 = vector.multi_reduction <add>, %136, %cst_133 [1] : vector<32x32xf32> to vector<32xf32>
    %138 = vector.shape_cast %137 : vector<32xf32> to vector<32x1xf32>
    %cst_134 = arith.constant 3.200000e+01 : f32
    %139 = vector.broadcast %cst_134 : f32 to vector<32x1xf32>
    %140 = arith.divf %138, %139 : vector<32x1xf32>
    %141 = vector.broadcast %140 : vector<32x1xf32> to vector<32x32xf32>
    %142 = arith.subf %136, %141 : vector<32x32xf32>
    %143 = arith.mulf %142, %142 : vector<32x32xf32>
    %cst_135 = arith.constant dense<0.000000e+00> : vector<32xf32>
    %144 = vector.multi_reduction <add>, %143, %cst_135 [1] : vector<32x32xf32> to vector<32xf32>
    %145 = vector.shape_cast %144 : vector<32xf32> to vector<32x1xf32>
    %cst_136 = arith.constant 3.200000e+01 : f32
    %146 = vector.broadcast %cst_136 : f32 to vector<32x1xf32>
    %147 = arith.divf %145, %146 : vector<32x1xf32>
    %c0_137 = arith.constant 0 : index
    %c0_138 = arith.constant 0 : index
    %148 = vector.load %arg10[%c0_137, %c0_138] : memref<32x1xf32, #tpu.memory_space<vmem>>, vector<32x1xf32>
    %cst_139 = arith.constant 9.99999974E-6 : f32
    %149 = vector.broadcast %cst_139 : f32 to vector<32x1xf32>
    %150 = arith.addf %147, %149 : vector<32x1xf32>
    %151 = math.rsqrt %150 : vector<32x1xf32>
    %152 = arith.mulf %148, %151 : vector<32x1xf32>
    %c0_140 = arith.constant 0 : index
    %c0_141 = arith.constant 0 : index
    %153 = vector.load %arg11[%c0_140, %c0_141] : memref<32x1xf32, #tpu.memory_space<vmem>>, vector<32x1xf32>
    %154 = arith.mulf %140, %152 : vector<32x1xf32>
    %155 = arith.subf %153, %154 : vector<32x1xf32>
    %156 = vector.broadcast %152 : vector<32x1xf32> to vector<32x32xf32>
    %157 = arith.mulf %136, %156 : vector<32x32xf32>
    %158 = vector.broadcast %155 : vector<32x1xf32> to vector<32x32xf32>
    %159 = arith.addf %157, %158 : vector<32x32xf32>
    %cst_142 = arith.constant 0.000000e+00 : f32
    %160 = vector.broadcast %cst_142 : f32 to vector<32x32xf32>
    %161 = arith.maximumf %159, %160 : vector<32x32xf32>
    %162 = arith.truncf %161 : vector<32x32xf32> to vector<32x32xbf16>
    %c0_143 = arith.constant 0 : index
    %c0_144 = arith.constant 0 : index
    %c0_145 = arith.constant 0 : index
    %163 = vector.load %arg12[%c0_143, %c0_144, %c0_145] : memref<16x32x8xbf16, #tpu.memory_space<vmem>>, vector<1x32x8xbf16>
    %164 = vector.shape_cast %163 : vector<1x32x8xbf16> to vector<32x8xbf16>
    %cst_146 = arith.constant dense<0.000000e+00> : vector<32x8xf32>
    %165 = tpu.matmul %162, %164, %cst_146 {dimension_numbers = #tpu.dot_dimension_numbers<[1], [0], [0], [1], [0, 0, 1, 1], [], []>} : vector<32x32xbf16>, vector<32x8xbf16>, vector<32x8xf32> -> vector<32x8xf32>
    %c1_147 = arith.constant 1 : index
    %c0_148 = arith.constant 0 : index
    %c0_149 = arith.constant 0 : index
    %166 = vector.load %arg12[%c1_147, %c0_148, %c0_149] : memref<16x32x8xbf16, #tpu.memory_space<vmem>>, vector<1x32x8xbf16>
    %167 = vector.shape_cast %166 : vector<1x32x8xbf16> to vector<32x8xbf16>
    %cst_150 = arith.constant dense<0.000000e+00> : vector<32x8xf32>
    %168 = tpu.matmul %162, %167, %cst_150 {dimension_numbers = #tpu.dot_dimension_numbers<[1], [0], [0], [1], [0, 0, 1, 1], [], []>} : vector<32x32xbf16>, vector<32x8xbf16>, vector<32x8xf32> -> vector<32x8xf32>
    %c2_151 = arith.constant 2 : index
    %c0_152 = arith.constant 0 : index
    %c0_153 = arith.constant 0 : index
    %169 = vector.load %arg12[%c2_151, %c0_152, %c0_153] : memref<16x32x8xbf16, #tpu.memory_space<vmem>>, vector<1x32x8xbf16>
    %170 = vector.shape_cast %169 : vector<1x32x8xbf16> to vector<32x8xbf16>
    %cst_154 = arith.constant dense<0.000000e+00> : vector<32x8xf32>
    %171 = tpu.matmul %162, %170, %cst_154 {dimension_numbers = #tpu.dot_dimension_numbers<[1], [0], [0], [1], [0, 0, 1, 1], [], []>} : vector<32x32xbf16>, vector<32x8xbf16>, vector<32x8xf32> -> vector<32x8xf32>
    %c3_155 = arith.constant 3 : index
    %c0_156 = arith.constant 0 : index
    %c0_157 = arith.constant 0 : index
    %172 = vector.load %arg12[%c3_155, %c0_156, %c0_157] : memref<16x32x8xbf16, #tpu.memory_space<vmem>>, vector<1x32x8xbf16>
    %173 = vector.shape_cast %172 : vector<1x32x8xbf16> to vector<32x8xbf16>
    %cst_158 = arith.constant dense<0.000000e+00> : vector<32x8xf32>
    %174 = tpu.matmul %162, %173, %cst_158 {dimension_numbers = #tpu.dot_dimension_numbers<[1], [0], [0], [1], [0, 0, 1, 1], [], []>} : vector<32x32xbf16>, vector<32x8xbf16>, vector<32x8xf32> -> vector<32x8xf32>
    %c4_159 = arith.constant 4 : index
    %c0_160 = arith.constant 0 : index
    %c0_161 = arith.constant 0 : index
    %175 = vector.load %arg12[%c4_159, %c0_160, %c0_161] : memref<16x32x8xbf16, #tpu.memory_space<vmem>>, vector<1x32x8xbf16>
    %176 = vector.shape_cast %175 : vector<1x32x8xbf16> to vector<32x8xbf16>
    %cst_162 = arith.constant dense<0.000000e+00> : vector<32x8xf32>
    %177 = tpu.matmul %162, %176, %cst_162 {dimension_numbers = #tpu.dot_dimension_numbers<[1], [0], [0], [1], [0, 0, 1, 1], [], []>} : vector<32x32xbf16>, vector<32x8xbf16>, vector<32x8xf32> -> vector<32x8xf32>
    %c5_163 = arith.constant 5 : index
    %c0_164 = arith.constant 0 : index
    %c0_165 = arith.constant 0 : index
    %178 = vector.load %arg12[%c5_163, %c0_164, %c0_165] : memref<16x32x8xbf16, #tpu.memory_space<vmem>>, vector<1x32x8xbf16>
    %179 = vector.shape_cast %178 : vector<1x32x8xbf16> to vector<32x8xbf16>
    %cst_166 = arith.constant dense<0.000000e+00> : vector<32x8xf32>
    %180 = tpu.matmul %162, %179, %cst_166 {dimension_numbers = #tpu.dot_dimension_numbers<[1], [0], [0], [1], [0, 0, 1, 1], [], []>} : vector<32x32xbf16>, vector<32x8xbf16>, vector<32x8xf32> -> vector<32x8xf32>
    %c6_167 = arith.constant 6 : index
    %c0_168 = arith.constant 0 : index
    %c0_169 = arith.constant 0 : index
    %181 = vector.load %arg12[%c6_167, %c0_168, %c0_169] : memref<16x32x8xbf16, #tpu.memory_space<vmem>>, vector<1x32x8xbf16>
    %182 = vector.shape_cast %181 : vector<1x32x8xbf16> to vector<32x8xbf16>
    %cst_170 = arith.constant dense<0.000000e+00> : vector<32x8xf32>
    %183 = tpu.matmul %162, %182, %cst_170 {dimension_numbers = #tpu.dot_dimension_numbers<[1], [0], [0], [1], [0, 0, 1, 1], [], []>} : vector<32x32xbf16>, vector<32x8xbf16>, vector<32x8xf32> -> vector<32x8xf32>
    %c7_171 = arith.constant 7 : index
    %c0_172 = arith.constant 0 : index
    %c0_173 = arith.constant 0 : index
    %184 = vector.load %arg12[%c7_171, %c0_172, %c0_173] : memref<16x32x8xbf16, #tpu.memory_space<vmem>>, vector<1x32x8xbf16>
    %185 = vector.shape_cast %184 : vector<1x32x8xbf16> to vector<32x8xbf16>
    %cst_174 = arith.constant dense<0.000000e+00> : vector<32x8xf32>
    %186 = tpu.matmul %162, %185, %cst_174 {dimension_numbers = #tpu.dot_dimension_numbers<[1], [0], [0], [1], [0, 0, 1, 1], [], []>} : vector<32x32xbf16>, vector<32x8xbf16>, vector<32x8xf32> -> vector<32x8xf32>
    %c8_175 = arith.constant 8 : index
    %c0_176 = arith.constant 0 : index
    %c0_177 = arith.constant 0 : index
    %187 = vector.load %arg12[%c8_175, %c0_176, %c0_177] : memref<16x32x8xbf16, #tpu.memory_space<vmem>>, vector<1x32x8xbf16>
    %188 = vector.shape_cast %187 : vector<1x32x8xbf16> to vector<32x8xbf16>
    %cst_178 = arith.constant dense<0.000000e+00> : vector<32x8xf32>
    %189 = tpu.matmul %162, %188, %cst_178 {dimension_numbers = #tpu.dot_dimension_numbers<[1], [0], [0], [1], [0, 0, 1, 1], [], []>} : vector<32x32xbf16>, vector<32x8xbf16>, vector<32x8xf32> -> vector<32x8xf32>
    %c9_179 = arith.constant 9 : index
    %c0_180 = arith.constant 0 : index
    %c0_181 = arith.constant 0 : index
    %190 = vector.load %arg12[%c9_179, %c0_180, %c0_181] : memref<16x32x8xbf16, #tpu.memory_space<vmem>>, vector<1x32x8xbf16>
    %191 = vector.shape_cast %190 : vector<1x32x8xbf16> to vector<32x8xbf16>
    %cst_182 = arith.constant dense<0.000000e+00> : vector<32x8xf32>
    %192 = tpu.matmul %162, %191, %cst_182 {dimension_numbers = #tpu.dot_dimension_numbers<[1], [0], [0], [1], [0, 0, 1, 1], [], []>} : vector<32x32xbf16>, vector<32x8xbf16>, vector<32x8xf32> -> vector<32x8xf32>
    %c10_183 = arith.constant 10 : index
    %c0_184 = arith.constant 0 : index
    %c0_185 = arith.constant 0 : index
    %193 = vector.load %arg12[%c10_183, %c0_184, %c0_185] : memref<16x32x8xbf16, #tpu.memory_space<vmem>>, vector<1x32x8xbf16>
    %194 = vector.shape_cast %193 : vector<1x32x8xbf16> to vector<32x8xbf16>
    %cst_186 = arith.constant dense<0.000000e+00> : vector<32x8xf32>
    %195 = tpu.matmul %162, %194, %cst_186 {dimension_numbers = #tpu.dot_dimension_numbers<[1], [0], [0], [1], [0, 0, 1, 1], [], []>} : vector<32x32xbf16>, vector<32x8xbf16>, vector<32x8xf32> -> vector<32x8xf32>
    %c11_187 = arith.constant 11 : index
    %c0_188 = arith.constant 0 : index
    %c0_189 = arith.constant 0 : index
    %196 = vector.load %arg12[%c11_187, %c0_188, %c0_189] : memref<16x32x8xbf16, #tpu.memory_space<vmem>>, vector<1x32x8xbf16>
    %197 = vector.shape_cast %196 : vector<1x32x8xbf16> to vector<32x8xbf16>
    %cst_190 = arith.constant dense<0.000000e+00> : vector<32x8xf32>
    %198 = tpu.matmul %162, %197, %cst_190 {dimension_numbers = #tpu.dot_dimension_numbers<[1], [0], [0], [1], [0, 0, 1, 1], [], []>} : vector<32x32xbf16>, vector<32x8xbf16>, vector<32x8xf32> -> vector<32x8xf32>
    %c12_191 = arith.constant 12 : index
    %c0_192 = arith.constant 0 : index
    %c0_193 = arith.constant 0 : index
    %199 = vector.load %arg12[%c12_191, %c0_192, %c0_193] : memref<16x32x8xbf16, #tpu.memory_space<vmem>>, vector<1x32x8xbf16>
    %200 = vector.shape_cast %199 : vector<1x32x8xbf16> to vector<32x8xbf16>
    %cst_194 = arith.constant dense<0.000000e+00> : vector<32x8xf32>
    %201 = tpu.matmul %162, %200, %cst_194 {dimension_numbers = #tpu.dot_dimension_numbers<[1], [0], [0], [1], [0, 0, 1, 1], [], []>} : vector<32x32xbf16>, vector<32x8xbf16>, vector<32x8xf32> -> vector<32x8xf32>
    %c13_195 = arith.constant 13 : index
    %c0_196 = arith.constant 0 : index
    %c0_197 = arith.constant 0 : index
    %202 = vector.load %arg12[%c13_195, %c0_196, %c0_197] : memref<16x32x8xbf16, #tpu.memory_space<vmem>>, vector<1x32x8xbf16>
    %203 = vector.shape_cast %202 : vector<1x32x8xbf16> to vector<32x8xbf16>
    %cst_198 = arith.constant dense<0.000000e+00> : vector<32x8xf32>
    %204 = tpu.matmul %162, %203, %cst_198 {dimension_numbers = #tpu.dot_dimension_numbers<[1], [0], [0], [1], [0, 0, 1, 1], [], []>} : vector<32x32xbf16>, vector<32x8xbf16>, vector<32x8xf32> -> vector<32x8xf32>
    %c14_199 = arith.constant 14 : index
    %c0_200 = arith.constant 0 : index
    %c0_201 = arith.constant 0 : index
    %205 = vector.load %arg12[%c14_199, %c0_200, %c0_201] : memref<16x32x8xbf16, #tpu.memory_space<vmem>>, vector<1x32x8xbf16>
    %206 = vector.shape_cast %205 : vector<1x32x8xbf16> to vector<32x8xbf16>
    %cst_202 = arith.constant dense<0.000000e+00> : vector<32x8xf32>
    %207 = tpu.matmul %162, %206, %cst_202 {dimension_numbers = #tpu.dot_dimension_numbers<[1], [0], [0], [1], [0, 0, 1, 1], [], []>} : vector<32x32xbf16>, vector<32x8xbf16>, vector<32x8xf32> -> vector<32x8xf32>
    %c15_203 = arith.constant 15 : index
    %c0_204 = arith.constant 0 : index
    %c0_205 = arith.constant 0 : index
    %208 = vector.load %arg12[%c15_203, %c0_204, %c0_205] : memref<16x32x8xbf16, #tpu.memory_space<vmem>>, vector<1x32x8xbf16>
    %209 = vector.shape_cast %208 : vector<1x32x8xbf16> to vector<32x8xbf16>
    %cst_206 = arith.constant dense<0.000000e+00> : vector<32x8xf32>
    %210 = tpu.matmul %162, %209, %cst_206 {dimension_numbers = #tpu.dot_dimension_numbers<[1], [0], [0], [1], [0, 0, 1, 1], [], []>} : vector<32x32xbf16>, vector<32x8xbf16>, vector<32x8xf32> -> vector<32x8xf32>
    %211 = tpu.concatenate %165, %168, %171, %174, %177, %180, %183, %186, %189, %192, %195, %198, %201, %204, %207, %210 in 0 : vector<32x8xf32>, vector<32x8xf32>, vector<32x8xf32>, vector<32x8xf32>, vector<32x8xf32>, vector<32x8xf32>, vector<32x8xf32>, vector<32x8xf32>, vector<32x8xf32>, vector<32x8xf32>, vector<32x8xf32>, vector<32x8xf32>, vector<32x8xf32>, vector<32x8xf32>, vector<32x8xf32>, vector<32x8xf32> -> vector<512x8xf32>
    %212 = arith.truncf %211 : vector<512x8xf32> to vector<512x8xbf16>
    %c0_207 = arith.constant 0 : index
    %c0_208 = arith.constant 0 : index
    %213 = vector.load %arg13[%c0_207, %c0_208] : memref<64x512xbf16, #tpu.memory_space<vmem>>, vector<64x512xbf16>
    %cst_209 = arith.constant dense<0.000000e+00> : vector<64x8xf32>
    %214 = tpu.matmul %213, %212, %cst_209 {dimension_numbers = #tpu.dot_dimension_numbers<[1], [0], [0], [1], [0, 0, 1, 1], [], []>} : vector<64x512xbf16>, vector<512x8xbf16>, vector<64x8xf32> -> vector<64x8xf32>
    %c0_210 = arith.constant 0 : index
    %c0_211 = arith.constant 0 : index
    %215 = vector.load %arg14[%c0_210, %c0_211] : memref<64x1xf32, #tpu.memory_space<vmem>>, vector<64x1xf32>
    %216 = vector.broadcast %215 : vector<64x1xf32> to vector<64x8xf32>
    %217 = arith.addf %214, %216 : vector<64x8xf32>
    %cst_212 = arith.constant dense<0.000000e+00> : vector<64xf32>
    %218 = vector.multi_reduction <add>, %217, %cst_212 [1] : vector<64x8xf32> to vector<64xf32>
    %219 = vector.shape_cast %218 : vector<64xf32> to vector<64x1xf32>
    %cst_213 = arith.constant 8.000000e+00 : f32
    %220 = vector.broadcast %cst_213 : f32 to vector<64x1xf32>
    %221 = arith.divf %219, %220 : vector<64x1xf32>
    %222 = vector.broadcast %221 : vector<64x1xf32> to vector<64x8xf32>
    %223 = arith.subf %217, %222 : vector<64x8xf32>
    %224 = arith.mulf %223, %223 : vector<64x8xf32>
    %cst_214 = arith.constant dense<0.000000e+00> : vector<64xf32>
    %225 = vector.multi_reduction <add>, %224, %cst_214 [1] : vector<64x8xf32> to vector<64xf32>
    %226 = vector.shape_cast %225 : vector<64xf32> to vector<64x1xf32>
    %cst_215 = arith.constant 8.000000e+00 : f32
    %227 = vector.broadcast %cst_215 : f32 to vector<64x1xf32>
    %228 = arith.divf %226, %227 : vector<64x1xf32>
    %c0_216 = arith.constant 0 : index
    %c0_217 = arith.constant 0 : index
    %229 = vector.load %arg15[%c0_216, %c0_217] : memref<64x1xf32, #tpu.memory_space<vmem>>, vector<64x1xf32>
    %cst_218 = arith.constant 9.99999974E-6 : f32
    %230 = vector.broadcast %cst_218 : f32 to vector<64x1xf32>
    %231 = arith.addf %228, %230 : vector<64x1xf32>
    %232 = math.rsqrt %231 : vector<64x1xf32>
    %233 = arith.mulf %229, %232 : vector<64x1xf32>
    %c0_219 = arith.constant 0 : index
    %c0_220 = arith.constant 0 : index
    %234 = vector.load %arg16[%c0_219, %c0_220] : memref<64x1xf32, #tpu.memory_space<vmem>>, vector<64x1xf32>
    %235 = arith.mulf %221, %233 : vector<64x1xf32>
    %236 = arith.subf %234, %235 : vector<64x1xf32>
    %237 = vector.broadcast %233 : vector<64x1xf32> to vector<64x8xf32>
    %238 = arith.mulf %217, %237 : vector<64x8xf32>
    %239 = vector.broadcast %236 : vector<64x1xf32> to vector<64x8xf32>
    %240 = arith.addf %238, %239 : vector<64x8xf32>
    %cst_221 = arith.constant 0.000000e+00 : f32
    %241 = vector.broadcast %cst_221 : f32 to vector<64x8xf32>
    %242 = arith.maximumf %240, %241 : vector<64x8xf32>
    %243 = arith.truncf %242 : vector<64x8xf32> to vector<64x8xbf16>
    %c0_222 = arith.constant 0 : index
    %c0_223 = arith.constant 0 : index
    %244 = vector.load %arg17[%c0_222, %c0_223] : memref<32x64xbf16, #tpu.memory_space<vmem>>, vector<32x64xbf16>
    %cst_224 = arith.constant dense<0.000000e+00> : vector<32x8xf32>
    %245 = tpu.matmul %244, %243, %cst_224 {dimension_numbers = #tpu.dot_dimension_numbers<[1], [0], [0], [1], [0, 0, 1, 1], [], []>} : vector<32x64xbf16>, vector<64x8xbf16>, vector<32x8xf32> -> vector<32x8xf32>
    %c0_225 = arith.constant 0 : index
    %c0_226 = arith.constant 0 : index
    %246 = vector.load %arg18[%c0_225, %c0_226] : memref<32x1xf32, #tpu.memory_space<vmem>>, vector<32x1xf32>
    %247 = vector.broadcast %246 : vector<32x1xf32> to vector<32x8xf32>
    %248 = arith.addf %245, %247 : vector<32x8xf32>
    %c0_227 = arith.constant 0 : index
    %c0_228 = arith.constant 0 : index
    %249 = vector.load %arg19[%c0_227, %c0_228] : memref<32x8xf32, #tpu.memory_space<vmem>>, vector<32x8xf32>
    tpu.vector_store %arg19[%c0_227, %c0_228], %248 {strides = array<i32>} : memref<32x8xf32, #tpu.memory_space<vmem>>, vector<32x8xf32>,
    return
  }
  func.func @transform_0(%arg0: i32) -> (i32, i32) {
    %c0_i32 = arith.constant 0 : i32
    %c0_i32_0 = arith.constant 0 : i32
    %c0_i32_1 = arith.constant 0 : i32
    return %c0_i32, %c0_i32_0 : i32, i32
  }
  func.func @transform_1(%arg0: i32) -> (i32, i32, i32) {
    %c0_i32 = arith.constant 0 : i32
    %c0_i32_0 = arith.constant 0 : i32
    %c0_i32_1 = arith.constant 0 : i32
    %c0_i32_2 = arith.constant 0 : i32
    return %c0_i32, %c0_i32_0, %c0_i32_1 : i32, i32, i32
  }
  func.func @transform_2(%arg0: i32) -> (i32, i32) {
    %c0_i32 = arith.constant 0 : i32
    %c0_i32_0 = arith.constant 0 : i32
    %c0_i32_1 = arith.constant 0 : i32
    return %c0_i32, %c0_i32_0 : i32, i32
  }
  func.func @transform_3(%arg0: i32) -> (i32, i32) {
    %c0_i32 = arith.constant 0 : i32
    %c0_i32_0 = arith.constant 0 : i32
    %c0_i32_1 = arith.constant 0 : i32
    return %c0_i32, %c0_i32_0 : i32, i32
  }
  func.func @transform_4(%arg0: i32) -> (i32, i32) {
    %c0_i32 = arith.constant 0 : i32
    %c0_i32_0 = arith.constant 0 : i32
    %c0_i32_1 = arith.constant 0 : i32
    return %c0_i32, %c0_i32_0 : i32, i32
  }
  func.func @transform_5(%arg0: i32) -> (i32, i32) {
    %c0_i32 = arith.constant 0 : i32
    %c0_i32_0 = arith.constant 0 : i32
    %c0_i32_1 = arith.constant 0 : i32
    return %c0_i32, %c0_i32_0 : i32, i32
  }
  func.func @transform_6(%arg0: i32) -> (i32, i32, i32) {
    %c0_i32 = arith.constant 0 : i32
    %c0_i32_0 = arith.constant 0 : i32
    %c0_i32_1 = arith.constant 0 : i32
    %c0_i32_2 = arith.constant 0 : i32
    return %c0_i32, %c0_i32_0, %c0_i32_1 : i32, i32, i32
  }
  func.func @transform_7(%arg0: i32) -> (i32, i32) {
    %c0_i32 = arith.constant 0 : i32
    %c0_i32_0 = arith.constant 0 : i32
    %c0_i32_1 = arith.constant 0 : i32
    return %c0_i32, %c0_i32_0 : i32, i32
  }
  func.func @transform_8(%arg0: i32) -> (i32, i32) {
    %c0_i32 = arith.constant 0 : i32
    %c0_i32_0 = arith.constant 0 : i32
    %c0_i32_1 = arith.constant 0 : i32
    return %c0_i32, %c0_i32_0 : i32, i32
  }
  func.func @transform_9(%arg0: i32) -> (i32, i32) {
    %c0_i32 = arith.constant 0 : i32
    %c0_i32_0 = arith.constant 0 : i32
    %c0_i32_1 = arith.constant 0 : i32
    return %c0_i32, %c0_i32_0 : i32, i32
  }
  func.func @transform_10(%arg0: i32) -> (i32, i32) {
    %c0_i32 = arith.constant 0 : i32
    %c0_i32_0 = arith.constant 0 : i32
    %c0_i32_1 = arith.constant 0 : i32
    return %c0_i32, %c0_i32_0 : i32, i32
  }
  func.func @transform_11(%arg0: i32) -> (i32, i32, i32) {
    %c0_i32 = arith.constant 0 : i32
    %c0_i32_0 = arith.constant 0 : i32
    %c0_i32_1 = arith.constant 0 : i32
    %c0_i32_2 = arith.constant 0 : i32
    return %c0_i32, %c0_i32_0, %c0_i32_1 : i32, i32, i32
  }
  func.func @transform_12(%arg0: i32) -> (i32, i32) {
    %c0_i32 = arith.constant 0 : i32
    %c0_i32_0 = arith.constant 0 : i32
    %c0_i32_1 = arith.constant 0 : i32
    return %c0_i32, %c0_i32_0 : i32, i32
  }
  func.func @transform_13(%arg0: i32) -> (i32, i32) {
    %c0_i32 = arith.constant 0 : i32
    %c0_i32_0 = arith.constant 0 : i32
    %c0_i32_1 = arith.constant 0 : i32
    return %c0_i32, %c0_i32_0 : i32, i32
  }
  func.func @transform_14(%arg0: i32) -> (i32, i32) {
    %c0_i32 = arith.constant 0 : i32
    %c0_i32_0 = arith.constant 0 : i32
    %c0_i32_1 = arith.constant 0 : i32
    return %c0_i32, %c0_i32_0 : i32, i32
  }
  func.func @transform_15(%arg0: i32) -> (i32, i32) {
    %c0_i32 = arith.constant 0 : i32
    %c0_i32_0 = arith.constant 0 : i32
    %c0_i32_1 = arith.constant 0 : i32
    return %c0_i32, %c0_i32_0 : i32, i32
  }
  func.func @transform_16(%arg0: i32) -> (i32, i32) {
    %c0_i32 = arith.constant 0 : i32
    %c0_i32_0 = arith.constant 0 : i32
    %c0_i32_1 = arith.constant 0 : i32
    return %c0_i32, %c0_i32_0 : i32, i32
  }
  func.func @transform_17(%arg0: i32) -> (i32, i32) {
    %c0_i32 = arith.constant 0 : i32
    %c0_i32_0 = arith.constant 0 : i32
    %c0_i32_1 = arith.constant 0 : i32
    return %c0_i32, %c0_i32_0 : i32, i32
  }
  func.func @transform_18(%arg0: i32) -> (i32, i32) {
    %c0_i32 = arith.constant 0 : i32
    %c0_i32_0 = arith.constant 0 : i32
    %c0_i32_1 = arith.constant 0 : i32
    return %c0_i32, %c0_i32_0 : i32, i32
  }
}

</mosaic_0001>

<llo_original>
// kernel: vq_encoder_forward.1
$region0: #{vq_encoder_forward.1}
  #allocation0 [shape = 'u32[]', space=smem, size = 0x4, offset = 0x4, fixed_abs, tag = 'smem constant byte address 0x4 - core index']
  #allocation1 [shape = 'u32[72,128]{1,0:T(1,128)}', space=vmem, size = 0x9000, scoped, tag = 'internal scratch']
  %s0 = inlined_call_operand.vmem [shape: bf16[1,512], index: 0, kind: input, shape index: {}]
  %s1 = inlined_call_operand.hbm [shape: bf16[16,512,128], index: 1, kind: input, shape index: {}]
  %s2 = inlined_call_operand.vmem [shape: bf16[16,16], index: 2, kind: input, shape index: {}]
  %s3 = inlined_call_operand.vmem [shape: f32[16,1], index: 3, kind: input, shape index: {}]
  %s4 = inlined_call_operand.vmem [shape: f32[16,1], index: 4, kind: input, shape index: {}]
  %s5 = inlined_call_operand.vmem [shape: f32[16,1], index: 5, kind: input, shape index: {}]
  %s6 = inlined_call_operand.hbm [shape: bf16[16,128,32], index: 6, kind: input, shape index: {}]
  %s7 = inlined_call_operand.vmem [shape: bf16[32,256], index: 7, kind: input, shape index: {}]
  %s8 = inlined_call_operand.vmem [shape: f32[32,1], index: 8, kind: input, shape index: {}]
  %s9 = inlined_call_operand.vmem [shape: f32[32,1], index: 9, kind: input, shape index: {}]
  %s10 = inlined_call_operand.vmem [shape: f32[32,1], index: 10, kind: input, shape index: {}]
  %s11 = inlined_call_operand.hbm [shape: bf16[16,32,8], index: 11, kind: input, shape index: {}]
  %s12 = inlined_call_operand.vmem [shape: bf16[64,512], index: 12, kind: input, shape index: {}]
  %s13 = inlined_call_operand.vmem [shape: f32[64,1], index: 13, kind: input, shape index: {}]
  %s14 = inlined_call_operand.vmem [shape: f32[64,1], index: 14, kind: input, shape index: {}]
  %s15 = inlined_call_operand.vmem [shape: f32[64,1], index: 15, kind: input, shape index: {}]
  %s16 = inlined_call_operand.vmem [shape: bf16[32,64], index: 16, kind: input, shape index: {}]
  %s17 = inlined_call_operand.vmem [shape: f32[32,1], index: 17, kind: input, shape index: {}]
  %s18 = inlined_call_operand.vmem [shape: f32[32,8], index: 18, kind: output, shape index: {}]
  %s19 = sld [smem:[#allocation0]]
  $region94: #{vq_encoder_forward.1} parent=0
    _
  %s21 = ssub.s32 1, %s19
  %s22 = scalar_select 0, %s21, %s19
  $region1: #{vq_encoder_forward.1} parent=0
    #allocation2 [shape = 'u8[2097152]{0}', space=vmem, size = 0x200000, scoped, tag = 'input window, operand 1, single buffered']
    #allocation3 [shape = 's32[1]{0}', space=sflag, size = 0x4, scoped, tag = 'scoped memory for vq_encoder_forward.1']
    #allocation4 [shape = 'u8[524288]{0}', space=vmem, size = 0x80000, scoped, tag = 'input window, operand 6, single buffered']
    #allocation5 [shape = 's32[1]{0}', space=sflag, size = 0x4, scoped, tag = 'scoped memory for vq_encoder_forward.1']
    #allocation6 [shape = 'u8[131072]{0}', space=vmem, size = 0x20000, scoped, tag = 'input window, operand 11, single buffered']
    %23 = vsyncpa [#allocation3], 0
    %24 = vsyncpa [#allocation5], 0
    // Predicated region
    $region2: #{vq_encoder_forward.1} parent=1 // pred_check
      _
    $region3: #{vq_encoder_forward.1} parent=1 // pred_check_branch
      %26 = sbr.rel (0) target = $region5
    $region4: #{vq_encoder_forward.1} parent=1 // pred_region
      _
    $region5: #{vq_encoder_forward.1} parent=1 // pred_fallthru
      _
    // Predicated region
    $region6: #{vq_encoder_forward.1} parent=1 // pred_check
      _
    $region7: #{vq_encoder_forward.1} parent=1 // pred_check_branch
      %28 = sbr.rel (0) target = $region9
    $region8: #{vq_encoder_forward.1} parent=1 // pred_region
      %30 = vsyncadd [#allocation3], 0
      %s31 = sshll.u32 %s1, 4
      %s32 = int_to_ptr.hbm [resolvable:$true] %s31
      %s33 = sshll.u32 [#allocation2], 4
      %s34 = int_to_ptr.vmem [resolvable:$true] %s33
      %39 = dma.hbm_to_vmem [thread:$0]  %s32, 65536, %s34, [#allocation3], 64, 64, 4
    $region9: #{vq_encoder_forward.1} parent=1 // pred_fallthru
      _
    // Predicated region
    $region10: #{vq_encoder_forward.1} parent=1 // pred_check
      _
    $region11: #{vq_encoder_forward.1} parent=1 // pred_check_branch
      %41 = sbr.rel (0) target = $region13
    $region12: #{vq_encoder_forward.1} parent=1 // pred_region
      _
    $region13: #{vq_encoder_forward.1} parent=1 // pred_fallthru
      _
    // Predicated region
    $region14: #{vq_encoder_forward.1} parent=1 // pred_check
      _
    $region15: #{vq_encoder_forward.1} parent=1 // pred_check_branch
      %43 = sbr.rel (0) target = $region17
    $region16: #{vq_encoder_forward.1} parent=1 // pred_region
      _
    $region17: #{vq_encoder_forward.1} parent=1 // pred_fallthru
      _
    // Predicated region
    $region18: #{vq_encoder_forward.1} parent=1 // pred_check
      _
    $region19: #{vq_encoder_forward.1} parent=1 // pred_check_branch
      %45 = sbr.rel (0) target = $region21
    $region20: #{vq_encoder_forward.1} parent=1 // pred_region
      _
    $region21: #{vq_encoder_forward.1} parent=1 // pred_fallthru
      _
    // Predicated region
    $region22: #{vq_encoder_forward.1} parent=1 // pred_check
      _
    $region23: #{vq_encoder_forward.1} parent=1 // pred_check_branch
      %47 = sbr.rel (0) target = $region25
    $region24: #{vq_encoder_forward.1} parent=1 // pred_region
      _
    $region25: #{vq_encoder_forward.1} parent=1 // pred_fallthru
      _
    // Predicated region
    $region26: #{vq_encoder_forward.1} parent=1 // pred_check
      _
    $region27: #{vq_encoder_forward.1} parent=1 // pred_check_branch
      %49 = sbr.rel (0) target = $region29
    $region28: #{vq_encoder_forward.1} parent=1 // pred_region
      %51 = vsyncadd [#allocation5], 0
      %s52 = sshll.u32 %s6, 4
      %s53 = int_to_ptr.hbm [resolvable:$true] %s52
      %s54 = sshll.u32 [#allocation4], 4
      %s55 = int_to_ptr.vmem [resolvable:$true] %s54
      %60 = dma.hbm_to_vmem [thread:$0]  %s53, 16384, %s55, [#allocation5], 64, 64, 4
    $region29: #{vq_encoder_forward.1} parent=1 // pred_fallthru
      _
    // Predicated region
    $region30: #{vq_encoder_forward.1} parent=1 // pred_check
      _
    $region31: #{vq_encoder_forward.1} parent=1 // pred_check_branch
      %62 = sbr.rel (0) target = $region33
    $region32: #{vq_encoder_forward.1} parent=1 // pred_region
      _
    $region33: #{vq_encoder_forward.1} parent=1 // pred_fallthru
      _
    // Predicated region
    $region34: #{vq_encoder_forward.1} parent=1 // pred_check
      _
    $region35: #{vq_encoder_forward.1} parent=1 // pred_check_branch
      %64 = sbr.rel (0) target = $region37
    $region36: #{vq_encoder_forward.1} parent=1 // pred_region
      _
    $region37: #{vq_encoder_forward.1} parent=1 // pred_fallthru
      _
    // Predicated region
    $region38: #{vq_encoder_forward.1} parent=1 // pred_check
      _
    $region39: #{vq_encoder_forward.1} parent=1 // pred_check_branch
      %66 = sbr.rel (0) target = $region41
    $region40: #{vq_encoder_forward.1} parent=1 // pred_region
      _
    $region41: #{vq_encoder_forward.1} parent=1 // pred_fallthru
      _
    // Predicated region
    $region42: #{vq_encoder_forward.1} parent=1 // pred_check
      _
    $region43: #{vq_encoder_forward.1} parent=1 // pred_check_branch
      %68 = sbr.rel (0) target = $region45
    $region44: #{vq_encoder_forward.1} parent=1 // pred_region
      _
    $region45: #{vq_encoder_forward.1} parent=1 // pred_fallthru
      _
    // Predicated region
    $region46: #{vq_encoder_forward.1} parent=1 // pred_check
      _
    $region47: #{vq_encoder_forward.1} parent=1 // pred_check_branch
      %70 = sbr.rel (0) target = $region49
    $region48: #{vq_encoder_forward.1} parent=1 // pred_region
      %72 = vsyncadd [#allocation5], 0
      %s73 = sshll.u32 %s11, 4
      %s74 = int_to_ptr.hbm [resolvable:$true] %s73
      %s75 = sshll.u32 [#allocation6], 4
      %s76 = int_to_ptr.vmem [resolvable:$true] %s75
      %81 = dma.hbm_to_vmem [thread:$0]  %s74, 4096, %s76, [#allocation5], 64, 64, 4
    $region49: #{vq_encoder_forward.1} parent=1 // pred_fallthru
      _
    // Predicated region
    $region50: #{vq_encoder_forward.1} parent=1 // pred_check
      _
    $region51: #{vq_encoder_forward.1} parent=1 // pred_check_branch
      %83 = sbr.rel (0) target = $region53
    $region52: #{vq_encoder_forward.1} parent=1 // pred_region
      _
    $region53: #{vq_encoder_forward.1} parent=1 // pred_fallthru
      _
    // Predicated region
    $region54: #{vq_encoder_forward.1} parent=1 // pred_check
      _
    $region55: #{vq_encoder_forward.1} parent=1 // pred_check_branch
      %85 = sbr.rel (0) target = $region57
    $region56: #{vq_encoder_forward.1} parent=1 // pred_region
      _
    $region57: #{vq_encoder_forward.1} parent=1 // pred_fallthru
      _
    // Predicated region
    $region58: #{vq_encoder_forward.1} parent=1 // pred_check
      _
    $region59: #{vq_encoder_forward.1} parent=1 // pred_check_branch
      %87 = sbr.rel (0) target = $region61
    $region60: #{vq_encoder_forward.1} parent=1 // pred_region
      _
    $region61: #{vq_encoder_forward.1} parent=1 // pred_fallthru
      _
    // Predicated region
    $region62: #{vq_encoder_forward.1} parent=1 // pred_check
      _
    $region63: #{vq_encoder_forward.1} parent=1 // pred_check_branch
      %89 = sbr.rel (0) target = $region65
    $region64: #{vq_encoder_forward.1} parent=1 // pred_region
      _
    $region65: #{vq_encoder_forward.1} parent=1 // pred_fallthru
      _
    // Predicated region
    $region66: #{vq_encoder_forward.1} parent=1 // pred_check
      _
    $region67: #{vq_encoder_forward.1} parent=1 // pred_check_branch
      %91 = sbr.rel (0) target = $region69
    $region68: #{vq_encoder_forward.1} parent=1 // pred_region
      _
    $region69: #{vq_encoder_forward.1} parent=1 // pred_fallthru
      _
    // Predicated region
    $region70: #{vq_encoder_forward.1} parent=1 // pred_check
      _
    $region71: #{vq_encoder_forward.1} parent=1 // pred_check_branch
      %93 = sbr.rel (0) target = $region73
    $region72: #{vq_encoder_forward.1} parent=1 // pred_region
      _
    $region73: #{vq_encoder_forward.1} parent=1 // pred_fallthru
      _
    // Predicated region
    $region74: #{vq_encoder_forward.1} parent=1 // pred_check
      _
    $region75: #{vq_encoder_forward.1} parent=1 // pred_check_branch
      %95 = sbr.rel (0) target = $region77
    $region76: #{vq_encoder_forward.1} parent=1 // pred_region
      %97 = dma.done [#allocation3], 65536
    $region77: #{vq_encoder_forward.1} parent=1 // pred_fallthru
      _
    // Predicated region
    $region78: #{vq_encoder_forward.1} parent=1 // pred_check
      _
    $region79: #{vq_encoder_forward.1} parent=1 // pred_check_branch
      %99 = sbr.rel (0) target = $region81
    $region80: #{vq_encoder_forward.1} parent=1 // pred_region
      %101 = dma.done [#allocation5], 16384
    $region81: #{vq_encoder_forward.1} parent=1 // pred_fallthru
      _
    // Predicated region
    $region82: #{vq_encoder_forward.1} parent=1 // pred_check
      _
    $region83: #{vq_encoder_forward.1} parent=1 // pred_check_branch
      %103 = sbr.rel (0) target = $region85
    $region84: #{vq_encoder_forward.1} parent=1 // pred_region
      %105 = dma.done [#allocation5], 4096
    $region85: #{vq_encoder_forward.1} parent=1 // pred_fallthru
      _
    %v107 = vld [vmem:[%s0] sm:$0xf]
    %v108 = vld [vmem:[#allocation2] sm:$0xf]
    %v109 = vld [vmem:[#allocation2 + $0x4] sm:$0xf]
    %v110 = vld [vmem:[#allocation2 + $0x8] sm:$0xf]
    %v111 = vld [vmem:[#allocation2 + $0xc] sm:$0xf]
    %v112 = vld [vmem:[#allocation2 + $0x10] sm:$0xf]
    %v113 = vld [vmem:[#allocation2 + $0x14] sm:$0xf]
    %v114 = vld [vmem:[#allocation2 + $0x18] sm:$0xf]
    %v115 = vld [vmem:[#allocation2 + $0x1c] sm:$0xf]
    %v116 = vld [vmem:[#allocation2 + $0x20] sm:$0xf]
    %v117 = vld [vmem:[#allocation2 + $0x24] sm:$0xf]
    %v118 = vld [vmem:[#allocation2 + $0x28] sm:$0xf]
    %v119 = vld [vmem:[#allocation2 + $0x2c] sm:$0xf]
    %v120 = vld [vmem:[#allocation2 + $0x30] sm:$0xf]
    %v121 = vld [vmem:[#allocation2 + $0x34] sm:$0xf]
    %v122 = vld [vmem:[#allocation2 + $0x38] sm:$0xf]
    %v123 = vld [vmem:[#allocation2 + $0x3c] sm:$0xf]
    %v124 = vld [vmem:[#allocation2 + $0x40] sm:$0xf]
    %v125 = vld [vmem:[#allocation2 + $0x44] sm:$0xf]
    %v126 = vld [vmem:[#allocation2 + $0x48] sm:$0xf]
    %v127 = vld [vmem:[#allocation2 + $0x4c] sm:$0xf]
    %v128 = vld [vmem:[#allocation2 + $0x50] sm:$0xf]
    %v129 = vld [vmem:[#allocation2 + $0x54] sm:$0xf]
    %v130 = vld [vmem:[#allocation2 + $0x58] sm:$0xf]
    %v131 = vld [vmem:[#allocation2 + $0x5c] sm:$0xf]
    %v132 = vld [vmem:[#allocation2 + $0x60] sm:$0xf]
    %v133 = vld [vmem:[#allocation2 + $0x64] sm:$0xf]
    %v134 = vld [vmem:[#allocation2 + $0x68] sm:$0xf]
    %v135 = vld [vmem:[#allocation2 + $0x6c] sm:$0xf]
    %v136 = vld [vmem:[#allocation2 + $0x70] sm:$0xf]
    %v137 = vld [vmem:[#allocation2 + $0x74] sm:$0xf]
    %v138 = vld [vmem:[#allocation2 + $0x78] sm:$0xf]
    %v139 = vld [vmem:[#allocation2 + $0x7c] sm:$0xf]
    %v140 = vld [vmem:[#allocation2 + $0x80] sm:$0xf]
    %v141 = vld [vmem:[#allocation2 + $0x84] sm:$0xf]
    %v142 = vld [vmem:[#allocation2 + $0x88] sm:$0xf]
    %v143 = vld [vmem:[#allocation2 + $0x8c] sm:$0xf]
    %v144 = vld [vmem:[#allocation2 + $0x90] sm:$0xf]
    %v145 = vld [vmem:[#allocation2 + $0x94] sm:$0xf]
    %v146 = vld [vmem:[#allocation2 + $0x98] sm:$0xf]
    %v147 = vld [vmem:[#allocation2 + $0x9c] sm:$0xf]
    %v148 = vld [vmem:[#allocation2 + $0xa0] sm:$0xf]
    %v149 = vld [vmem:[#allocation2 + $0xa4] sm:$0xf]
    %v150 = vld [vmem:[#allocation2 + $0xa8] sm:$0xf]
    %v151 = vld [vmem:[#allocation2 + $0xac] sm:$0xf]
    %v152 = vld [vmem:[#allocation2 + $0xb0] sm:$0xf]
    %v153 = vld [vmem:[#allocation2 + $0xb4] sm:$0xf]
    %v154 = vld [vmem:[#allocation2 + $0xb8] sm:$0xf]
    %v155 = vld [vmem:[#allocation2 + $0xbc] sm:$0xf]
    %v156 = vld [vmem:[#allocation2 + $0xc0] sm:$0xf]
    %v157 = vld [vmem:[#allocation2 + $0xc4] sm:$0xf]
    %v158 = vld [vmem:[#allocation2 + $0xc8] sm:$0xf]
    %v159 = vld [vmem:[#allocation2 + $0xcc] sm:$0xf]
    %v160 = vld [vmem:[#allocation2 + $0xd0] sm:$0xf]
    %v161 = vld [vmem:[#allocation2 + $0xd4] sm:$0xf]
    %v162 = vld [vmem:[#allocation2 + $0xd8] sm:$0xf]
    %v163 = vld [vmem:[#allocation2 + $0xdc] sm:$0xf]
    %v164 = vld [vmem:[#allocation2 + $0xe0] sm:$0xf]
    %v165 = vld [vmem:[#allocation2 + $0xe4] sm:$0xf]
    %v166 = vld [vmem:[#allocation2 + $0xe8] sm:$0xf]
    %v167 = vld [vmem:[#allocation2 + $0xec] sm:$0xf]
    %v168 = vld [vmem:[#allocation2 + $0xf0] sm:$0xf]
    %v169 = vld [vmem:[#allocation2 + $0xf4] sm:$0xf]
    %v170 = vld [vmem:[#allocation2 + $0xf8] sm:$0xf]
    %v171 = vld [vmem:[#allocation2 + $0xfc] sm:$0xf]
    %173 = vst [vmem:[#allocation1] ss:$9 sm:$0xff] %v107
    %v174 = vld [vmem:[#allocation1] sm:$0xff]
    %v175 = vld [vmem:[#allocation1 + $0x9] sm:$0xff]
    %v176 = vld [vmem:[#allocation1 + $0x12] sm:$0xff]
    %v177 = vld [vmem:[#allocation1 + $0x1b] sm:$0xff]
    %v246 = vunpack.c.l.b16 %v108
    %v247 = vunpack.c.l.b16 %v109
    %v248 = vunpack.c.l.b16 %v110
    %v249 = vunpack.c.l.b16 %v111
    %v250 = vunpack.c.l.b16 %v112
    %v251 = vunpack.c.l.b16 %v113
    %v252 = vunpack.c.l.b16 %v114
    %v253 = vunpack.c.l.b16 %v115
    %v254 = vunpack.c.l.b16 %v116
    %v255 = vunpack.c.l.b16 %v117
    %v256 = vunpack.c.l.b16 %v118
    %v257 = vunpack.c.l.b16 %v119
    %v258 = vunpack.c.l.b16 %v120
    %v259 = vunpack.c.l.b16 %v121
    %v260 = vunpack.c.l.b16 %v122
    %v261 = vunpack.c.l.b16 %v123
    %v262 = vunpack.c.l.b16 %v124
    %v263 = vunpack.c.l.b16 %v125
    %v264 = vunpack.c.l.b16 %v126
    %v265 = vunpack.c.l.b16 %v127
    %v266 = vunpack.c.l.b16 %v128
    %v267 = vunpack.c.l.b16 %v129
    %v268 = vunpack.c.l.b16 %v130
    %v269 = vunpack.c.l.b16 %v131
    %v270 = vunpack.c.l.b16 %v132
    %v271 = vunpack.c.l.b16 %v133
    %v272 = vunpack.c.l.b16 %v134
    %v273 = vunpack.c.l.b16 %v135
    %v274 = vunpack.c.l.b16 %v136
    %v275 = vunpack.c.l.b16 %v137
    %v276 = vunpack.c.l.b16 %v138
    %v277 = vunpack.c.l.b16 %v139
    %v278 = vunpack.c.l.b16 %v140
    %v279 = vunpack.c.l.b16 %v141
    %v280 = vunpack.c.l.b16 %v142
    %v281 = vunpack.c.l.b16 %v143
    %v282 = vunpack.c.l.b16 %v144
    %v283 = vunpack.c.l.b16 %v145
    %v284 = vunpack.c.l.b16 %v146
    %v285 = vunpack.c.l.b16 %v147
    %v286 = vunpack.c.l.b16 %v148
    %v287 = vunpack.c.l.b16 %v149
    %v288 = vunpack.c.l.b16 %v150
    %v289 = vunpack.c.l.b16 %v151
    %v290 = vunpack.c.l.b16 %v152
    %v291 = vunpack.c.l.b16 %v153
    %v292 = vunpack.c.l.b16 %v154
    %v293 = vunpack.c.l.b16 %v155
    %v294 = vunpack.c.l.b16 %v156
    %v295 = vunpack.c.l.b16 %v157
    %v296 = vunpack.c.l.b16 %v158
    %v297 = vunpack.c.l.b16 %v159
    %v298 = vunpack.c.l.b16 %v160
    %v299 = vunpack.c.l.b16 %v161
    %v300 = vunpack.c.l.b16 %v162
    %v301 = vunpack.c.l.b16 %v163
    %v302 = vunpack.c.l.b16 %v164
    %v303 = vunpack.c.l.b16 %v165
    %v304 = vunpack.c.l.b16 %v166
    %v305 = vunpack.c.l.b16 %v167
    %v306 = vunpack.c.l.b16 %v168
    %v307 = vunpack.c.l.b16 %v169
    %v308 = vunpack.c.l.b16 %v170
    %v309 = vunpack.c.l.b16 %v171
    %v310 = vpack.c.b16 %v247, %v246
    %v311 = vpack.c.b16 %v249, %v248
    %v312 = vpack.c.b16 %v251, %v250
    %v313 = vpack.c.b16 %v253, %v252
    %v314 = vpack.c.b16 %v255, %v254
    %v315 = vpack.c.b16 %v257, %v256
    %v316 = vpack.c.b16 %v259, %v258
    %v317 = vpack.c.b16 %v261, %v260
    %v318 = vpack.c.b16 %v263, %v262
    %v319 = vpack.c.b16 %v265, %v264
    %v320 = vpack.c.b16 %v267, %v266
    %v321 = vpack.c.b16 %v269, %v268
    %v322 = vpack.c.b16 %v271, %v270
    %v323 = vpack.c.b16 %v273, %v272
    %v324 = vpack.c.b16 %v275, %v274
    %v325 = vpack.c.b16 %v277, %v276
    %v326 = vpack.c.b16 %v279, %v278
    %v327 = vpack.c.b16 %v281, %v280
    %v328 = vpack.c.b16 %v283, %v282
    %v329 = vpack.c.b16 %v285, %v284
    %v330 = vpack.c.b16 %v287, %v286
    %v331 = vpack.c.b16 %v289, %v288
    %v332 = vpack.c.b16 %v291, %v290
    %v333 = vpack.c.b16 %v293, %v292
    %v334 = vpack.c.b16 %v295, %v294
    %v335 = vpack.c.b16 %v297, %v296
    %v336 = vpack.c.b16 %v299, %v298
    %v337 = vpack.c.b16 %v301, %v300
    %v338 = vpack.c.b16 %v303, %v302
    %v339 = vpack.c.b16 %v305, %v304
    %v340 = vpack.c.b16 %v307, %v306
    %v341 = vpack.c.b16 %v309, %v308
    %374 = vmatpush.bf16.msra.mxu0 %v317
    %375 = vmatpush.bf16.msra.mxu0 %v316
    %376 = vmatpush.bf16.msra.mxu0 %v315
    %377 = vmatpush.bf16.msra.mxu0 %v314
    %378 = vmatpush.bf16.msra.mxu0 %v313
    %379 = vmatpush.bf16.msra.mxu0 %v312
    %380 = vmatpush.bf16.msra.mxu0 %v311
    %381 = vmatpush.bf16.msra.mxu0 %v310
    %382 = vmatmul.bf16.gmra.mxu0 %v174
    %v383 = vpop.f32.mrf.mxu0
    %v384 = vadd.f32 0.0, %v383
    %v385 = vpop.f32.mrf.mxu0
    %386 = vdwg.mxu0
    %387 = vmatpush.bf16.msra.mxu0 %v325
    %388 = vmatpush.bf16.msra.mxu0 %v324
    %389 = vmatpush.bf16.msra.mxu0 %v323
    %390 = vmatpush.bf16.msra.mxu0 %v322
    %391 = vmatpush.bf16.msra.mxu0 %v321
    %392 = vmatpush.bf16.msra.mxu0 %v320
    %393 = vmatpush.bf16.msra.mxu0 %v319
    %394 = vmatpush.bf16.msra.mxu0 %v318
    %395 = vmatmul.bf16.gmra.mxu0 %v175
    %v396 = vpop.f32.mrf.mxu0
    %v397 = vadd.f32 %v384, %v396
    %v398 = vpop.f32.mrf.mxu0
    %399 = vdwg.mxu0
    %400 = vmatpush.bf16.msra.mxu0 %v333
    %401 = vmatpush.bf16.msra.mxu0 %v332
    %402 = vmatpush.bf16.msra.mxu0 %v331
    %403 = vmatpush.bf16.msra.mxu0 %v330
    %404 = vmatpush.bf16.msra.mxu0 %v329
    %405 = vmatpush.bf16.msra.mxu0 %v328
    %406 = vmatpush.bf16.msra.mxu0 %v327
    %407 = vmatpush.bf16.msra.mxu0 %v326
    %408 = vmatmul.bf16.gmra.mxu0 %v176
    %v409 = vpop.f32.mrf.mxu0
    %v410 = vadd.f32 %v397, %v409
    %v411 = vpop.f32.mrf.mxu0
    %412 = vdwg.mxu0
    %413 = vmatpush.bf16.msra.mxu0 %v341
    %414 = vmatpush.bf16.msra.mxu0 %v340
    %415 = vmatpush.bf16.msra.mxu0 %v339
    %416 = vmatpush.bf16.msra.mxu0 %v338
    %417 = vmatpush.bf16.msra.mxu0 %v337
    %418 = vmatpush.bf16.msra.mxu0 %v336
    %419 = vmatpush.bf16.msra.mxu0 %v335
    %420 = vmatpush.bf16.msra.mxu0 %v334
    %421 = vmatmul.bf16.gmra.mxu0 %v177
    %v422 = vpop.f32.mrf.mxu0
    %v423 = vadd.f32 %v410, %v422
    %v424 = vpop.f32.mrf.mxu0
    %425 = vdwg.mxu0
    %s426 = scalar_lea.vmem [#allocation2], 256
    %v427 = vld [vmem:[%s426] sm:$0xf]
    %v428 = vld [vmem:[%s426 + $0x4] sm:$0xf]
    %v429 = vld [vmem:[%s426 + $0x8] sm:$0xf]
    %v430 = vld [vmem:[%s426 + $0xc] sm:$0xf]
    %v431 = vld [vmem:[%s426 + $0x10] sm:$0xf]
    %v432 = vld [vmem:[%s426 + $0x14] sm:$0xf]
    %v433 = vld [vmem:[%s426 + $0x18] sm:$0xf]
    %v434 = vld [vmem:[%s426 + $0x1c] sm:$0xf]
    %v435 = vld [vmem:[%s426 + $0x20] sm:$0xf]
    %v436 = vld [vmem:[%s426 + $0x24] sm:$0xf]
    %v437 = vld [vmem:[%s426 + $0x28] sm:$0xf]
    %v438 = vld [vmem:[%s426 + $0x2c] sm:$0xf]
    %v439 = vld [vmem:[%s426 + $0x30] sm:$0xf]
    %v440 = vld [vmem:[%s426 + $0x34] sm:$0xf]
    %v441 = vld [vmem:[%s426 + $0x38] sm:$0xf]
    %v442 = vld [vmem:[%s426 + $0x3c] sm:$0xf]
    %v443 = vld [vmem:[%s426 + $0x40] sm:$0xf]
    %v444 = vld [vmem:[%s426 + $0x44] sm:$0xf]
    %v445 = vld [vmem:[%s426 + $0x48] sm:$0xf]
    %v446 = vld [vmem:[%s426 + $0x4c] sm:$0xf]
    %v447 = vld [vmem:[%s426 + $0x50] sm:$0xf]
    %v448 = vld [vmem:[%s426 + $0x54] sm:$0xf]
    %v449 = vld [vmem:[%s426 + $0x58] sm:$0xf]
    %v450 = vld [vmem:[%s426 + $0x5c] sm:$0xf]
    %v451 = vld [vmem:[%s426 + $0x60] sm:$0xf]
    %v452 = vld [vmem:[%s426 + $0x64] sm:$0xf]
    %v453 = vld [vmem:[%s426 + $0x68] sm:$0xf]
    %v454 = vld [vmem:[%s426 + $0x6c] sm:$0xf]
    %v455 = vld [vmem:[%s426 + $0x70] sm:$0xf]
    %v456 = vld [vmem:[%s426 + $0x74] sm:$0xf]
    %v457 = vld [vmem:[%s426 + $0x78] sm:$0xf]
    %v458 = vld [vmem:[%s426 + $0x7c] sm:$0xf]
    %v459 = vld [vmem:[%s426 + $0x80] sm:$0xf]
    %v460 = vld [vmem:[%s426 + $0x84] sm:$0xf]
    %v461 = vld [vmem:[%s426 + $0x88] sm:$0xf]
    %v462 = vld [vmem:[%s426 + $0x8c] sm:$0xf]
    %v463 = vld [vmem:[%s426 + $0x90] sm:$0xf]
    %v464 = vld [vmem:[%s426 + $0x94] sm:$0xf]
    %v465 = vld [vmem:[%s426 + $0x98] sm:$0xf]
    %v466 = vld [vmem:[%s426 + $0x9c] sm:$0xf]
    %v467 = vld [vmem:[%s426 + $0xa0] sm:$0xf]
    %v468 = vld [vmem:[%s426 + $0xa4] sm:$0xf]
    %v469 = vld [vmem:[%s426 + $0xa8] sm:$0xf]
    %v470 = vld [vmem:[%s426 + $0xac] sm:$0xf]
    %v471 = vld [vmem:[%s426 + $0xb0] sm:$0xf]
    %v472 = vld [vmem:[%s426 + $0xb4] sm:$0xf]
    %v473 = vld [vmem:[%s426 + $0xb8] sm:$0xf]
    %v474 = vld [vmem:[%s426 + $0xbc] sm:$0xf]
    %v475 = vld [vmem:[%s426 + $0xc0] sm:$0xf]
    %v476 = vld [vmem:[%s426 + $0xc4] sm:$0xf]
    %v477 = vld [vmem:[%s426 + $0xc8] sm:$0xf]
    %v478 = vld [vmem:[%s426 + $0xcc] sm:$0xf]
    %v479 = vld [vmem:[%s426 + $0xd0] sm:$0xf]
    %v480 = vld [vmem:[%s426 + $0xd4] sm:$0xf]
    %v481 = vld [vmem:[%s426 + $0xd8] sm:$0xf]
    %v482 = vld [vmem:[%s426 + $0xdc] sm:$0xf]
    %v483 = vld [vmem:[%s426 + $0xe0] sm:$0xf]
    %v484 = vld [vmem:[%s426 + $0xe4] sm:$0xf]
    %v485 = vld [vmem:[%s426 + $0xe8] sm:$0xf]
    %v486 = vld [vmem:[%s426 + $0xec] sm:$0xf]
    %v487 = vld [vmem:[%s426 + $0xf0] sm:$0xf]
    %v488 = vld [vmem:[%s426 + $0xf4] sm:$0xf]
    %v489 = vld [vmem:[%s426 + $0xf8] sm:$0xf]
    %v490 = vld [vmem:[%s426 + $0xfc] sm:$0xf]
    %491 = vst [vmem:[#allocation1] ss:$9 sm:$0xff] %v107
    %v492 = vld [vmem:[#allocation1] sm:$0xff]
    %v493 = vld [vmem:[#allocation1 + $0x9] sm:$0xff]
    %v494 = vld [vmem:[#allocation1 + $0x12] sm:$0xff]
    %v495 = vld [vmem:[#allocation1 + $0x1b] sm:$0xff]
    %v564 = vunpack.c.l.b16 %v427
    %v565 = vunpack.c.l.b16 %v428
    %v566 = vunpack.c.l.b16 %v429
    %v567 = vunpack.c.l.b16 %v430
    %v568 = vunpack.c.l.b16 %v431
    %v569 = vunpack.c.l.b16 %v432
    %v570 = vunpack.c.l.b16 %v433
    %v571 = vunpack.c.l.b16 %v434
    %v572 = vunpack.c.l.b16 %v435
    %v573 = vunpack.c.l.b16 %v436
    %v574 = vunpack.c.l.b16 %v437
    %v575 = vunpack.c.l.b16 %v438
    %v576 = vunpack.c.l.b16 %v439
    %v577 = vunpack.c.l.b16 %v440
    %v578 = vunpack.c.l.b16 %v441
    %v579 = vunpack.c.l.b16 %v442
    %v580 = vunpack.c.l.b16 %v443
    %v581 = vunpack.c.l.b16 %v444
    %v582 = vunpack.c.l.b16 %v445
    %v583 = vunpack.c.l.b16 %v446
    %v584 = vunpack.c.l.b16 %v447
    %v585 = vunpack.c.l.b16 %v448
    %v586 = vunpack.c.l.b16 %v449
    %v587 = vunpack.c.l.b16 %v450
    %v588 = vunpack.c.l.b16 %v451
    %v589 = vunpack.c.l.b16 %v452
    %v590 = vunpack.c.l.b16 %v453
    %v591 = vunpack.c.l.b16 %v454
    %v592 = vunpack.c.l.b16 %v455
    %v593 = vunpack.c.l.b16 %v456
    %v594 = vunpack.c.l.b16 %v457
    %v595 = vunpack.c.l.b16 %v458
    %v596 = vunpack.c.l.b16 %v459
    %v597 = vunpack.c.l.b16 %v460
    %v598 = vunpack.c.l.b16 %v461
    %v599 = vunpack.c.l.b16 %v462
    %v600 = vunpack.c.l.b16 %v463
    %v601 = vunpack.c.l.b16 %v464
    %v602 = vunpack.c.l.b16 %v465
    %v603 = vunpack.c.l.b16 %v466
    %v604 = vunpack.c.l.b16 %v467
    %v605 = vunpack.c.l.b16 %v468
    %v606 = vunpack.c.l.b16 %v469
    %v607 = vunpack.c.l.b16 %v470
    %v608 = vunpack.c.l.b16 %v471
    %v609 = vunpack.c.l.b16 %v472
    %v610 = vunpack.c.l.b16 %v473
    %v611 = vunpack.c.l.b16 %v474
    %v612 = vunpack.c.l.b16 %v475
    %v613 = vunpack.c.l.b16 %v476
    %v614 = vunpack.c.l.b16 %v477
    %v615 = vunpack.c.l.b16 %v478
    %v616 = vunpack.c.l.b16 %v479
    %v617 = vunpack.c.l.b16 %v480
    %v618 = vunpack.c.l.b16 %v481
    %v619 = vunpack.c.l.b16 %v482
    %v620 = vunpack.c.l.b16 %v483
    %v621 = vunpack.c.l.b16 %v484
    %v622 = vunpack.c.l.b16 %v485
    %v623 = vunpack.c.l.b16 %v486
    %v624 = vunpack.c.l.b16 %v487
    %v625 = vunpack.c.l.b16 %v488
    %v626 = vunpack.c.l.b16 %v489
    %v627 = vunpack.c.l.b16 %v490
    %v628 = vpack.c.b16 %v565, %v564
    %v629 = vpack.c.b16 %v567, %v566
    %v630 = vpack.c.b16 %v569, %v568
    %v631 = vpack.c.b16 %v571, %v570
    %v632 = vpack.c.b16 %v573, %v572
    %v633 = vpack.c.b16 %v575, %v574
    %v634 = vpack.c.b16 %v577, %v576
    %v635 = vpack.c.b16 %v579, %v578
    %v636 = vpack.c.b16 %v581, %v580
    %v637 = vpack.c.b16 %v583, %v582
    %v638 = vpack.c.b16 %v585, %v584
    %v639 = vpack.c.b16 %v587, %v586
    %v640 = vpack.c.b16 %v589, %v588
    %v641 = vpack.c.b16 %v591, %v590
    %v642 = vpack.c.b16 %v593, %v592
    %v643 = vpack.c.b16 %v595, %v594
    %v644 = vpack.c.b16 %v597, %v596
    %v645 = vpack.c.b16 %v599, %v598
    %v646 = vpack.c.b16 %v601, %v600
    %v647 = vpack.c.b16 %v603, %v602
    %v648 = vpack.c.b16 %v605, %v604
    %v649 = vpack.c.b16 %v607, %v606
    %v650 = vpack.c.b16 %v609, %v608
    %v651 = vpack.c.b16 %v611, %v610
    %v652 = vpack.c.b16 %v613, %v612
    %v653 = vpack.c.b16 %v615, %v614
    %v654 = vpack.c.b16 %v617, %v616
    %v655 = vpack.c.b16 %v619, %v618
    %v656 = vpack.c.b16 %v621, %v620
    %v657 = vpack.c.b16 %v623, %v622
    %v658 = vpack.c.b16 %v625, %v624
    %v659 = vpack.c.b16 %v627, %v626
    %692 = vmatpush.bf16.msra.mxu0 %v635
    %693 = vmatpush.bf16.msra.mxu0 %v634
    %694 = vmatpush.bf16.msra.mxu0 %v633
    %695 = vmatpush.bf16.msra.mxu0 %v632
    %696 = vmatpush.bf16.msra.mxu0 %v631
    %697 = vmatpush.bf16.msra.mxu0 %v630
    %698 = vmatpush.bf16.msra.mxu0 %v629
    %699 = vmatpush.bf16.msra.mxu0 %v628
    %700 = vmatmul.bf16.gmra.mxu0 %v492
    %v701 = vpop.f32.mrf.mxu0
    %v702 = vadd.f32 0.0, %v701
    %v703 = vpop.f32.mrf.mxu0
    %704 = vdwg.mxu0
    %705 = vmatpush.bf16.msra.mxu0 %v643
    %706 = vmatpush.bf16.msra.mxu0 %v642
    %707 = vmatpush.bf16.msra.mxu0 %v641
    %708 = vmatpush.bf16.msra.mxu0 %v640
    %709 = vmatpush.bf16.msra.mxu0 %v639
    %710 = vmatpush.bf16.msra.mxu0 %v638
    %711 = vmatpush.bf16.msra.mxu0 %v637
    %712 = vmatpush.bf16.msra.mxu0 %v636
    %713 = vmatmul.bf16.gmra.mxu0 %v493
    %v714 = vpop.f32.mrf.mxu0
    %v715 = vadd.f32 %v702, %v714
    %v716 = vpop.f32.mrf.mxu0
    %717 = vdwg.mxu0
    %718 = vmatpush.bf16.msra.mxu0 %v651
    %719 = vmatpush.bf16.msra.mxu0 %v650
    %720 = vmatpush.bf16.msra.mxu0 %v649
    %721 = vmatpush.bf16.msra.mxu0 %v648
    %722 = vmatpush.bf16.msra.mxu0 %v647
    %723 = vmatpush.bf16.msra.mxu0 %v646
    %724 = vmatpush.bf16.msra.mxu0 %v645
    %725 = vmatpush.bf16.msra.mxu0 %v644
    %726 = vmatmul.bf16.gmra.mxu0 %v494
    %v727 = vpop.f32.mrf.mxu0
    %v728 = vadd.f32 %v715, %v727
    %v729 = vpop.f32.mrf.mxu0
    %730 = vdwg.mxu0
    %731 = vmatpush.bf16.msra.mxu0 %v659
    %732 = vmatpush.bf16.msra.mxu0 %v658
    %733 = vmatpush.bf16.msra.mxu0 %v657
    %734 = vmatpush.bf16.msra.mxu0 %v656
    %735 = vmatpush.bf16.msra.mxu0 %v655
    %736 = vmatpush.bf16.msra.mxu0 %v654
    %737 = vmatpush.bf16.msra.mxu0 %v653
    %738 = vmatpush.bf16.msra.mxu0 %v652
    %739 = vmatmul.bf16.gmra.mxu0 %v495
    %v740 = vpop.f32.mrf.mxu0
    %v741 = vadd.f32 %v728, %v740
    %v742 = vpop.f32.mrf.mxu0
    %743 = vdwg.mxu0
    %s744 = scalar_lea.vmem [#allocation2], 512
    %v745 = vld [vmem:[%s744] sm:$0xf]
    %v746 = vld [vmem:[%s744 + $0x4] sm:$0xf]
    %v747 = vld [vmem:[%s744 + $0x8] sm:$0xf]
    %v748 = vld [vmem:[%s744 + $0xc] sm:$0xf]
    %v749 = vld [vmem:[%s744 + $0x10] sm:$0xf]
    %v750 = vld [vmem:[%s744 + $0x14] sm:$0xf]
    %v751 = vld [vmem:[%s744 + $0x18] sm:$0xf]
    %v752 = vld [vmem:[%s744 + $0x1c] sm:$0xf]
    %v753 = vld [vmem:[%s744 + $0x20] sm:$0xf]
    %v754 = vld [vmem:[%s744 + $0x24] sm:$0xf]
    %v755 = vld [vmem:[%s744 + $0x28] sm:$0xf]
    %v756 = vld [vmem:[%s744 + $0x2c] sm:$0xf]
    %v757 = vld [vmem:[%s744 + $0x30] sm:$0xf]
    %v758 = vld [vmem:[%s744 + $0x34] sm:$0xf]
    %v759 = vld [vmem:[%s744 + $0x38] sm:$0xf]
    %v760 = vld [vmem:[%s744 + $0x3c] sm:$0xf]
    %v761 = vld [vmem:[%s744 + $0x40] sm:$0xf]
    %v762 = vld [vmem:[%s744 + $0x44] sm:$0xf]
    %v763 = vld [vmem:[%s744 + $0x48] sm:$0xf]
    %v764 = vld [vmem:[%s744 + $0x4c] sm:$0xf]
    %v765 = vld [vmem:[%s744 + $0x50] sm:$0xf]
    %v766 = vld [vmem:[%s744 + $0x54] sm:$0xf]
    %v767 = vld [vmem:[%s744 + $0x58] sm:$0xf]
    %v768 = vld [vmem:[%s744 + $0x5c] sm:$0xf]
    %v769 = vld [vmem:[%s744 + $0x60] sm:$0xf]
    %v770 = vld [vmem:[%s744 + $0x64] sm:$0xf]
    %v771 = vld [vmem:[%s744 + $0x68] sm:$0xf]
    %v772 = vld [vmem:[%s744 + $0x6c] sm:$0xf]
    %v773 = vld [vmem:[%s744 + $0x70] sm:$0xf]
    %v774 = vld [vmem:[%s744 + $0x74] sm:$0xf]
    %v775 = vld [vmem:[%s744 + $0x78] sm:$0xf]
    %v776 = vld [vmem:[%s744 + $0x7c] sm:$0xf]
    %v777 = vld [vmem:[%s744 + $0x80] sm:$0xf]
    %v778 = vld [vmem:[%s744 + $0x84] sm:$0xf]
    %v779 = vld [vmem:[%s744 + $0x88] sm:$0xf]
    %v780 = vld [vmem:[%s744 + $0x8c] sm:$0xf]
    %v781 = vld [vmem:[%s744 + $0x90] sm:$0xf]
    %v782 = vld [vmem:[%s744 + $0x94] sm:$0xf]
    %v783 = vld [vmem:[%s744 + $0x98] sm:$0xf]
    %v784 = vld [vmem:[%s744 + $0x9c] sm:$0xf]
    %v785 = vld [vmem:[%s744 + $0xa0] sm:$0xf]
    %v786 = vld [vmem:[%s744 + $0xa4] sm:$0xf]
    %v787 = vld [vmem:[%s744 + $0xa8] sm:$0xf]
    %v788 = vld [vmem:[%s744 + $0xac] sm:$0xf]
    %v789 = vld [vmem:[%s744 + $0xb0] sm:$0xf]
    %v790 = vld [vmem:[%s744 + $0xb4] sm:$0xf]
    %v791 = vld [vmem:[%s744 + $0xb8] sm:$0xf]
    %v792 = vld [vmem:[%s744 + $0xbc] sm:$0xf]
    %v793 = vld [vmem:[%s744 + $0xc0] sm:$0xf]
    %v794 = vld [vmem:[%s744 + $0xc4] sm:$0xf]
    %v795 = vld [vmem:[%s744 + $0xc8] sm:$0xf]
    %v796 = vld [vmem:[%s744 + $0xcc] sm:$0xf]
    %v797 = vld [vmem:[%s744 + $0xd0] sm:$0xf]
    %v798 = vld [vmem:[%s744 + $0xd4] sm:$0xf]
    %v799 = vld [vmem:[%s744 + $0xd8] sm:$0xf]
    %v800 = vld [vmem:[%s744 + $0xdc] sm:$0xf]
    %v801 = vld [vmem:[%s744 + $0xe0] sm:$0xf]
    %v802 = vld [vmem:[%s744 + $0xe4] sm:$0xf]
    %v803 = vld [vmem:[%s744 + $0xe8] sm:$0xf]
    %v804 = vld [vmem:[%s744 + $0xec] sm:$0xf]
    %v805 = vld [vmem:[%s744 + $0xf0] sm:$0xf]
    %v806 = vld [vmem:[%s744 + $0xf4] sm:$0xf]
    %v807 = vld [vmem:[%s744 + $0xf8] sm:$0xf]
    %v808 = vld [vmem:[%s744 + $0xfc] sm:$0xf]
    %809 = vst [vmem:[#allocation1] ss:$9 sm:$0xff] %v107
    %v810 = vld [vmem:[#allocation1] sm:$0xff]
    %v811 = vld [vmem:[#allocation1 + $0x9] sm:$0xff]
    %v812 = vld [vmem:[#allocation1 + $0x12] sm:$0xff]
    %v813 = vld [vmem:[#allocation1 + $0x1b] sm:$0xff]
    %v882 = vunpack.c.l.b16 %v745
    %v883 = vunpack.c.l.b16 %v746
    %v884 = vunpack.c.l.b16 %v747
    %v885 = vunpack.c.l.b16 %v748
    %v886 = vunpack.c.l.b16 %v749
    %v887 = vunpack.c.l.b16 %v750
    %v888 = vunpack.c.l.b16 %v751
    %v889 = vunpack.c.l.b16 %v752
    %v890 = vunpack.c.l.b16 %v753
    %v891 = vunpack.c.l.b16 %v754
    %v892 = vunpack.c.l.b16 %v755
    %v893 = vunpack.c.l.b16 %v756
    %v894 = vunpack.c.l.b16 %v757
    %v895 = vunpack.c.l.b16 %v758
    %v896 = vunpack.c.l.b16 %v759
    %v897 = vunpack.c.l.b16 %v760
    %v898 = vunpack.c.l.b16 %v761
    %v899 = vunpack.c.l.b16 %v762
    %v900 = vunpack.c.l.b16 %v763
    %v901 = vunpack.c.l.b16 %v764
    %v902 = vunpack.c.l.b16 %v765
    %v903 = vunpack.c.l.b16 %v766
    %v904 = vunpack.c.l.b16 %v767
    %v905 = vunpack.c.l.b16 %v768
    %v906 = vunpack.c.l.b16 %v769
    %v907 = vunpack.c.l.b16 %v770
    %v908 = vunpack.c.l.b16 %v771
    %v909 = vunpack.c.l.b16 %v772
    %v910 = vunpack.c.l.b16 %v773
    %v911 = vunpack.c.l.b16 %v774
    %v912 = vunpack.c.l.b16 %v775
    %v913 = vunpack.c.l.b16 %v776
    %v914 = vunpack.c.l.b16 %v777
    %v915 = vunpack.c.l.b16 %v778
    %v916 = vunpack.c.l.b16 %v779
    %v917 = vunpack.c.l.b16 %v780
    %v918 = vunpack.c.l.b16 %v781
    %v919 = vunpack.c.l.b16 %v782
    %v920 = vunpack.c.l.b16 %v783
    %v921 = vunpack.c.l.b16 %v784
    %v922 = vunpack.c.l.b16 %v785
    %v923 = vunpack.c.l.b16 %v786
    %v924 = vunpack.c.l.b16 %v787
    %v925 = vunpack.c.l.b16 %v788
    %v926 = vunpack.c.l.b16 %v789
    %v927 = vunpack.c.l.b16 %v790
    %v928 = vunpack.c.l.b16 %v791
    %v929 = vunpack.c.l.b16 %v792
    %v930 = vunpack.c.l.b16 %v793
    %v931 = vunpack.c.l.b16 %v794
    %v932 = vunpack.c.l.b16 %v795
    %v933 = vunpack.c.l.b16 %v796
    %v934 = vunpack.c.l.b16 %v797
    %v935 = vunpack.c.l.b16 %v798
    %v936 = vunpack.c.l.b16 %v799
    %v937 = vunpack.c.l.b16 %v800
    %v938 = vunpack.c.l.b16 %v801
    %v939 = vunpack.c.l.b16 %v802
    %v940 = vunpack.c.l.b16 %v803
    %v941 = vunpack.c.l.b16 %v804
    %v942 = vunpack.c.l.b16 %v805
    %v943 = vunpack.c.l.b16 %v806
    %v944 = vunpack.c.l.b16 %v807
    %v945 = vunpack.c.l.b16 %v808
    %v946 = vpack.c.b16 %v883, %v882
    %v947 = vpack.c.b16 %v885, %v884
    %v948 = vpack.c.b16 %v887, %v886
    %v949 = vpack.c.b16 %v889, %v888
    %v950 = vpack.c.b16 %v891, %v890
    %v951 = vpack.c.b16 %v893, %v892
    %v952 = vpack.c.b16 %v895, %v894
    %v953 = vpack.c.b16 %v897, %v896
    %v954 = vpack.c.b16 %v899, %v898
    %v955 = vpack.c.b16 %v901, %v900
    %v956 = vpack.c.b16 %v903, %v902
    %v957 = vpack.c.b16 %v905, %v904
    %v958 = vpack.c.b16 %v907, %v906
    %v959 = vpack.c.b16 %v909, %v908
    %v960 = vpack.c.b16 %v911, %v910
    %v961 = vpack.c.b16 %v913, %v912
    %v962 = vpack.c.b16 %v915, %v914
    %v963 = vpack.c.b16 %v917, %v916
    %v964 = vpack.c.b16 %v919, %v918
    %v965 = vpack.c.b16 %v921, %v920
    %v966 = vpack.c.b16 %v923, %v922
    %v967 = vpack.c.b16 %v925, %v924
    %v968 = vpack.c.b16 %v927, %v926
    %v969 = vpack.c.b16 %v929, %v928
    %v970 = vpack.c.b16 %v931, %v930
    %v971 = vpack.c.b16 %v933, %v932
    %v972 = vpack.c.b16 %v935, %v934
    %v973 = vpack.c.b16 %v937, %v936
    %v974 = vpack.c.b16 %v939, %v938
    %v975 = vpack.c.b16 %v941, %v940
    %v976 = vpack.c.b16 %v943, %v942
    %v977 = vpack.c.b16 %v945, %v944
    %1010 = vmatpush.bf16.msra.mxu0 %v953
    %1011 = vmatpush.bf16.msra.mxu0 %v952
    %1012 = vmatpush.bf16.msra.mxu0 %v951
    %1013 = vmatpush.bf16.msra.mxu0 %v950
    %1014 = vmatpush.bf16.msra.mxu0 %v949
    %1015 = vmatpush.bf16.msra.mxu0 %v948
    %1016 = vmatpush.bf16.msra.mxu0 %v947
    %1017 = vmatpush.bf16.msra.mxu0 %v946
    %1018 = vmatmul.bf16.gmra.mxu0 %v810
    %v1019 = vpop.f32.mrf.mxu0
    %v1020 = vadd.f32 0.0, %v1019
    %v1021 = vpop.f32.mrf.mxu0
    %1022 = vdwg.mxu0
    %1023 = vmatpush.bf16.msra.mxu0 %v961
    %1024 = vmatpush.bf16.msra.mxu0 %v960
    %1025 = vmatpush.bf16.msra.mxu0 %v959
    %1026 = vmatpush.bf16.msra.mxu0 %v958
    %1027 = vmatpush.bf16.msra.mxu0 %v957
    %1028 = vmatpush.bf16.msra.mxu0 %v956
    %1029 = vmatpush.bf16.msra.mxu0 %v955
    %1030 = vmatpush.bf16.msra.mxu0 %v954
    %1031 = vmatmul.bf16.gmra.mxu0 %v811
    %v1032 = vpop.f32.mrf.mxu0
    %v1033 = vadd.f32 %v1020, %v1032
    %v1034 = vpop.f32.mrf.mxu0
    %1035 = vdwg.mxu0
    %1036 = vmatpush.bf16.msra.mxu0 %v969
    %1037 = vmatpush.bf16.msra.mxu0 %v968
    %1038 = vmatpush.bf16.msra.mxu0 %v967
    %1039 = vmatpush.bf16.msra.mxu0 %v966
    %1040 = vmatpush.bf16.msra.mxu0 %v965
    %1041 = vmatpush.bf16.msra.mxu0 %v964
    %1042 = vmatpush.bf16.msra.mxu0 %v963
    %1043 = vmatpush.bf16.msra.mxu0 %v962
    %1044 = vmatmul.bf16.gmra.mxu0 %v812
    %v1045 = vpop.f32.mrf.mxu0
    %v1046 = vadd.f32 %v1033, %v1045
    %v1047 = vpop.f32.mrf.mxu0
    %1048 = vdwg.mxu0
    %1049 = vmatpush.bf16.msra.mxu0 %v977
    %1050 = vmatpush.bf16.msra.mxu0 %v976
    %1051 = vmatpush.bf16.msra.mxu0 %v975
    %1052 = vmatpush.bf16.msra.mxu0 %v974
    %1053 = vmatpush.bf16.msra.mxu0 %v973
    %1054 = vmatpush.bf16.msra.mxu0 %v972
    %1055 = vmatpush.bf16.msra.mxu0 %v971
    %1056 = vmatpush.bf16.msra.mxu0 %v970
    %1057 = vmatmul.bf16.gmra.mxu0 %v813
    %v1058 = vpop.f32.mrf.mxu0
    %v1059 = vadd.f32 %v1046, %v1058
    %v1060 = vpop.f32.mrf.mxu0
    %1061 = vdwg.mxu0
    %s1062 = scalar_lea.vmem [#allocation2], 768
    %v1063 = vld [vmem:[%s1062] sm:$0xf]
    %v1064 = vld [vmem:[%s1062 + $0x4] sm:$0xf]
    %v1065 = vld [vmem:[%s1062 + $0x8] sm:$0xf]
    %v1066 = vld [vmem:[%s1062 + $0xc] sm:$0xf]
    %v1067 = vld [vmem:[%s1062 + $0x10] sm:$0xf]
    %v1068 = vld [vmem:[%s1062 + $0x14] sm:$0xf]
    %v1069 = vld [vmem:[%s1062 + $0x18] sm:$0xf]
    %v1070 = vld [vmem:[%s1062 + $0x1c] sm:$0xf]
    %v1071 = vld [vmem:[%s1062 + $0x20] sm:$0xf]
    %v1072 = vld [vmem:[%s1062 + $0x24] sm:$0xf]
    %v1073 = vld [vmem:[%s1062 + $0x28] sm:$0xf]
    %v1074 = vld [vmem:[%s1062 + $0x2c] sm:$0xf]
    %v1075 = vld [vmem:[%s1062 + $0x30] sm:$0xf]
    %v1076 = vld [vmem:[%s1062 + $0x34] sm:$0xf]
    %v1077 = vld [vmem:[%s1062 + $0x38] sm:$0xf]
    %v1078 = vld [vmem:[%s1062 + $0x3c] sm:$0xf]
    %v1079 = vld [vmem:[%s1062 + $0x40] sm:$0xf]
    %v1080 = vld [vmem:[%s1062 + $0x44] sm:$0xf]
    %v1081 = vld [vmem:[%s1062 + $0x48] sm:$0xf]
    %v1082 = vld [vmem:[%s1062 + $0x4c] sm:$0xf]
    %v1083 = vld [vmem:[%s1062 + $0x50] sm:$0xf]
    %v1084 = vld [vmem:[%s1062 + $0x54] sm:$0xf]
    %v1085 = vld [vmem:[%s1062 + $0x58] sm:$0xf]
    %v1086 = vld [vmem:[%s1062 + $0x5c] sm:$0xf]
    %v1087 = vld [vmem:[%s1062 + $0x60] sm:$0xf]
    %v1088 = vld [vmem:[%s1062 + $0x64] sm:$0xf]
    %v1089 = vld [vmem:[%s1062 + $0x68] sm:$0xf]
    %v1090 = vld [vmem:[%s1062 + $0x6c] sm:$0xf]
    %v1091 = vld [vmem:[%s1062 + $0x70] sm:$0xf]
    %v1092 = vld [vmem:[%s1062 + $0x74] sm:$0xf]
    %v1093 = vld [vmem:[%s1062 + $0x78] sm:$0xf]
    %v1094 = vld [vmem:[%s1062 + $0x7c] sm:$0xf]
    %v1095 = vld [vmem:[%s1062 + $0x80] sm:$0xf]
    %v1096 = vld [vmem:[%s1062 + $0x84] sm:$0xf]
    %v1097 = vld [vmem:[%s1062 + $0x88] sm:$0xf]
    %v1098 = vld [vmem:[%s1062 + $0x8c] sm:$0xf]
    %v1099 = vld [vmem:[%s1062 + $0x90] sm:$0xf]
    %v1100 = vld [vmem:[%s1062 + $0x94] sm:$0xf]
    %v1101 = vld [vmem:[%s1062 + $0x98] sm:$0xf]
    %v1102 = vld [vmem:[%s1062 + $0x9c] sm:$0xf]
    %v1103 = vld [vmem:[%s1062 + $0xa0] sm:$0xf]
    %v1104 = vld [vmem:[%s1062 + $0xa4] sm:$0xf]
    %v1105 = vld [vmem:[%s1062 + $0xa8] sm:$0xf]
    %v1106 = vld [vmem:[%s1062 + $0xac] sm:$0xf]
    %v1107 = vld [vmem:[%s1062 + $0xb0] sm:$0xf]
    %v1108 = vld [vmem:[%s1062 + $0xb4] sm:$0xf]
    %v1109 = vld [vmem:[%s1062 + $0xb8] sm:$0xf]
    %v1110 = vld [vmem:[%s1062 + $0xbc] sm:$0xf]
    %v1111 = vld [vmem:[%s1062 + $0xc0] sm:$0xf]
    %v1112 = vld [vmem:[%s1062 + $0xc4] sm:$0xf]
    %v1113 = vld [vmem:[%s1062 + $0xc8] sm:$0xf]
    %v1114 = vld [vmem:[%s1062 + $0xcc] sm:$0xf]
    %v1115 = vld [vmem:[%s1062 + $0xd0] sm:$0xf]
    %v1116 = vld [vmem:[%s1062 + $0xd4] sm:$0xf]
    %v1117 = vld [vmem:[%s1062 + $0xd8] sm:$0xf]
    %v1118 = vld [vmem:[%s1062 + $0xdc] sm:$0xf]
    %v1119 = vld [vmem:[%s1062 + $0xe0] sm:$0xf]
    %v1120 = vld [vmem:[%s1062 + $0xe4] sm:$0xf]
    %v1121 = vld [vmem:[%s1062 + $0xe8] sm:$0xf]
    %v1122 = vld [vmem:[%s1062 + $0xec] sm:$0xf]
    %v1123 = vld [vmem:[%s1062 + $0xf0] sm:$0xf]
    %v1124 = vld [vmem:[%s1062 + $0xf4] sm:$0xf]
    %v1125 = vld [vmem:[%s1062 + $0xf8] sm:$0xf]
    %v1126 = vld [vmem:[%s1062 + $0xfc] sm:$0xf]
    %1127 = vst [vmem:[#allocation1] ss:$9 sm:$0xff] %v107
    %v1128 = vld [vmem:[#allocation1] sm:$0xff]
    %v1129 = vld [vmem:[#allocation1 + $0x9] sm:$0xff]
    %v1130 = vld [vmem:[#allocation1 + $0x12] sm:$0xff]
    %v1131 = vld [vmem:[#allocation1 + $0x1b] sm:$0xff]
    %v1200 = vunpack.c.l.b16 %v1063
    %v1201 = vunpack.c.l.b16 %v1064
    %v1202 = vunpack.c.l.b16 %v1065
    %v1203 = vunpack.c.l.b16 %v1066
    %v1204 = vunpack.c.l.b16 %v1067
    %v1205 = vunpack.c.l.b16 %v1068
    %v1206 = vunpack.c.l.b16 %v1069
    %v1207 = vunpack.c.l.b16 %v1070
    %v1208 = vunpack.c.l.b16 %v1071
    %v1209 = vunpack.c.l.b16 %v1072
    %v1210 = vunpack.c.l.b16 %v1073
    %v1211 = vunpack.c.l.b16 %v1074
    %v1212 = vunpack.c.l.b16 %v1075
    %v1213 = vunpack.c.l.b16 %v1076
    %v1214 = vunpack.c.l.b16 %v1077
    %v1215 = vunpack.c.l.b16 %v1078
    %v1216 = vunpack.c.l.b16 %v1079
    %v1217 = vunpack.c.l.b16 %v1080
    %v1218 = vunpack.c.l.b16 %v1081
    %v1219 = vunpack.c.l.b16 %v1082
    %v1220 = vunpack.c.l.b16 %v1083
    %v1221 = vunpack.c.l.b16 %v1084
    %v1222 = vunpack.c.l.b16 %v1085
    %v1223 = vunpack.c.l.b16 %v1086
    %v1224 = vunpack.c.l.b16 %v1087
    %v1225 = vunpack.c.l.b16 %v1088
    %v1226 = vunpack.c.l.b16 %v1089
    %v1227 = vunpack.c.l.b16 %v1090
    %v1228 = vunpack.c.l.b16 %v1091
    %v1229 = vunpack.c.l.b16 %v1092
    %v1230 = vunpack.c.l.b16 %v1093
    %v1231 = vunpack.c.l.b16 %v1094
    %v1232 = vunpack.c.l.b16 %v1095
    %v1233 = vunpack.c.l.b16 %v1096
    %v1234 = vunpack.c.l.b16 %v1097
    %v1235 = vunpack.c.l.b16 %v1098
    %v1236 = vunpack.c.l.b16 %v1099
    %v1237 = vunpack.c.l.b16 %v1100
    %v1238 = vunpack.c.l.b16 %v1101
    %v1239 = vunpack.c.l.b16 %v1102
    %v1240 = vunpack.c.l.b16 %v1103
    %v1241 = vunpack.c.l.b16 %v1104
    %v1242 = vunpack.c.l.b16 %v1105
    %v1243 = vunpack.c.l.b16 %v1106
    %v1244 = vunpack.c.l.b16 %v1107
    %v1245 = vunpack.c.l.b16 %v1108
    %v1246 = vunpack.c.l.b16 %v1109
    %v1247 = vunpack.c.l.b16 %v1110
    %v1248 = vunpack.c.l.b16 %v1111
    %v1249 = vunpack.c.l.b16 %v1112
    %v1250 = vunpack.c.l.b16 %v1113
    %v1251 = vunpack.c.l.b16 %v1114
    %v1252 = vunpack.c.l.b16 %v1115
    %v1253 = vunpack.c.l.b16 %v1116
    %v1254 = vunpack.c.l.b16 %v1117
    %v1255 = vunpack.c.l.b16 %v1118
    %v1256 = vunpack.c.l.b16 %v1119
    %v1257 = vunpack.c.l.b16 %v1120
    %v1258 = vunpack.c.l.b16 %v1121
    %v1259 = vunpack.c.l.b16 %v1122
    %v1260 = vunpack.c.l.b16 %v1123
    %v1261 = vunpack.c.l.b16 %v1124
    %v1262 = vunpack.c.l.b16 %v1125
    %v1263 = vunpack.c.l.b16 %v1126
    %v1264 = vpack.c.b16 %v1201, %v1200
    %v1265 = vpack.c.b16 %v1203, %v1202
    %v1266 = vpack.c.b16 %v1205, %v1204
    %v1267 = vpack.c.b16 %v1207, %v1206
    %v1268 = vpack.c.b16 %v1209, %v1208
    %v1269 = vpack.c.b16 %v1211, %v1210
    %v1270 = vpack.c.b16 %v1213, %v1212
    %v1271 = vpack.c.b16 %v1215, %v1214
    %v1272 = vpack.c.b16 %v1217, %v1216
    %v1273 = vpack.c.b16 %v1219, %v1218
    %v1274 = vpack.c.b16 %v1221, %v1220
    %v1275 = vpack.c.b16 %v1223, %v1222
    %v1276 = vpack.c.b16 %v1225, %v1224
    %v1277 = vpack.c.b16 %v1227, %v1226
    %v1278 = vpack.c.b16 %v1229, %v1228
    %v1279 = vpack.c.b16 %v1231, %v1230
    %v1280 = vpack.c.b16 %v1233, %v1232
    %v1281 = vpack.c.b16 %v1235, %v1234
    %v1282 = vpack.c.b16 %v1237, %v1236
    %v1283 = vpack.c.b16 %v1239, %v1238
    %v1284 = vpack.c.b16 %v1241, %v1240
    %v1285 = vpack.c.b16 %v1243, %v1242
    %v1286 = vpack.c.b16 %v1245, %v1244
    %v1287 = vpack.c.b16 %v1247, %v1246
    %v1288 = vpack.c.b16 %v1249, %v1248
    %v1289 = vpack.c.b16 %v1251, %v1250
    %v1290 = vpack.c.b16 %v1253, %v1252
    %v1291 = vpack.c.b16 %v1255, %v1254
    %v1292 = vpack.c.b16 %v1257, %v1256
    %v1293 = vpack.c.b16 %v1259, %v1258
    %v1294 = vpack.c.b16 %v1261, %v1260
    %v1295 = vpack.c.b16 %v1263, %v1262
    %1328 = vmatpush.bf16.msra.mxu0 %v1271
    %1329 = vmatpush.bf16.msra.mxu0 %v1270
    %1330 = vmatpush.bf16.msra.mxu0 %v1269
    %1331 = vmatpush.bf16.msra.mxu0 %v1268
    %1332 = vmatpush.bf16.msra.mxu0 %v1267
    %1333 = vmatpush.bf16.msra.mxu0 %v1266
    %1334 = vmatpush.bf16.msra.mxu0 %v1265
    %1335 = vmatpush.bf16.msra.mxu0 %v1264
    %1336 = vmatmul.bf16.gmra.mxu0 %v1128
    %v1337 = vpop.f32.mrf.mxu0
    %v1338 = vadd.f32 0.0, %v1337
    %v1339 = vpop.f32.mrf.mxu0
    %1340 = vdwg.mxu0
    %1341 = vmatpush.bf16.msra.mxu0 %v1279
    %1342 = vmatpush.bf16.msra.mxu0 %v1278
    %1343 = vmatpush.bf16.msra.mxu0 %v1277
    %1344 = vmatpush.bf16.msra.mxu0 %v1276
    %1345 = vmatpush.bf16.msra.mxu0 %v1275
    %1346 = vmatpush.bf16.msra.mxu0 %v1274
    %1347 = vmatpush.bf16.msra.mxu0 %v1273
    %1348 = vmatpush.bf16.msra.mxu0 %v1272
    %1349 = vmatmul.bf16.gmra.mxu0 %v1129
    %v1350 = vpop.f32.mrf.mxu0
    %v1351 = vadd.f32 %v1338, %v1350
    %v1352 = vpop.f32.mrf.mxu0
    %1353 = vdwg.mxu0
    %1354 = vmatpush.bf16.msra.mxu0 %v1287
    %1355 = vmatpush.bf16.msra.mxu0 %v1286
    %1356 = vmatpush.bf16.msra.mxu0 %v1285
    %1357 = vmatpush.bf16.msra.mxu0 %v1284
    %1358 = vmatpush.bf16.msra.mxu0 %v1283
    %1359 = vmatpush.bf16.msra.mxu0 %v1282
    %1360 = vmatpush.bf16.msra.mxu0 %v1281
    %1361 = vmatpush.bf16.msra.mxu0 %v1280
    %1362 = vmatmul.bf16.gmra.mxu0 %v1130
    %v1363 = vpop.f32.mrf.mxu0
    %v1364 = vadd.f32 %v1351, %v1363
    %v1365 = vpop.f32.mrf.mxu0
    %1366 = vdwg.mxu0
    %1367 = vmatpush.bf16.msra.mxu0 %v1295
    %1368 = vmatpush.bf16.msra.mxu0 %v1294
    %1369 = vmatpush.bf16.msra.mxu0 %v1293
    %1370 = vmatpush.bf16.msra.mxu0 %v1292
    %1371 = vmatpush.bf16.msra.mxu0 %v1291
    %1372 = vmatpush.bf16.msra.mxu0 %v1290
    %1373 = vmatpush.bf16.msra.mxu0 %v1289
    %1374 = vmatpush.bf16.msra.mxu0 %v1288
    %1375 = vmatmul.bf16.gmra.mxu0 %v1131
    %v1376 = vpop.f32.mrf.mxu0
    %v1377 = vadd.f32 %v1364, %v1376
    %v1378 = vpop.f32.mrf.mxu0
    %1379 = vdwg.mxu0
    %s1380 = scalar_lea.vmem [#allocation2], 1024
    %v1381 = vld [vmem:[%s1380] sm:$0xf]
    %v1382 = vld [vmem:[%s1380 + $0x4] sm:$0xf]
    %v1383 = vld [vmem:[%s1380 + $0x8] sm:$0xf]
    %v1384 = vld [vmem:[%s1380 + $0xc] sm:$0xf]
    %v1385 = vld [vmem:[%s1380 + $0x10] sm:$0xf]
    %v1386 = vld [vmem:[%s1380 + $0x14] sm:$0xf]
    %v1387 = vld [vmem:[%s1380 + $0x18] sm:$0xf]
    %v1388 = vld [vmem:[%s1380 + $0x1c] sm:$0xf]
    %v1389 = vld [vmem:[%s1380 + $0x20] sm:$0xf]
    %v1390 = vld [vmem:[%s1380 + $0x24] sm:$0xf]
    %v1391 = vld [vmem:[%s1380 + $0x28] sm:$0xf]
    %v1392 = vld [vmem:[%s1380 + $0x2c] sm:$0xf]
    %v1393 = vld [vmem:[%s1380 + $0x30] sm:$0xf]
    %v1394 = vld [vmem:[%s1380 + $0x34] sm:$0xf]
    %v1395 = vld [vmem:[%s1380 + $0x38] sm:$0xf]
    %v1396 = vld [vmem:[%s1380 + $0x3c] sm:$0xf]
    %v1397 = vld [vmem:[%s1380 + $0x40] sm:$0xf]
    %v1398 = vld [vmem:[%s1380 + $0x44] sm:$0xf]
    %v1399 = vld [vmem:[%s1380 + $0x48] sm:$0xf]
    %v1400 = vld [vmem:[%s1380 + $0x4c] sm:$0xf]
    %v1401 = vld [vmem:[%s1380 + $0x50] sm:$0xf]
    %v1402 = vld [vmem:[%s1380 + $0x54] sm:$0xf]
    %v1403 = vld [vmem:[%s1380 + $0x58] sm:$0xf]
    %v1404 = vld [vmem:[%s1380 + $0x5c] sm:$0xf]
    %v1405 = vld [vmem:[%s1380 + $0x60] sm:$0xf]
    %v1406 = vld [vmem:[%s1380 + $0x64] sm:$0xf]
    %v1407 = vld [vmem:[%s1380 + $0x68] sm:$0xf]
    %v1408 = vld [vmem:[%s1380 + $0x6c] sm:$0xf]
    %v1409 = vld [vmem:[%s1380 + $0x70] sm:$0xf]
    %v1410 = vld [vmem:[%s1380 + $0x74] sm:$0xf]
    %v1411 = vld [vmem:[%s1380 + $0x78] sm:$0xf]
    %v1412 = vld [vmem:[%s1380 + $0x7c] sm:$0xf]
    %v1413 = vld [vmem:[%s1380 + $0x80] sm:$0xf]
    %v1414 = vld [vmem:[%s1380 + $0x84] sm:$0xf]
    %v1415 = vld [vmem:[%s1380 + $0x88] sm:$0xf]
    %v1416 = vld [vmem:[%s1380 + $0x8c] sm:$0xf]
    %v1417 = vld [vmem:[%s1380 + $0x90] sm:$0xf]
    %v1418 = vld [vmem:[%s1380 + $0x94] sm:$0xf]
    %v1419 = vld [vmem:[%s1380 + $0x98] sm:$0xf]
    %v1420 = vld [vmem:[%s1380 + $0x9c] sm:$0xf]
    %v1421 = vld [vmem:[%s1380 + $0xa0] sm:$0xf]
    %v1422 = vld [vmem:[%s1380 + $0xa4] sm:$0xf]
    %v1423 = vld [vmem:[%s1380 + $0xa8] sm:$0xf]
    %v1424 = vld [vmem:[%s1380 + $0xac] sm:$0xf]
    %v1425 = vld [vmem:[%s1380 + $0xb0] sm:$0xf]
    %v1426 = vld [vmem:[%s1380 + $0xb4] sm:$0xf]
    %v1427 = vld [vmem:[%s1380 + $0xb8] sm:$0xf]
    %v1428 = vld [vmem:[%s1380 + $0xbc] sm:$0xf]
    %v1429 = vld [vmem:[%s1380 + $0xc0] sm:$0xf]
    %v1430 = vld [vmem:[%s1380 + $0xc4] sm:$0xf]
    %v1431 = vld [vmem:[%s1380 + $0xc8] sm:$0xf]
    %v1432 = vld [vmem:[%s1380 + $0xcc] sm:$0xf]
    %v1433 = vld [vmem:[%s1380 + $0xd0] sm:$0xf]
    %v1434 = vld [vmem:[%s1380 + $0xd4] sm:$0xf]
    %v1435 = vld [vmem:[%s1380 + $0xd8] sm:$0xf]
    %v1436 = vld [vmem:[%s1380 + $0xdc] sm:$0xf]
    %v1437 = vld [vmem:[%s1380 + $0xe0] sm:$0xf]
    %v1438 = vld [vmem:[%s1380 + $0xe4] sm:$0xf]
    %v1439 = vld [vmem:[%s1380 + $0xe8] sm:$0xf]
    %v1440 = vld [vmem:[%s1380 + $0xec] sm:$0xf]
    %v1441 = vld [vmem:[%s1380 + $0xf0] sm:$0xf]
    %v1442 = vld [vmem:[%s1380 + $0xf4] sm:$0xf]
    %v1443 = vld [vmem:[%s1380 + $0xf8] sm:$0xf]
    %v1444 = vld [vmem:[%s1380 + $0xfc] sm:$0xf]
    %1445 = vst [vmem:[#allocation1] ss:$9 sm:$0xff] %v107
    %v1446 = vld [vmem:[#allocation1] sm:$0xff]
    %v1447 = vld [vmem:[#allocation1 + $0x9] sm:$0xff]
    %v1448 = vld [vmem:[#allocation1 + $0x12] sm:$0xff]
    %v1449 = vld [vmem:[#allocation1 + $0x1b] sm:$0xff]
    %v1518 = vunpack.c.l.b16 %v1381
    %v1519 = vunpack.c.l.b16 %v1382
    %v1520 = vunpack.c.l.b16 %v1383
    %v1521 = vunpack.c.l.b16 %v1384
    %v1522 = vunpack.c.l.b16 %v1385
    %v1523 = vunpack.c.l.b16 %v1386
    %v1524 = vunpack.c.l.b16 %v1387
    %v1525 = vunpack.c.l.b16 %v1388
    %v1526 = vunpack.c.l.b16 %v1389
    %v1527 = vunpack.c.l.b16 %v1390
    %v1528 = vunpack.c.l.b16 %v1391
    %v1529 = vunpack.c.l.b16 %v1392
    %v1530 = vunpack.c.l.b16 %v1393
    %v1531 = vunpack.c.l.b16 %v1394
    %v1532 = vunpack.c.l.b16 %v1395
    %v1533 = vunpack.c.l.b16 %v1396
    %v1534 = vunpack.c.l.b16 %v1397
    %v1535 = vunpack.c.l.b16 %v1398
    %v1536 = vunpack.c.l.b16 %v1399
    %v1537 = vunpack.c.l.b16 %v1400
    %v1538 = vunpack.c.l.b16 %v1401
    %v1539 = vunpack.c.l.b16 %v1402
    %v1540 = vunpack.c.l.b16 %v1403
    %v1541 = vunpack.c.l.b16 %v1404
    %v1542 = vunpack.c.l.b16 %v1405
    %v1543 = vunpack.c.l.b16 %v1406
    %v1544 = vunpack.c.l.b16 %v1407
    %v1545 = vunpack.c.l.b16 %v1408
    %v1546 = vunpack.c.l.b16 %v1409
    %v1547 = vunpack.c.l.b16 %v1410
    %v1548 = vunpack.c.l.b16 %v1411
    %v1549 = vunpack.c.l.b16 %v1412
    %v1550 = vunpack.c.l.b16 %v1413
    %v1551 = vunpack.c.l.b16 %v1414
    %v1552 = vunpack.c.l.b16 %v1415
    %v1553 = vunpack.c.l.b16 %v1416
    %v1554 = vunpack.c.l.b16 %v1417
    %v1555 = vunpack.c.l.b16 %v1418
    %v1556 = vunpack.c.l.b16 %v1419
    %v1557 = vunpack.c.l.b16 %v1420
    %v1558 = vunpack.c.l.b16 %v1421
    %v1559 = vunpack.c.l.b16 %v1422
    %v1560 = vunpack.c.l.b16 %v1423
    %v1561 = vunpack.c.l.b16 %v1424
    %v1562 = vunpack.c.l.b16 %v1425
    %v1563 = vunpack.c.l.b16 %v1426
    %v1564 = vunpack.c.l.b16 %v1427
    %v1565 = vunpack.c.l.b16 %v1428
    %v1566 = vunpack.c.l.b16 %v1429
    %v1567 = vunpack.c.l.b16 %v1430
    %v1568 = vunpack.c.l.b16 %v1431
    %v1569 = vunpack.c.l.b16 %v1432
    %v1570 = vunpack.c.l.b16 %v1433
    %v1571 = vunpack.c.l.b16 %v1434
    %v1572 = vunpack.c.l.b16 %v1435
    %v1573 = vunpack.c.l.b16 %v1436
    %v1574 = vunpack.c.l.b16 %v1437
    %v1575 = vunpack.c.l.b16 %v1438
    %v1576 = vunpack.c.l.b16 %v1439
    %v1577 = vunpack.c.l.b16 %v1440
    %v1578 = vunpack.c.l.b16 %v1441
    %v1579 = vunpack.c.l.b16 %v1442
    %v1580 = vunpack.c.l.b16 %v1443
    %v1581 = vunpack.c.l.b16 %v1444
    %v1582 = vpack.c.b16 %v1519, %v1518
    %v1583 = vpack.c.b16 %v1521, %v1520
    %v1584 = vpack.c.b16 %v1523, %v1522
    %v1585 = vpack.c.b16 %v1525, %v1524
    %v1586 = vpack.c.b16 %v1527, %v1526
    %v1587 = vpack.c.b16 %v1529, %v1528
    %v1588 = vpack.c.b16 %v1531, %v1530
    %v1589 = vpack.c.b16 %v1533, %v1532
    %v1590 = vpack.c.b16 %v1535, %v1534
    %v1591 = vpack.c.b16 %v1537, %v1536
    %v1592 = vpack.c.b16 %v1539, %v1538
    %v1593 = vpack.c.b16 %v1541, %v1540
    %v1594 = vpack.c.b16 %v1543, %v1542
    %v1595 = vpack.c.b16 %v1545, %v1544
    %v1596 = vpack.c.b16 %v1547, %v1546
    %v1597 = vpack.c.b16 %v1549, %v1548
    %v1598 = vpack.c.b16 %v1551, %v1550
    %v1599 = vpack.c.b16 %v1553, %v1552
    %v1600 = vpack.c.b16 %v1555, %v1554
    %v1601 = vpack.c.b16 %v1557, %v1556
    %v1602 = vpack.c.b16 %v1559, %v1558
    %v1603 = vpack.c.b16 %v1561, %v1560
    %v1604 = vpack.c.b16 %v1563, %v1562
    %v1605 = vpack.c.b16 %v1565, %v1564
    %v1606 = vpack.c.b16 %v1567, %v1566
    %v1607 = vpack.c.b16 %v1569, %v1568
    %v1608 = vpack.c.b16 %v1571, %v1570
    %v1609 = vpack.c.b16 %v1573, %v1572
    %v1610 = vpack.c.b16 %v1575, %v1574
    %v1611 = vpack.c.b16 %v1577, %v1576
    %v1612 = vpack.c.b16 %v1579, %v1578
    %v1613 = vpack.c.b16 %v1581, %v1580
    %1646 = vmatpush.bf16.msra.mxu0 %v1589
    %1647 = vmatpush.bf16.msra.mxu0 %v1588
    %1648 = vmatpush.bf16.msra.mxu0 %v1587
    %1649 = vmatpush.bf16.msra.mxu0 %v1586
    %1650 = vmatpush.bf16.msra.mxu0 %v1585
    %1651 = vmatpush.bf16.msra.mxu0 %v1584
    %1652 = vmatpush.bf16.msra.mxu0 %v1583
    %1653 = vmatpush.bf16.msra.mxu0 %v1582
    %1654 = vmatmul.bf16.gmra.mxu0 %v1446
    %v1655 = vpop.f32.mrf.mxu0
    %v1656 = vadd.f32 0.0, %v1655
    %v1657 = vpop.f32.mrf.mxu0
    %1658 = vdwg.mxu0
    %1659 = vmatpush.bf16.msra.mxu0 %v1597
    %1660 = vmatpush.bf16.msra.mxu0 %v1596
    %1661 = vmatpush.bf16.msra.mxu0 %v1595
    %1662 = vmatpush.bf16.msra.mxu0 %v1594
    %1663 = vmatpush.bf16.msra.mxu0 %v1593
    %1664 = vmatpush.bf16.msra.mxu0 %v1592
    %1665 = vmatpush.bf16.msra.mxu0 %v1591
    %1666 = vmatpush.bf16.msra.mxu0 %v1590
    %1667 = vmatmul.bf16.gmra.mxu0 %v1447
    %v1668 = vpop.f32.mrf.mxu0
    %v1669 = vadd.f32 %v1656, %v1668
    %v1670 = vpop.f32.mrf.mxu0
    %1671 = vdwg.mxu0
    %1672 = vmatpush.bf16.msra.mxu0 %v1605
    %1673 = vmatpush.bf16.msra.mxu0 %v1604
    %1674 = vmatpush.bf16.msra.mxu0 %v1603
    %1675 = vmatpush.bf16.msra.mxu0 %v1602
    %1676 = vmatpush.bf16.msra.mxu0 %v1601
    %1677 = vmatpush.bf16.msra.mxu0 %v1600
    %1678 = vmatpush.bf16.msra.mxu0 %v1599
    %1679 = vmatpush.bf16.msra.mxu0 %v1598
    %1680 = vmatmul.bf16.gmra.mxu0 %v1448
    %v1681 = vpop.f32.mrf.mxu0
    %v1682 = vadd.f32 %v1669, %v1681
    %v1683 = vpop.f32.mrf.mxu0
    %1684 = vdwg.mxu0
    %1685 = vmatpush.bf16.msra.mxu0 %v1613
    %1686 = vmatpush.bf16.msra.mxu0 %v1612
    %1687 = vmatpush.bf16.msra.mxu0 %v1611
    %1688 = vmatpush.bf16.msra.mxu0 %v1610
    %1689 = vmatpush.bf16.msra.mxu0 %v1609
    %1690 = vmatpush.bf16.msra.mxu0 %v1608
    %1691 = vmatpush.bf16.msra.mxu0 %v1607
    %1692 = vmatpush.bf16.msra.mxu0 %v1606
    %1693 = vmatmul.bf16.gmra.mxu0 %v1449
    %v1694 = vpop.f32.mrf.mxu0
    %v1695 = vadd.f32 %v1682, %v1694
    %v1696 = vpop.f32.mrf.mxu0
    %1697 = vdwg.mxu0
    %s1698 = scalar_lea.vmem [#allocation2], 1280
    %v1699 = vld [vmem:[%s1698] sm:$0xf]
    %v1700 = vld [vmem:[%s1698 + $0x4] sm:$0xf]
    %v1701 = vld [vmem:[%s1698 + $0x8] sm:$0xf]
    %v1702 = vld [vmem:[%s1698 + $0xc] sm:$0xf]
    %v1703 = vld [vmem:[%s1698 + $0x10] sm:$0xf]
    %v1704 = vld [vmem:[%s1698 + $0x14] sm:$0xf]
    %v1705 = vld [vmem:[%s1698 + $0x18] sm:$0xf]
    %v1706 = vld [vmem:[%s1698 + $0x1c] sm:$0xf]
    %v1707 = vld [vmem:[%s1698 + $0x20] sm:$0xf]
    %v1708 = vld [vmem:[%s1698 + $0x24] sm:$0xf]
    %v1709 = vld [vmem:[%s1698 + $0x28] sm:$0xf]
    %v1710 = vld [vmem:[%s1698 + $0x2c] sm:$0xf]
    %v1711 = vld [vmem:[%s1698 + $0x30] sm:$0xf]
    %v1712 = vld [vmem:[%s1698 + $0x34] sm:$0xf]
    %v1713 = vld [vmem:[%s1698 + $0x38] sm:$0xf]
    %v1714 = vld [vmem:[%s1698 + $0x3c] sm:$0xf]
    %v1715 = vld [vmem:[%s1698 + $0x40] sm:$0xf]
    %v1716 = vld [vmem:[%s1698 + $0x44] sm:$0xf]
    %v1717 = vld [vmem:[%s1698 + $0x48] sm:$0xf]
    %v1718 = vld [vmem:[%s1698 + $0x4c] sm:$0xf]
    %v1719 = vld [vmem:[%s1698 + $0x50] sm:$0xf]
    %v1720 = vld [vmem:[%s1698 + $0x54] sm:$0xf]
    %v1721 = vld [vmem:[%s1698 + $0x58] sm:$0xf]
    %v1722 = vld [vmem:[%s1698 + $0x5c] sm:$0xf]
    %v1723 = vld [vmem:[%s1698 + $0x60] sm:$0xf]
    %v1724 = vld [vmem:[%s1698 + $0x64] sm:$0xf]
    %v1725 = vld [vmem:[%s1698 + $0x68] sm:$0xf]
    %v1726 = vld [vmem:[%s1698 + $0x6c] sm:$0xf]
    %v1727 = vld [vmem:[%s1698 + $0x70] sm:$0xf]
    %v1728 = vld [vmem:[%s1698 + $0x74] sm:$0xf]
    %v1729 = vld [vmem:[%s1698 + $0x78] sm:$0xf]
    %v1730 = vld [vmem:[%s1698 + $0x7c] sm:$0xf]
    %v1731 = vld [vmem:[%s1698 + $0x80] sm:$0xf]
    %v1732 = vld [vmem:[%s1698 + $0x84] sm:$0xf]
    %v1733 = vld [vmem:[%s1698 + $0x88] sm:$0xf]
    %v1734 = vld [vmem:[%s1698 + $0x8c] sm:$0xf]
    %v1735 = vld [vmem:[%s1698 + $0x90] sm:$0xf]
    %v1736 = vld [vmem:[%s1698 + $0x94] sm:$0xf]
    %v1737 = vld [vmem:[%s1698 + $0x98] sm:$0xf]
    %v1738 = vld [vmem:[%s1698 + $0x9c] sm:$0xf]
    %v1739 = vld [vmem:[%s1698 + $0xa0] sm:$0xf]
    %v1740 = vld [vmem:[%s1698 + $0xa4] sm:$0xf]
    %v1741 = vld [vmem:[%s1698 + $0xa8] sm:$0xf]
    %v1742 = vld [vmem:[%s1698 + $0xac] sm:$0xf]
    %v1743 = vld [vmem:[%s1698 + $0xb0] sm:$0xf]
    %v1744 = vld [vmem:[%s1698 + $0xb4] sm:$0xf]
    %v1745 = vld [vmem:[%s1698 + $0xb8] sm:$0xf]
    %v1746 = vld [vmem:[%s1698 + $0xbc] sm:$0xf]
    %v1747 = vld [vmem:[%s1698 + $0xc0] sm:$0xf]
    %v1748 = vld [vmem:[%s1698 + $0xc4] sm:$0xf]
    %v1749 = vld [vmem:[%s1698 + $0xc8] sm:$0xf]
    %v1750 = vld [vmem:[%s1698 + $0xcc] sm:$0xf]
    %v1751 = vld [vmem:[%s1698 + $0xd0] sm:$0xf]
    %v1752 = vld [vmem:[%s1698 + $0xd4] sm:$0xf]
    %v1753 = vld [vmem:[%s1698 + $0xd8] sm:$0xf]
    %v1754 = vld [vmem:[%s1698 + $0xdc] sm:$0xf]
    %v1755 = vld [vmem:[%s1698 + $0xe0] sm:$0xf]
    %v1756 = vld [vmem:[%s1698 + $0xe4] sm:$0xf]
    %v1757 = vld [vmem:[%s1698 + $0xe8] sm:$0xf]
    %v1758 = vld [vmem:[%s1698 + $0xec] sm:$0xf]
    %v1759 = vld [vmem:[%s1698 + $0xf0] sm:$0xf]
    %v1760 = vld [vmem:[%s1698 + $0xf4] sm:$0xf]
    %v1761 = vld [vmem:[%s1698 + $0xf8] sm:$0xf]
    %v1762 = vld [vmem:[%s1698 + $0xfc] sm:$0xf]
    %1763 = vst [vmem:[#allocation1] ss:$9 sm:$0xff] %v107
    %v1764 = vld [vmem:[#allocation1] sm:$0xff]
    %v1765 = vld [vmem:[#allocation1 + $0x9] sm:$0xff]
    %v1766 = vld [vmem:[#allocation1 + $0x12] sm:$0xff]
    %v1767 = vld [vmem:[#allocation1 + $0x1b] sm:$0xff]
    %v1836 = vunpack.c.l.b16 %v1699
    %v1837 = vunpack.c.l.b16 %v1700
    %v1838 = vunpack.c.l.b16 %v1701
    %v1839 = vunpack.c.l.b16 %v1702
    %v1840 = vunpack.c.l.b16 %v1703
    %v1841 = vunpack.c.l.b16 %v1704
    %v1842 = vunpack.c.l.b16 %v1705
    %v1843 = vunpack.c.l.b16 %v1706
    %v1844 = vunpack.c.l.b16 %v1707
    %v1845 = vunpack.c.l.b16 %v1708
    %v1846 = vunpack.c.l.b16 %v1709
    %v1847 = vunpack.c.l.b16 %v1710
    %v1848 = vunpack.c.l.b16 %v1711
    %v1849 = vunpack.c.l.b16 %v1712
    %v1850 = vunpack.c.l.b16 %v1713
    %v1851 = vunpack.c.l.b16 %v1714
    %v1852 = vunpack.c.l.b16 %v1715
    %v1853 = vunpack.c.l.b16 %v1716
    %v1854 = vunpack.c.l.b16 %v1717
    %v1855 = vunpack.c.l.b16 %v1718
    %v1856 = vunpack.c.l.b16 %v1719
    %v1857 = vunpack.c.l.b16 %v1720
    %v1858 = vunpack.c.l.b16 %v1721
    %v1859 = vunpack.c.l.b16 %v1722
    %v1860 = vunpack.c.l.b16 %v1723
    %v1861 = vunpack.c.l.b16 %v1724
    %v1862 = vunpack.c.l.b16 %v1725
    %v1863 = vunpack.c.l.b16 %v1726
    %v1864 = vunpack.c.l.b16 %v1727
    %v1865 = vunpack.c.l.b16 %v1728
    %v1866 = vunpack.c.l.b16 %v1729
    %v1867 = vunpack.c.l.b16 %v1730
    %v1868 = vunpack.c.l.b16 %v1731
    %v1869 = vunpack.c.l.b16 %v1732
    %v1870 = vunpack.c.l.b16 %v1733
    %v1871 = vunpack.c.l.b16 %v1734
    %v1872 = vunpack.c.l.b16 %v1735
    %v1873 = vunpack.c.l.b16 %v1736
    %v1874 = vunpack.c.l.b16 %v1737
    %v1875 = vunpack.c.l.b16 %v1738
    %v1876 = vunpack.c.l.b16 %v1739
    %v1877 = vunpack.c.l.b16 %v1740
    %v1878 = vunpack.c.l.b16 %v1741
    %v1879 = vunpack.c.l.b16 %v1742
    %v1880 = vunpack.c.l.b16 %v1743
    %v1881 = vunpack.c.l.b16 %v1744
    %v1882 = vunpack.c.l.b16 %v1745
    %v1883 = vunpack.c.l.b16 %v1746
    %v1884 = vunpack.c.l.b16 %v1747
    %v1885 = vunpack.c.l.b16 %v1748
    %v1886 = vunpack.c.l.b16 %v1749
    %v1887 = vunpack.c.l.b16 %v1750
    %v1888 = vunpack.c.l.b16 %v1751
    %v1889 = vunpack.c.l.b16 %v1752
    %v1890 = vunpack.c.l.b16 %v1753
    %v1891 = vunpack.c.l.b16 %v1754
    %v1892 = vunpack.c.l.b16 %v1755
    %v1893 = vunpack.c.l.b16 %v1756
    %v1894 = vunpack.c.l.b16 %v1757
    %v1895 = vunpack.c.l.b16 %v1758
    %v1896 = vunpack.c.l.b16 %v1759
    %v1897 = vunpack.c.l.b16 %v1760
    %v1898 = vunpack.c.l.b16 %v1761
    %v1899 = vunpack.c.l.b16 %v1762
    %v1900 = vpack.c.b16 %v1837, %v1836
    %v1901 = vpack.c.b16 %v1839, %v1838
    %v1902 = vpack.c.b16 %v1841, %v1840
    %v1903 = vpack.c.b16 %v1843, %v1842
    %v1904 = vpack.c.b16 %v1845, %v1844
    %v1905 = vpack.c.b16 %v1847, %v1846
    %v1906 = vpack.c.b16 %v1849, %v1848
    %v1907 = vpack.c.b16 %v1851, %v1850
    %v1908 = vpack.c.b16 %v1853, %v1852
    %v1909 = vpack.c.b16 %v1855, %v1854
    %v1910 = vpack.c.b16 %v1857, %v1856
    %v1911 = vpack.c.b16 %v1859, %v1858
    %v1912 = vpack.c.b16 %v1861, %v1860
    %v1913 = vpack.c.b16 %v1863, %v1862
    %v1914 = vpack.c.b16 %v1865, %v1864
    %v1915 = vpack.c.b16 %v1867, %v1866
    %v1916 = vpack.c.b16 %v1869, %v1868
    %v1917 = vpack.c.b16 %v1871, %v1870
    %v1918 = vpack.c.b16 %v1873, %v1872
    %v1919 = vpack.c.b16 %v1875, %v1874
    %v1920 = vpack.c.b16 %v1877, %v1876
    %v1921 = vpack.c.b16 %v1879, %v1878
    %v1922 = vpack.c.b16 %v1881, %v1880
    %v1923 = vpack.c.b16 %v1883, %v1882
    %v1924 = vpack.c.b16 %v1885, %v1884
    %v1925 = vpack.c.b16 %v1887, %v1886
    %v1926 = vpack.c.b16 %v1889, %v1888
    %v1927 = vpack.c.b16 %v1891, %v1890
    %v1928 = vpack.c.b16 %v1893, %v1892
    %v1929 = vpack.c.b16 %v1895, %v1894
    %v1930 = vpack.c.b16 %v1897, %v1896
    %v1931 = vpack.c.b16 %v1899, %v1898
    %1964 = vmatpush.bf16.msra.mxu0 %v1907
    %1965 = vmatpush.bf16.msra.mxu0 %v1906
    %1966 = vmatpush.bf16.msra.mxu0 %v1905
    %1967 = vmatpush.bf16.msra.mxu0 %v1904
    %1968 = vmatpush.bf16.msra.mxu0 %v1903
    %1969 = vmatpush.bf16.msra.mxu0 %v1902
    %1970 = vmatpush.bf16.msra.mxu0 %v1901
    %1971 = vmatpush.bf16.msra.mxu0 %v1900
    %1972 = vmatmul.bf16.gmra.mxu0 %v1764
    %v1973 = vpop.f32.mrf.mxu0
    %v1974 = vadd.f32 0.0, %v1973
    %v1975 = vpop.f32.mrf.mxu0
    %1976 = vdwg.mxu0
    %1977 = vmatpush.bf16.msra.mxu0 %v1915
    %1978 = vmatpush.bf16.msra.mxu0 %v1914
    %1979 = vmatpush.bf16.msra.mxu0 %v1913
    %1980 = vmatpush.bf16.msra.mxu0 %v1912
    %1981 = vmatpush.bf16.msra.mxu0 %v1911
    %1982 = vmatpush.bf16.msra.mxu0 %v1910
    %1983 = vmatpush.bf16.msra.mxu0 %v1909
    %1984 = vmatpush.bf16.msra.mxu0 %v1908
    %1985 = vmatmul.bf16.gmra.mxu0 %v1765
    %v1986 = vpop.f32.mrf.mxu0
    %v1987 = vadd.f32 %v1974, %v1986
    %v1988 = vpop.f32.mrf.mxu0
    %1989 = vdwg.mxu0
    %1990 = vmatpush.bf16.msra.mxu0 %v1923
    %1991 = vmatpush.bf16.msra.mxu0 %v1922
    %1992 = vmatpush.bf16.msra.mxu0 %v1921
    %1993 = vmatpush.bf16.msra.mxu0 %v1920
    %1994 = vmatpush.bf16.msra.mxu0 %v1919
    %1995 = vmatpush.bf16.msra.mxu0 %v1918
    %1996 = vmatpush.bf16.msra.mxu0 %v1917
    %1997 = vmatpush.bf16.msra.mxu0 %v1916
    %1998 = vmatmul.bf16.gmra.mxu0 %v1766
    %v1999 = vpop.f32.mrf.mxu0
    %v2000 = vadd.f32 %v1987, %v1999
    %v2001 = vpop.f32.mrf.mxu0
    %2002 = vdwg.mxu0
    %2003 = vmatpush.bf16.msra.mxu0 %v1931
    %2004 = vmatpush.bf16.msra.mxu0 %v1930
    %2005 = vmatpush.bf16.msra.mxu0 %v1929
    %2006 = vmatpush.bf16.msra.mxu0 %v1928
    %2007 = vmatpush.bf16.msra.mxu0 %v1927
    %2008 = vmatpush.bf16.msra.mxu0 %v1926
    %2009 = vmatpush.bf16.msra.mxu0 %v1925
    %2010 = vmatpush.bf16.msra.mxu0 %v1924
    %2011 = vmatmul.bf16.gmra.mxu0 %v1767
    %v2012 = vpop.f32.mrf.mxu0
    %v2013 = vadd.f32 %v2000, %v2012
    %v2014 = vpop.f32.mrf.mxu0
    %2015 = vdwg.mxu0
    %s2016 = scalar_lea.vmem [#allocation2], 1536
    %v2017 = vld [vmem:[%s2016] sm:$0xf]
    %v2018 = vld [vmem:[%s2016 + $0x4] sm:$0xf]
    %v2019 = vld [vmem:[%s2016 + $0x8] sm:$0xf]
    %v2020 = vld [vmem:[%s2016 + $0xc] sm:$0xf]
    %v2021 = vld [vmem:[%s2016 + $0x10] sm:$0xf]
    %v2022 = vld [vmem:[%s2016 + $0x14] sm:$0xf]
    %v2023 = vld [vmem:[%s2016 + $0x18] sm:$0xf]
    %v2024 = vld [vmem:[%s2016 + $0x1c] sm:$0xf]
    %v2025 = vld [vmem:[%s2016 + $0x20] sm:$0xf]
    %v2026 = vld [vmem:[%s2016 + $0x24] sm:$0xf]
    %v2027 = vld [vmem:[%s2016 + $0x28] sm:$0xf]
    %v2028 = vld [vmem:[%s2016 + $0x2c] sm:$0xf]
    %v2029 = vld [vmem:[%s2016 + $0x30] sm:$0xf]
    %v2030 = vld [vmem:[%s2016 + $0x34] sm:$0xf]
    %v2031 = vld [vmem:[%s2016 + $0x38] sm:$0xf]
    %v2032 = vld [vmem:[%s2016 + $0x3c] sm:$0xf]
    %v2033 = vld [vmem:[%s2016 + $0x40] sm:$0xf]
    %v2034 = vld [vmem:[%s2016 + $0x44] sm:$0xf]
    %v2035 = vld [vmem:[%s2016 + $0x48] sm:$0xf]
    %v2036 = vld [vmem:[%s2016 + $0x4c] sm:$0xf]
    %v2037 = vld [vmem:[%s2016 + $0x50] sm:$0xf]
    %v2038 = vld [vmem:[%s2016 + $0x54] sm:$0xf]
    %v2039 = vld [vmem:[%s2016 + $0x58] sm:$0xf]
    %v2040 = vld [vmem:[%s2016 + $0x5c] sm:$0xf]
    %v2041 = vld [vmem:[%s2016 + $0x60] sm:$0xf]
    %v2042 = vld [vmem:[%s2016 + $0x64] sm:$0xf]
    %v2043 = vld [vmem:[%s2016 + $0x68] sm:$0xf]
    %v2044 = vld [vmem:[%s2016 + $0x6c] sm:$0xf]
    %v2045 = vld [vmem:[%s2016 + $0x70] sm:$0xf]
    %v2046 = vld [vmem:[%s2016 + $0x74] sm:$0xf]
    %v2047 = vld [vmem:[%s2016 + $0x78] sm:$0xf]
    %v2048 = vld [vmem:[%s2016 + $0x7c] sm:$0xf]
    %v2049 = vld [vmem:[%s2016 + $0x80] sm:$0xf]
    %v2050 = vld [vmem:[%s2016 + $0x84] sm:$0xf]
    %v2051 = vld [vmem:[%s2016 + $0x88] sm:$0xf]
    %v2052 = vld [vmem:[%s2016 + $0x8c] sm:$0xf]
    %v2053 = vld [vmem:[%s2016 + $0x90] sm:$0xf]
    %v2054 = vld [vmem:[%s2016 + $0x94] sm:$0xf]
    %v2055 = vld [vmem:[%s2016 + $0x98] sm:$0xf]
    %v2056 = vld [vmem:[%s2016 + $0x9c] sm:$0xf]
    %v2057 = vld [vmem:[%s2016 + $0xa0] sm:$0xf]
    %v2058 = vld [vmem:[%s2016 + $0xa4] sm:$0xf]
    %v2059 = vld [vmem:[%s2016 + $0xa8] sm:$0xf]
    %v2060 = vld [vmem:[%s2016 + $0xac] sm:$0xf]
    %v2061 = vld [vmem:[%s2016 + $0xb0] sm:$0xf]
    %v2062 = vld [vmem:[%s2016 + $0xb4] sm:$0xf]
    %v2063 = vld [vmem:[%s2016 + $0xb8] sm:$0xf]
    %v2064 = vld [vmem:[%s2016 + $0xbc] sm:$0xf]
    %v2065 = vld [vmem:[%s2016 + $0xc0] sm:$0xf]
    %v2066 = vld [vmem:[%s2016 + $0xc4] sm:$0xf]
    %v2067 = vld [vmem:[%s2016 + $0xc8] sm:$0xf]
    %v2068 = vld [vmem:[%s2016 + $0xcc] sm:$0xf]
    %v2069 = vld [vmem:[%s2016 + $0xd0] sm:$0xf]
    %v2070 = vld [vmem:[%s2016 + $0xd4] sm:$0xf]
    %v2071 = vld [vmem:[%s2016 + $0xd8] sm:$0xf]
    %v2072 = vld [vmem:[%s2016 + $0xdc] sm:$0xf]
    %v2073 = vld [vmem:[%s2016 + $0xe0] sm:$0xf]
    %v2074 = vld [vmem:[%s2016 + $0xe4] sm:$0xf]
    %v2075 = vld [vmem:[%s2016 + $0xe8] sm:$0xf]
    %v2076 = vld [vmem:[%s2016 + $0xec] sm:$0xf]
    %v2077 = vld [vmem:[%s2016 + $0xf0] sm:$0xf]
    %v2078 = vld [vmem:[%s2016 + $0xf4] sm:$0xf]
    %v2079 = vld [vmem:[%s2016 + $0xf8] sm:$0xf]
    %v2080 = vld [vmem:[%s2016 + $0xfc] sm:$0xf]
    %2081 = vst [vmem:[#allocation1] ss:$9 sm:$0xff] %v107
    %v2082 = vld [vmem:[#allocation1] sm:$0xff]
    %v2083 = vld [vmem:[#allocation1 + $0x9] sm:$0xff]
    %v2084 = vld [vmem:[#allocation1 + $0x12] sm:$0xff]
    %v2085 = vld [vmem:[#allocation1 + $0x1b] sm:$0xff]
    %v2154 = vunpack.c.l.b16 %v2017
    %v2155 = vunpack.c.l.b16 %v2018
    %v2156 = vunpack.c.l.b16 %v2019
    %v2157 = vunpack.c.l.b16 %v2020
    %v2158 = vunpack.c.l.b16 %v2021
    %v2159 = vunpack.c.l.b16 %v2022
    %v2160 = vunpack.c.l.b16 %v2023
    %v2161 = vunpack.c.l.b16 %v2024
    %v2162 = vunpack.c.l.b16 %v2025
    %v2163 = vunpack.c.l.b16 %v2026
    %v2164 = vunpack.c.l.b16 %v2027
    %v2165 = vunpack.c.l.b16 %v2028
    %v2166 = vunpack.c.l.b16 %v2029
    %v2167 = vunpack.c.l.b16 %v2030
    %v2168 = vunpack.c.l.b16 %v2031
    %v2169 = vunpack.c.l.b16 %v2032
    %v2170 = vunpack.c.l.b16 %v2033
    %v2171 = vunpack.c.l.b16 %v2034
    %v2172 = vunpack.c.l.b16 %v2035
    %v2173 = vunpack.c.l.b16 %v2036
    %v2174 = vunpack.c.l.b16 %v2037
    %v2175 = vunpack.c.l.b16 %v2038
    %v2176 = vunpack.c.l.b16 %v2039
    %v2177 = vunpack.c.l.b16 %v2040
    %v2178 = vunpack.c.l.b16 %v2041
    %v2179 = vunpack.c.l.b16 %v2042
    %v2180 = vunpack.c.l.b16 %v2043
    %v2181 = vunpack.c.l.b16 %v2044
    %v2182 = vunpack.c.l.b16 %v2045
    %v2183 = vunpack.c.l.b16 %v2046
    %v2184 = vunpack.c.l.b16 %v2047
    %v2185 = vunpack.c.l.b16 %v2048
    %v2186 = vunpack.c.l.b16 %v2049
    %v2187 = vunpack.c.l.b16 %v2050
    %v2188 = vunpack.c.l.b16 %v2051
    %v2189 = vunpack.c.l.b16 %v2052
    %v2190 = vunpack.c.l.b16 %v2053
    %v2191 = vunpack.c.l.b16 %v2054
    %v2192 = vunpack.c.l.b16 %v2055
    %v2193 = vunpack.c.l.b16 %v2056
    %v2194 = vunpack.c.l.b16 %v2057
    %v2195 = vunpack.c.l.b16 %v2058
    %v2196 = vunpack.c.l.b16 %v2059
    %v2197 = vunpack.c.l.b16 %v2060
    %v2198 = vunpack.c.l.b16 %v2061
    %v2199 = vunpack.c.l.b16 %v2062
    %v2200 = vunpack.c.l.b16 %v2063
    %v2201 = vunpack.c.l.b16 %v2064
    %v2202 = vunpack.c.l.b16 %v2065
    %v2203 = vunpack.c.l.b16 %v2066
    %v2204 = vunpack.c.l.b16 %v2067
    %v2205 = vunpack.c.l.b16 %v2068
    %v2206 = vunpack.c.l.b16 %v2069
    %v2207 = vunpack.c.l.b16 %v2070
    %v2208 = vunpack.c.l.b16 %v2071
    %v2209 = vunpack.c.l.b16 %v2072
    %v2210 = vunpack.c.l.b16 %v2073
    %v2211 = vunpack.c.l.b16 %v2074
    %v2212 = vunpack.c.l.b16 %v2075
    %v2213 = vunpack.c.l.b16 %v2076
    %v2214 = vunpack.c.l.b16 %v2077
    %v2215 = vunpack.c.l.b16 %v2078
    %v2216 = vunpack.c.l.b16 %v2079
    %v2217 = vunpack.c.l.b16 %v2080
    %v2218 = vpack.c.b16 %v2155, %v2154
    %v2219 = vpack.c.b16 %v2157, %v2156
    %v2220 = vpack.c.b16 %v2159, %v2158
    %v2221 = vpack.c.b16 %v2161, %v2160
    %v2222 = vpack.c.b16 %v2163, %v2162
    %v2223 = vpack.c.b16 %v2165, %v2164
    %v2224 = vpack.c.b16 %v2167, %v2166
    %v2225 = vpack.c.b16 %v2169, %v2168
    %v2226 = vpack.c.b16 %v2171, %v2170
    %v2227 = vpack.c.b16 %v2173, %v2172
    %v2228 = vpack.c.b16 %v2175, %v2174
    %v2229 = vpack.c.b16 %v2177, %v2176
    %v2230 = vpack.c.b16 %v2179, %v2178
    %v2231 = vpack.c.b16 %v2181, %v2180
    %v2232 = vpack.c.b16 %v2183, %v2182
    %v2233 = vpack.c.b16 %v2185, %v2184
    %v2234 = vpack.c.b16 %v2187, %v2186
    %v2235 = vpack.c.b16 %v2189, %v2188
    %v2236 = vpack.c.b16 %v2191, %v2190
    %v2237 = vpack.c.b16 %v2193, %v2192
    %v2238 = vpack.c.b16 %v2195, %v2194
    %v2239 = vpack.c.b16 %v2197, %v2196
    %v2240 = vpack.c.b16 %v2199, %v2198
    %v2241 = vpack.c.b16 %v2201, %v2200
    %v2242 = vpack.c.b16 %v2203, %v2202
    %v2243 = vpack.c.b16 %v2205, %v2204
    %v2244 = vpack.c.b16 %v2207, %v2206
    %v2245 = vpack.c.b16 %v2209, %v2208
    %v2246 = vpack.c.b16 %v2211, %v2210
    %v2247 = vpack.c.b16 %v2213, %v2212
    %v2248 = vpack.c.b16 %v2215, %v2214
    %v2249 = vpack.c.b16 %v2217, %v2216
    %2282 = vmatpush.bf16.msra.mxu0 %v2225
    %2283 = vmatpush.bf16.msra.mxu0 %v2224
    %2284 = vmatpush.bf16.msra.mxu0 %v2223
    %2285 = vmatpush.bf16.msra.mxu0 %v2222
    %2286 = vmatpush.bf16.msra.mxu0 %v2221
    %2287 = vmatpush.bf16.msra.mxu0 %v2220
    %2288 = vmatpush.bf16.msra.mxu0 %v2219
    %2289 = vmatpush.bf16.msra.mxu0 %v2218
    %2290 = vmatmul.bf16.gmra.mxu0 %v2082
    %v2291 = vpop.f32.mrf.mxu0
    %v2292 = vadd.f32 0.0, %v2291
    %v2293 = vpop.f32.mrf.mxu0
    %2294 = vdwg.mxu0
    %2295 = vmatpush.bf16.msra.mxu0 %v2233
    %2296 = vmatpush.bf16.msra.mxu0 %v2232
    %2297 = vmatpush.bf16.msra.mxu0 %v2231
    %2298 = vmatpush.bf16.msra.mxu0 %v2230
    %2299 = vmatpush.bf16.msra.mxu0 %v2229
    %2300 = vmatpush.bf16.msra.mxu0 %v2228
    %2301 = vmatpush.bf16.msra.mxu0 %v2227
    %2302 = vmatpush.bf16.msra.mxu0 %v2226
    %2303 = vmatmul.bf16.gmra.mxu0 %v2083
    %v2304 = vpop.f32.mrf.mxu0
    %v2305 = vadd.f32 %v2292, %v2304
    %v2306 = vpop.f32.mrf.mxu0
    %2307 = vdwg.mxu0
    %2308 = vmatpush.bf16.msra.mxu0 %v2241
    %2309 = vmatpush.bf16.msra.mxu0 %v2240
    %2310 = vmatpush.bf16.msra.mxu0 %v2239
    %2311 = vmatpush.bf16.msra.mxu0 %v2238
    %2312 = vmatpush.bf16.msra.mxu0 %v2237
    %2313 = vmatpush.bf16.msra.mxu0 %v2236
    %2314 = vmatpush.bf16.msra.mxu0 %v2235
    %2315 = vmatpush.bf16.msra.mxu0 %v2234
    %2316 = vmatmul.bf16.gmra.mxu0 %v2084
    %v2317 = vpop.f32.mrf.mxu0
    %v2318 = vadd.f32 %v2305, %v2317
    %v2319 = vpop.f32.mrf.mxu0
    %2320 = vdwg.mxu0
    %2321 = vmatpush.bf16.msra.mxu0 %v2249
    %2322 = vmatpush.bf16.msra.mxu0 %v2248
    %2323 = vmatpush.bf16.msra.mxu0 %v2247
    %2324 = vmatpush.bf16.msra.mxu0 %v2246
    %2325 = vmatpush.bf16.msra.mxu0 %v2245
    %2326 = vmatpush.bf16.msra.mxu0 %v2244
    %2327 = vmatpush.bf16.msra.mxu0 %v2243
    %2328 = vmatpush.bf16.msra.mxu0 %v2242
    %2329 = vmatmul.bf16.gmra.mxu0 %v2085
    %v2330 = vpop.f32.mrf.mxu0
    %v2331 = vadd.f32 %v2318, %v2330
    %v2332 = vpop.f32.mrf.mxu0
    %2333 = vdwg.mxu0
    %s2334 = scalar_lea.vmem [#allocation2], 1792
    %v2335 = vld [vmem:[%s2334] sm:$0xf]
    %v2336 = vld [vmem:[%s2334 + $0x4] sm:$0xf]
    %v2337 = vld [vmem:[%s2334 + $0x8] sm:$0xf]
    %v2338 = vld [vmem:[%s2334 + $0xc] sm:$0xf]
    %v2339 = vld [vmem:[%s2334 + $0x10] sm:$0xf]
    %v2340 = vld [vmem:[%s2334 + $0x14] sm:$0xf]
    %v2341 = vld [vmem:[%s2334 + $0x18] sm:$0xf]
    %v2342 = vld [vmem:[%s2334 + $0x1c] sm:$0xf]
    %v2343 = vld [vmem:[%s2334 + $0x20] sm:$0xf]
    %v2344 = vld [vmem:[%s2334 + $0x24] sm:$0xf]
    %v2345 = vld [vmem:[%s2334 + $0x28] sm:$0xf]
    %v2346 = vld [vmem:[%s2334 + $0x2c] sm:$0xf]
    %v2347 = vld [vmem:[%s2334 + $0x30] sm:$0xf]
    %v2348 = vld [vmem:[%s2334 + $0x34] sm:$0xf]
    %v2349 = vld [vmem:[%s2334 + $0x38] sm:$0xf]
    %v2350 = vld [vmem:[%s2334 + $0x3c] sm:$0xf]
    %v2351 = vld [vmem:[%s2334 + $0x40] sm:$0xf]
    %v2352 = vld [vmem:[%s2334 + $0x44] sm:$0xf]
    %v2353 = vld [vmem:[%s2334 + $0x48] sm:$0xf]
    %v2354 = vld [vmem:[%s2334 + $0x4c] sm:$0xf]
    %v2355 = vld [vmem:[%s2334 + $0x50] sm:$0xf]
    %v2356 = vld [vmem:[%s2334 + $0x54] sm:$0xf]
    %v2357 = vld [vmem:[%s2334 + $0x58] sm:$0xf]
    %v2358 = vld [vmem:[%s2334 + $0x5c] sm:$0xf]
    %v2359 = vld [vmem:[%s2334 + $0x60] sm:$0xf]
    %v2360 = vld [vmem:[%s2334 + $0x64] sm:$0xf]
    %v2361 = vld [vmem:[%s2334 + $0x68] sm:$0xf]
    %v2362 = vld [vmem:[%s2334 + $0x6c] sm:$0xf]
    %v2363 = vld [vmem:[%s2334 + $0x70] sm:$0xf]
    %v2364 = vld [vmem:[%s2334 + $0x74] sm:$0xf]
    %v2365 = vld [vmem:[%s2334 + $0x78] sm:$0xf]
    %v2366 = vld [vmem:[%s2334 + $0x7c] sm:$0xf]
    %v2367 = vld [vmem:[%s2334 + $0x80] sm:$0xf]
    %v2368 = vld [vmem:[%s2334 + $0x84] sm:$0xf]
    %v2369 = vld [vmem:[%s2334 + $0x88] sm:$0xf]
    %v2370 = vld [vmem:[%s2334 + $0x8c] sm:$0xf]
    %v2371 = vld [vmem:[%s2334 + $0x90] sm:$0xf]
    %v2372 = vld [vmem:[%s2334 + $0x94] sm:$0xf]
    %v2373 = vld [vmem:[%s2334 + $0x98] sm:$0xf]
    %v2374 = vld [vmem:[%s2334 + $0x9c] sm:$0xf]
    %v2375 = vld [vmem:[%s2334 + $0xa0] sm:$0xf]
    %v2376 = vld [vmem:[%s2334 + $0xa4] sm:$0xf]
    %v2377 = vld [vmem:[%s2334 + $0xa8] sm:$0xf]
    %v2378 = vld [vmem:[%s2334 + $0xac] sm:$0xf]
    %v2379 = vld [vmem:[%s2334 + $0xb0] sm:$0xf]
    %v2380 = vld [vmem:[%s2334 + $0xb4] sm:$0xf]
    %v2381 = vld [vmem:[%s2334 + $0xb8] sm:$0xf]
    %v2382 = vld [vmem:[%s2334 + $0xbc] sm:$0xf]
    %v2383 = vld [vmem:[%s2334 + $0xc0] sm:$0xf]
    %v2384 = vld [vmem:[%s2334 + $0xc4] sm:$0xf]
    %v2385 = vld [vmem:[%s2334 + $0xc8] sm:$0xf]
    %v2386 = vld [vmem:[%s2334 + $0xcc] sm:$0xf]
    %v2387 = vld [vmem:[%s2334 + $0xd0] sm:$0xf]
    %v2388 = vld [vmem:[%s2334 + $0xd4] sm:$0xf]
    %v2389 = vld [vmem:[%s2334 + $0xd8] sm:$0xf]
    %v2390 = vld [vmem:[%s2334 + $0xdc] sm:$0xf]
    %v2391 = vld [vmem:[%s2334 + $0xe0] sm:$0xf]
    %v2392 = vld [vmem:[%s2334 + $0xe4] sm:$0xf]
    %v2393 = vld [vmem:[%s2334 + $0xe8] sm:$0xf]
    %v2394 = vld [vmem:[%s2334 + $0xec] sm:$0xf]
    %v2395 = vld [vmem:[%s2334 + $0xf0] sm:$0xf]
    %v2396 = vld [vmem:[%s2334 + $0xf4] sm:$0xf]
    %v2397 = vld [vmem:[%s2334 + $0xf8] sm:$0xf]
    %v2398 = vld [vmem:[%s2334 + $0xfc] sm:$0xf]
    %2399 = vst [vmem:[#allocation1] ss:$9 sm:$0xff] %v107
    %v2400 = vld [vmem:[#allocation1] sm:$0xff]
    %v2401 = vld [vmem:[#allocation1 + $0x9] sm:$0xff]
    %v2402 = vld [vmem:[#allocation1 + $0x12] sm:$0xff]
    %v2403 = vld [vmem:[#allocation1 + $0x1b] sm:$0xff]
    %v2472 = vunpack.c.l.b16 %v2335
    %v2473 = vunpack.c.l.b16 %v2336
    %v2474 = vunpack.c.l.b16 %v2337
    %v2475 = vunpack.c.l.b16 %v2338
    %v2476 = vunpack.c.l.b16 %v2339
    %v2477 = vunpack.c.l.b16 %v2340
    %v2478 = vunpack.c.l.b16 %v2341
    %v2479 = vunpack.c.l.b16 %v2342
    %v2480 = vunpack.c.l.b16 %v2343
    %v2481 = vunpack.c.l.b16 %v2344
    %v2482 = vunpack.c.l.b16 %v2345
    %v2483 = vunpack.c.l.b16 %v2346
    %v2484 = vunpack.c.l.b16 %v2347
    %v2485 = vunpack.c.l.b16 %v2348
    %v2486 = vunpack.c.l.b16 %v2349
    %v2487 = vunpack.c.l.b16 %v2350
    %v2488 = vunpack.c.l.b16 %v2351
    %v2489 = vunpack.c.l.b16 %v2352
    %v2490 = vunpack.c.l.b16 %v2353
    %v2491 = vunpack.c.l.b16 %v2354
    %v2492 = vunpack.c.l.b16 %v2355
    %v2493 = vunpack.c.l.b16 %v2356
    %v2494 = vunpack.c.l.b16 %v2357
    %v2495 = vunpack.c.l.b16 %v2358
    %v2496 = vunpack.c.l.b16 %v2359
    %v2497 = vunpack.c.l.b16 %v2360
    %v2498 = vunpack.c.l.b16 %v2361
    %v2499 = vunpack.c.l.b16 %v2362
    %v2500 = vunpack.c.l.b16 %v2363
    %v2501 = vunpack.c.l.b16 %v2364
    %v2502 = vunpack.c.l.b16 %v2365
    %v2503 = vunpack.c.l.b16 %v2366
    %v2504 = vunpack.c.l.b16 %v2367
    %v2505 = vunpack.c.l.b16 %v2368
    %v2506 = vunpack.c.l.b16 %v2369
    %v2507 = vunpack.c.l.b16 %v2370
    %v2508 = vunpack.c.l.b16 %v2371
    %v2509 = vunpack.c.l.b16 %v2372
    %v2510 = vunpack.c.l.b16 %v2373
    %v2511 = vunpack.c.l.b16 %v2374
    %v2512 = vunpack.c.l.b16 %v2375
    %v2513 = vunpack.c.l.b16 %v2376
    %v2514 = vunpack.c.l.b16 %v2377
    %v2515 = vunpack.c.l.b16 %v2378
    %v2516 = vunpack.c.l.b16 %v2379
    %v2517 = vunpack.c.l.b16 %v2380
    %v2518 = vunpack.c.l.b16 %v2381
    %v2519 = vunpack.c.l.b16 %v2382
    %v2520 = vunpack.c.l.b16 %v2383
    %v2521 = vunpack.c.l.b16 %v2384
    %v2522 = vunpack.c.l.b16 %v2385
    %v2523 = vunpack.c.l.b16 %v2386
    %v2524 = vunpack.c.l.b16 %v2387
    %v2525 = vunpack.c.l.b16 %v2388
    %v2526 = vunpack.c.l.b16 %v2389
    %v2527 = vunpack.c.l.b16 %v2390
    %v2528 = vunpack.c.l.b16 %v2391
    %v2529 = vunpack.c.l.b16 %v2392
    %v2530 = vunpack.c.l.b16 %v2393
    %v2531 = vunpack.c.l.b16 %v2394
    %v2532 = vunpack.c.l.b16 %v2395
    %v2533 = vunpack.c.l.b16 %v2396
    %v2534 = vunpack.c.l.b16 %v2397
    %v2535 = vunpack.c.l.b16 %v2398
    %v2536 = vpack.c.b16 %v2473, %v2472
    %v2537 = vpack.c.b16 %v2475, %v2474
    %v2538 = vpack.c.b16 %v2477, %v2476
    %v2539 = vpack.c.b16 %v2479, %v2478
    %v2540 = vpack.c.b16 %v2481, %v2480
    %v2541 = vpack.c.b16 %v2483, %v2482
    %v2542 = vpack.c.b16 %v2485, %v2484
    %v2543 = vpack.c.b16 %v2487, %v2486
    %v2544 = vpack.c.b16 %v2489, %v2488
    %v2545 = vpack.c.b16 %v2491, %v2490
    %v2546 = vpack.c.b16 %v2493, %v2492
    %v2547 = vpack.c.b16 %v2495, %v2494
    %v2548 = vpack.c.b16 %v2497, %v2496
    %v2549 = vpack.c.b16 %v2499, %v2498
    %v2550 = vpack.c.b16 %v2501, %v2500
    %v2551 = vpack.c.b16 %v2503, %v2502
    %v2552 = vpack.c.b16 %v2505, %v2504
    %v2553 = vpack.c.b16 %v2507, %v2506
    %v2554 = vpack.c.b16 %v2509, %v2508
    %v2555 = vpack.c.b16 %v2511, %v2510
    %v2556 = vpack.c.b16 %v2513, %v2512
    %v2557 = vpack.c.b16 %v2515, %v2514
    %v2558 = vpack.c.b16 %v2517, %v2516
    %v2559 = vpack.c.b16 %v2519, %v2518
    %v2560 = vpack.c.b16 %v2521, %v2520
    %v2561 = vpack.c.b16 %v2523, %v2522
    %v2562 = vpack.c.b16 %v2525, %v2524
    %v2563 = vpack.c.b16 %v2527, %v2526
    %v2564 = vpack.c.b16 %v2529, %v2528
    %v2565 = vpack.c.b16 %v2531, %v2530
    %v2566 = vpack.c.b16 %v2533, %v2532
    %v2567 = vpack.c.b16 %v2535, %v2534
    %2600 = vmatpush.bf16.msra.mxu0 %v2543
    %2601 = vmatpush.bf16.msra.mxu0 %v2542
    %2602 = vmatpush.bf16.msra.mxu0 %v2541
    %2603 = vmatpush.bf16.msra.mxu0 %v2540
    %2604 = vmatpush.bf16.msra.mxu0 %v2539
    %2605 = vmatpush.bf16.msra.mxu0 %v2538
    %2606 = vmatpush.bf16.msra.mxu0 %v2537
    %2607 = vmatpush.bf16.msra.mxu0 %v2536
    %2608 = vmatmul.bf16.gmra.mxu0 %v2400
    %v2609 = vpop.f32.mrf.mxu0
    %v2610 = vadd.f32 0.0, %v2609
    %v2611 = vpop.f32.mrf.mxu0
    %2612 = vdwg.mxu0
    %2613 = vmatpush.bf16.msra.mxu0 %v2551
    %2614 = vmatpush.bf16.msra.mxu0 %v2550
    %2615 = vmatpush.bf16.msra.mxu0 %v2549
    %2616 = vmatpush.bf16.msra.mxu0 %v2548
    %2617 = vmatpush.bf16.msra.mxu0 %v2547
    %2618 = vmatpush.bf16.msra.mxu0 %v2546
    %2619 = vmatpush.bf16.msra.mxu0 %v2545
    %2620 = vmatpush.bf16.msra.mxu0 %v2544
    %2621 = vmatmul.bf16.gmra.mxu0 %v2401
    %v2622 = vpop.f32.mrf.mxu0
    %v2623 = vadd.f32 %v2610, %v2622
    %v2624 = vpop.f32.mrf.mxu0
    %2625 = vdwg.mxu0
    %2626 = vmatpush.bf16.msra.mxu0 %v2559
    %2627 = vmatpush.bf16.msra.mxu0 %v2558
    %2628 = vmatpush.bf16.msra.mxu0 %v2557
    %2629 = vmatpush.bf16.msra.mxu0 %v2556
    %2630 = vmatpush.bf16.msra.mxu0 %v2555
    %2631 = vmatpush.bf16.msra.mxu0 %v2554
    %2632 = vmatpush.bf16.msra.mxu0 %v2553
    %2633 = vmatpush.bf16.msra.mxu0 %v2552
    %2634 = vmatmul.bf16.gmra.mxu0 %v2402
    %v2635 = vpop.f32.mrf.mxu0
    %v2636 = vadd.f32 %v2623, %v2635
    %v2637 = vpop.f32.mrf.mxu0
    %2638 = vdwg.mxu0
    %2639 = vmatpush.bf16.msra.mxu0 %v2567
    %2640 = vmatpush.bf16.msra.mxu0 %v2566
    %2641 = vmatpush.bf16.msra.mxu0 %v2565
    %2642 = vmatpush.bf16.msra.mxu0 %v2564
    %2643 = vmatpush.bf16.msra.mxu0 %v2563
    %2644 = vmatpush.bf16.msra.mxu0 %v2562
    %2645 = vmatpush.bf16.msra.mxu0 %v2561
    %2646 = vmatpush.bf16.msra.mxu0 %v2560
    %2647 = vmatmul.bf16.gmra.mxu0 %v2403
    %v2648 = vpop.f32.mrf.mxu0
    %v2649 = vadd.f32 %v2636, %v2648
    %v2650 = vpop.f32.mrf.mxu0
    %2651 = vdwg.mxu0
    %s2652 = scalar_lea.vmem [#allocation2], 2048
    %v2653 = vld [vmem:[%s2652] sm:$0xf]
    %v2654 = vld [vmem:[%s2652 + $0x4] sm:$0xf]
    %v2655 = vld [vmem:[%s2652 + $0x8] sm:$0xf]
    %v2656 = vld [vmem:[%s2652 + $0xc] sm:$0xf]
    %v2657 = vld [vmem:[%s2652 + $0x10] sm:$0xf]
    %v2658 = vld [vmem:[%s2652 + $0x14] sm:$0xf]
    %v2659 = vld [vmem:[%s2652 + $0x18] sm:$0xf]
    %v2660 = vld [vmem:[%s2652 + $0x1c] sm:$0xf]
    %v2661 = vld [vmem:[%s2652 + $0x20] sm:$0xf]
    %v2662 = vld [vmem:[%s2652 + $0x24] sm:$0xf]
    %v2663 = vld [vmem:[%s2652 + $0x28] sm:$0xf]
    %v2664 = vld [vmem:[%s2652 + $0x2c] sm:$0xf]
    %v2665 = vld [vmem:[%s2652 + $0x30] sm:$0xf]
    %v2666 = vld [vmem:[%s2652 + $0x34] sm:$0xf]
    %v2667 = vld [vmem:[%s2652 + $0x38] sm:$0xf]
    %v2668 = vld [vmem:[%s2652 + $0x3c] sm:$0xf]
    %v2669 = vld [vmem:[%s2652 + $0x40] sm:$0xf]
    %v2670 = vld [vmem:[%s2652 + $0x44] sm:$0xf]
    %v2671 = vld [vmem:[%s2652 + $0x48] sm:$0xf]
    %v2672 = vld [vmem:[%s2652 + $0x4c] sm:$0xf]
    %v2673 = vld [vmem:[%s2652 + $0x50] sm:$0xf]
    %v2674 = vld [vmem:[%s2652 + $0x54] sm:$0xf]
    %v2675 = vld [vmem:[%s2652 + $0x58] sm:$0xf]
    %v2676 = vld [vmem:[%s2652 + $0x5c] sm:$0xf]
    %v2677 = vld [vmem:[%s2652 + $0x60] sm:$0xf]
    %v2678 = vld [vmem:[%s2652 + $0x64] sm:$0xf]
    %v2679 = vld [vmem:[%s2652 + $0x68] sm:$0xf]
    %v2680 = vld [vmem:[%s2652 + $0x6c] sm:$0xf]
    %v2681 = vld [vmem:[%s2652 + $0x70] sm:$0xf]
    %v2682 = vld [vmem:[%s2652 + $0x74] sm:$0xf]
    %v2683 = vld [vmem:[%s2652 + $0x78] sm:$0xf]
    %v2684 = vld [vmem:[%s2652 + $0x7c] sm:$0xf]
    %v2685 = vld [vmem:[%s2652 + $0x80] sm:$0xf]
    %v2686 = vld [vmem:[%s2652 + $0x84] sm:$0xf]
    %v2687 = vld [vmem:[%s2652 + $0x88] sm:$0xf]
    %v2688 = vld [vmem:[%s2652 + $0x8c] sm:$0xf]
    %v2689 = vld [vmem:[%s2652 + $0x90] sm:$0xf]
    %v2690 = vld [vmem:[%s2652 + $0x94] sm:$0xf]
    %v2691 = vld [vmem:[%s2652 + $0x98] sm:$0xf]
    %v2692 = vld [vmem:[%s2652 + $0x9c] sm:$0xf]
    %v2693 = vld [vmem:[%s2652 + $0xa0] sm:$0xf]
    %v2694 = vld [vmem:[%s2652 + $0xa4] sm:$0xf]
    %v2695 = vld [vmem:[%s2652 + $0xa8] sm:$0xf]
    %v2696 = vld [vmem:[%s2652 + $0xac] sm:$0xf]
    %v2697 = vld [vmem:[%s2652 + $0xb0] sm:$0xf]
    %v2698 = vld [vmem:[%s2652 + $0xb4] sm:$0xf]
    %v2699 = vld [vmem:[%s2652 + $0xb8] sm:$0xf]
    %v2700 = vld [vmem:[%s2652 + $0xbc] sm:$0xf]
    %v2701 = vld [vmem:[%s2652 + $0xc0] sm:$0xf]
    %v2702 = vld [vmem:[%s2652 + $0xc4] sm:$0xf]
    %v2703 = vld [vmem:[%s2652 + $0xc8] sm:$0xf]
    %v2704 = vld [vmem:[%s2652 + $0xcc] sm:$0xf]
    %v2705 = vld [vmem:[%s2652 + $0xd0] sm:$0xf]
    %v2706 = vld [vmem:[%s2652 + $0xd4] sm:$0xf]
    %v2707 = vld [vmem:[%s2652 + $0xd8] sm:$0xf]
    %v2708 = vld [vmem:[%s2652 + $0xdc] sm:$0xf]
    %v2709 = vld [vmem:[%s2652 + $0xe0] sm:$0xf]
    %v2710 = vld [vmem:[%s2652 + $0xe4] sm:$0xf]
    %v2711 = vld [vmem:[%s2652 + $0xe8] sm:$0xf]
    %v2712 = vld [vmem:[%s2652 + $0xec] sm:$0xf]
    %v2713 = vld [vmem:[%s2652 + $0xf0] sm:$0xf]
    %v2714 = vld [vmem:[%s2652 + $0xf4] sm:$0xf]
    %v2715 = vld [vmem:[%s2652 + $0xf8] sm:$0xf]
    %v2716 = vld [vmem:[%s2652 + $0xfc] sm:$0xf]
    %2717 = vst [vmem:[#allocation1] ss:$9 sm:$0xff] %v107
    %v2718 = vld [vmem:[#allocation1] sm:$0xff]
    %v2719 = vld [vmem:[#allocation1 + $0x9] sm:$0xff]
    %v2720 = vld [vmem:[#allocation1 + $0x12] sm:$0xff]
    %v2721 = vld [vmem:[#allocation1 + $0x1b] sm:$0xff]
    %v2790 = vunpack.c.l.b16 %v2653
    %v2791 = vunpack.c.l.b16 %v2654
    %v2792 = vunpack.c.l.b16 %v2655
    %v2793 = vunpack.c.l.b16 %v2656
    %v2794 = vunpack.c.l.b16 %v2657
    %v2795 = vunpack.c.l.b16 %v2658
    %v2796 = vunpack.c.l.b16 %v2659
    %v2797 = vunpack.c.l.b16 %v2660
    %v2798 = vunpack.c.l.b16 %v2661
    %v2799 = vunpack.c.l.b16 %v2662
    %v2800 = vunpack.c.l.b16 %v2663
    %v2801 = vunpack.c.l.b16 %v2664
    %v2802 = vunpack.c.l.b16 %v2665
    %v2803 = vunpack.c.l.b16 %v2666
    %v2804 = vunpack.c.l.b16 %v2667
    %v2805 = vunpack.c.l.b16 %v2668
    %v2806 = vunpack.c.l.b16 %v2669
    %v2807 = vunpack.c.l.b16 %v2670
    %v2808 = vunpack.c.l.b16 %v2671
    %v2809 = vunpack.c.l.b16 %v2672
    %v2810 = vunpack.c.l.b16 %v2673
    %v2811 = vunpack.c.l.b16 %v2674
    %v2812 = vunpack.c.l.b16 %v2675
    %v2813 = vunpack.c.l.b16 %v2676
    %v2814 = vunpack.c.l.b16 %v2677
    %v2815 = vunpack.c.l.b16 %v2678
    %v2816 = vunpack.c.l.b16 %v2679
    %v2817 = vunpack.c.l.b16 %v2680
    %v2818 = vunpack.c.l.b16 %v2681
    %v2819 = vunpack.c.l.b16 %v2682
    %v2820 = vunpack.c.l.b16 %v2683
    %v2821 = vunpack.c.l.b16 %v2684
    %v2822 = vunpack.c.l.b16 %v2685
    %v2823 = vunpack.c.l.b16 %v2686
    %v2824 = vunpack.c.l.b16 %v2687
    %v2825 = vunpack.c.l.b16 %v2688
    %v2826 = vunpack.c.l.b16 %v2689
    %v2827 = vunpack.c.l.b16 %v2690
    %v2828 = vunpack.c.l.b16 %v2691
    %v2829 = vunpack.c.l.b16 %v2692
    %v2830 = vunpack.c.l.b16 %v2693
    %v2831 = vunpack.c.l.b16 %v2694
    %v2832 = vunpack.c.l.b16 %v2695
    %v2833 = vunpack.c.l.b16 %v2696
    %v2834 = vunpack.c.l.b16 %v2697
    %v2835 = vunpack.c.l.b16 %v2698
    %v2836 = vunpack.c.l.b16 %v2699
    %v2837 = vunpack.c.l.b16 %v2700
    %v2838 = vunpack.c.l.b16 %v2701
    %v2839 = vunpack.c.l.b16 %v2702
    %v2840 = vunpack.c.l.b16 %v2703
    %v2841 = vunpack.c.l.b16 %v2704
    %v2842 = vunpack.c.l.b16 %v2705
    %v2843 = vunpack.c.l.b16 %v2706
    %v2844 = vunpack.c.l.b16 %v2707
    %v2845 = vunpack.c.l.b16 %v2708
    %v2846 = vunpack.c.l.b16 %v2709
    %v2847 = vunpack.c.l.b16 %v2710
    %v2848 = vunpack.c.l.b16 %v2711
    %v2849 = vunpack.c.l.b16 %v2712
    %v2850 = vunpack.c.l.b16 %v2713
    %v2851 = vunpack.c.l.b16 %v2714
    %v2852 = vunpack.c.l.b16 %v2715
    %v2853 = vunpack.c.l.b16 %v2716
    %v2854 = vpack.c.b16 %v2791, %v2790
    %v2855 = vpack.c.b16 %v2793, %v2792
    %v2856 = vpack.c.b16 %v2795, %v2794
    %v2857 = vpack.c.b16 %v2797, %v2796
    %v2858 = vpack.c.b16 %v2799, %v2798
    %v2859 = vpack.c.b16 %v2801, %v2800
    %v2860 = vpack.c.b16 %v2803, %v2802
    %v2861 = vpack.c.b16 %v2805, %v2804
    %v2862 = vpack.c.b16 %v2807, %v2806
    %v2863 = vpack.c.b16 %v2809, %v2808
    %v2864 = vpack.c.b16 %v2811, %v2810
    %v2865 = vpack.c.b16 %v2813, %v2812
    %v2866 = vpack.c.b16 %v2815, %v2814
    %v2867 = vpack.c.b16 %v2817, %v2816
    %v2868 = vpack.c.b16 %v2819, %v2818
    %v2869 = vpack.c.b16 %v2821, %v2820
    %v2870 = vpack.c.b16 %v2823, %v2822
    %v2871 = vpack.c.b16 %v2825, %v2824
    %v2872 = vpack.c.b16 %v2827, %v2826
    %v2873 = vpack.c.b16 %v2829, %v2828
    %v2874 = vpack.c.b16 %v2831, %v2830
    %v2875 = vpack.c.b16 %v2833, %v2832
    %v2876 = vpack.c.b16 %v2835, %v2834
    %v2877 = vpack.c.b16 %v2837, %v2836
    %v2878 = vpack.c.b16 %v2839, %v2838
    %v2879 = vpack.c.b16 %v2841, %v2840
    %v2880 = vpack.c.b16 %v2843, %v2842
    %v2881 = vpack.c.b16 %v2845, %v2844
    %v2882 = vpack.c.b16 %v2847, %v2846
    %v2883 = vpack.c.b16 %v2849, %v2848
    %v2884 = vpack.c.b16 %v2851, %v2850
    %v2885 = vpack.c.b16 %v2853, %v2852
    %2918 = vmatpush.bf16.msra.mxu0 %v2861
    %2919 = vmatpush.bf16.msra.mxu0 %v2860
    %2920 = vmatpush.bf16.msra.mxu0 %v2859
    %2921 = vmatpush.bf16.msra.mxu0 %v2858
    %2922 = vmatpush.bf16.msra.mxu0 %v2857
    %2923 = vmatpush.bf16.msra.mxu0 %v2856
    %2924 = vmatpush.bf16.msra.mxu0 %v2855
    %2925 = vmatpush.bf16.msra.mxu0 %v2854
    %2926 = vmatmul.bf16.gmra.mxu0 %v2718
    %v2927 = vpop.f32.mrf.mxu0
    %v2928 = vadd.f32 0.0, %v2927
    %v2929 = vpop.f32.mrf.mxu0
    %2930 = vdwg.mxu0
    %2931 = vmatpush.bf16.msra.mxu0 %v2869
    %2932 = vmatpush.bf16.msra.mxu0 %v2868
    %2933 = vmatpush.bf16.msra.mxu0 %v2867
    %2934 = vmatpush.bf16.msra.mxu0 %v2866
    %2935 = vmatpush.bf16.msra.mxu0 %v2865
    %2936 = vmatpush.bf16.msra.mxu0 %v2864
    %2937 = vmatpush.bf16.msra.mxu0 %v2863
    %2938 = vmatpush.bf16.msra.mxu0 %v2862
    %2939 = vmatmul.bf16.gmra.mxu0 %v2719
    %v2940 = vpop.f32.mrf.mxu0
    %v2941 = vadd.f32 %v2928, %v2940
    %v2942 = vpop.f32.mrf.mxu0
    %2943 = vdwg.mxu0
    %2944 = vmatpush.bf16.msra.mxu0 %v2877
    %2945 = vmatpush.bf16.msra.mxu0 %v2876
    %2946 = vmatpush.bf16.msra.mxu0 %v2875
    %2947 = vmatpush.bf16.msra.mxu0 %v2874
    %2948 = vmatpush.bf16.msra.mxu0 %v2873
    %2949 = vmatpush.bf16.msra.mxu0 %v2872
    %2950 = vmatpush.bf16.msra.mxu0 %v2871
    %2951 = vmatpush.bf16.msra.mxu0 %v2870
    %2952 = vmatmul.bf16.gmra.mxu0 %v2720
    %v2953 = vpop.f32.mrf.mxu0
    %v2954 = vadd.f32 %v2941, %v2953
    %v2955 = vpop.f32.mrf.mxu0
    %2956 = vdwg.mxu0
    %2957 = vmatpush.bf16.msra.mxu0 %v2885
    %2958 = vmatpush.bf16.msra.mxu0 %v2884
    %2959 = vmatpush.bf16.msra.mxu0 %v2883
    %2960 = vmatpush.bf16.msra.mxu0 %v2882
    %2961 = vmatpush.bf16.msra.mxu0 %v2881
    %2962 = vmatpush.bf16.msra.mxu0 %v2880
    %2963 = vmatpush.bf16.msra.mxu0 %v2879
    %2964 = vmatpush.bf16.msra.mxu0 %v2878
    %2965 = vmatmul.bf16.gmra.mxu0 %v2721
    %v2966 = vpop.f32.mrf.mxu0
    %v2967 = vadd.f32 %v2954, %v2966
    %v2968 = vpop.f32.mrf.mxu0
    %2969 = vdwg.mxu0
    %s2970 = scalar_lea.vmem [#allocation2], 2304
    %v2971 = vld [vmem:[%s2970] sm:$0xf]
    %v2972 = vld [vmem:[%s2970 + $0x4] sm:$0xf]
    %v2973 = vld [vmem:[%s2970 + $0x8] sm:$0xf]
    %v2974 = vld [vmem:[%s2970 + $0xc] sm:$0xf]
    %v2975 = vld [vmem:[%s2970 + $0x10] sm:$0xf]
    %v2976 = vld [vmem:[%s2970 + $0x14] sm:$0xf]
    %v2977 = vld [vmem:[%s2970 + $0x18] sm:$0xf]
    %v2978 = vld [vmem:[%s2970 + $0x1c] sm:$0xf]
    %v2979 = vld [vmem:[%s2970 + $0x20] sm:$0xf]
    %v2980 = vld [vmem:[%s2970 + $0x24] sm:$0xf]
    %v2981 = vld [vmem:[%s2970 + $0x28] sm:$0xf]
    %v2982 = vld [vmem:[%s2970 + $0x2c] sm:$0xf]
    %v2983 = vld [vmem:[%s2970 + $0x30] sm:$0xf]
    %v2984 = vld [vmem:[%s2970 + $0x34] sm:$0xf]
    %v2985 = vld [vmem:[%s2970 + $0x38] sm:$0xf]
    %v2986 = vld [vmem:[%s2970 + $0x3c] sm:$0xf]
    %v2987 = vld [vmem:[%s2970 + $0x40] sm:$0xf]
    %v2988 = vld [vmem:[%s2970 + $0x44] sm:$0xf]
    %v2989 = vld [vmem:[%s2970 + $0x48] sm:$0xf]
    %v2990 = vld [vmem:[%s2970 + $0x4c] sm:$0xf]
    %v2991 = vld [vmem:[%s2970 + $0x50] sm:$0xf]
    %v2992 = vld [vmem:[%s2970 + $0x54] sm:$0xf]
    %v2993 = vld [vmem:[%s2970 + $0x58] sm:$0xf]
    %v2994 = vld [vmem:[%s2970 + $0x5c] sm:$0xf]
    %v2995 = vld [vmem:[%s2970 + $0x60] sm:$0xf]
    %v2996 = vld [vmem:[%s2970 + $0x64] sm:$0xf]
    %v2997 = vld [vmem:[%s2970 + $0x68] sm:$0xf]
    %v2998 = vld [vmem:[%s2970 + $0x6c] sm:$0xf]
    %v2999 = vld [vmem:[%s2970 + $0x70] sm:$0xf]
    %v3000 = vld [vmem:[%s2970 + $0x74] sm:$0xf]
    %v3001 = vld [vmem:[%s2970 + $0x78] sm:$0xf]
    %v3002 = vld [vmem:[%s2970 + $0x7c] sm:$0xf]
    %v3003 = vld [vmem:[%s2970 + $0x80] sm:$0xf]
    %v3004 = vld [vmem:[%s2970 + $0x84] sm:$0xf]
    %v3005 = vld [vmem:[%s2970 + $0x88] sm:$0xf]
    %v3006 = vld [vmem:[%s2970 + $0x8c] sm:$0xf]
    %v3007 = vld [vmem:[%s2970 + $0x90] sm:$0xf]
    %v3008 = vld [vmem:[%s2970 + $0x94] sm:$0xf]
    %v3009 = vld [vmem:[%s2970 + $0x98] sm:$0xf]
    %v3010 = vld [vmem:[%s2970 + $0x9c] sm:$0xf]
    %v3011 = vld [vmem:[%s2970 + $0xa0] sm:$0xf]
    %v3012 = vld [vmem:[%s2970 + $0xa4] sm:$0xf]
    %v3013 = vld [vmem:[%s2970 + $0xa8] sm:$0xf]
    %v3014 = vld [vmem:[%s2970 + $0xac] sm:$0xf]
    %v3015 = vld [vmem:[%s2970 + $0xb0] sm:$0xf]
    %v3016 = vld [vmem:[%s2970 + $0xb4] sm:$0xf]
    %v3017 = vld [vmem:[%s2970 + $0xb8] sm:$0xf]
    %v3018 = vld [vmem:[%s2970 + $0xbc] sm:$0xf]
    %v3019 = vld [vmem:[%s2970 + $0xc0] sm:$0xf]
    %v3020 = vld [vmem:[%s2970 + $0xc4] sm:$0xf]
    %v3021 = vld [vmem:[%s2970 + $0xc8] sm:$0xf]
    %v3022 = vld [vmem:[%s2970 + $0xcc] sm:$0xf]
    %v3023 = vld [vmem:[%s2970 + $0xd0] sm:$0xf]
    %v3024 = vld [vmem:[%s2970 + $0xd4] sm:$0xf]
    %v3025 = vld [vmem:[%s2970 + $0xd8] sm:$0xf]
    %v3026 = vld [vmem:[%s2970 + $0xdc] sm:$0xf]
    %v3027 = vld [vmem:[%s2970 + $0xe0] sm:$0xf]
    %v3028 = vld [vmem:[%s2970 + $0xe4] sm:$0xf]
    %v3029 = vld [vmem:[%s2970 + $0xe8] sm:$0xf]
    %v3030 = vld [vmem:[%s2970 + $0xec] sm:$0xf]
    %v3031 = vld [vmem:[%s2970 + $0xf0] sm:$0xf]
    %v3032 = vld [vmem:[%s2970 + $0xf4] sm:$0xf]
    %v3033 = vld [vmem:[%s2970 + $0xf8] sm:$0xf]
    %v3034 = vld [vmem:[%s2970 + $0xfc] sm:$0xf]
    %3035 = vst [vmem:[#allocation1] ss:$9 sm:$0xff] %v107
    %v3036 = vld [vmem:[#allocation1] sm:$0xff]
    %v3037 = vld [vmem:[#allocation1 + $0x9] sm:$0xff]
    %v3038 = vld [vmem:[#allocation1 + $0x12] sm:$0xff]
    %v3039 = vld [vmem:[#allocation1 + $0x1b] sm:$0xff]
    %v3108 = vunpack.c.l.b16 %v2971
    %v3109 = vunpack.c.l.b16 %v2972
    %v3110 = vunpack.c.l.b16 %v2973
    %v3111 = vunpack.c.l.b16 %v2974
    %v3112 = vunpack.c.l.b16 %v2975
    %v3113 = vunpack.c.l.b16 %v2976
    %v3114 = vunpack.c.l.b16 %v2977
    %v3115 = vunpack.c.l.b16 %v2978
    %v3116 = vunpack.c.l.b16 %v2979
    %v3117 = vunpack.c.l.b16 %v2980
    %v3118 = vunpack.c.l.b16 %v2981
    %v3119 = vunpack.c.l.b16 %v2982
    %v3120 = vunpack.c.l.b16 %v2983
    %v3121 = vunpack.c.l.b16 %v2984
    %v3122 = vunpack.c.l.b16 %v2985
    %v3123 = vunpack.c.l.b16 %v2986
    %v3124 = vunpack.c.l.b16 %v2987
    %v3125 = vunpack.c.l.b16 %v2988
    %v3126 = vunpack.c.l.b16 %v2989
    %v3127 = vunpack.c.l.b16 %v2990
    %v3128 = vunpack.c.l.b16 %v2991
    %v3129 = vunpack.c.l.b16 %v2992
    %v3130 = vunpack.c.l.b16 %v2993
    %v3131 = vunpack.c.l.b16 %v2994
    %v3132 = vunpack.c.l.b16 %v2995
    %v3133 = vunpack.c.l.b16 %v2996
    %v3134 = vunpack.c.l.b16 %v2997
    %v3135 = vunpack.c.l.b16 %v2998
    %v3136 = vunpack.c.l.b16 %v2999
    %v3137 = vunpack.c.l.b16 %v3000
    %v3138 = vunpack.c.l.b16 %v3001
    %v3139 = vunpack.c.l.b16 %v3002
    %v3140 = vunpack.c.l.b16 %v3003
    %v3141 = vunpack.c.l.b16 %v3004
    %v3142 = vunpack.c.l.b16 %v3005
    %v3143 = vunpack.c.l.b16 %v3006
    %v3144 = vunpack.c.l.b16 %v3007
    %v3145 = vunpack.c.l.b16 %v3008
    %v3146 = vunpack.c.l.b16 %v3009
    %v3147 = vunpack.c.l.b16 %v3010
    %v3148 = vunpack.c.l.b16 %v3011
    %v3149 = vunpack.c.l.b16 %v3012
    %v3150 = vunpack.c.l.b16 %v3013
    %v3151 = vunpack.c.l.b16 %v3014
    %v3152 = vunpack.c.l.b16 %v3015
    %v3153 = vunpack.c.l.b16 %v3016
    %v3154 = vunpack.c.l.b16 %v3017
    %v3155 = vunpack.c.l.b16 %v3018
    %v3156 = vunpack.c.l.b16 %v3019
    %v3157 = vunpack.c.l.b16 %v3020
    %v3158 = vunpack.c.l.b16 %v3021
    %v3159 = vunpack.c.l.b16 %v3022
    %v3160 = vunpack.c.l.b16 %v3023
    %v3161 = vunpack.c.l.b16 %v3024
    %v3162 = vunpack.c.l.b16 %v3025
    %v3163 = vunpack.c.l.b16 %v3026
    %v3164 = vunpack.c.l.b16 %v3027
    %v3165 = vunpack.c.l.b16 %v3028
    %v3166 = vunpack.c.l.b16 %v3029
    %v3167 = vunpack.c.l.b16 %v3030
    %v3168 = vunpack.c.l.b16 %v3031
    %v3169 = vunpack.c.l.b16 %v3032
    %v3170 = vunpack.c.l.b16 %v3033
    %v3171 = vunpack.c.l.b16 %v3034
    %v3172 = vpack.c.b16 %v3109, %v3108
    %v3173 = vpack.c.b16 %v3111, %v3110
    %v3174 = vpack.c.b16 %v3113, %v3112
    %v3175 = vpack.c.b16 %v3115, %v3114
    %v3176 = vpack.c.b16 %v3117, %v3116
    %v3177 = vpack.c.b16 %v3119, %v3118
    %v3178 = vpack.c.b16 %v3121, %v3120
    %v3179 = vpack.c.b16 %v3123, %v3122
    %v3180 = vpack.c.b16 %v3125, %v3124
    %v3181 = vpack.c.b16 %v3127, %v3126
    %v3182 = vpack.c.b16 %v3129, %v3128
    %v3183 = vpack.c.b16 %v3131, %v3130
    %v3184 = vpack.c.b16 %v3133, %v3132
    %v3185 = vpack.c.b16 %v3135, %v3134
    %v3186 = vpack.c.b16 %v3137, %v3136
    %v3187 = vpack.c.b16 %v3139, %v3138
    %v3188 = vpack.c.b16 %v3141, %v3140
    %v3189 = vpack.c.b16 %v3143, %v3142
    %v3190 = vpack.c.b16 %v3145, %v3144
    %v3191 = vpack.c.b16 %v3147, %v3146
    %v3192 = vpack.c.b16 %v3149, %v3148
    %v3193 = vpack.c.b16 %v3151, %v3150
    %v3194 = vpack.c.b16 %v3153, %v3152
    %v3195 = vpack.c.b16 %v3155, %v3154
    %v3196 = vpack.c.b16 %v3157, %v3156
    %v3197 = vpack.c.b16 %v3159, %v3158
    %v3198 = vpack.c.b16 %v3161, %v3160
    %v3199 = vpack.c.b16 %v3163, %v3162
    %v3200 = vpack.c.b16 %v3165, %v3164
    %v3201 = vpack.c.b16 %v3167, %v3166
    %v3202 = vpack.c.b16 %v3169, %v3168
    %v3203 = vpack.c.b16 %v3171, %v3170
    %3236 = vmatpush.bf16.msra.mxu0 %v3179
    %3237 = vmatpush.bf16.msra.mxu0 %v3178
    %3238 = vmatpush.bf16.msra.mxu0 %v3177
    %3239 = vmatpush.bf16.msra.mxu0 %v3176
    %3240 = vmatpush.bf16.msra.mxu0 %v3175
    %3241 = vmatpush.bf16.msra.mxu0 %v3174
    %3242 = vmatpush.bf16.msra.mxu0 %v3173
    %3243 = vmatpush.bf16.msra.mxu0 %v3172
    %3244 = vmatmul.bf16.gmra.mxu0 %v3036
    %v3245 = vpop.f32.mrf.mxu0
    %v3246 = vadd.f32 0.0, %v3245
    %v3247 = vpop.f32.mrf.mxu0
    %3248 = vdwg.mxu0
    %3249 = vmatpush.bf16.msra.mxu0 %v3187
    %3250 = vmatpush.bf16.msra.mxu0 %v3186
    %3251 = vmatpush.bf16.msra.mxu0 %v3185
    %3252 = vmatpush.bf16.msra.mxu0 %v3184
    %3253 = vmatpush.bf16.msra.mxu0 %v3183
    %3254 = vmatpush.bf16.msra.mxu0 %v3182
    %3255 = vmatpush.bf16.msra.mxu0 %v3181
    %3256 = vmatpush.bf16.msra.mxu0 %v3180
    %3257 = vmatmul.bf16.gmra.mxu0 %v3037
    %v3258 = vpop.f32.mrf.mxu0
    %v3259 = vadd.f32 %v3246, %v3258
    %v3260 = vpop.f32.mrf.mxu0
    %3261 = vdwg.mxu0
    %3262 = vmatpush.bf16.msra.mxu0 %v3195
    %3263 = vmatpush.bf16.msra.mxu0 %v3194
    %3264 = vmatpush.bf16.msra.mxu0 %v3193
    %3265 = vmatpush.bf16.msra.mxu0 %v3192
    %3266 = vmatpush.bf16.msra.mxu0 %v3191
    %3267 = vmatpush.bf16.msra.mxu0 %v3190
    %3268 = vmatpush.bf16.msra.mxu0 %v3189
    %3269 = vmatpush.bf16.msra.mxu0 %v3188
    %3270 = vmatmul.bf16.gmra.mxu0 %v3038
    %v3271 = vpop.f32.mrf.mxu0
    %v3272 = vadd.f32 %v3259, %v3271
    %v3273 = vpop.f32.mrf.mxu0
    %3274 = vdwg.mxu0
    %3275 = vmatpush.bf16.msra.mxu0 %v3203
    %3276 = vmatpush.bf16.msra.mxu0 %v3202
    %3277 = vmatpush.bf16.msra.mxu0 %v3201
    %3278 = vmatpush.bf16.msra.mxu0 %v3200
    %3279 = vmatpush.bf16.msra.mxu0 %v3199
    %3280 = vmatpush.bf16.msra.mxu0 %v3198
    %3281 = vmatpush.bf16.msra.mxu0 %v3197
    %3282 = vmatpush.bf16.msra.mxu0 %v3196
    %3283 = vmatmul.bf16.gmra.mxu0 %v3039
    %v3284 = vpop.f32.mrf.mxu0
    %v3285 = vadd.f32 %v3272, %v3284
    %v3286 = vpop.f32.mrf.mxu0
    %3287 = vdwg.mxu0
    %s3288 = scalar_lea.vmem [#allocation2], 2560
    %v3289 = vld [vmem:[%s3288] sm:$0xf]
    %v3290 = vld [vmem:[%s3288 + $0x4] sm:$0xf]
    %v3291 = vld [vmem:[%s3288 + $0x8] sm:$0xf]
    %v3292 = vld [vmem:[%s3288 + $0xc] sm:$0xf]
    %v3293 = vld [vmem:[%s3288 + $0x10] sm:$0xf]
    %v3294 = vld [vmem:[%s3288 + $0x14] sm:$0xf]
    %v3295 = vld [vmem:[%s3288 + $0x18] sm:$0xf]
    %v3296 = vld [vmem:[%s3288 + $0x1c] sm:$0xf]
    %v3297 = vld [vmem:[%s3288 + $0x20] sm:$0xf]
    %v3298 = vld [vmem:[%s3288 + $0x24] sm:$0xf]
    %v3299 = vld [vmem:[%s3288 + $0x28] sm:$0xf]
    %v3300 = vld [vmem:[%s3288 + $0x2c] sm:$0xf]
    %v3301 = vld [vmem:[%s3288 + $0x30] sm:$0xf]
    %v3302 = vld [vmem:[%s3288 + $0x34] sm:$0xf]
    %v3303 = vld [vmem:[%s3288 + $0x38] sm:$0xf]
    %v3304 = vld [vmem:[%s3288 + $0x3c] sm:$0xf]
    %v3305 = vld [vmem:[%s3288 + $0x40] sm:$0xf]
    %v3306 = vld [vmem:[%s3288 + $0x44] sm:$0xf]
    %v3307 = vld [vmem:[%s3288 + $0x48] sm:$0xf]
    %v3308 = vld [vmem:[%s3288 + $0x4c] sm:$0xf]
    %v3309 = vld [vmem:[%s3288 + $0x50] sm:$0xf]
    %v3310 = vld [vmem:[%s3288 + $0x54] sm:$0xf]
    %v3311 = vld [vmem:[%s3288 + $0x58] sm:$0xf]
    %v3312 = vld [vmem:[%s3288 + $0x5c] sm:$0xf]
    %v3313 = vld [vmem:[%s3288 + $0x60] sm:$0xf]
    %v3314 = vld [vmem:[%s3288 + $0x64] sm:$0xf]
    %v3315 = vld [vmem:[%s3288 + $0x68] sm:$0xf]
    %v3316 = vld [vmem:[%s3288 + $0x6c] sm:$0xf]
    %v3317 = vld [vmem:[%s3288 + $0x70] sm:$0xf]
    %v3318 = vld [vmem:[%s3288 + $0x74] sm:$0xf]
    %v3319 = vld [vmem:[%s3288 + $0x78] sm:$0xf]
    %v3320 = vld [vmem:[%s3288 + $0x7c] sm:$0xf]
    %v3321 = vld [vmem:[%s3288 + $0x80] sm:$0xf]
    %v3322 = vld [vmem:[%s3288 + $0x84] sm:$0xf]
    %v3323 = vld [vmem:[%s3288 + $0x88] sm:$0xf]
    %v3324 = vld [vmem:[%s3288 + $0x8c] sm:$0xf]
    %v3325 = vld [vmem:[%s3288 + $0x90] sm:$0xf]
    %v3326 = vld [vmem:[%s3288 + $0x94] sm:$0xf]
    %v3327 = vld [vmem:[%s3288 + $0x98] sm:$0xf]
    %v3328 = vld [vmem:[%s3288 + $0x9c] sm:$0xf]
    %v3329 = vld [vmem:[%s3288 + $0xa0] sm:$0xf]
    %v3330 = vld [vmem:[%s3288 + $0xa4] sm:$0xf]
    %v3331 = vld [vmem:[%s3288 + $0xa8] sm:$0xf]
    %v3332 = vld [vmem:[%s3288 + $0xac] sm:$0xf]
    %v3333 = vld [vmem:[%s3288 + $0xb0] sm:$0xf]
    %v3334 = vld [vmem:[%s3288 + $0xb4] sm:$0xf]
    %v3335 = vld [vmem:[%s3288 + $0xb8] sm:$0xf]
    %v3336 = vld [vmem:[%s3288 + $0xbc] sm:$0xf]
    %v3337 = vld [vmem:[%s3288 + $0xc0] sm:$0xf]
    %v3338 = vld [vmem:[%s3288 + $0xc4] sm:$0xf]
    %v3339 = vld [vmem:[%s3288 + $0xc8] sm:$0xf]
    %v3340 = vld [vmem:[%s3288 + $0xcc] sm:$0xf]
    %v3341 = vld [vmem:[%s3288 + $0xd0] sm:$0xf]
    %v3342 = vld [vmem:[%s3288 + $0xd4] sm:$0xf]
    %v3343 = vld [vmem:[%s3288 + $0xd8] sm:$0xf]
    %v3344 = vld [vmem:[%s3288 + $0xdc] sm:$0xf]
    %v3345 = vld [vmem:[%s3288 + $0xe0] sm:$0xf]
    %v3346 = vld [vmem:[%s3288 + $0xe4] sm:$0xf]
    %v3347 = vld [vmem:[%s3288 + $0xe8] sm:$0xf]
    %v3348 = vld [vmem:[%s3288 + $0xec] sm:$0xf]
    %v3349 = vld [vmem:[%s3288 + $0xf0] sm:$0xf]
    %v3350 = vld [vmem:[%s3288 + $0xf4] sm:$0xf]
    %v3351 = vld [vmem:[%s3288 + $0xf8] sm:$0xf]
    %v3352 = vld [vmem:[%s3288 + $0xfc] sm:$0xf]
    %3353 = vst [vmem:[#allocation1] ss:$9 sm:$0xff] %v107
    %v3354 = vld [vmem:[#allocation1] sm:$0xff]
    %v3355 = vld [vmem:[#allocation1 + $0x9] sm:$0xff]
    %v3356 = vld [vmem:[#allocation1 + $0x12] sm:$0xff]
    %v3357 = vld [vmem:[#allocation1 + $0x1b] sm:$0xff]
    %v3426 = vunpack.c.l.b16 %v3289
    %v3427 = vunpack.c.l.b16 %v3290
    %v3428 = vunpack.c.l.b16 %v3291
    %v3429 = vunpack.c.l.b16 %v3292
    %v3430 = vunpack.c.l.b16 %v3293
    %v3431 = vunpack.c.l.b16 %v3294
    %v3432 = vunpack.c.l.b16 %v3295
    %v3433 = vunpack.c.l.b16 %v3296
    %v3434 = vunpack.c.l.b16 %v3297
    %v3435 = vunpack.c.l.b16 %v3298
    %v3436 = vunpack.c.l.b16 %v3299
    %v3437 = vunpack.c.l.b16 %v3300
    %v3438 = vunpack.c.l.b16 %v3301
    %v3439 = vunpack.c.l.b16 %v3302
    %v3440 = vunpack.c.l.b16 %v3303
    %v3441 = vunpack.c.l.b16 %v3304
    %v3442 = vunpack.c.l.b16 %v3305
    %v3443 = vunpack.c.l.b16 %v3306
    %v3444 = vunpack.c.l.b16 %v3307
    %v3445 = vunpack.c.l.b16 %v3308
    %v3446 = vunpack.c.l.b16 %v3309
    %v3447 = vunpack.c.l.b16 %v3310
    %v3448 = vunpack.c.l.b16 %v3311
    %v3449 = vunpack.c.l.b16 %v3312
    %v3450 = vunpack.c.l.b16 %v3313
    %v3451 = vunpack.c.l.b16 %v3314
    %v3452 = vunpack.c.l.b16 %v3315
    %v3453 = vunpack.c.l.b16 %v3316
    %v3454 = vunpack.c.l.b16 %v3317
    %v3455 = vunpack.c.l.b16 %v3318
    %v3456 = vunpack.c.l.b16 %v3319
    %v3457 = vunpack.c.l.b16 %v3320
    %v3458 = vunpack.c.l.b16 %v3321
    %v3459 = vunpack.c.l.b16 %v3322
    %v3460 = vunpack.c.l.b16 %v3323
    %v3461 = vunpack.c.l.b16 %v3324
    %v3462 = vunpack.c.l.b16 %v3325
    %v3463 = vunpack.c.l.b16 %v3326
    %v3464 = vunpack.c.l.b16 %v3327
    %v3465 = vunpack.c.l.b16 %v3328
    %v3466 = vunpack.c.l.b16 %v3329
    %v3467 = vunpack.c.l.b16 %v3330
    %v3468 = vunpack.c.l.b16 %v3331
    %v3469 = vunpack.c.l.b16 %v3332
    %v3470 = vunpack.c.l.b16 %v3333
    %v3471 = vunpack.c.l.b16 %v3334
    %v3472 = vunpack.c.l.b16 %v3335
    %v3473 = vunpack.c.l.b16 %v3336
    %v3474 = vunpack.c.l.b16 %v3337
    %v3475 = vunpack.c.l.b16 %v3338
    %v3476 = vunpack.c.l.b16 %v3339
    %v3477 = vunpack.c.l.b16 %v3340
    %v3478 = vunpack.c.l.b16 %v3341
    %v3479 = vunpack.c.l.b16 %v3342
    %v3480 = vunpack.c.l.b16 %v3343
    %v3481 = vunpack.c.l.b16 %v3344
    %v3482 = vunpack.c.l.b16 %v3345
    %v3483 = vunpack.c.l.b16 %v3346
    %v3484 = vunpack.c.l.b16 %v3347
    %v3485 = vunpack.c.l.b16 %v3348
    %v3486 = vunpack.c.l.b16 %v3349
    %v3487 = vunpack.c.l.b16 %v3350
    %v3488 = vunpack.c.l.b16 %v3351
    %v3489 = vunpack.c.l.b16 %v3352
    %v3490 = vpack.c.b16 %v3427, %v3426
    %v3491 = vpack.c.b16 %v3429, %v3428
    %v3492 = vpack.c.b16 %v3431, %v3430
    %v3493 = vpack.c.b16 %v3433, %v3432
    %v3494 = vpack.c.b16 %v3435, %v3434
    %v3495 = vpack.c.b16 %v3437, %v3436
    %v3496 = vpack.c.b16 %v3439, %v3438
    %v3497 = vpack.c.b16 %v3441, %v3440
    %v3498 = vpack.c.b16 %v3443, %v3442
    %v3499 = vpack.c.b16 %v3445, %v3444
    %v3500 = vpack.c.b16 %v3447, %v3446
    %v3501 = vpack.c.b16 %v3449, %v3448
    %v3502 = vpack.c.b16 %v3451, %v3450
    %v3503 = vpack.c.b16 %v3453, %v3452
    %v3504 = vpack.c.b16 %v3455, %v3454
    %v3505 = vpack.c.b16 %v3457, %v3456
    %v3506 = vpack.c.b16 %v3459, %v3458
    %v3507 = vpack.c.b16 %v3461, %v3460
    %v3508 = vpack.c.b16 %v3463, %v3462
    %v3509 = vpack.c.b16 %v3465, %v3464
    %v3510 = vpack.c.b16 %v3467, %v3466
    %v3511 = vpack.c.b16 %v3469, %v3468
    %v3512 = vpack.c.b16 %v3471, %v3470
    %v3513 = vpack.c.b16 %v3473, %v3472
    %v3514 = vpack.c.b16 %v3475, %v3474
    %v3515 = vpack.c.b16 %v3477, %v3476
    %v3516 = vpack.c.b16 %v3479, %v3478
    %v3517 = vpack.c.b16 %v3481, %v3480
    %v3518 = vpack.c.b16 %v3483, %v3482
    %v3519 = vpack.c.b16 %v3485, %v3484
    %v3520 = vpack.c.b16 %v3487, %v3486
    %v3521 = vpack.c.b16 %v3489, %v3488
    %3554 = vmatpush.bf16.msra.mxu0 %v3497
    %3555 = vmatpush.bf16.msra.mxu0 %v3496
    %3556 = vmatpush.bf16.msra.mxu0 %v3495
    %3557 = vmatpush.bf16.msra.mxu0 %v3494
    %3558 = vmatpush.bf16.msra.mxu0 %v3493
    %3559 = vmatpush.bf16.msra.mxu0 %v3492
    %3560 = vmatpush.bf16.msra.mxu0 %v3491
    %3561 = vmatpush.bf16.msra.mxu0 %v3490
    %3562 = vmatmul.bf16.gmra.mxu0 %v3354
    %v3563 = vpop.f32.mrf.mxu0
    %v3564 = vadd.f32 0.0, %v3563
    %v3565 = vpop.f32.mrf.mxu0
    %3566 = vdwg.mxu0
    %3567 = vmatpush.bf16.msra.mxu0 %v3505
    %3568 = vmatpush.bf16.msra.mxu0 %v3504
    %3569 = vmatpush.bf16.msra.mxu0 %v3503
    %3570 = vmatpush.bf16.msra.mxu0 %v3502
    %3571 = vmatpush.bf16.msra.mxu0 %v3501
    %3572 = vmatpush.bf16.msra.mxu0 %v3500
    %3573 = vmatpush.bf16.msra.mxu0 %v3499
    %3574 = vmatpush.bf16.msra.mxu0 %v3498
    %3575 = vmatmul.bf16.gmra.mxu0 %v3355
    %v3576 = vpop.f32.mrf.mxu0
    %v3577 = vadd.f32 %v3564, %v3576
    %v3578 = vpop.f32.mrf.mxu0
    %3579 = vdwg.mxu0
    %3580 = vmatpush.bf16.msra.mxu0 %v3513
    %3581 = vmatpush.bf16.msra.mxu0 %v3512
    %3582 = vmatpush.bf16.msra.mxu0 %v3511
    %3583 = vmatpush.bf16.msra.mxu0 %v3510
    %3584 = vmatpush.bf16.msra.mxu0 %v3509
    %3585 = vmatpush.bf16.msra.mxu0 %v3508
    %3586 = vmatpush.bf16.msra.mxu0 %v3507
    %3587 = vmatpush.bf16.msra.mxu0 %v3506
    %3588 = vmatmul.bf16.gmra.mxu0 %v3356
    %v3589 = vpop.f32.mrf.mxu0
    %v3590 = vadd.f32 %v3577, %v3589
    %v3591 = vpop.f32.mrf.mxu0
    %3592 = vdwg.mxu0
    %3593 = vmatpush.bf16.msra.mxu0 %v3521
    %3594 = vmatpush.bf16.msra.mxu0 %v3520
    %3595 = vmatpush.bf16.msra.mxu0 %v3519
    %3596 = vmatpush.bf16.msra.mxu0 %v3518
    %3597 = vmatpush.bf16.msra.mxu0 %v3517
    %3598 = vmatpush.bf16.msra.mxu0 %v3516
    %3599 = vmatpush.bf16.msra.mxu0 %v3515
    %3600 = vmatpush.bf16.msra.mxu0 %v3514
    %3601 = vmatmul.bf16.gmra.mxu0 %v3357
    %v3602 = vpop.f32.mrf.mxu0
    %v3603 = vadd.f32 %v3590, %v3602
    %v3604 = vpop.f32.mrf.mxu0
    %3605 = vdwg.mxu0
    %s3606 = scalar_lea.vmem [#allocation2], 2816
    %v3607 = vld [vmem:[%s3606] sm:$0xf]
    %v3608 = vld [vmem:[%s3606 + $0x4] sm:$0xf]
    %v3609 = vld [vmem:[%s3606 + $0x8] sm:$0xf]
    %v3610 = vld [vmem:[%s3606 + $0xc] sm:$0xf]
    %v3611 = vld [vmem:[%s3606 + $0x10] sm:$0xf]
    %v3612 = vld [vmem:[%s3606 + $0x14] sm:$0xf]
    %v3613 = vld [vmem:[%s3606 + $0x18] sm:$0xf]
    %v3614 = vld [vmem:[%s3606 + $0x1c] sm:$0xf]
    %v3615 = vld [vmem:[%s3606 + $0x20] sm:$0xf]
    %v3616 = vld [vmem:[%s3606 + $0x24] sm:$0xf]
    %v3617 = vld [vmem:[%s3606 + $0x28] sm:$0xf]
    %v3618 = vld [vmem:[%s3606 + $0x2c] sm:$0xf]
    %v3619 = vld [vmem:[%s3606 + $0x30] sm:$0xf]
    %v3620 = vld [vmem:[%s3606 + $0x34] sm:$0xf]
    %v3621 = vld [vmem:[%s3606 + $0x38] sm:$0xf]
    %v3622 = vld [vmem:[%s3606 + $0x3c] sm:$0xf]
    %v3623 = vld [vmem:[%s3606 + $0x40] sm:$0xf]
    %v3624 = vld [vmem:[%s3606 + $0x44] sm:$0xf]
    %v3625 = vld [vmem:[%s3606 + $0x48] sm:$0xf]
    %v3626 = vld [vmem:[%s3606 + $0x4c] sm:$0xf]
    %v3627 = vld [vmem:[%s3606 + $0x50] sm:$0xf]
    %v3628 = vld [vmem:[%s3606 + $0x54] sm:$0xf]
    %v3629 = vld [vmem:[%s3606 + $0x58] sm:$0xf]
    %v3630 = vld [vmem:[%s3606 + $0x5c] sm:$0xf]
    %v3631 = vld [vmem:[%s3606 + $0x60] sm:$0xf]
    %v3632 = vld [vmem:[%s3606 + $0x64] sm:$0xf]
    %v3633 = vld [vmem:[%s3606 + $0x68] sm:$0xf]
    %v3634 = vld [vmem:[%s3606 + $0x6c] sm:$0xf]
    %v3635 = vld [vmem:[%s3606 + $0x70] sm:$0xf]
    %v3636 = vld [vmem:[%s3606 + $0x74] sm:$0xf]
    %v3637 = vld [vmem:[%s3606 + $0x78] sm:$0xf]
    %v3638 = vld [vmem:[%s3606 + $0x7c] sm:$0xf]
    %v3639 = vld [vmem:[%s3606 + $0x80] sm:$0xf]
    %v3640 = vld [vmem:[%s3606 + $0x84] sm:$0xf]
    %v3641 = vld [vmem:[%s3606 + $0x88] sm:$0xf]
    %v3642 = vld [vmem:[%s3606 + $0x8c] sm:$0xf]
    %v3643 = vld [vmem:[%s3606 + $0x90] sm:$0xf]
    %v3644 = vld [vmem:[%s3606 + $0x94] sm:$0xf]
    %v3645 = vld [vmem:[%s3606 + $0x98] sm:$0xf]
    %v3646 = vld [vmem:[%s3606 + $0x9c] sm:$0xf]
    %v3647 = vld [vmem:[%s3606 + $0xa0] sm:$0xf]
    %v3648 = vld [vmem:[%s3606 + $0xa4] sm:$0xf]
    %v3649 = vld [vmem:[%s3606 + $0xa8] sm:$0xf]
    %v3650 = vld [vmem:[%s3606 + $0xac] sm:$0xf]
    %v3651 = vld [vmem:[%s3606 + $0xb0] sm:$0xf]
    %v3652 = vld [vmem:[%s3606 + $0xb4] sm:$0xf]
    %v3653 = vld [vmem:[%s3606 + $0xb8] sm:$0xf]
    %v3654 = vld [vmem:[%s3606 + $0xbc] sm:$0xf]
    %v3655 = vld [vmem:[%s3606 + $0xc0] sm:$0xf]
    %v3656 = vld [vmem:[%s3606 + $0xc4] sm:$0xf]
    %v3657 = vld [vmem:[%s3606 + $0xc8] sm:$0xf]
    %v3658 = vld [vmem:[%s3606 + $0xcc] sm:$0xf]
    %v3659 = vld [vmem:[%s3606 + $0xd0] sm:$0xf]
    %v3660 = vld [vmem:[%s3606 + $0xd4] sm:$0xf]
    %v3661 = vld [vmem:[%s3606 + $0xd8] sm:$0xf]
    %v3662 = vld [vmem:[%s3606 + $0xdc] sm:$0xf]
    %v3663 = vld [vmem:[%s3606 + $0xe0] sm:$0xf]
    %v3664 = vld [vmem:[%s3606 + $0xe4] sm:$0xf]
    %v3665 = vld [vmem:[%s3606 + $0xe8] sm:$0xf]
    %v3666 = vld [vmem:[%s3606 + $0xec] sm:$0xf]
    %v3667 = vld [vmem:[%s3606 + $0xf0] sm:$0xf]
    %v3668 = vld [vmem:[%s3606 + $0xf4] sm:$0xf]
    %v3669 = vld [vmem:[%s3606 + $0xf8] sm:$0xf]
    %v3670 = vld [vmem:[%s3606 + $0xfc] sm:$0xf]
    %3671 = vst [vmem:[#allocation1] ss:$9 sm:$0xff] %v107
    %v3672 = vld [vmem:[#allocation1] sm:$0xff]
    %v3673 = vld [vmem:[#allocation1 + $0x9] sm:$0xff]
    %v3674 = vld [vmem:[#allocation1 + $0x12] sm:$0xff]
    %v3675 = vld [vmem:[#allocation1 + $0x1b] sm:$0xff]
    %v3744 = vunpack.c.l.b16 %v3607
    %v3745 = vunpack.c.l.b16 %v3608
    %v3746 = vunpack.c.l.b16 %v3609
    %v3747 = vunpack.c.l.b16 %v3610
    %v3748 = vunpack.c.l.b16 %v3611
    %v3749 = vunpack.c.l.b16 %v3612
    %v3750 = vunpack.c.l.b16 %v3613
    %v3751 = vunpack.c.l.b16 %v3614
    %v3752 = vunpack.c.l.b16 %v3615
    %v3753 = vunpack.c.l.b16 %v3616
    %v3754 = vunpack.c.l.b16 %v3617
    %v3755 = vunpack.c.l.b16 %v3618
    %v3756 = vunpack.c.l.b16 %v3619
    %v3757 = vunpack.c.l.b16 %v3620
    %v3758 = vunpack.c.l.b16 %v3621
    %v3759 = vunpack.c.l.b16 %v3622
    %v3760 = vunpack.c.l.b16 %v3623
    %v3761 = vunpack.c.l.b16 %v3624
    %v3762 = vunpack.c.l.b16 %v3625
    %v3763 = vunpack.c.l.b16 %v3626
    %v3764 = vunpack.c.l.b16 %v3627
    %v3765 = vunpack.c.l.b16 %v3628
    %v3766 = vunpack.c.l.b16 %v3629
    %v3767 = vunpack.c.l.b16 %v3630
    %v3768 = vunpack.c.l.b16 %v3631
    %v3769 = vunpack.c.l.b16 %v3632
    %v3770 = vunpack.c.l.b16 %v3633
    %v3771 = vunpack.c.l.b16 %v3634
    %v3772 = vunpack.c.l.b16 %v3635
    %v3773 = vunpack.c.l.b16 %v3636
    %v3774 = vunpack.c.l.b16 %v3637
    %v3775 = vunpack.c.l.b16 %v3638
    %v3776 = vunpack.c.l.b16 %v3639
    %v3777 = vunpack.c.l.b16 %v3640
    %v3778 = vunpack.c.l.b16 %v3641
    %v3779 = vunpack.c.l.b16 %v3642
    %v3780 = vunpack.c.l.b16 %v3643
    %v3781 = vunpack.c.l.b16 %v3644
    %v3782 = vunpack.c.l.b16 %v3645
    %v3783 = vunpack.c.l.b16 %v3646
    %v3784 = vunpack.c.l.b16 %v3647
    %v3785 = vunpack.c.l.b16 %v3648
    %v3786 = vunpack.c.l.b16 %v3649
    %v3787 = vunpack.c.l.b16 %v3650
    %v3788 = vunpack.c.l.b16 %v3651
    %v3789 = vunpack.c.l.b16 %v3652
    %v3790 = vunpack.c.l.b16 %v3653
    %v3791 = vunpack.c.l.b16 %v3654
    %v3792 = vunpack.c.l.b16 %v3655
    %v3793 = vunpack.c.l.b16 %v3656
    %v3794 = vunpack.c.l.b16 %v3657
    %v3795 = vunpack.c.l.b16 %v3658
    %v3796 = vunpack.c.l.b16 %v3659
    %v3797 = vunpack.c.l.b16 %v3660
    %v3798 = vunpack.c.l.b16 %v3661
    %v3799 = vunpack.c.l.b16 %v3662
    %v3800 = vunpack.c.l.b16 %v3663
    %v3801 = vunpack.c.l.b16 %v3664
    %v3802 = vunpack.c.l.b16 %v3665
    %v3803 = vunpack.c.l.b16 %v3666
    %v3804 = vunpack.c.l.b16 %v3667
    %v3805 = vunpack.c.l.b16 %v3668
    %v3806 = vunpack.c.l.b16 %v3669
    %v3807 = vunpack.c.l.b16 %v3670
    %v3808 = vpack.c.b16 %v3745, %v3744
    %v3809 = vpack.c.b16 %v3747, %v3746
    %v3810 = vpack.c.b16 %v3749, %v3748
    %v3811 = vpack.c.b16 %v3751, %v3750
    %v3812 = vpack.c.b16 %v3753, %v3752
    %v3813 = vpack.c.b16 %v3755, %v3754
    %v3814 = vpack.c.b16 %v3757, %v3756
    %v3815 = vpack.c.b16 %v3759, %v3758
    %v3816 = vpack.c.b16 %v3761, %v3760
    %v3817 = vpack.c.b16 %v3763, %v3762
    %v3818 = vpack.c.b16 %v3765, %v3764
    %v3819 = vpack.c.b16 %v3767, %v3766
    %v3820 = vpack.c.b16 %v3769, %v3768
    %v3821 = vpack.c.b16 %v3771, %v3770
    %v3822 = vpack.c.b16 %v3773, %v3772
    %v3823 = vpack.c.b16 %v3775, %v3774
    %v3824 = vpack.c.b16 %v3777, %v3776
    %v3825 = vpack.c.b16 %v3779, %v3778
    %v3826 = vpack.c.b16 %v3781, %v3780
    %v3827 = vpack.c.b16 %v3783, %v3782
    %v3828 = vpack.c.b16 %v3785, %v3784
    %v3829 = vpack.c.b16 %v3787, %v3786
    %v3830 = vpack.c.b16 %v3789, %v3788
    %v3831 = vpack.c.b16 %v3791, %v3790
    %v3832 = vpack.c.b16 %v3793, %v3792
    %v3833 = vpack.c.b16 %v3795, %v3794
    %v3834 = vpack.c.b16 %v3797, %v3796
    %v3835 = vpack.c.b16 %v3799, %v3798
    %v3836 = vpack.c.b16 %v3801, %v3800
    %v3837 = vpack.c.b16 %v3803, %v3802
    %v3838 = vpack.c.b16 %v3805, %v3804
    %v3839 = vpack.c.b16 %v3807, %v3806
    %3872 = vmatpush.bf16.msra.mxu0 %v3815
    %3873 = vmatpush.bf16.msra.mxu0 %v3814
    %3874 = vmatpush.bf16.msra.mxu0 %v3813
    %3875 = vmatpush.bf16.msra.mxu0 %v3812
    %3876 = vmatpush.bf16.msra.mxu0 %v3811
    %3877 = vmatpush.bf16.msra.mxu0 %v3810
    %3878 = vmatpush.bf16.msra.mxu0 %v3809
    %3879 = vmatpush.bf16.msra.mxu0 %v3808
    %3880 = vmatmul.bf16.gmra.mxu0 %v3672
    %v3881 = vpop.f32.mrf.mxu0
    %v3882 = vadd.f32 0.0, %v3881
    %v3883 = vpop.f32.mrf.mxu0
    %3884 = vdwg.mxu0
    %3885 = vmatpush.bf16.msra.mxu0 %v3823
    %3886 = vmatpush.bf16.msra.mxu0 %v3822
    %3887 = vmatpush.bf16.msra.mxu0 %v3821
    %3888 = vmatpush.bf16.msra.mxu0 %v3820
    %3889 = vmatpush.bf16.msra.mxu0 %v3819
    %3890 = vmatpush.bf16.msra.mxu0 %v3818
    %3891 = vmatpush.bf16.msra.mxu0 %v3817
    %3892 = vmatpush.bf16.msra.mxu0 %v3816
    %3893 = vmatmul.bf16.gmra.mxu0 %v3673
    %v3894 = vpop.f32.mrf.mxu0
    %v3895 = vadd.f32 %v3882, %v3894
    %v3896 = vpop.f32.mrf.mxu0
    %3897 = vdwg.mxu0
    %3898 = vmatpush.bf16.msra.mxu0 %v3831
    %3899 = vmatpush.bf16.msra.mxu0 %v3830
    %3900 = vmatpush.bf16.msra.mxu0 %v3829
    %3901 = vmatpush.bf16.msra.mxu0 %v3828
    %3902 = vmatpush.bf16.msra.mxu0 %v3827
    %3903 = vmatpush.bf16.msra.mxu0 %v3826
    %3904 = vmatpush.bf16.msra.mxu0 %v3825
    %3905 = vmatpush.bf16.msra.mxu0 %v3824
    %3906 = vmatmul.bf16.gmra.mxu0 %v3674
    %v3907 = vpop.f32.mrf.mxu0
    %v3908 = vadd.f32 %v3895, %v3907
    %v3909 = vpop.f32.mrf.mxu0
    %3910 = vdwg.mxu0
    %3911 = vmatpush.bf16.msra.mxu0 %v3839
    %3912 = vmatpush.bf16.msra.mxu0 %v3838
    %3913 = vmatpush.bf16.msra.mxu0 %v3837
    %3914 = vmatpush.bf16.msra.mxu0 %v3836
    %3915 = vmatpush.bf16.msra.mxu0 %v3835
    %3916 = vmatpush.bf16.msra.mxu0 %v3834
    %3917 = vmatpush.bf16.msra.mxu0 %v3833
    %3918 = vmatpush.bf16.msra.mxu0 %v3832
    %3919 = vmatmul.bf16.gmra.mxu0 %v3675
    %v3920 = vpop.f32.mrf.mxu0
    %v3921 = vadd.f32 %v3908, %v3920
    %v3922 = vpop.f32.mrf.mxu0
    %3923 = vdwg.mxu0
    %s3924 = scalar_lea.vmem [#allocation2], 3072
    %v3925 = vld [vmem:[%s3924] sm:$0xf]
    %v3926 = vld [vmem:[%s3924 + $0x4] sm:$0xf]
    %v3927 = vld [vmem:[%s3924 + $0x8] sm:$0xf]
    %v3928 = vld [vmem:[%s3924 + $0xc] sm:$0xf]
    %v3929 = vld [vmem:[%s3924 + $0x10] sm:$0xf]
    %v3930 = vld [vmem:[%s3924 + $0x14] sm:$0xf]
    %v3931 = vld [vmem:[%s3924 + $0x18] sm:$0xf]
    %v3932 = vld [vmem:[%s3924 + $0x1c] sm:$0xf]
    %v3933 = vld [vmem:[%s3924 + $0x20] sm:$0xf]
    %v3934 = vld [vmem:[%s3924 + $0x24] sm:$0xf]
    %v3935 = vld [vmem:[%s3924 + $0x28] sm:$0xf]
    %v3936 = vld [vmem:[%s3924 + $0x2c] sm:$0xf]
    %v3937 = vld [vmem:[%s3924 + $0x30] sm:$0xf]
    %v3938 = vld [vmem:[%s3924 + $0x34] sm:$0xf]
    %v3939 = vld [vmem:[%s3924 + $0x38] sm:$0xf]
    %v3940 = vld [vmem:[%s3924 + $0x3c] sm:$0xf]
    %v3941 = vld [vmem:[%s3924 + $0x40] sm:$0xf]
    %v3942 = vld [vmem:[%s3924 + $0x44] sm:$0xf]
    %v3943 = vld [vmem:[%s3924 + $0x48] sm:$0xf]
    %v3944 = vld [vmem:[%s3924 + $0x4c] sm:$0xf]
    %v3945 = vld [vmem:[%s3924 + $0x50] sm:$0xf]
    %v3946 = vld [vmem:[%s3924 + $0x54] sm:$0xf]
    %v3947 = vld [vmem:[%s3924 + $0x58] sm:$0xf]
    %v3948 = vld [vmem:[%s3924 + $0x5c] sm:$0xf]
    %v3949 = vld [vmem:[%s3924 + $0x60] sm:$0xf]
    %v3950 = vld [vmem:[%s3924 + $0x64] sm:$0xf]
    %v3951 = vld [vmem:[%s3924 + $0x68] sm:$0xf]
    %v3952 = vld [vmem:[%s3924 + $0x6c] sm:$0xf]
    %v3953 = vld [vmem:[%s3924 + $0x70] sm:$0xf]
    %v3954 = vld [vmem:[%s3924 + $0x74] sm:$0xf]
    %v3955 = vld [vmem:[%s3924 + $0x78] sm:$0xf]
    %v3956 = vld [vmem:[%s3924 + $0x7c] sm:$0xf]
    %v3957 = vld [vmem:[%s3924 + $0x80] sm:$0xf]
    %v3958 = vld [vmem:[%s3924 + $0x84] sm:$0xf]
    %v3959 = vld [vmem:[%s3924 + $0x88] sm:$0xf]
    %v3960 = vld [vmem:[%s3924 + $0x8c] sm:$0xf]
    %v3961 = vld [vmem:[%s3924 + $0x90] sm:$0xf]
    %v3962 = vld [vmem:[%s3924 + $0x94] sm:$0xf]
    %v3963 = vld [vmem:[%s3924 + $0x98] sm:$0xf]
    %v3964 = vld [vmem:[%s3924 + $0x9c] sm:$0xf]
    %v3965 = vld [vmem:[%s3924 + $0xa0] sm:$0xf]
    %v3966 = vld [vmem:[%s3924 + $0xa4] sm:$0xf]
    %v3967 = vld [vmem:[%s3924 + $0xa8] sm:$0xf]
    %v3968 = vld [vmem:[%s3924 + $0xac] sm:$0xf]
    %v3969 = vld [vmem:[%s3924 + $0xb0] sm:$0xf]
    %v3970 = vld [vmem:[%s3924 + $0xb4] sm:$0xf]
    %v3971 = vld [vmem:[%s3924 + $0xb8] sm:$0xf]
    %v3972 = vld [vmem:[%s3924 + $0xbc] sm:$0xf]
    %v3973 = vld [vmem:[%s3924 + $0xc0] sm:$0xf]
    %v3974 = vld [vmem:[%s3924 + $0xc4] sm:$0xf]
    %v3975 = vld [vmem:[%s3924 + $0xc8] sm:$0xf]
    %v3976 = vld [vmem:[%s3924 + $0xcc] sm:$0xf]
    %v3977 = vld [vmem:[%s3924 + $0xd0] sm:$0xf]
    %v3978 = vld [vmem:[%s3924 + $0xd4] sm:$0xf]
    %v3979 = vld [vmem:[%s3924 + $0xd8] sm:$0xf]
    %v3980 = vld [vmem:[%s3924 + $0xdc] sm:$0xf]
    %v3981 = vld [vmem:[%s3924 + $0xe0] sm:$0xf]
    %v3982 = vld [vmem:[%s3924 + $0xe4] sm:$0xf]
    %v3983 = vld [vmem:[%s3924 + $0xe8] sm:$0xf]
    %v3984 = vld [vmem:[%s3924 + $0xec] sm:$0xf]
    %v3985 = vld [vmem:[%s3924 + $0xf0] sm:$0xf]
    %v3986 = vld [vmem:[%s3924 + $0xf4] sm:$0xf]
    %v3987 = vld [vmem:[%s3924 + $0xf8] sm:$0xf]
    %v3988 = vld [vmem:[%s3924 + $0xfc] sm:$0xf]
    %3989 = vst [vmem:[#allocation1] ss:$9 sm:$0xff] %v107
    %v3990 = vld [vmem:[#allocation1] sm:$0xff]
    %v3991 = vld [vmem:[#allocation1 + $0x9] sm:$0xff]
    %v3992 = vld [vmem:[#allocation1 + $0x12] sm:$0xff]
    %v3993 = vld [vmem:[#allocation1 + $0x1b] sm:$0xff]
    %v4062 = vunpack.c.l.b16 %v3925
    %v4063 = vunpack.c.l.b16 %v3926
    %v4064 = vunpack.c.l.b16 %v3927
    %v4065 = vunpack.c.l.b16 %v3928
    %v4066 = vunpack.c.l.b16 %v3929
    %v4067 = vunpack.c.l.b16 %v3930
    %v4068 = vunpack.c.l.b16 %v3931
    %v4069 = vunpack.c.l.b16 %v3932
    %v4070 = vunpack.c.l.b16 %v3933
    %v4071 = vunpack.c.l.b16 %v3934
    %v4072 = vunpack.c.l.b16 %v3935
    %v4073 = vunpack.c.l.b16 %v3936
    %v4074 = vunpack.c.l.b16 %v3937
    %v4075 = vunpack.c.l.b16 %v3938
    %v4076 = vunpack.c.l.b16 %v3939
    %v4077 = vunpack.c.l.b16 %v3940
    %v4078 = vunpack.c.l.b16 %v3941
    %v4079 = vunpack.c.l.b16 %v3942
    %v4080 = vunpack.c.l.b16 %v3943
    %v4081 = vunpack.c.l.b16 %v3944
    %v4082 = vunpack.c.l.b16 %v3945
    %v4083 = vunpack.c.l.b16 %v3946
    %v4084 = vunpack.c.l.b16 %v3947
    %v4085 = vunpack.c.l.b16 %v3948
    %v4086 = vunpack.c.l.b16 %v3949
    %v4087 = vunpack.c.l.b16 %v3950
    %v4088 = vunpack.c.l.b16 %v3951
    %v4089 = vunpack.c.l.b16 %v3952
    %v4090 = vunpack.c.l.b16 %v3953
    %v4091 = vunpack.c.l.b16 %v3954
    %v4092 = vunpack.c.l.b16 %v3955
    %v4093 = vunpack.c.l.b16 %v3956
    %v4094 = vunpack.c.l.b16 %v3957
    %v4095 = vunpack.c.l.b16 %v3958
    %v4096 = vunpack.c.l.b16 %v3959
    %v4097 = vunpack.c.l.b16 %v3960
    %v4098 = vunpack.c.l.b16 %v3961
    %v4099 = vunpack.c.l.b16 %v3962
    %v4100 = vunpack.c.l.b16 %v3963
    %v4101 = vunpack.c.l.b16 %v3964
    %v4102 = vunpack.c.l.b16 %v3965
    %v4103 = vunpack.c.l.b16 %v3966
    %v4104 = vunpack.c.l.b16 %v3967
    %v4105 = vunpack.c.l.b16 %v3968
    %v4106 = vunpack.c.l.b16 %v3969
    %v4107 = vunpack.c.l.b16 %v3970
    %v4108 = vunpack.c.l.b16 %v3971
    %v4109 = vunpack.c.l.b16 %v3972
    %v4110 = vunpack.c.l.b16 %v3973
    %v4111 = vunpack.c.l.b16 %v3974
    %v4112 = vunpack.c.l.b16 %v3975
    %v4113 = vunpack.c.l.b16 %v3976
    %v4114 = vunpack.c.l.b16 %v3977
    %v4115 = vunpack.c.l.b16 %v3978
    %v4116 = vunpack.c.l.b16 %v3979
    %v4117 = vunpack.c.l.b16 %v3980
    %v4118 = vunpack.c.l.b16 %v3981
    %v4119 = vunpack.c.l.b16 %v3982
    %v4120 = vunpack.c.l.b16 %v3983
    %v4121 = vunpack.c.l.b16 %v3984
    %v4122 = vunpack.c.l.b16 %v3985
    %v4123 = vunpack.c.l.b16 %v3986
    %v4124 = vunpack.c.l.b16 %v3987
    %v4125 = vunpack.c.l.b16 %v3988
    %v4126 = vpack.c.b16 %v4063, %v4062
    %v4127 = vpack.c.b16 %v4065, %v4064
    %v4128 = vpack.c.b16 %v4067, %v4066
    %v4129 = vpack.c.b16 %v4069, %v4068
    %v4130 = vpack.c.b16 %v4071, %v4070
    %v4131 = vpack.c.b16 %v4073, %v4072
    %v4132 = vpack.c.b16 %v4075, %v4074
    %v4133 = vpack.c.b16 %v4077, %v4076
    %v4134 = vpack.c.b16 %v4079, %v4078
    %v4135 = vpack.c.b16 %v4081, %v4080
    %v4136 = vpack.c.b16 %v4083, %v4082
    %v4137 = vpack.c.b16 %v4085, %v4084
    %v4138 = vpack.c.b16 %v4087, %v4086
    %v4139 = vpack.c.b16 %v4089, %v4088
    %v4140 = vpack.c.b16 %v4091, %v4090
    %v4141 = vpack.c.b16 %v4093, %v4092
    %v4142 = vpack.c.b16 %v4095, %v4094
    %v4143 = vpack.c.b16 %v4097, %v4096
    %v4144 = vpack.c.b16 %v4099, %v4098
    %v4145 = vpack.c.b16 %v4101, %v4100
    %v4146 = vpack.c.b16 %v4103, %v4102
    %v4147 = vpack.c.b16 %v4105, %v4104
    %v4148 = vpack.c.b16 %v4107, %v4106
    %v4149 = vpack.c.b16 %v4109, %v4108
    %v4150 = vpack.c.b16 %v4111, %v4110
    %v4151 = vpack.c.b16 %v4113, %v4112
    %v4152 = vpack.c.b16 %v4115, %v4114
    %v4153 = vpack.c.b16 %v4117, %v4116
    %v4154 = vpack.c.b16 %v4119, %v4118
    %v4155 = vpack.c.b16 %v4121, %v4120
    %v4156 = vpack.c.b16 %v4123, %v4122
    %v4157 = vpack.c.b16 %v4125, %v4124
    %4190 = vmatpush.bf16.msra.mxu0 %v4133
    %4191 = vmatpush.bf16.msra.mxu0 %v4132
    %4192 = vmatpush.bf16.msra.mxu0 %v4131
    %4193 = vmatpush.bf16.msra.mxu0 %v4130
    %4194 = vmatpush.bf16.msra.mxu0 %v4129
    %4195 = vmatpush.bf16.msra.mxu0 %v4128
    %4196 = vmatpush.bf16.msra.mxu0 %v4127
    %4197 = vmatpush.bf16.msra.mxu0 %v4126
    %4198 = vmatmul.bf16.gmra.mxu0 %v3990
    %v4199 = vpop.f32.mrf.mxu0
    %v4200 = vadd.f32 0.0, %v4199
    %v4201 = vpop.f32.mrf.mxu0
    %4202 = vdwg.mxu0
    %4203 = vmatpush.bf16.msra.mxu0 %v4141
    %4204 = vmatpush.bf16.msra.mxu0 %v4140
    %4205 = vmatpush.bf16.msra.mxu0 %v4139
    %4206 = vmatpush.bf16.msra.mxu0 %v4138
    %4207 = vmatpush.bf16.msra.mxu0 %v4137
    %4208 = vmatpush.bf16.msra.mxu0 %v4136
    %4209 = vmatpush.bf16.msra.mxu0 %v4135
    %4210 = vmatpush.bf16.msra.mxu0 %v4134
    %4211 = vmatmul.bf16.gmra.mxu0 %v3991
    %v4212 = vpop.f32.mrf.mxu0
    %v4213 = vadd.f32 %v4200, %v4212
    %v4214 = vpop.f32.mrf.mxu0
    %4215 = vdwg.mxu0
    %4216 = vmatpush.bf16.msra.mxu0 %v4149
    %4217 = vmatpush.bf16.msra.mxu0 %v4148
    %4218 = vmatpush.bf16.msra.mxu0 %v4147
    %4219 = vmatpush.bf16.msra.mxu0 %v4146
    %4220 = vmatpush.bf16.msra.mxu0 %v4145
    %4221 = vmatpush.bf16.msra.mxu0 %v4144
    %4222 = vmatpush.bf16.msra.mxu0 %v4143
    %4223 = vmatpush.bf16.msra.mxu0 %v4142
    %4224 = vmatmul.bf16.gmra.mxu0 %v3992
    %v4225 = vpop.f32.mrf.mxu0
    %v4226 = vadd.f32 %v4213, %v4225
    %v4227 = vpop.f32.mrf.mxu0
    %4228 = vdwg.mxu0
    %4229 = vmatpush.bf16.msra.mxu0 %v4157
    %4230 = vmatpush.bf16.msra.mxu0 %v4156
    %4231 = vmatpush.bf16.msra.mxu0 %v4155
    %4232 = vmatpush.bf16.msra.mxu0 %v4154
    %4233 = vmatpush.bf16.msra.mxu0 %v4153
    %4234 = vmatpush.bf16.msra.mxu0 %v4152
    %4235 = vmatpush.bf16.msra.mxu0 %v4151
    %4236 = vmatpush.bf16.msra.mxu0 %v4150
    %4237 = vmatmul.bf16.gmra.mxu0 %v3993
    %v4238 = vpop.f32.mrf.mxu0
    %v4239 = vadd.f32 %v4226, %v4238
    %v4240 = vpop.f32.mrf.mxu0
    %4241 = vdwg.mxu0
    %s4242 = scalar_lea.vmem [#allocation2], 3328
    %v4243 = vld [vmem:[%s4242] sm:$0xf]
    %v4244 = vld [vmem:[%s4242 + $0x4] sm:$0xf]
    %v4245 = vld [vmem:[%s4242 + $0x8] sm:$0xf]
    %v4246 = vld [vmem:[%s4242 + $0xc] sm:$0xf]
    %v4247 = vld [vmem:[%s4242 + $0x10] sm:$0xf]
    %v4248 = vld [vmem:[%s4242 + $0x14] sm:$0xf]
    %v4249 = vld [vmem:[%s4242 + $0x18] sm:$0xf]
    %v4250 = vld [vmem:[%s4242 + $0x1c] sm:$0xf]
    %v4251 = vld [vmem:[%s4242 + $0x20] sm:$0xf]
    %v4252 = vld [vmem:[%s4242 + $0x24] sm:$0xf]
    %v4253 = vld [vmem:[%s4242 + $0x28] sm:$0xf]
    %v4254 = vld [vmem:[%s4242 + $0x2c] sm:$0xf]
    %v4255 = vld [vmem:[%s4242 + $0x30] sm:$0xf]
    %v4256 = vld [vmem:[%s4242 + $0x34] sm:$0xf]
    %v4257 = vld [vmem:[%s4242 + $0x38] sm:$0xf]
    %v4258 = vld [vmem:[%s4242 + $0x3c] sm:$0xf]
    %v4259 = vld [vmem:[%s4242 + $0x40] sm:$0xf]
    %v4260 = vld [vmem:[%s4242 + $0x44] sm:$0xf]
    %v4261 = vld [vmem:[%s4242 + $0x48] sm:$0xf]
    %v4262 = vld [vmem:[%s4242 + $0x4c] sm:$0xf]
    %v4263 = vld [vmem:[%s4242 + $0x50] sm:$0xf]
    %v4264 = vld [vmem:[%s4242 + $0x54] sm:$0xf]
    %v4265 = vld [vmem:[%s4242 + $0x58] sm:$0xf]
    %v4266 = vld [vmem:[%s4242 + $0x5c] sm:$0xf]
    %v4267 = vld [vmem:[%s4242 + $0x60] sm:$0xf]
    %v4268 = vld [vmem:[%s4242 + $0x64] sm:$0xf]
    %v4269 = vld [vmem:[%s4242 + $0x68] sm:$0xf]
    %v4270 = vld [vmem:[%s4242 + $0x6c] sm:$0xf]
    %v4271 = vld [vmem:[%s4242 + $0x70] sm:$0xf]
    %v4272 = vld [vmem:[%s4242 + $0x74] sm:$0xf]
    %v4273 = vld [vmem:[%s4242 + $0x78] sm:$0xf]
    %v4274 = vld [vmem:[%s4242 + $0x7c] sm:$0xf]
    %v4275 = vld [vmem:[%s4242 + $0x80] sm:$0xf]
    %v4276 = vld [vmem:[%s4242 + $0x84] sm:$0xf]
    %v4277 = vld [vmem:[%s4242 + $0x88] sm:$0xf]
    %v4278 = vld [vmem:[%s4242 + $0x8c] sm:$0xf]
    %v4279 = vld [vmem:[%s4242 + $0x90] sm:$0xf]
    %v4280 = vld [vmem:[%s4242 + $0x94] sm:$0xf]
    %v4281 = vld [vmem:[%s4242 + $0x98] sm:$0xf]
    %v4282 = vld [vmem:[%s4242 + $0x9c] sm:$0xf]
    %v4283 = vld [vmem:[%s4242 + $0xa0] sm:$0xf]
    %v4284 = vld [vmem:[%s4242 + $0xa4] sm:$0xf]
    %v4285 = vld [vmem:[%s4242 + $0xa8] sm:$0xf]
    %v4286 = vld [vmem:[%s4242 + $0xac] sm:$0xf]
    %v4287 = vld [vmem:[%s4242 + $0xb0] sm:$0xf]
    %v4288 = vld [vmem:[%s4242 + $0xb4] sm:$0xf]
    %v4289 = vld [vmem:[%s4242 + $0xb8] sm:$0xf]
    %v4290 = vld [vmem:[%s4242 + $0xbc] sm:$0xf]
    %v4291 = vld [vmem:[%s4242 + $0xc0] sm:$0xf]
    %v4292 = vld [vmem:[%s4242 + $0xc4] sm:$0xf]
    %v4293 = vld [vmem:[%s4242 + $0xc8] sm:$0xf]
    %v4294 = vld [vmem:[%s4242 + $0xcc] sm:$0xf]
    %v4295 = vld [vmem:[%s4242 + $0xd0] sm:$0xf]
    %v4296 = vld [vmem:[%s4242 + $0xd4] sm:$0xf]
    %v4297 = vld [vmem:[%s4242 + $0xd8] sm:$0xf]
    %v4298 = vld [vmem:[%s4242 + $0xdc] sm:$0xf]
    %v4299 = vld [vmem:[%s4242 + $0xe0] sm:$0xf]
    %v4300 = vld [vmem:[%s4242 + $0xe4] sm:$0xf]
    %v4301 = vld [vmem:[%s4242 + $0xe8] sm:$0xf]
    %v4302 = vld [vmem:[%s4242 + $0xec] sm:$0xf]
    %v4303 = vld [vmem:[%s4242 + $0xf0] sm:$0xf]
    %v4304 = vld [vmem:[%s4242 + $0xf4] sm:$0xf]
    %v4305 = vld [vmem:[%s4242 + $0xf8] sm:$0xf]
    %v4306 = vld [vmem:[%s4242 + $0xfc] sm:$0xf]
    %4307 = vst [vmem:[#allocation1] ss:$9 sm:$0xff] %v107
    %v4308 = vld [vmem:[#allocation1] sm:$0xff]
    %v4309 = vld [vmem:[#allocation1 + $0x9] sm:$0xff]
    %v4310 = vld [vmem:[#allocation1 + $0x12] sm:$0xff]
    %v4311 = vld [vmem:[#allocation1 + $0x1b] sm:$0xff]
    %v4380 = vunpack.c.l.b16 %v4243
    %v4381 = vunpack.c.l.b16 %v4244
    %v4382 = vunpack.c.l.b16 %v4245
    %v4383 = vunpack.c.l.b16 %v4246
    %v4384 = vunpack.c.l.b16 %v4247
    %v4385 = vunpack.c.l.b16 %v4248
    %v4386 = vunpack.c.l.b16 %v4249
    %v4387 = vunpack.c.l.b16 %v4250
    %v4388 = vunpack.c.l.b16 %v4251
    %v4389 = vunpack.c.l.b16 %v4252
    %v4390 = vunpack.c.l.b16 %v4253
    %v4391 = vunpack.c.l.b16 %v4254
    %v4392 = vunpack.c.l.b16 %v4255
    %v4393 = vunpack.c.l.b16 %v4256
    %v4394 = vunpack.c.l.b16 %v4257
    %v4395 = vunpack.c.l.b16 %v4258
    %v4396 = vunpack.c.l.b16 %v4259
    %v4397 = vunpack.c.l.b16 %v4260
    %v4398 = vunpack.c.l.b16 %v4261
    %v4399 = vunpack.c.l.b16 %v4262
    %v4400 = vunpack.c.l.b16 %v4263
    %v4401 = vunpack.c.l.b16 %v4264
    %v4402 = vunpack.c.l.b16 %v4265
    %v4403 = vunpack.c.l.b16 %v4266
    %v4404 = vunpack.c.l.b16 %v4267
    %v4405 = vunpack.c.l.b16 %v4268
    %v4406 = vunpack.c.l.b16 %v4269
    %v4407 = vunpack.c.l.b16 %v4270
    %v4408 = vunpack.c.l.b16 %v4271
    %v4409 = vunpack.c.l.b16 %v4272
    %v4410 = vunpack.c.l.b16 %v4273
    %v4411 = vunpack.c.l.b16 %v4274
    %v4412 = vunpack.c.l.b16 %v4275
    %v4413 = vunpack.c.l.b16 %v4276
    %v4414 = vunpack.c.l.b16 %v4277
    %v4415 = vunpack.c.l.b16 %v4278
    %v4416 = vunpack.c.l.b16 %v4279
    %v4417 = vunpack.c.l.b16 %v4280
    %v4418 = vunpack.c.l.b16 %v4281
    %v4419 = vunpack.c.l.b16 %v4282
    %v4420 = vunpack.c.l.b16 %v4283
    %v4421 = vunpack.c.l.b16 %v4284
    %v4422 = vunpack.c.l.b16 %v4285
    %v4423 = vunpack.c.l.b16 %v4286
    %v4424 = vunpack.c.l.b16 %v4287
    %v4425 = vunpack.c.l.b16 %v4288
    %v4426 = vunpack.c.l.b16 %v4289
    %v4427 = vunpack.c.l.b16 %v4290
    %v4428 = vunpack.c.l.b16 %v4291
    %v4429 = vunpack.c.l.b16 %v4292
    %v4430 = vunpack.c.l.b16 %v4293
    %v4431 = vunpack.c.l.b16 %v4294
    %v4432 = vunpack.c.l.b16 %v4295
    %v4433 = vunpack.c.l.b16 %v4296
    %v4434 = vunpack.c.l.b16 %v4297
    %v4435 = vunpack.c.l.b16 %v4298
    %v4436 = vunpack.c.l.b16 %v4299
    %v4437 = vunpack.c.l.b16 %v4300
    %v4438 = vunpack.c.l.b16 %v4301
    %v4439 = vunpack.c.l.b16 %v4302
    %v4440 = vunpack.c.l.b16 %v4303
    %v4441 = vunpack.c.l.b16 %v4304
    %v4442 = vunpack.c.l.b16 %v4305
    %v4443 = vunpack.c.l.b16 %v4306
    %v4444 = vpack.c.b16 %v4381, %v4380
    %v4445 = vpack.c.b16 %v4383, %v4382
    %v4446 = vpack.c.b16 %v4385, %v4384
    %v4447 = vpack.c.b16 %v4387, %v4386
    %v4448 = vpack.c.b16 %v4389, %v4388
    %v4449 = vpack.c.b16 %v4391, %v4390
    %v4450 = vpack.c.b16 %v4393, %v4392
    %v4451 = vpack.c.b16 %v4395, %v4394
    %v4452 = vpack.c.b16 %v4397, %v4396
    %v4453 = vpack.c.b16 %v4399, %v4398
    %v4454 = vpack.c.b16 %v4401, %v4400
    %v4455 = vpack.c.b16 %v4403, %v4402
    %v4456 = vpack.c.b16 %v4405, %v4404
    %v4457 = vpack.c.b16 %v4407, %v4406
    %v4458 = vpack.c.b16 %v4409, %v4408
    %v4459 = vpack.c.b16 %v4411, %v4410
    %v4460 = vpack.c.b16 %v4413, %v4412
    %v4461 = vpack.c.b16 %v4415, %v4414
    %v4462 = vpack.c.b16 %v4417, %v4416
    %v4463 = vpack.c.b16 %v4419, %v4418
    %v4464 = vpack.c.b16 %v4421, %v4420
    %v4465 = vpack.c.b16 %v4423, %v4422
    %v4466 = vpack.c.b16 %v4425, %v4424
    %v4467 = vpack.c.b16 %v4427, %v4426
    %v4468 = vpack.c.b16 %v4429, %v4428
    %v4469 = vpack.c.b16 %v4431, %v4430
    %v4470 = vpack.c.b16 %v4433, %v4432
    %v4471 = vpack.c.b16 %v4435, %v4434
    %v4472 = vpack.c.b16 %v4437, %v4436
    %v4473 = vpack.c.b16 %v4439, %v4438
    %v4474 = vpack.c.b16 %v4441, %v4440
    %v4475 = vpack.c.b16 %v4443, %v4442
    %4508 = vmatpush.bf16.msra.mxu0 %v4451
    %4509 = vmatpush.bf16.msra.mxu0 %v4450
    %4510 = vmatpush.bf16.msra.mxu0 %v4449
    %4511 = vmatpush.bf16.msra.mxu0 %v4448
    %4512 = vmatpush.bf16.msra.mxu0 %v4447
    %4513 = vmatpush.bf16.msra.mxu0 %v4446
    %4514 = vmatpush.bf16.msra.mxu0 %v4445
    %4515 = vmatpush.bf16.msra.mxu0 %v4444
    %4516 = vmatmul.bf16.gmra.mxu0 %v4308
    %v4517 = vpop.f32.mrf.mxu0
    %v4518 = vadd.f32 0.0, %v4517
    %v4519 = vpop.f32.mrf.mxu0
    %4520 = vdwg.mxu0
    %4521 = vmatpush.bf16.msra.mxu0 %v4459
    %4522 = vmatpush.bf16.msra.mxu0 %v4458
    %4523 = vmatpush.bf16.msra.mxu0 %v4457
    %4524 = vmatpush.bf16.msra.mxu0 %v4456
    %4525 = vmatpush.bf16.msra.mxu0 %v4455
    %4526 = vmatpush.bf16.msra.mxu0 %v4454
    %4527 = vmatpush.bf16.msra.mxu0 %v4453
    %4528 = vmatpush.bf16.msra.mxu0 %v4452
    %4529 = vmatmul.bf16.gmra.mxu0 %v4309
    %v4530 = vpop.f32.mrf.mxu0
    %v4531 = vadd.f32 %v4518, %v4530
    %v4532 = vpop.f32.mrf.mxu0
    %4533 = vdwg.mxu0
    %4534 = vmatpush.bf16.msra.mxu0 %v4467
    %4535 = vmatpush.bf16.msra.mxu0 %v4466
    %4536 = vmatpush.bf16.msra.mxu0 %v4465
    %4537 = vmatpush.bf16.msra.mxu0 %v4464
    %4538 = vmatpush.bf16.msra.mxu0 %v4463
    %4539 = vmatpush.bf16.msra.mxu0 %v4462
    %4540 = vmatpush.bf16.msra.mxu0 %v4461
    %4541 = vmatpush.bf16.msra.mxu0 %v4460
    %4542 = vmatmul.bf16.gmra.mxu0 %v4310
    %v4543 = vpop.f32.mrf.mxu0
    %v4544 = vadd.f32 %v4531, %v4543
    %v4545 = vpop.f32.mrf.mxu0
    %4546 = vdwg.mxu0
    %4547 = vmatpush.bf16.msra.mxu0 %v4475
    %4548 = vmatpush.bf16.msra.mxu0 %v4474
    %4549 = vmatpush.bf16.msra.mxu0 %v4473
    %4550 = vmatpush.bf16.msra.mxu0 %v4472
    %4551 = vmatpush.bf16.msra.mxu0 %v4471
    %4552 = vmatpush.bf16.msra.mxu0 %v4470
    %4553 = vmatpush.bf16.msra.mxu0 %v4469
    %4554 = vmatpush.bf16.msra.mxu0 %v4468
    %4555 = vmatmul.bf16.gmra.mxu0 %v4311
    %v4556 = vpop.f32.mrf.mxu0
    %v4557 = vadd.f32 %v4544, %v4556
    %v4558 = vpop.f32.mrf.mxu0
    %4559 = vdwg.mxu0
    %s4560 = scalar_lea.vmem [#allocation2], 3584
    %v4561 = vld [vmem:[%s4560] sm:$0xf]
    %v4562 = vld [vmem:[%s4560 + $0x4] sm:$0xf]
    %v4563 = vld [vmem:[%s4560 + $0x8] sm:$0xf]
    %v4564 = vld [vmem:[%s4560 + $0xc] sm:$0xf]
    %v4565 = vld [vmem:[%s4560 + $0x10] sm:$0xf]
    %v4566 = vld [vmem:[%s4560 + $0x14] sm:$0xf]
    %v4567 = vld [vmem:[%s4560 + $0x18] sm:$0xf]
    %v4568 = vld [vmem:[%s4560 + $0x1c] sm:$0xf]
    %v4569 = vld [vmem:[%s4560 + $0x20] sm:$0xf]
    %v4570 = vld [vmem:[%s4560 + $0x24] sm:$0xf]
    %v4571 = vld [vmem:[%s4560 + $0x28] sm:$0xf]
    %v4572 = vld [vmem:[%s4560 + $0x2c] sm:$0xf]
    %v4573 = vld [vmem:[%s4560 + $0x30] sm:$0xf]
    %v4574 = vld [vmem:[%s4560 + $0x34] sm:$0xf]
    %v4575 = vld [vmem:[%s4560 + $0x38] sm:$0xf]
    %v4576 = vld [vmem:[%s4560 + $0x3c] sm:$0xf]
    %v4577 = vld [vmem:[%s4560 + $0x40] sm:$0xf]
    %v4578 = vld [vmem:[%s4560 + $0x44] sm:$0xf]
    %v4579 = vld [vmem:[%s4560 + $0x48] sm:$0xf]
    %v4580 = vld [vmem:[%s4560 + $0x4c] sm:$0xf]
    %v4581 = vld [vmem:[%s4560 + $0x50] sm:$0xf]
    %v4582 = vld [vmem:[%s4560 + $0x54] sm:$0xf]
    %v4583 = vld [vmem:[%s4560 + $0x58] sm:$0xf]
    %v4584 = vld [vmem:[%s4560 + $0x5c] sm:$0xf]
    %v4585 = vld [vmem:[%s4560 + $0x60] sm:$0xf]
    %v4586 = vld [vmem:[%s4560 + $0x64] sm:$0xf]
    %v4587 = vld [vmem:[%s4560 + $0x68] sm:$0xf]
    %v4588 = vld [vmem:[%s4560 + $0x6c] sm:$0xf]
    %v4589 = vld [vmem:[%s4560 + $0x70] sm:$0xf]
    %v4590 = vld [vmem:[%s4560 + $0x74] sm:$0xf]
    %v4591 = vld [vmem:[%s4560 + $0x78] sm:$0xf]
    %v4592 = vld [vmem:[%s4560 + $0x7c] sm:$0xf]
    %v4593 = vld [vmem:[%s4560 + $0x80] sm:$0xf]
    %v4594 = vld [vmem:[%s4560 + $0x84] sm:$0xf]
    %v4595 = vld [vmem:[%s4560 + $0x88] sm:$0xf]
    %v4596 = vld [vmem:[%s4560 + $0x8c] sm:$0xf]
    %v4597 = vld [vmem:[%s4560 + $0x90] sm:$0xf]
    %v4598 = vld [vmem:[%s4560 + $0x94] sm:$0xf]
    %v4599 = vld [vmem:[%s4560 + $0x98] sm:$0xf]
    %v4600 = vld [vmem:[%s4560 + $0x9c] sm:$0xf]
    %v4601 = vld [vmem:[%s4560 + $0xa0] sm:$0xf]
    %v4602 = vld [vmem:[%s4560 + $0xa4] sm:$0xf]
    %v4603 = vld [vmem:[%s4560 + $0xa8] sm:$0xf]
    %v4604 = vld [vmem:[%s4560 + $0xac] sm:$0xf]
    %v4605 = vld [vmem:[%s4560 + $0xb0] sm:$0xf]
    %v4606 = vld [vmem:[%s4560 + $0xb4] sm:$0xf]
    %v4607 = vld [vmem:[%s4560 + $0xb8] sm:$0xf]
    %v4608 = vld [vmem:[%s4560 + $0xbc] sm:$0xf]
    %v4609 = vld [vmem:[%s4560 + $0xc0] sm:$0xf]
    %v4610 = vld [vmem:[%s4560 + $0xc4] sm:$0xf]
    %v4611 = vld [vmem:[%s4560 + $0xc8] sm:$0xf]
    %v4612 = vld [vmem:[%s4560 + $0xcc] sm:$0xf]
    %v4613 = vld [vmem:[%s4560 + $0xd0] sm:$0xf]
    %v4614 = vld [vmem:[%s4560 + $0xd4] sm:$0xf]
    %v4615 = vld [vmem:[%s4560 + $0xd8] sm:$0xf]
    %v4616 = vld [vmem:[%s4560 + $0xdc] sm:$0xf]
    %v4617 = vld [vmem:[%s4560 + $0xe0] sm:$0xf]
    %v4618 = vld [vmem:[%s4560 + $0xe4] sm:$0xf]
    %v4619 = vld [vmem:[%s4560 + $0xe8] sm:$0xf]
    %v4620 = vld [vmem:[%s4560 + $0xec] sm:$0xf]
    %v4621 = vld [vmem:[%s4560 + $0xf0] sm:$0xf]
    %v4622 = vld [vmem:[%s4560 + $0xf4] sm:$0xf]
    %v4623 = vld [vmem:[%s4560 + $0xf8] sm:$0xf]
    %v4624 = vld [vmem:[%s4560 + $0xfc] sm:$0xf]
    %4625 = vst [vmem:[#allocation1] ss:$9 sm:$0xff] %v107
    %v4626 = vld [vmem:[#allocation1] sm:$0xff]
    %v4627 = vld [vmem:[#allocation1 + $0x9] sm:$0xff]
    %v4628 = vld [vmem:[#allocation1 + $0x12] sm:$0xff]
    %v4629 = vld [vmem:[#allocation1 + $0x1b] sm:$0xff]
    %v4698 = vunpack.c.l.b16 %v4561
    %v4699 = vunpack.c.l.b16 %v4562
    %v4700 = vunpack.c.l.b16 %v4563
    %v4701 = vunpack.c.l.b16 %v4564
    %v4702 = vunpack.c.l.b16 %v4565
    %v4703 = vunpack.c.l.b16 %v4566
    %v4704 = vunpack.c.l.b16 %v4567
    %v4705 = vunpack.c.l.b16 %v4568
    %v4706 = vunpack.c.l.b16 %v4569
    %v4707 = vunpack.c.l.b16 %v4570
    %v4708 = vunpack.c.l.b16 %v4571
    %v4709 = vunpack.c.l.b16 %v4572
    %v4710 = vunpack.c.l.b16 %v4573
    %v4711 = vunpack.c.l.b16 %v4574
    %v4712 = vunpack.c.l.b16 %v4575
    %v4713 = vunpack.c.l.b16 %v4576
    %v4714 = vunpack.c.l.b16 %v4577
    %v4715 = vunpack.c.l.b16 %v4578
    %v4716 = vunpack.c.l.b16 %v4579
    %v4717 = vunpack.c.l.b16 %v4580
    %v4718 = vunpack.c.l.b16 %v4581
    %v4719 = vunpack.c.l.b16 %v4582
    %v4720 = vunpack.c.l.b16 %v4583
    %v4721 = vunpack.c.l.b16 %v4584
    %v4722 = vunpack.c.l.b16 %v4585
    %v4723 = vunpack.c.l.b16 %v4586
    %v4724 = vunpack.c.l.b16 %v4587
    %v4725 = vunpack.c.l.b16 %v4588
    %v4726 = vunpack.c.l.b16 %v4589
    %v4727 = vunpack.c.l.b16 %v4590
    %v4728 = vunpack.c.l.b16 %v4591
    %v4729 = vunpack.c.l.b16 %v4592
    %v4730 = vunpack.c.l.b16 %v4593
    %v4731 = vunpack.c.l.b16 %v4594
    %v4732 = vunpack.c.l.b16 %v4595
    %v4733 = vunpack.c.l.b16 %v4596
    %v4734 = vunpack.c.l.b16 %v4597
    %v4735 = vunpack.c.l.b16 %v4598
    %v4736 = vunpack.c.l.b16 %v4599
    %v4737 = vunpack.c.l.b16 %v4600
    %v4738 = vunpack.c.l.b16 %v4601
    %v4739 = vunpack.c.l.b16 %v4602
    %v4740 = vunpack.c.l.b16 %v4603
    %v4741 = vunpack.c.l.b16 %v4604
    %v4742 = vunpack.c.l.b16 %v4605
    %v4743 = vunpack.c.l.b16 %v4606
    %v4744 = vunpack.c.l.b16 %v4607
    %v4745 = vunpack.c.l.b16 %v4608
    %v4746 = vunpack.c.l.b16 %v4609
    %v4747 = vunpack.c.l.b16 %v4610
    %v4748 = vunpack.c.l.b16 %v4611
    %v4749 = vunpack.c.l.b16 %v4612
    %v4750 = vunpack.c.l.b16 %v4613
    %v4751 = vunpack.c.l.b16 %v4614
    %v4752 = vunpack.c.l.b16 %v4615
    %v4753 = vunpack.c.l.b16 %v4616
    %v4754 = vunpack.c.l.b16 %v4617
    %v4755 = vunpack.c.l.b16 %v4618
    %v4756 = vunpack.c.l.b16 %v4619
    %v4757 = vunpack.c.l.b16 %v4620
    %v4758 = vunpack.c.l.b16 %v4621
    %v4759 = vunpack.c.l.b16 %v4622
    %v4760 = vunpack.c.l.b16 %v4623
    %v4761 = vunpack.c.l.b16 %v4624
    %v4762 = vpack.c.b16 %v4699, %v4698
    %v4763 = vpack.c.b16 %v4701, %v4700
    %v4764 = vpack.c.b16 %v4703, %v4702
    %v4765 = vpack.c.b16 %v4705, %v4704
    %v4766 = vpack.c.b16 %v4707, %v4706
    %v4767 = vpack.c.b16 %v4709, %v4708
    %v4768 = vpack.c.b16 %v4711, %v4710
    %v4769 = vpack.c.b16 %v4713, %v4712
    %v4770 = vpack.c.b16 %v4715, %v4714
    %v4771 = vpack.c.b16 %v4717, %v4716
    %v4772 = vpack.c.b16 %v4719, %v4718
    %v4773 = vpack.c.b16 %v4721, %v4720
    %v4774 = vpack.c.b16 %v4723, %v4722
    %v4775 = vpack.c.b16 %v4725, %v4724
    %v4776 = vpack.c.b16 %v4727, %v4726
    %v4777 = vpack.c.b16 %v4729, %v4728
    %v4778 = vpack.c.b16 %v4731, %v4730
    %v4779 = vpack.c.b16 %v4733, %v4732
    %v4780 = vpack.c.b16 %v4735, %v4734
    %v4781 = vpack.c.b16 %v4737, %v4736
    %v4782 = vpack.c.b16 %v4739, %v4738
    %v4783 = vpack.c.b16 %v4741, %v4740
    %v4784 = vpack.c.b16 %v4743, %v4742
    %v4785 = vpack.c.b16 %v4745, %v4744
    %v4786 = vpack.c.b16 %v4747, %v4746
    %v4787 = vpack.c.b16 %v4749, %v4748
    %v4788 = vpack.c.b16 %v4751, %v4750
    %v4789 = vpack.c.b16 %v4753, %v4752
    %v4790 = vpack.c.b16 %v4755, %v4754
    %v4791 = vpack.c.b16 %v4757, %v4756
    %v4792 = vpack.c.b16 %v4759, %v4758
    %v4793 = vpack.c.b16 %v4761, %v4760
    %4826 = vmatpush.bf16.msra.mxu0 %v4769
    %4827 = vmatpush.bf16.msra.mxu0 %v4768
    %4828 = vmatpush.bf16.msra.mxu0 %v4767
    %4829 = vmatpush.bf16.msra.mxu0 %v4766
    %4830 = vmatpush.bf16.msra.mxu0 %v4765
    %4831 = vmatpush.bf16.msra.mxu0 %v4764
    %4832 = vmatpush.bf16.msra.mxu0 %v4763
    %4833 = vmatpush.bf16.msra.mxu0 %v4762
    %4834 = vmatmul.bf16.gmra.mxu0 %v4626
    %v4835 = vpop.f32.mrf.mxu0
    %v4836 = vadd.f32 0.0, %v4835
    %v4837 = vpop.f32.mrf.mxu0
    %4838 = vdwg.mxu0
    %4839 = vmatpush.bf16.msra.mxu0 %v4777
    %4840 = vmatpush.bf16.msra.mxu0 %v4776
    %4841 = vmatpush.bf16.msra.mxu0 %v4775
    %4842 = vmatpush.bf16.msra.mxu0 %v4774
    %4843 = vmatpush.bf16.msra.mxu0 %v4773
    %4844 = vmatpush.bf16.msra.mxu0 %v4772
    %4845 = vmatpush.bf16.msra.mxu0 %v4771
    %4846 = vmatpush.bf16.msra.mxu0 %v4770
    %4847 = vmatmul.bf16.gmra.mxu0 %v4627
    %v4848 = vpop.f32.mrf.mxu0
    %v4849 = vadd.f32 %v4836, %v4848
    %v4850 = vpop.f32.mrf.mxu0
    %4851 = vdwg.mxu0
    %4852 = vmatpush.bf16.msra.mxu0 %v4785
    %4853 = vmatpush.bf16.msra.mxu0 %v4784
    %4854 = vmatpush.bf16.msra.mxu0 %v4783
    %4855 = vmatpush.bf16.msra.mxu0 %v4782
    %4856 = vmatpush.bf16.msra.mxu0 %v4781
    %4857 = vmatpush.bf16.msra.mxu0 %v4780
    %4858 = vmatpush.bf16.msra.mxu0 %v4779
    %4859 = vmatpush.bf16.msra.mxu0 %v4778
    %4860 = vmatmul.bf16.gmra.mxu0 %v4628
    %v4861 = vpop.f32.mrf.mxu0
    %v4862 = vadd.f32 %v4849, %v4861
    %v4863 = vpop.f32.mrf.mxu0
    %4864 = vdwg.mxu0
    %4865 = vmatpush.bf16.msra.mxu0 %v4793
    %4866 = vmatpush.bf16.msra.mxu0 %v4792
    %4867 = vmatpush.bf16.msra.mxu0 %v4791
    %4868 = vmatpush.bf16.msra.mxu0 %v4790
    %4869 = vmatpush.bf16.msra.mxu0 %v4789
    %4870 = vmatpush.bf16.msra.mxu0 %v4788
    %4871 = vmatpush.bf16.msra.mxu0 %v4787
    %4872 = vmatpush.bf16.msra.mxu0 %v4786
    %4873 = vmatmul.bf16.gmra.mxu0 %v4629
    %v4874 = vpop.f32.mrf.mxu0
    %v4875 = vadd.f32 %v4862, %v4874
    %v4876 = vpop.f32.mrf.mxu0
    %4877 = vdwg.mxu0
    %s4878 = scalar_lea.vmem [#allocation2], 3840
    %v4879 = vld [vmem:[%s4878] sm:$0xf]
    %v4880 = vld [vmem:[%s4878 + $0x4] sm:$0xf]
    %v4881 = vld [vmem:[%s4878 + $0x8] sm:$0xf]
    %v4882 = vld [vmem:[%s4878 + $0xc] sm:$0xf]
    %v4883 = vld [vmem:[%s4878 + $0x10] sm:$0xf]
    %v4884 = vld [vmem:[%s4878 + $0x14] sm:$0xf]
    %v4885 = vld [vmem:[%s4878 + $0x18] sm:$0xf]
    %v4886 = vld [vmem:[%s4878 + $0x1c] sm:$0xf]
    %v4887 = vld [vmem:[%s4878 + $0x20] sm:$0xf]
    %v4888 = vld [vmem:[%s4878 + $0x24] sm:$0xf]
    %v4889 = vld [vmem:[%s4878 + $0x28] sm:$0xf]
    %v4890 = vld [vmem:[%s4878 + $0x2c] sm:$0xf]
    %v4891 = vld [vmem:[%s4878 + $0x30] sm:$0xf]
    %v4892 = vld [vmem:[%s4878 + $0x34] sm:$0xf]
    %v4893 = vld [vmem:[%s4878 + $0x38] sm:$0xf]
    %v4894 = vld [vmem:[%s4878 + $0x3c] sm:$0xf]
    %v4895 = vld [vmem:[%s4878 + $0x40] sm:$0xf]
    %v4896 = vld [vmem:[%s4878 + $0x44] sm:$0xf]
    %v4897 = vld [vmem:[%s4878 + $0x48] sm:$0xf]
    %v4898 = vld [vmem:[%s4878 + $0x4c] sm:$0xf]
    %v4899 = vld [vmem:[%s4878 + $0x50] sm:$0xf]
    %v4900 = vld [vmem:[%s4878 + $0x54] sm:$0xf]
    %v4901 = vld [vmem:[%s4878 + $0x58] sm:$0xf]
    %v4902 = vld [vmem:[%s4878 + $0x5c] sm:$0xf]
    %v4903 = vld [vmem:[%s4878 + $0x60] sm:$0xf]
    %v4904 = vld [vmem:[%s4878 + $0x64] sm:$0xf]
    %v4905 = vld [vmem:[%s4878 + $0x68] sm:$0xf]
    %v4906 = vld [vmem:[%s4878 + $0x6c] sm:$0xf]
    %v4907 = vld [vmem:[%s4878 + $0x70] sm:$0xf]
    %v4908 = vld [vmem:[%s4878 + $0x74] sm:$0xf]
    %v4909 = vld [vmem:[%s4878 + $0x78] sm:$0xf]
    %v4910 = vld [vmem:[%s4878 + $0x7c] sm:$0xf]
    %v4911 = vld [vmem:[%s4878 + $0x80] sm:$0xf]
    %v4912 = vld [vmem:[%s4878 + $0x84] sm:$0xf]
    %v4913 = vld [vmem:[%s4878 + $0x88] sm:$0xf]
    %v4914 = vld [vmem:[%s4878 + $0x8c] sm:$0xf]
    %v4915 = vld [vmem:[%s4878 + $0x90] sm:$0xf]
    %v4916 = vld [vmem:[%s4878 + $0x94] sm:$0xf]
    %v4917 = vld [vmem:[%s4878 + $0x98] sm:$0xf]
    %v4918 = vld [vmem:[%s4878 + $0x9c] sm:$0xf]
    %v4919 = vld [vmem:[%s4878 + $0xa0] sm:$0xf]
    %v4920 = vld [vmem:[%s4878 + $0xa4] sm:$0xf]
    %v4921 = vld [vmem:[%s4878 + $0xa8] sm:$0xf]
    %v4922 = vld [vmem:[%s4878 + $0xac] sm:$0xf]
    %v4923 = vld [vmem:[%s4878 + $0xb0] sm:$0xf]
    %v4924 = vld [vmem:[%s4878 + $0xb4] sm:$0xf]
    %v4925 = vld [vmem:[%s4878 + $0xb8] sm:$0xf]
    %v4926 = vld [vmem:[%s4878 + $0xbc] sm:$0xf]
    %v4927 = vld [vmem:[%s4878 + $0xc0] sm:$0xf]
    %v4928 = vld [vmem:[%s4878 + $0xc4] sm:$0xf]
    %v4929 = vld [vmem:[%s4878 + $0xc8] sm:$0xf]
    %v4930 = vld [vmem:[%s4878 + $0xcc] sm:$0xf]
    %v4931 = vld [vmem:[%s4878 + $0xd0] sm:$0xf]
    %v4932 = vld [vmem:[%s4878 + $0xd4] sm:$0xf]
    %v4933 = vld [vmem:[%s4878 + $0xd8] sm:$0xf]
    %v4934 = vld [vmem:[%s4878 + $0xdc] sm:$0xf]
    %v4935 = vld [vmem:[%s4878 + $0xe0] sm:$0xf]
    %v4936 = vld [vmem:[%s4878 + $0xe4] sm:$0xf]
    %v4937 = vld [vmem:[%s4878 + $0xe8] sm:$0xf]
    %v4938 = vld [vmem:[%s4878 + $0xec] sm:$0xf]
    %v4939 = vld [vmem:[%s4878 + $0xf0] sm:$0xf]
    %v4940 = vld [vmem:[%s4878 + $0xf4] sm:$0xf]
    %v4941 = vld [vmem:[%s4878 + $0xf8] sm:$0xf]
    %v4942 = vld [vmem:[%s4878 + $0xfc] sm:$0xf]
    %4943 = vst [vmem:[#allocation1] ss:$9 sm:$0xff] %v107
    %v4944 = vld [vmem:[#allocation1] sm:$0xff]
    %v4945 = vld [vmem:[#allocation1 + $0x9] sm:$0xff]
    %v4946 = vld [vmem:[#allocation1 + $0x12] sm:$0xff]
    %v4947 = vld [vmem:[#allocation1 + $0x1b] sm:$0xff]
    %v5016 = vunpack.c.l.b16 %v4879
    %v5017 = vunpack.c.l.b16 %v4880
    %v5018 = vunpack.c.l.b16 %v4881
    %v5019 = vunpack.c.l.b16 %v4882
    %v5020 = vunpack.c.l.b16 %v4883
    %v5021 = vunpack.c.l.b16 %v4884
    %v5022 = vunpack.c.l.b16 %v4885
    %v5023 = vunpack.c.l.b16 %v4886
    %v5024 = vunpack.c.l.b16 %v4887
    %v5025 = vunpack.c.l.b16 %v4888
    %v5026 = vunpack.c.l.b16 %v4889
    %v5027 = vunpack.c.l.b16 %v4890
    %v5028 = vunpack.c.l.b16 %v4891
    %v5029 = vunpack.c.l.b16 %v4892
    %v5030 = vunpack.c.l.b16 %v4893
    %v5031 = vunpack.c.l.b16 %v4894
    %v5032 = vunpack.c.l.b16 %v4895
    %v5033 = vunpack.c.l.b16 %v4896
    %v5034 = vunpack.c.l.b16 %v4897
    %v5035 = vunpack.c.l.b16 %v4898
    %v5036 = vunpack.c.l.b16 %v4899
    %v5037 = vunpack.c.l.b16 %v4900
    %v5038 = vunpack.c.l.b16 %v4901
    %v5039 = vunpack.c.l.b16 %v4902
    %v5040 = vunpack.c.l.b16 %v4903
    %v5041 = vunpack.c.l.b16 %v4904
    %v5042 = vunpack.c.l.b16 %v4905
    %v5043 = vunpack.c.l.b16 %v4906
    %v5044 = vunpack.c.l.b16 %v4907
    %v5045 = vunpack.c.l.b16 %v4908
    %v5046 = vunpack.c.l.b16 %v4909
    %v5047 = vunpack.c.l.b16 %v4910
    %v5048 = vunpack.c.l.b16 %v4911
    %v5049 = vunpack.c.l.b16 %v4912
    %v5050 = vunpack.c.l.b16 %v4913
    %v5051 = vunpack.c.l.b16 %v4914
    %v5052 = vunpack.c.l.b16 %v4915
    %v5053 = vunpack.c.l.b16 %v4916
    %v5054 = vunpack.c.l.b16 %v4917
    %v5055 = vunpack.c.l.b16 %v4918
    %v5056 = vunpack.c.l.b16 %v4919
    %v5057 = vunpack.c.l.b16 %v4920
    %v5058 = vunpack.c.l.b16 %v4921
    %v5059 = vunpack.c.l.b16 %v4922
    %v5060 = vunpack.c.l.b16 %v4923
    %v5061 = vunpack.c.l.b16 %v4924
    %v5062 = vunpack.c.l.b16 %v4925
    %v5063 = vunpack.c.l.b16 %v4926
    %v5064 = vunpack.c.l.b16 %v4927
    %v5065 = vunpack.c.l.b16 %v4928
    %v5066 = vunpack.c.l.b16 %v4929
    %v5067 = vunpack.c.l.b16 %v4930
    %v5068 = vunpack.c.l.b16 %v4931
    %v5069 = vunpack.c.l.b16 %v4932
    %v5070 = vunpack.c.l.b16 %v4933
    %v5071 = vunpack.c.l.b16 %v4934
    %v5072 = vunpack.c.l.b16 %v4935
    %v5073 = vunpack.c.l.b16 %v4936
    %v5074 = vunpack.c.l.b16 %v4937
    %v5075 = vunpack.c.l.b16 %v4938
    %v5076 = vunpack.c.l.b16 %v4939
    %v5077 = vunpack.c.l.b16 %v4940
    %v5078 = vunpack.c.l.b16 %v4941
    %v5079 = vunpack.c.l.b16 %v4942
    %v5080 = vpack.c.b16 %v5017, %v5016
    %v5081 = vpack.c.b16 %v5019, %v5018
    %v5082 = vpack.c.b16 %v5021, %v5020
    %v5083 = vpack.c.b16 %v5023, %v5022
    %v5084 = vpack.c.b16 %v5025, %v5024
    %v5085 = vpack.c.b16 %v5027, %v5026
    %v5086 = vpack.c.b16 %v5029, %v5028
    %v5087 = vpack.c.b16 %v5031, %v5030
    %v5088 = vpack.c.b16 %v5033, %v5032
    %v5089 = vpack.c.b16 %v5035, %v5034
    %v5090 = vpack.c.b16 %v5037, %v5036
    %v5091 = vpack.c.b16 %v5039, %v5038
    %v5092 = vpack.c.b16 %v5041, %v5040
    %v5093 = vpack.c.b16 %v5043, %v5042
    %v5094 = vpack.c.b16 %v5045, %v5044
    %v5095 = vpack.c.b16 %v5047, %v5046
    %v5096 = vpack.c.b16 %v5049, %v5048
    %v5097 = vpack.c.b16 %v5051, %v5050
    %v5098 = vpack.c.b16 %v5053, %v5052
    %v5099 = vpack.c.b16 %v5055, %v5054
    %v5100 = vpack.c.b16 %v5057, %v5056
    %v5101 = vpack.c.b16 %v5059, %v5058
    %v5102 = vpack.c.b16 %v5061, %v5060
    %v5103 = vpack.c.b16 %v5063, %v5062
    %v5104 = vpack.c.b16 %v5065, %v5064
    %v5105 = vpack.c.b16 %v5067, %v5066
    %v5106 = vpack.c.b16 %v5069, %v5068
    %v5107 = vpack.c.b16 %v5071, %v5070
    %v5108 = vpack.c.b16 %v5073, %v5072
    %v5109 = vpack.c.b16 %v5075, %v5074
    %v5110 = vpack.c.b16 %v5077, %v5076
    %v5111 = vpack.c.b16 %v5079, %v5078
    %5144 = vmatpush.bf16.msra.mxu0 %v5087
    %5145 = vmatpush.bf16.msra.mxu0 %v5086
    %5146 = vmatpush.bf16.msra.mxu0 %v5085
    %5147 = vmatpush.bf16.msra.mxu0 %v5084
    %5148 = vmatpush.bf16.msra.mxu0 %v5083
    %5149 = vmatpush.bf16.msra.mxu0 %v5082
    %5150 = vmatpush.bf16.msra.mxu0 %v5081
    %5151 = vmatpush.bf16.msra.mxu0 %v5080
    %5152 = vmatmul.bf16.gmra.mxu0 %v4944
    %v5153 = vpop.f32.mrf.mxu0
    %v5154 = vadd.f32 0.0, %v5153
    %v5155 = vpop.f32.mrf.mxu0
    %5156 = vdwg.mxu0
    %5157 = vmatpush.bf16.msra.mxu0 %v5095
    %5158 = vmatpush.bf16.msra.mxu0 %v5094
    %5159 = vmatpush.bf16.msra.mxu0 %v5093
    %5160 = vmatpush.bf16.msra.mxu0 %v5092
    %5161 = vmatpush.bf16.msra.mxu0 %v5091
    %5162 = vmatpush.bf16.msra.mxu0 %v5090
    %5163 = vmatpush.bf16.msra.mxu0 %v5089
    %5164 = vmatpush.bf16.msra.mxu0 %v5088
    %5165 = vmatmul.bf16.gmra.mxu0 %v4945
    %v5166 = vpop.f32.mrf.mxu0
    %v5167 = vadd.f32 %v5154, %v5166
    %v5168 = vpop.f32.mrf.mxu0
    %5169 = vdwg.mxu0
    %5170 = vmatpush.bf16.msra.mxu0 %v5103
    %5171 = vmatpush.bf16.msra.mxu0 %v5102
    %5172 = vmatpush.bf16.msra.mxu0 %v5101
    %5173 = vmatpush.bf16.msra.mxu0 %v5100
    %5174 = vmatpush.bf16.msra.mxu0 %v5099
    %5175 = vmatpush.bf16.msra.mxu0 %v5098
    %5176 = vmatpush.bf16.msra.mxu0 %v5097
    %5177 = vmatpush.bf16.msra.mxu0 %v5096
    %5178 = vmatmul.bf16.gmra.mxu0 %v4946
    %v5179 = vpop.f32.mrf.mxu0
    %v5180 = vadd.f32 %v5167, %v5179
    %v5181 = vpop.f32.mrf.mxu0
    %5182 = vdwg.mxu0
    %5183 = vmatpush.bf16.msra.mxu0 %v5111
    %5184 = vmatpush.bf16.msra.mxu0 %v5110
    %5185 = vmatpush.bf16.msra.mxu0 %v5109
    %5186 = vmatpush.bf16.msra.mxu0 %v5108
    %5187 = vmatpush.bf16.msra.mxu0 %v5107
    %5188 = vmatpush.bf16.msra.mxu0 %v5106
    %5189 = vmatpush.bf16.msra.mxu0 %v5105
    %5190 = vmatpush.bf16.msra.mxu0 %v5104
    %5191 = vmatmul.bf16.gmra.mxu0 %v4947
    %v5192 = vpop.f32.mrf.mxu0
    %v5193 = vadd.f32 %v5180, %v5192
    %v5194 = vpop.f32.mrf.mxu0
    %5195 = vdwg.mxu0
    %v5197 = vrot.slane %v741, 7
    %v5200 = vrot.slane %v1059, 6
    %v5203 = vrot.slane %v1377, 5
    %v5206 = vrot.slane %v1695, 4
    %v5209 = vrot.slane %v2013, 3
    %v5212 = vrot.slane %v2331, 2
    %v5215 = vrot.slane %v2649, 1
    %v5218 = vrot.slane %v3285, 7
    %v5221 = vrot.slane %v3603, 6
    %v5224 = vrot.slane %v3921, 5
    %v5227 = vrot.slane %v4239, 4
    %v5230 = vrot.slane %v4557, 3
    %v5233 = vrot.slane %v4875, 2
    %v5236 = vrot.slane %v5193, 1
    %vm5238 = vcmask 1040384
    %v5239 = vsel %vm5238, %v423, %v5197
    %vm5240 = vcmask 1041408
    %v5241 = vsel %vm5240, %v5239, %v5200
    %vm5242 = vcmask 1042432
    %v5243 = vsel %vm5242, %v5241, %v5203
    %vm5244 = vcmask 1043456
    %v5245 = vsel %vm5244, %v5243, %v5206
    %vm5246 = vcmask 1044480
    %v5247 = vsel %vm5246, %v5245, %v5209
    %vm5248 = vcmask 1045504
    %v5249 = vsel %vm5248, %v5247, %v5212
    %vm5250 = vcmask 1046528
    %v5251 = vsel %vm5250, %v5249, %v5215
    %v5252 = vsel %vm5238, %v2967, %v5218
    %v5253 = vsel %vm5240, %v5252, %v5221
    %v5254 = vsel %vm5242, %v5253, %v5224
    %v5255 = vsel %vm5244, %v5254, %v5227
    %v5256 = vsel %vm5246, %v5255, %v5230
    %v5257 = vsel %vm5248, %v5256, %v5233
    %v5258 = vsel %vm5250, %v5257, %v5236
    %v5259 = vpack.c.bf16 %v5258, %v5251
    %v5260 = vld [vmem:[%s2] sm:$0xf]
    %v5261 = vld [vmem:[%s2 + $0x4] sm:$0xf]
    %v5262 = vld [vmem:[%s3] sm:$0xff]
    %v5263 = vld [vmem:[%s3 + $0x8] sm:$0xff]
    %5265 = vset.pattern.permute.xlu0 0
    %5266 = vperm.xlu0 %5265, %v5262
    %v5267 = vpop.permute.xlu0 %5266
    %5270 = vset.pattern.permute.xlu0 0
    %5271 = vperm.xlu0 %5270, %v5263
    %v5272 = vpop.permute.xlu0 %5271
    %v5276 = vunpack.c.l.b16 %v5260
    %v5277 = vunpack.c.l.b16 %v5261
    %v5278 = vpack.c.b16 %v5277, %v5276
    %vm5279 = vcmask 130048
    %v5281 = vsel %vm5279, %v5278, 0
    %5283 = vmatpush.bf16.msra.mxu0 0
    %5284 = vmatpush.bf16.msra.mxu0 0
    %5285 = vmatpush.bf16.msra.mxu0 0
    %5286 = vmatpush.bf16.msra.mxu0 0
    %5287 = vmatpush.bf16.msra.mxu0 0
    %5288 = vmatpush.bf16.msra.mxu0 0
    %5289 = vmatpush.bf16.msra.mxu0 0
    %5290 = vmatpush.bf16.msra.mxu0 %v5259
    %5291 = vmatmul.bf16.gmra.mxu0 %v5281
    %v5292 = vpop.f32.mrf.mxu0
    %v5293 = vadd.f32 %v5267, %v5292
    %v5294 = vpop.f32.mrf.mxu0
    %v5295 = vadd.f32 %v5272, %v5294
    %5296 = vdwg.mxu0
    %5297 = vadd.xlane.f32.xlu0 %v5293
    %v5298 = vpop.xlane.xlu0 %5297
    %5299 = vadd.xlane.f32.xlu0 %v5295
    %v5300 = vpop.xlane.xlu0 %5299
    %v5301 = vrcp.pop 128.0
    %v5302 = vmul.f32 128.0, %v5301
    %v5303 = vsub.f32 1.0, %v5302
    %v5304 = vmul.f32 %v5301, %v5303
    %v5305 = vadd.f32 %v5301, %v5304
    %vm5306 = vweird.f32 %v5301
    %v5307 = vsel %vm5306, %v5301, %v5305
    %v5308 = vmul.f32 %v5298, %v5307
    %v5309 = vmul.f32 %v5300, %v5307
    %v5310 = vsub.f32 %v5293, %v5308
    %v5311 = vsub.f32 %v5295, %v5309
    %v5312 = vmul.f32 %v5310, %v5310
    %v5313 = vmul.f32 %v5311, %v5311
    %5314 = vadd.xlane.f32.xlu0 %v5312
    %v5315 = vpop.xlane.xlu0 %5314
    %5316 = vadd.xlane.f32.xlu0 %v5313
    %v5317 = vpop.xlane.xlu0 %5316
    %v5318 = vmul.f32 %v5315, %v5307
    %v5319 = vmul.f32 %v5317, %v5307
    %v5320 = vld [vmem:[%s4] sm:$0xff]
    %v5321 = vld [vmem:[%s4 + $0x8] sm:$0xff]
    %v5322 = vadd.f32 %v5318, 1e-05
    %v5323 = vadd.f32 %v5319, 1e-05
    %v5324 = vrsqrt.pop %v5322
    %v5325 = vmul.f32 %v5324, %v5322
    %v5326 = vmul.f32 %v5325, %v5324
    %v5327 = vmul.f32 0.5, %v5326
    %v5328 = vsub.f32 1.5, %v5327
    %v5329 = vmul.f32 %v5324, %v5328
    %vm5330 = vweird.f32 %v5322
    %vm5331 = vweird.f32 %v5324
    %vm5332 = vmor %vm5330, %vm5331
    %v5333 = vsel %vm5332, %v5324, %v5329
    %v5334 = vrsqrt.pop %v5323
    %v5335 = vmul.f32 %v5334, %v5323
    %v5336 = vmul.f32 %v5335, %v5334
    %v5337 = vmul.f32 0.5, %v5336
    %v5338 = vsub.f32 1.5, %v5337
    %v5339 = vmul.f32 %v5334, %v5338
    %vm5340 = vweird.f32 %v5323
    %vm5341 = vweird.f32 %v5334
    %vm5342 = vmor %vm5340, %vm5341
    %v5343 = vsel %vm5342, %v5334, %v5339
    %v5344 = vmul.f32 %v5320, %v5333
    %v5345 = vmul.f32 %v5321, %v5343
    %v5346 = vld [vmem:[%s5] sm:$0xff]
    %v5347 = vld [vmem:[%s5 + $0x8] sm:$0xff]
    %v5348 = vmul.f32 %v5308, %v5344
    %v5349 = vmul.f32 %v5309, %v5345
    %v5350 = vsub.f32 %v5346, %v5348
    %v5351 = vsub.f32 %v5347, %v5349
    %5353 = vset.pattern.permute.xlu0 0
    %5354 = vperm.xlu0 %5353, %v5344
    %v5355 = vpop.permute.xlu0 %5354
    %5358 = vset.pattern.permute.xlu0 0
    %5359 = vperm.xlu0 %5358, %v5345
    %v5360 = vpop.permute.xlu0 %5359
    %v5362 = vmul.f32 %v5293, %v5355
    %v5363 = vmul.f32 %v5295, %v5360
    %5365 = vset.pattern.permute.xlu0 0
    %5366 = vperm.xlu0 %5365, %v5350
    %v5367 = vpop.permute.xlu0 %5366
    %5370 = vset.pattern.permute.xlu0 0
    %5371 = vperm.xlu0 %5370, %v5351
    %v5372 = vpop.permute.xlu0 %5371
    %v5374 = vadd.f32 %v5362, %v5367
    %v5375 = vadd.f32 %v5363, %v5372
    %v5376 = vmax.f32 %v5374, 0.0
    %v5377 = vmax.f32 %v5375, 0.0
    %v5378 = vpack.c.bf16 %v5377, %v5376
    %v5379 = vld [vmem:[#allocation4] sm:$0xf]
    %v5380 = vld [vmem:[#allocation4 + $0x4] sm:$0xf]
    %v5381 = vld [vmem:[#allocation4 + $0x8] sm:$0xf]
    %v5382 = vld [vmem:[#allocation4 + $0xc] sm:$0xf]
    %v5383 = vld [vmem:[#allocation4 + $0x10] sm:$0xf]
    %v5384 = vld [vmem:[#allocation4 + $0x14] sm:$0xf]
    %v5385 = vld [vmem:[#allocation4 + $0x18] sm:$0xf]
    %v5386 = vld [vmem:[#allocation4 + $0x1c] sm:$0xf]
    %v5387 = vld [vmem:[#allocation4 + $0x20] sm:$0xf]
    %v5388 = vld [vmem:[#allocation4 + $0x24] sm:$0xf]
    %v5389 = vld [vmem:[#allocation4 + $0x28] sm:$0xf]
    %v5390 = vld [vmem:[#allocation4 + $0x2c] sm:$0xf]
    %v5391 = vld [vmem:[#allocation4 + $0x30] sm:$0xf]
    %v5392 = vld [vmem:[#allocation4 + $0x34] sm:$0xf]
    %v5393 = vld [vmem:[#allocation4 + $0x38] sm:$0xf]
    %v5394 = vld [vmem:[#allocation4 + $0x3c] sm:$0xf]
    %v5411 = vunpack.c.l.b16 %v5379
    %v5412 = vunpack.c.l.b16 %v5380
    %v5413 = vunpack.c.l.b16 %v5381
    %v5414 = vunpack.c.l.b16 %v5382
    %v5415 = vunpack.c.l.b16 %v5383
    %v5416 = vunpack.c.l.b16 %v5384
    %v5417 = vunpack.c.l.b16 %v5385
    %v5418 = vunpack.c.l.b16 %v5386
    %v5419 = vunpack.c.l.b16 %v5387
    %v5420 = vunpack.c.l.b16 %v5388
    %v5421 = vunpack.c.l.b16 %v5389
    %v5422 = vunpack.c.l.b16 %v5390
    %v5423 = vunpack.c.l.b16 %v5391
    %v5424 = vunpack.c.l.b16 %v5392
    %v5425 = vunpack.c.l.b16 %v5393
    %v5426 = vunpack.c.l.b16 %v5394
    %v5427 = vpack.c.b16 %v5412, %v5411
    %v5428 = vpack.c.b16 %v5414, %v5413
    %v5429 = vpack.c.b16 %v5416, %v5415
    %v5430 = vpack.c.b16 %v5418, %v5417
    %v5431 = vpack.c.b16 %v5420, %v5419
    %v5432 = vpack.c.b16 %v5422, %v5421
    %v5433 = vpack.c.b16 %v5424, %v5423
    %v5434 = vpack.c.b16 %v5426, %v5425
    %5443 = vmatpush.bf16.msra.mxu0 %v5434
    %5444 = vmatpush.bf16.msra.mxu0 %v5433
    %5445 = vmatpush.bf16.msra.mxu0 %v5432
    %5446 = vmatpush.bf16.msra.mxu0 %v5431
    %5447 = vmatpush.bf16.msra.mxu0 %v5430
    %5448 = vmatpush.bf16.msra.mxu0 %v5429
    %5449 = vmatpush.bf16.msra.mxu0 %v5428
    %5450 = vmatpush.bf16.msra.mxu0 %v5427
    %5451 = vmatmul.bf16.gmra.mxu0 %v5378
    %v5452 = vpop.f32.mrf.mxu0
    %v5453 = vadd.f32 0.0, %v5452
    %v5454 = vpop.f32.mrf.mxu0
    %v5455 = vadd.f32 0.0, %v5454
    %5456 = vdwg.mxu0
    %s5457 = scalar_lea.vmem [#allocation4], 64
    %v5458 = vld [vmem:[%s5457] sm:$0xf]
    %v5459 = vld [vmem:[%s5457 + $0x4] sm:$0xf]
    %v5460 = vld [vmem:[%s5457 + $0x8] sm:$0xf]
    %v5461 = vld [vmem:[%s5457 + $0xc] sm:$0xf]
    %v5462 = vld [vmem:[%s5457 + $0x10] sm:$0xf]
    %v5463 = vld [vmem:[%s5457 + $0x14] sm:$0xf]
    %v5464 = vld [vmem:[%s5457 + $0x18] sm:$0xf]
    %v5465 = vld [vmem:[%s5457 + $0x1c] sm:$0xf]
    %v5466 = vld [vmem:[%s5457 + $0x20] sm:$0xf]
    %v5467 = vld [vmem:[%s5457 + $0x24] sm:$0xf]
    %v5468 = vld [vmem:[%s5457 + $0x28] sm:$0xf]
    %v5469 = vld [vmem:[%s5457 + $0x2c] sm:$0xf]
    %v5470 = vld [vmem:[%s5457 + $0x30] sm:$0xf]
    %v5471 = vld [vmem:[%s5457 + $0x34] sm:$0xf]
    %v5472 = vld [vmem:[%s5457 + $0x38] sm:$0xf]
    %v5473 = vld [vmem:[%s5457 + $0x3c] sm:$0xf]
    %v5490 = vunpack.c.l.b16 %v5458
    %v5491 = vunpack.c.l.b16 %v5459
    %v5492 = vunpack.c.l.b16 %v5460
    %v5493 = vunpack.c.l.b16 %v5461
    %v5494 = vunpack.c.l.b16 %v5462
    %v5495 = vunpack.c.l.b16 %v5463
    %v5496 = vunpack.c.l.b16 %v5464
    %v5497 = vunpack.c.l.b16 %v5465
    %v5498 = vunpack.c.l.b16 %v5466
    %v5499 = vunpack.c.l.b16 %v5467
    %v5500 = vunpack.c.l.b16 %v5468
    %v5501 = vunpack.c.l.b16 %v5469
    %v5502 = vunpack.c.l.b16 %v5470
    %v5503 = vunpack.c.l.b16 %v5471
    %v5504 = vunpack.c.l.b16 %v5472
    %v5505 = vunpack.c.l.b16 %v5473
    %v5506 = vpack.c.b16 %v5491, %v5490
    %v5507 = vpack.c.b16 %v5493, %v5492
    %v5508 = vpack.c.b16 %v5495, %v5494
    %v5509 = vpack.c.b16 %v5497, %v5496
    %v5510 = vpack.c.b16 %v5499, %v5498
    %v5511 = vpack.c.b16 %v5501, %v5500
    %v5512 = vpack.c.b16 %v5503, %v5502
    %v5513 = vpack.c.b16 %v5505, %v5504
    %5522 = vmatpush.bf16.msra.mxu0 %v5513
    %5523 = vmatpush.bf16.msra.mxu0 %v5512
    %5524 = vmatpush.bf16.msra.mxu0 %v5511
    %5525 = vmatpush.bf16.msra.mxu0 %v5510
    %5526 = vmatpush.bf16.msra.mxu0 %v5509
    %5527 = vmatpush.bf16.msra.mxu0 %v5508
    %5528 = vmatpush.bf16.msra.mxu0 %v5507
    %5529 = vmatpush.bf16.msra.mxu0 %v5506
    %5530 = vmatmul.bf16.gmra.mxu0 %v5378
    %v5531 = vpop.f32.mrf.mxu0
    %v5532 = vadd.f32 0.0, %v5531
    %v5533 = vpop.f32.mrf.mxu0
    %v5534 = vadd.f32 0.0, %v5533
    %5535 = vdwg.mxu0
    %s5536 = scalar_lea.vmem [#allocation4], 128
    %v5537 = vld [vmem:[%s5536] sm:$0xf]
    %v5538 = vld [vmem:[%s5536 + $0x4] sm:$0xf]
    %v5539 = vld [vmem:[%s5536 + $0x8] sm:$0xf]
    %v5540 = vld [vmem:[%s5536 + $0xc] sm:$0xf]
    %v5541 = vld [vmem:[%s5536 + $0x10] sm:$0xf]
    %v5542 = vld [vmem:[%s5536 + $0x14] sm:$0xf]
    %v5543 = vld [vmem:[%s5536 + $0x18] sm:$0xf]
    %v5544 = vld [vmem:[%s5536 + $0x1c] sm:$0xf]
    %v5545 = vld [vmem:[%s5536 + $0x20] sm:$0xf]
    %v5546 = vld [vmem:[%s5536 + $0x24] sm:$0xf]
    %v5547 = vld [vmem:[%s5536 + $0x28] sm:$0xf]
    %v5548 = vld [vmem:[%s5536 + $0x2c] sm:$0xf]
    %v5549 = vld [vmem:[%s5536 + $0x30] sm:$0xf]
    %v5550 = vld [vmem:[%s5536 + $0x34] sm:$0xf]
    %v5551 = vld [vmem:[%s5536 + $0x38] sm:$0xf]
    %v5552 = vld [vmem:[%s5536 + $0x3c] sm:$0xf]
    %v5569 = vunpack.c.l.b16 %v5537
    %v5570 = vunpack.c.l.b16 %v5538
    %v5571 = vunpack.c.l.b16 %v5539
    %v5572 = vunpack.c.l.b16 %v5540
    %v5573 = vunpack.c.l.b16 %v5541
    %v5574 = vunpack.c.l.b16 %v5542
    %v5575 = vunpack.c.l.b16 %v5543
    %v5576 = vunpack.c.l.b16 %v5544
    %v5577 = vunpack.c.l.b16 %v5545
    %v5578 = vunpack.c.l.b16 %v5546
    %v5579 = vunpack.c.l.b16 %v5547
    %v5580 = vunpack.c.l.b16 %v5548
    %v5581 = vunpack.c.l.b16 %v5549
    %v5582 = vunpack.c.l.b16 %v5550
    %v5583 = vunpack.c.l.b16 %v5551
    %v5584 = vunpack.c.l.b16 %v5552
    %v5585 = vpack.c.b16 %v5570, %v5569
    %v5586 = vpack.c.b16 %v5572, %v5571
    %v5587 = vpack.c.b16 %v5574, %v5573
    %v5588 = vpack.c.b16 %v5576, %v5575
    %v5589 = vpack.c.b16 %v5578, %v5577
    %v5590 = vpack.c.b16 %v5580, %v5579
    %v5591 = vpack.c.b16 %v5582, %v5581
    %v5592 = vpack.c.b16 %v5584, %v5583
    %5601 = vmatpush.bf16.msra.mxu0 %v5592
    %5602 = vmatpush.bf16.msra.mxu0 %v5591
    %5603 = vmatpush.bf16.msra.mxu0 %v5590
    %5604 = vmatpush.bf16.msra.mxu0 %v5589
    %5605 = vmatpush.bf16.msra.mxu0 %v5588
    %5606 = vmatpush.bf16.msra.mxu0 %v5587
    %5607 = vmatpush.bf16.msra.mxu0 %v5586
    %5608 = vmatpush.bf16.msra.mxu0 %v5585
    %5609 = vmatmul.bf16.gmra.mxu0 %v5378
    %v5610 = vpop.f32.mrf.mxu0
    %v5611 = vadd.f32 0.0, %v5610
    %v5612 = vpop.f32.mrf.mxu0
    %v5613 = vadd.f32 0.0, %v5612
    %5614 = vdwg.mxu0
    %s5615 = scalar_lea.vmem [#allocation4], 192
    %v5616 = vld [vmem:[%s5615] sm:$0xf]
    %v5617 = vld [vmem:[%s5615 + $0x4] sm:$0xf]
    %v5618 = vld [vmem:[%s5615 + $0x8] sm:$0xf]
    %v5619 = vld [vmem:[%s5615 + $0xc] sm:$0xf]
    %v5620 = vld [vmem:[%s5615 + $0x10] sm:$0xf]
    %v5621 = vld [vmem:[%s5615 + $0x14] sm:$0xf]
    %v5622 = vld [vmem:[%s5615 + $0x18] sm:$0xf]
    %v5623 = vld [vmem:[%s5615 + $0x1c] sm:$0xf]
    %v5624 = vld [vmem:[%s5615 + $0x20] sm:$0xf]
    %v5625 = vld [vmem:[%s5615 + $0x24] sm:$0xf]
    %v5626 = vld [vmem:[%s5615 + $0x28] sm:$0xf]
    %v5627 = vld [vmem:[%s5615 + $0x2c] sm:$0xf]
    %v5628 = vld [vmem:[%s5615 + $0x30] sm:$0xf]
    %v5629 = vld [vmem:[%s5615 + $0x34] sm:$0xf]
    %v5630 = vld [vmem:[%s5615 + $0x38] sm:$0xf]
    %v5631 = vld [vmem:[%s5615 + $0x3c] sm:$0xf]
    %v5648 = vunpack.c.l.b16 %v5616
    %v5649 = vunpack.c.l.b16 %v5617
    %v5650 = vunpack.c.l.b16 %v5618
    %v5651 = vunpack.c.l.b16 %v5619
    %v5652 = vunpack.c.l.b16 %v5620
    %v5653 = vunpack.c.l.b16 %v5621
    %v5654 = vunpack.c.l.b16 %v5622
    %v5655 = vunpack.c.l.b16 %v5623
    %v5656 = vunpack.c.l.b16 %v5624
    %v5657 = vunpack.c.l.b16 %v5625
    %v5658 = vunpack.c.l.b16 %v5626
    %v5659 = vunpack.c.l.b16 %v5627
    %v5660 = vunpack.c.l.b16 %v5628
    %v5661 = vunpack.c.l.b16 %v5629
    %v5662 = vunpack.c.l.b16 %v5630
    %v5663 = vunpack.c.l.b16 %v5631
    %v5664 = vpack.c.b16 %v5649, %v5648
    %v5665 = vpack.c.b16 %v5651, %v5650
    %v5666 = vpack.c.b16 %v5653, %v5652
    %v5667 = vpack.c.b16 %v5655, %v5654
    %v5668 = vpack.c.b16 %v5657, %v5656
    %v5669 = vpack.c.b16 %v5659, %v5658
    %v5670 = vpack.c.b16 %v5661, %v5660
    %v5671 = vpack.c.b16 %v5663, %v5662
    %5680 = vmatpush.bf16.msra.mxu0 %v5671
    %5681 = vmatpush.bf16.msra.mxu0 %v5670
    %5682 = vmatpush.bf16.msra.mxu0 %v5669
    %5683 = vmatpush.bf16.msra.mxu0 %v5668
    %5684 = vmatpush.bf16.msra.mxu0 %v5667
    %5685 = vmatpush.bf16.msra.mxu0 %v5666
    %5686 = vmatpush.bf16.msra.mxu0 %v5665
    %5687 = vmatpush.bf16.msra.mxu0 %v5664
    %5688 = vmatmul.bf16.gmra.mxu0 %v5378
    %v5689 = vpop.f32.mrf.mxu0
    %v5690 = vadd.f32 0.0, %v5689
    %v5691 = vpop.f32.mrf.mxu0
    %v5692 = vadd.f32 0.0, %v5691
    %5693 = vdwg.mxu0
    %s5694 = scalar_lea.vmem [#allocation4], 256
    %v5695 = vld [vmem:[%s5694] sm:$0xf]
    %v5696 = vld [vmem:[%s5694 + $0x4] sm:$0xf]
    %v5697 = vld [vmem:[%s5694 + $0x8] sm:$0xf]
    %v5698 = vld [vmem:[%s5694 + $0xc] sm:$0xf]
    %v5699 = vld [vmem:[%s5694 + $0x10] sm:$0xf]
    %v5700 = vld [vmem:[%s5694 + $0x14] sm:$0xf]
    %v5701 = vld [vmem:[%s5694 + $0x18] sm:$0xf]
    %v5702 = vld [vmem:[%s5694 + $0x1c] sm:$0xf]
    %v5703 = vld [vmem:[%s5694 + $0x20] sm:$0xf]
    %v5704 = vld [vmem:[%s5694 + $0x24] sm:$0xf]
    %v5705 = vld [vmem:[%s5694 + $0x28] sm:$0xf]
    %v5706 = vld [vmem:[%s5694 + $0x2c] sm:$0xf]
    %v5707 = vld [vmem:[%s5694 + $0x30] sm:$0xf]
    %v5708 = vld [vmem:[%s5694 + $0x34] sm:$0xf]
    %v5709 = vld [vmem:[%s5694 + $0x38] sm:$0xf]
    %v5710 = vld [vmem:[%s5694 + $0x3c] sm:$0xf]
    %v5727 = vunpack.c.l.b16 %v5695
    %v5728 = vunpack.c.l.b16 %v5696
    %v5729 = vunpack.c.l.b16 %v5697
    %v5730 = vunpack.c.l.b16 %v5698
    %v5731 = vunpack.c.l.b16 %v5699
    %v5732 = vunpack.c.l.b16 %v5700
    %v5733 = vunpack.c.l.b16 %v5701
    %v5734 = vunpack.c.l.b16 %v5702
    %v5735 = vunpack.c.l.b16 %v5703
    %v5736 = vunpack.c.l.b16 %v5704
    %v5737 = vunpack.c.l.b16 %v5705
    %v5738 = vunpack.c.l.b16 %v5706
    %v5739 = vunpack.c.l.b16 %v5707
    %v5740 = vunpack.c.l.b16 %v5708
    %v5741 = vunpack.c.l.b16 %v5709
    %v5742 = vunpack.c.l.b16 %v5710
    %v5743 = vpack.c.b16 %v5728, %v5727
    %v5744 = vpack.c.b16 %v5730, %v5729
    %v5745 = vpack.c.b16 %v5732, %v5731
    %v5746 = vpack.c.b16 %v5734, %v5733
    %v5747 = vpack.c.b16 %v5736, %v5735
    %v5748 = vpack.c.b16 %v5738, %v5737
    %v5749 = vpack.c.b16 %v5740, %v5739
    %v5750 = vpack.c.b16 %v5742, %v5741
    %5759 = vmatpush.bf16.msra.mxu0 %v5750
    %5760 = vmatpush.bf16.msra.mxu0 %v5749
    %5761 = vmatpush.bf16.msra.mxu0 %v5748
    %5762 = vmatpush.bf16.msra.mxu0 %v5747
    %5763 = vmatpush.bf16.msra.mxu0 %v5746
    %5764 = vmatpush.bf16.msra.mxu0 %v5745
    %5765 = vmatpush.bf16.msra.mxu0 %v5744
    %5766 = vmatpush.bf16.msra.mxu0 %v5743
    %5767 = vmatmul.bf16.gmra.mxu0 %v5378
    %v5768 = vpop.f32.mrf.mxu0
    %v5769 = vadd.f32 0.0, %v5768
    %v5770 = vpop.f32.mrf.mxu0
    %v5771 = vadd.f32 0.0, %v5770
    %5772 = vdwg.mxu0
    %s5773 = scalar_lea.vmem [#allocation4], 320
    %v5774 = vld [vmem:[%s5773] sm:$0xf]
    %v5775 = vld [vmem:[%s5773 + $0x4] sm:$0xf]
    %v5776 = vld [vmem:[%s5773 + $0x8] sm:$0xf]
    %v5777 = vld [vmem:[%s5773 + $0xc] sm:$0xf]
    %v5778 = vld [vmem:[%s5773 + $0x10] sm:$0xf]
    %v5779 = vld [vmem:[%s5773 + $0x14] sm:$0xf]
    %v5780 = vld [vmem:[%s5773 + $0x18] sm:$0xf]
    %v5781 = vld [vmem:[%s5773 + $0x1c] sm:$0xf]
    %v5782 = vld [vmem:[%s5773 + $0x20] sm:$0xf]
    %v5783 = vld [vmem:[%s5773 + $0x24] sm:$0xf]
    %v5784 = vld [vmem:[%s5773 + $0x28] sm:$0xf]
    %v5785 = vld [vmem:[%s5773 + $0x2c] sm:$0xf]
    %v5786 = vld [vmem:[%s5773 + $0x30] sm:$0xf]
    %v5787 = vld [vmem:[%s5773 + $0x34] sm:$0xf]
    %v5788 = vld [vmem:[%s5773 + $0x38] sm:$0xf]
    %v5789 = vld [vmem:[%s5773 + $0x3c] sm:$0xf]
    %v5806 = vunpack.c.l.b16 %v5774
    %v5807 = vunpack.c.l.b16 %v5775
    %v5808 = vunpack.c.l.b16 %v5776
    %v5809 = vunpack.c.l.b16 %v5777
    %v5810 = vunpack.c.l.b16 %v5778
    %v5811 = vunpack.c.l.b16 %v5779
    %v5812 = vunpack.c.l.b16 %v5780
    %v5813 = vunpack.c.l.b16 %v5781
    %v5814 = vunpack.c.l.b16 %v5782
    %v5815 = vunpack.c.l.b16 %v5783
    %v5816 = vunpack.c.l.b16 %v5784
    %v5817 = vunpack.c.l.b16 %v5785
    %v5818 = vunpack.c.l.b16 %v5786
    %v5819 = vunpack.c.l.b16 %v5787
    %v5820 = vunpack.c.l.b16 %v5788
    %v5821 = vunpack.c.l.b16 %v5789
    %v5822 = vpack.c.b16 %v5807, %v5806
    %v5823 = vpack.c.b16 %v5809, %v5808
    %v5824 = vpack.c.b16 %v5811, %v5810
    %v5825 = vpack.c.b16 %v5813, %v5812
    %v5826 = vpack.c.b16 %v5815, %v5814
    %v5827 = vpack.c.b16 %v5817, %v5816
    %v5828 = vpack.c.b16 %v5819, %v5818
    %v5829 = vpack.c.b16 %v5821, %v5820
    %5838 = vmatpush.bf16.msra.mxu0 %v5829
    %5839 = vmatpush.bf16.msra.mxu0 %v5828
    %5840 = vmatpush.bf16.msra.mxu0 %v5827
    %5841 = vmatpush.bf16.msra.mxu0 %v5826
    %5842 = vmatpush.bf16.msra.mxu0 %v5825
    %5843 = vmatpush.bf16.msra.mxu0 %v5824
    %5844 = vmatpush.bf16.msra.mxu0 %v5823
    %5845 = vmatpush.bf16.msra.mxu0 %v5822
    %5846 = vmatmul.bf16.gmra.mxu0 %v5378
    %v5847 = vpop.f32.mrf.mxu0
    %v5848 = vadd.f32 0.0, %v5847
    %v5849 = vpop.f32.mrf.mxu0
    %v5850 = vadd.f32 0.0, %v5849
    %5851 = vdwg.mxu0
    %s5852 = scalar_lea.vmem [#allocation4], 384
    %v5853 = vld [vmem:[%s5852] sm:$0xf]
    %v5854 = vld [vmem:[%s5852 + $0x4] sm:$0xf]
    %v5855 = vld [vmem:[%s5852 + $0x8] sm:$0xf]
    %v5856 = vld [vmem:[%s5852 + $0xc] sm:$0xf]
    %v5857 = vld [vmem:[%s5852 + $0x10] sm:$0xf]
    %v5858 = vld [vmem:[%s5852 + $0x14] sm:$0xf]
    %v5859 = vld [vmem:[%s5852 + $0x18] sm:$0xf]
    %v5860 = vld [vmem:[%s5852 + $0x1c] sm:$0xf]
    %v5861 = vld [vmem:[%s5852 + $0x20] sm:$0xf]
    %v5862 = vld [vmem:[%s5852 + $0x24] sm:$0xf]
    %v5863 = vld [vmem:[%s5852 + $0x28] sm:$0xf]
    %v5864 = vld [vmem:[%s5852 + $0x2c] sm:$0xf]
    %v5865 = vld [vmem:[%s5852 + $0x30] sm:$0xf]
    %v5866 = vld [vmem:[%s5852 + $0x34] sm:$0xf]
    %v5867 = vld [vmem:[%s5852 + $0x38] sm:$0xf]
    %v5868 = vld [vmem:[%s5852 + $0x3c] sm:$0xf]
    %v5885 = vunpack.c.l.b16 %v5853
    %v5886 = vunpack.c.l.b16 %v5854
    %v5887 = vunpack.c.l.b16 %v5855
    %v5888 = vunpack.c.l.b16 %v5856
    %v5889 = vunpack.c.l.b16 %v5857
    %v5890 = vunpack.c.l.b16 %v5858
    %v5891 = vunpack.c.l.b16 %v5859
    %v5892 = vunpack.c.l.b16 %v5860
    %v5893 = vunpack.c.l.b16 %v5861
    %v5894 = vunpack.c.l.b16 %v5862
    %v5895 = vunpack.c.l.b16 %v5863
    %v5896 = vunpack.c.l.b16 %v5864
    %v5897 = vunpack.c.l.b16 %v5865
    %v5898 = vunpack.c.l.b16 %v5866
    %v5899 = vunpack.c.l.b16 %v5867
    %v5900 = vunpack.c.l.b16 %v5868
    %v5901 = vpack.c.b16 %v5886, %v5885
    %v5902 = vpack.c.b16 %v5888, %v5887
    %v5903 = vpack.c.b16 %v5890, %v5889
    %v5904 = vpack.c.b16 %v5892, %v5891
    %v5905 = vpack.c.b16 %v5894, %v5893
    %v5906 = vpack.c.b16 %v5896, %v5895
    %v5907 = vpack.c.b16 %v5898, %v5897
    %v5908 = vpack.c.b16 %v5900, %v5899
    %5917 = vmatpush.bf16.msra.mxu0 %v5908
    %5918 = vmatpush.bf16.msra.mxu0 %v5907
    %5919 = vmatpush.bf16.msra.mxu0 %v5906
    %5920 = vmatpush.bf16.msra.mxu0 %v5905
    %5921 = vmatpush.bf16.msra.mxu0 %v5904
    %5922 = vmatpush.bf16.msra.mxu0 %v5903
    %5923 = vmatpush.bf16.msra.mxu0 %v5902
    %5924 = vmatpush.bf16.msra.mxu0 %v5901
    %5925 = vmatmul.bf16.gmra.mxu0 %v5378
    %v5926 = vpop.f32.mrf.mxu0
    %v5927 = vadd.f32 0.0, %v5926
    %v5928 = vpop.f32.mrf.mxu0
    %v5929 = vadd.f32 0.0, %v5928
    %5930 = vdwg.mxu0
    %s5931 = scalar_lea.vmem [#allocation4], 448
    %v5932 = vld [vmem:[%s5931] sm:$0xf]
    %v5933 = vld [vmem:[%s5931 + $0x4] sm:$0xf]
    %v5934 = vld [vmem:[%s5931 + $0x8] sm:$0xf]
    %v5935 = vld [vmem:[%s5931 + $0xc] sm:$0xf]
    %v5936 = vld [vmem:[%s5931 + $0x10] sm:$0xf]
    %v5937 = vld [vmem:[%s5931 + $0x14] sm:$0xf]
    %v5938 = vld [vmem:[%s5931 + $0x18] sm:$0xf]
    %v5939 = vld [vmem:[%s5931 + $0x1c] sm:$0xf]
    %v5940 = vld [vmem:[%s5931 + $0x20] sm:$0xf]
    %v5941 = vld [vmem:[%s5931 + $0x24] sm:$0xf]
    %v5942 = vld [vmem:[%s5931 + $0x28] sm:$0xf]
    %v5943 = vld [vmem:[%s5931 + $0x2c] sm:$0xf]
    %v5944 = vld [vmem:[%s5931 + $0x30] sm:$0xf]
    %v5945 = vld [vmem:[%s5931 + $0x34] sm:$0xf]
    %v5946 = vld [vmem:[%s5931 + $0x38] sm:$0xf]
    %v5947 = vld [vmem:[%s5931 + $0x3c] sm:$0xf]
    %v5964 = vunpack.c.l.b16 %v5932
    %v5965 = vunpack.c.l.b16 %v5933
    %v5966 = vunpack.c.l.b16 %v5934
    %v5967 = vunpack.c.l.b16 %v5935
    %v5968 = vunpack.c.l.b16 %v5936
    %v5969 = vunpack.c.l.b16 %v5937
    %v5970 = vunpack.c.l.b16 %v5938
    %v5971 = vunpack.c.l.b16 %v5939
    %v5972 = vunpack.c.l.b16 %v5940
    %v5973 = vunpack.c.l.b16 %v5941
    %v5974 = vunpack.c.l.b16 %v5942
    %v5975 = vunpack.c.l.b16 %v5943
    %v5976 = vunpack.c.l.b16 %v5944
    %v5977 = vunpack.c.l.b16 %v5945
    %v5978 = vunpack.c.l.b16 %v5946
    %v5979 = vunpack.c.l.b16 %v5947
    %v5980 = vpack.c.b16 %v5965, %v5964
    %v5981 = vpack.c.b16 %v5967, %v5966
    %v5982 = vpack.c.b16 %v5969, %v5968
    %v5983 = vpack.c.b16 %v5971, %v5970
    %v5984 = vpack.c.b16 %v5973, %v5972
    %v5985 = vpack.c.b16 %v5975, %v5974
    %v5986 = vpack.c.b16 %v5977, %v5976
    %v5987 = vpack.c.b16 %v5979, %v5978
    %5996 = vmatpush.bf16.msra.mxu0 %v5987
    %5997 = vmatpush.bf16.msra.mxu0 %v5986
    %5998 = vmatpush.bf16.msra.mxu0 %v5985
    %5999 = vmatpush.bf16.msra.mxu0 %v5984
    %6000 = vmatpush.bf16.msra.mxu0 %v5983
    %6001 = vmatpush.bf16.msra.mxu0 %v5982
    %6002 = vmatpush.bf16.msra.mxu0 %v5981
    %6003 = vmatpush.bf16.msra.mxu0 %v5980
    %6004 = vmatmul.bf16.gmra.mxu0 %v5378
    %v6005 = vpop.f32.mrf.mxu0
    %v6006 = vadd.f32 0.0, %v6005
    %v6007 = vpop.f32.mrf.mxu0
    %v6008 = vadd.f32 0.0, %v6007
    %6009 = vdwg.mxu0
    %s6010 = scalar_lea.vmem [#allocation4], 512
    %v6011 = vld [vmem:[%s6010] sm:$0xf]
    %v6012 = vld [vmem:[%s6010 + $0x4] sm:$0xf]
    %v6013 = vld [vmem:[%s6010 + $0x8] sm:$0xf]
    %v6014 = vld [vmem:[%s6010 + $0xc] sm:$0xf]
    %v6015 = vld [vmem:[%s6010 + $0x10] sm:$0xf]
    %v6016 = vld [vmem:[%s6010 + $0x14] sm:$0xf]
    %v6017 = vld [vmem:[%s6010 + $0x18] sm:$0xf]
    %v6018 = vld [vmem:[%s6010 + $0x1c] sm:$0xf]
    %v6019 = vld [vmem:[%s6010 + $0x20] sm:$0xf]
    %v6020 = vld [vmem:[%s6010 + $0x24] sm:$0xf]
    %v6021 = vld [vmem:[%s6010 + $0x28] sm:$0xf]
    %v6022 = vld [vmem:[%s6010 + $0x2c] sm:$0xf]
    %v6023 = vld [vmem:[%s6010 + $0x30] sm:$0xf]
    %v6024 = vld [vmem:[%s6010 + $0x34] sm:$0xf]
    %v6025 = vld [vmem:[%s6010 + $0x38] sm:$0xf]
    %v6026 = vld [vmem:[%s6010 + $0x3c] sm:$0xf]
    %v6043 = vunpack.c.l.b16 %v6011
    %v6044 = vunpack.c.l.b16 %v6012
    %v6045 = vunpack.c.l.b16 %v6013
    %v6046 = vunpack.c.l.b16 %v6014
    %v6047 = vunpack.c.l.b16 %v6015
    %v6048 = vunpack.c.l.b16 %v6016
    %v6049 = vunpack.c.l.b16 %v6017
    %v6050 = vunpack.c.l.b16 %v6018
    %v6051 = vunpack.c.l.b16 %v6019
    %v6052 = vunpack.c.l.b16 %v6020
    %v6053 = vunpack.c.l.b16 %v6021
    %v6054 = vunpack.c.l.b16 %v6022
    %v6055 = vunpack.c.l.b16 %v6023
    %v6056 = vunpack.c.l.b16 %v6024
    %v6057 = vunpack.c.l.b16 %v6025
    %v6058 = vunpack.c.l.b16 %v6026
    %v6059 = vpack.c.b16 %v6044, %v6043
    %v6060 = vpack.c.b16 %v6046, %v6045
    %v6061 = vpack.c.b16 %v6048, %v6047
    %v6062 = vpack.c.b16 %v6050, %v6049
    %v6063 = vpack.c.b16 %v6052, %v6051
    %v6064 = vpack.c.b16 %v6054, %v6053
    %v6065 = vpack.c.b16 %v6056, %v6055
    %v6066 = vpack.c.b16 %v6058, %v6057
    %6075 = vmatpush.bf16.msra.mxu0 %v6066
    %6076 = vmatpush.bf16.msra.mxu0 %v6065
    %6077 = vmatpush.bf16.msra.mxu0 %v6064
    %6078 = vmatpush.bf16.msra.mxu0 %v6063
    %6079 = vmatpush.bf16.msra.mxu0 %v6062
    %6080 = vmatpush.bf16.msra.mxu0 %v6061
    %6081 = vmatpush.bf16.msra.mxu0 %v6060
    %6082 = vmatpush.bf16.msra.mxu0 %v6059
    %6083 = vmatmul.bf16.gmra.mxu0 %v5378
    %v6084 = vpop.f32.mrf.mxu0
    %v6085 = vadd.f32 0.0, %v6084
    %v6086 = vpop.f32.mrf.mxu0
    %v6087 = vadd.f32 0.0, %v6086
    %6088 = vdwg.mxu0
    %s6089 = scalar_lea.vmem [#allocation4], 576
    %v6090 = vld [vmem:[%s6089] sm:$0xf]
    %v6091 = vld [vmem:[%s6089 + $0x4] sm:$0xf]
    %v6092 = vld [vmem:[%s6089 + $0x8] sm:$0xf]
    %v6093 = vld [vmem:[%s6089 + $0xc] sm:$0xf]
    %v6094 = vld [vmem:[%s6089 + $0x10] sm:$0xf]
    %v6095 = vld [vmem:[%s6089 + $0x14] sm:$0xf]
    %v6096 = vld [vmem:[%s6089 + $0x18] sm:$0xf]
    %v6097 = vld [vmem:[%s6089 + $0x1c] sm:$0xf]
    %v6098 = vld [vmem:[%s6089 + $0x20] sm:$0xf]
    %v6099 = vld [vmem:[%s6089 + $0x24] sm:$0xf]
    %v6100 = vld [vmem:[%s6089 + $0x28] sm:$0xf]
    %v6101 = vld [vmem:[%s6089 + $0x2c] sm:$0xf]
    %v6102 = vld [vmem:[%s6089 + $0x30] sm:$0xf]
    %v6103 = vld [vmem:[%s6089 + $0x34] sm:$0xf]
    %v6104 = vld [vmem:[%s6089 + $0x38] sm:$0xf]
    %v6105 = vld [vmem:[%s6089 + $0x3c] sm:$0xf]
    %v6122 = vunpack.c.l.b16 %v6090
    %v6123 = vunpack.c.l.b16 %v6091
    %v6124 = vunpack.c.l.b16 %v6092
    %v6125 = vunpack.c.l.b16 %v6093
    %v6126 = vunpack.c.l.b16 %v6094
    %v6127 = vunpack.c.l.b16 %v6095
    %v6128 = vunpack.c.l.b16 %v6096
    %v6129 = vunpack.c.l.b16 %v6097
    %v6130 = vunpack.c.l.b16 %v6098
    %v6131 = vunpack.c.l.b16 %v6099
    %v6132 = vunpack.c.l.b16 %v6100
    %v6133 = vunpack.c.l.b16 %v6101
    %v6134 = vunpack.c.l.b16 %v6102
    %v6135 = vunpack.c.l.b16 %v6103
    %v6136 = vunpack.c.l.b16 %v6104
    %v6137 = vunpack.c.l.b16 %v6105
    %v6138 = vpack.c.b16 %v6123, %v6122
    %v6139 = vpack.c.b16 %v6125, %v6124
    %v6140 = vpack.c.b16 %v6127, %v6126
    %v6141 = vpack.c.b16 %v6129, %v6128
    %v6142 = vpack.c.b16 %v6131, %v6130
    %v6143 = vpack.c.b16 %v6133, %v6132
    %v6144 = vpack.c.b16 %v6135, %v6134
    %v6145 = vpack.c.b16 %v6137, %v6136
    %6154 = vmatpush.bf16.msra.mxu0 %v6145
    %6155 = vmatpush.bf16.msra.mxu0 %v6144
    %6156 = vmatpush.bf16.msra.mxu0 %v6143
    %6157 = vmatpush.bf16.msra.mxu0 %v6142
    %6158 = vmatpush.bf16.msra.mxu0 %v6141
    %6159 = vmatpush.bf16.msra.mxu0 %v6140
    %6160 = vmatpush.bf16.msra.mxu0 %v6139
    %6161 = vmatpush.bf16.msra.mxu0 %v6138
    %6162 = vmatmul.bf16.gmra.mxu0 %v5378
    %v6163 = vpop.f32.mrf.mxu0
    %v6164 = vadd.f32 0.0, %v6163
    %v6165 = vpop.f32.mrf.mxu0
    %v6166 = vadd.f32 0.0, %v6165
    %6167 = vdwg.mxu0
    %s6168 = scalar_lea.vmem [#allocation4], 640
    %v6169 = vld [vmem:[%s6168] sm:$0xf]
    %v6170 = vld [vmem:[%s6168 + $0x4] sm:$0xf]
    %v6171 = vld [vmem:[%s6168 + $0x8] sm:$0xf]
    %v6172 = vld [vmem:[%s6168 + $0xc] sm:$0xf]
    %v6173 = vld [vmem:[%s6168 + $0x10] sm:$0xf]
    %v6174 = vld [vmem:[%s6168 + $0x14] sm:$0xf]
    %v6175 = vld [vmem:[%s6168 + $0x18] sm:$0xf]
    %v6176 = vld [vmem:[%s6168 + $0x1c] sm:$0xf]
    %v6177 = vld [vmem:[%s6168 + $0x20] sm:$0xf]
    %v6178 = vld [vmem:[%s6168 + $0x24] sm:$0xf]
    %v6179 = vld [vmem:[%s6168 + $0x28] sm:$0xf]
    %v6180 = vld [vmem:[%s6168 + $0x2c] sm:$0xf]
    %v6181 = vld [vmem:[%s6168 + $0x30] sm:$0xf]
    %v6182 = vld [vmem:[%s6168 + $0x34] sm:$0xf]
    %v6183 = vld [vmem:[%s6168 + $0x38] sm:$0xf]
    %v6184 = vld [vmem:[%s6168 + $0x3c] sm:$0xf]
    %v6201 = vunpack.c.l.b16 %v6169
    %v6202 = vunpack.c.l.b16 %v6170
    %v6203 = vunpack.c.l.b16 %v6171
    %v6204 = vunpack.c.l.b16 %v6172
    %v6205 = vunpack.c.l.b16 %v6173
    %v6206 = vunpack.c.l.b16 %v6174
    %v6207 = vunpack.c.l.b16 %v6175
    %v6208 = vunpack.c.l.b16 %v6176
    %v6209 = vunpack.c.l.b16 %v6177
    %v6210 = vunpack.c.l.b16 %v6178
    %v6211 = vunpack.c.l.b16 %v6179
    %v6212 = vunpack.c.l.b16 %v6180
    %v6213 = vunpack.c.l.b16 %v6181
    %v6214 = vunpack.c.l.b16 %v6182
    %v6215 = vunpack.c.l.b16 %v6183
    %v6216 = vunpack.c.l.b16 %v6184
    %v6217 = vpack.c.b16 %v6202, %v6201
    %v6218 = vpack.c.b16 %v6204, %v6203
    %v6219 = vpack.c.b16 %v6206, %v6205
    %v6220 = vpack.c.b16 %v6208, %v6207
    %v6221 = vpack.c.b16 %v6210, %v6209
    %v6222 = vpack.c.b16 %v6212, %v6211
    %v6223 = vpack.c.b16 %v6214, %v6213
    %v6224 = vpack.c.b16 %v6216, %v6215
    %6233 = vmatpush.bf16.msra.mxu0 %v6224
    %6234 = vmatpush.bf16.msra.mxu0 %v6223
    %6235 = vmatpush.bf16.msra.mxu0 %v6222
    %6236 = vmatpush.bf16.msra.mxu0 %v6221
    %6237 = vmatpush.bf16.msra.mxu0 %v6220
    %6238 = vmatpush.bf16.msra.mxu0 %v6219
    %6239 = vmatpush.bf16.msra.mxu0 %v6218
    %6240 = vmatpush.bf16.msra.mxu0 %v6217
    %6241 = vmatmul.bf16.gmra.mxu0 %v5378
    %v6242 = vpop.f32.mrf.mxu0
    %v6243 = vadd.f32 0.0, %v6242
    %v6244 = vpop.f32.mrf.mxu0
    %v6245 = vadd.f32 0.0, %v6244
    %6246 = vdwg.mxu0
    %s6247 = scalar_lea.vmem [#allocation4], 704
    %v6248 = vld [vmem:[%s6247] sm:$0xf]
    %v6249 = vld [vmem:[%s6247 + $0x4] sm:$0xf]
    %v6250 = vld [vmem:[%s6247 + $0x8] sm:$0xf]
    %v6251 = vld [vmem:[%s6247 + $0xc] sm:$0xf]
    %v6252 = vld [vmem:[%s6247 + $0x10] sm:$0xf]
    %v6253 = vld [vmem:[%s6247 + $0x14] sm:$0xf]
    %v6254 = vld [vmem:[%s6247 + $0x18] sm:$0xf]
    %v6255 = vld [vmem:[%s6247 + $0x1c] sm:$0xf]
    %v6256 = vld [vmem:[%s6247 + $0x20] sm:$0xf]
    %v6257 = vld [vmem:[%s6247 + $0x24] sm:$0xf]
    %v6258 = vld [vmem:[%s6247 + $0x28] sm:$0xf]
    %v6259 = vld [vmem:[%s6247 + $0x2c] sm:$0xf]
    %v6260 = vld [vmem:[%s6247 + $0x30] sm:$0xf]
    %v6261 = vld [vmem:[%s6247 + $0x34] sm:$0xf]
    %v6262 = vld [vmem:[%s6247 + $0x38] sm:$0xf]
    %v6263 = vld [vmem:[%s6247 + $0x3c] sm:$0xf]
    %v6280 = vunpack.c.l.b16 %v6248
    %v6281 = vunpack.c.l.b16 %v6249
    %v6282 = vunpack.c.l.b16 %v6250
    %v6283 = vunpack.c.l.b16 %v6251
    %v6284 = vunpack.c.l.b16 %v6252
    %v6285 = vunpack.c.l.b16 %v6253
    %v6286 = vunpack.c.l.b16 %v6254
    %v6287 = vunpack.c.l.b16 %v6255
    %v6288 = vunpack.c.l.b16 %v6256
    %v6289 = vunpack.c.l.b16 %v6257
    %v6290 = vunpack.c.l.b16 %v6258
    %v6291 = vunpack.c.l.b16 %v6259
    %v6292 = vunpack.c.l.b16 %v6260
    %v6293 = vunpack.c.l.b16 %v6261
    %v6294 = vunpack.c.l.b16 %v6262
    %v6295 = vunpack.c.l.b16 %v6263
    %v6296 = vpack.c.b16 %v6281, %v6280
    %v6297 = vpack.c.b16 %v6283, %v6282
    %v6298 = vpack.c.b16 %v6285, %v6284
    %v6299 = vpack.c.b16 %v6287, %v6286
    %v6300 = vpack.c.b16 %v6289, %v6288
    %v6301 = vpack.c.b16 %v6291, %v6290
    %v6302 = vpack.c.b16 %v6293, %v6292
    %v6303 = vpack.c.b16 %v6295, %v6294
    %6312 = vmatpush.bf16.msra.mxu0 %v6303
    %6313 = vmatpush.bf16.msra.mxu0 %v6302
    %6314 = vmatpush.bf16.msra.mxu0 %v6301
    %6315 = vmatpush.bf16.msra.mxu0 %v6300
    %6316 = vmatpush.bf16.msra.mxu0 %v6299
    %6317 = vmatpush.bf16.msra.mxu0 %v6298
    %6318 = vmatpush.bf16.msra.mxu0 %v6297
    %6319 = vmatpush.bf16.msra.mxu0 %v6296
    %6320 = vmatmul.bf16.gmra.mxu0 %v5378
    %v6321 = vpop.f32.mrf.mxu0
    %v6322 = vadd.f32 0.0, %v6321
    %v6323 = vpop.f32.mrf.mxu0
    %v6324 = vadd.f32 0.0, %v6323
    %6325 = vdwg.mxu0
    %s6326 = scalar_lea.vmem [#allocation4], 768
    %v6327 = vld [vmem:[%s6326] sm:$0xf]
    %v6328 = vld [vmem:[%s6326 + $0x4] sm:$0xf]
    %v6329 = vld [vmem:[%s6326 + $0x8] sm:$0xf]
    %v6330 = vld [vmem:[%s6326 + $0xc] sm:$0xf]
    %v6331 = vld [vmem:[%s6326 + $0x10] sm:$0xf]
    %v6332 = vld [vmem:[%s6326 + $0x14] sm:$0xf]
    %v6333 = vld [vmem:[%s6326 + $0x18] sm:$0xf]
    %v6334 = vld [vmem:[%s6326 + $0x1c] sm:$0xf]
    %v6335 = vld [vmem:[%s6326 + $0x20] sm:$0xf]
    %v6336 = vld [vmem:[%s6326 + $0x24] sm:$0xf]
    %v6337 = vld [vmem:[%s6326 + $0x28] sm:$0xf]
    %v6338 = vld [vmem:[%s6326 + $0x2c] sm:$0xf]
    %v6339 = vld [vmem:[%s6326 + $0x30] sm:$0xf]
    %v6340 = vld [vmem:[%s6326 + $0x34] sm:$0xf]
    %v6341 = vld [vmem:[%s6326 + $0x38] sm:$0xf]
    %v6342 = vld [vmem:[%s6326 + $0x3c] sm:$0xf]
    %v6359 = vunpack.c.l.b16 %v6327
    %v6360 = vunpack.c.l.b16 %v6328
    %v6361 = vunpack.c.l.b16 %v6329
    %v6362 = vunpack.c.l.b16 %v6330
    %v6363 = vunpack.c.l.b16 %v6331
    %v6364 = vunpack.c.l.b16 %v6332
    %v6365 = vunpack.c.l.b16 %v6333
    %v6366 = vunpack.c.l.b16 %v6334
    %v6367 = vunpack.c.l.b16 %v6335
    %v6368 = vunpack.c.l.b16 %v6336
    %v6369 = vunpack.c.l.b16 %v6337
    %v6370 = vunpack.c.l.b16 %v6338
    %v6371 = vunpack.c.l.b16 %v6339
    %v6372 = vunpack.c.l.b16 %v6340
    %v6373 = vunpack.c.l.b16 %v6341
    %v6374 = vunpack.c.l.b16 %v6342
    %v6375 = vpack.c.b16 %v6360, %v6359
    %v6376 = vpack.c.b16 %v6362, %v6361
    %v6377 = vpack.c.b16 %v6364, %v6363
    %v6378 = vpack.c.b16 %v6366, %v6365
    %v6379 = vpack.c.b16 %v6368, %v6367
    %v6380 = vpack.c.b16 %v6370, %v6369
    %v6381 = vpack.c.b16 %v6372, %v6371
    %v6382 = vpack.c.b16 %v6374, %v6373
    %6391 = vmatpush.bf16.msra.mxu0 %v6382
    %6392 = vmatpush.bf16.msra.mxu0 %v6381
    %6393 = vmatpush.bf16.msra.mxu0 %v6380
    %6394 = vmatpush.bf16.msra.mxu0 %v6379
    %6395 = vmatpush.bf16.msra.mxu0 %v6378
    %6396 = vmatpush.bf16.msra.mxu0 %v6377
    %6397 = vmatpush.bf16.msra.mxu0 %v6376
    %6398 = vmatpush.bf16.msra.mxu0 %v6375
    %6399 = vmatmul.bf16.gmra.mxu0 %v5378
    %v6400 = vpop.f32.mrf.mxu0
    %v6401 = vadd.f32 0.0, %v6400
    %v6402 = vpop.f32.mrf.mxu0
    %v6403 = vadd.f32 0.0, %v6402
    %6404 = vdwg.mxu0
    %s6405 = scalar_lea.vmem [#allocation4], 832
    %v6406 = vld [vmem:[%s6405] sm:$0xf]
    %v6407 = vld [vmem:[%s6405 + $0x4] sm:$0xf]
    %v6408 = vld [vmem:[%s6405 + $0x8] sm:$0xf]
    %v6409 = vld [vmem:[%s6405 + $0xc] sm:$0xf]
    %v6410 = vld [vmem:[%s6405 + $0x10] sm:$0xf]
    %v6411 = vld [vmem:[%s6405 + $0x14] sm:$0xf]
    %v6412 = vld [vmem:[%s6405 + $0x18] sm:$0xf]
    %v6413 = vld [vmem:[%s6405 + $0x1c] sm:$0xf]
    %v6414 = vld [vmem:[%s6405 + $0x20] sm:$0xf]
    %v6415 = vld [vmem:[%s6405 + $0x24] sm:$0xf]
    %v6416 = vld [vmem:[%s6405 + $0x28] sm:$0xf]
    %v6417 = vld [vmem:[%s6405 + $0x2c] sm:$0xf]
    %v6418 = vld [vmem:[%s6405 + $0x30] sm:$0xf]
    %v6419 = vld [vmem:[%s6405 + $0x34] sm:$0xf]
    %v6420 = vld [vmem:[%s6405 + $0x38] sm:$0xf]
    %v6421 = vld [vmem:[%s6405 + $0x3c] sm:$0xf]
    %v6438 = vunpack.c.l.b16 %v6406
    %v6439 = vunpack.c.l.b16 %v6407
    %v6440 = vunpack.c.l.b16 %v6408
    %v6441 = vunpack.c.l.b16 %v6409
    %v6442 = vunpack.c.l.b16 %v6410
    %v6443 = vunpack.c.l.b16 %v6411
    %v6444 = vunpack.c.l.b16 %v6412
    %v6445 = vunpack.c.l.b16 %v6413
    %v6446 = vunpack.c.l.b16 %v6414
    %v6447 = vunpack.c.l.b16 %v6415
    %v6448 = vunpack.c.l.b16 %v6416
    %v6449 = vunpack.c.l.b16 %v6417
    %v6450 = vunpack.c.l.b16 %v6418
    %v6451 = vunpack.c.l.b16 %v6419
    %v6452 = vunpack.c.l.b16 %v6420
    %v6453 = vunpack.c.l.b16 %v6421
    %v6454 = vpack.c.b16 %v6439, %v6438
    %v6455 = vpack.c.b16 %v6441, %v6440
    %v6456 = vpack.c.b16 %v6443, %v6442
    %v6457 = vpack.c.b16 %v6445, %v6444
    %v6458 = vpack.c.b16 %v6447, %v6446
    %v6459 = vpack.c.b16 %v6449, %v6448
    %v6460 = vpack.c.b16 %v6451, %v6450
    %v6461 = vpack.c.b16 %v6453, %v6452
    %6470 = vmatpush.bf16.msra.mxu0 %v6461
    %6471 = vmatpush.bf16.msra.mxu0 %v6460
    %6472 = vmatpush.bf16.msra.mxu0 %v6459
    %6473 = vmatpush.bf16.msra.mxu0 %v6458
    %6474 = vmatpush.bf16.msra.mxu0 %v6457
    %6475 = vmatpush.bf16.msra.mxu0 %v6456
    %6476 = vmatpush.bf16.msra.mxu0 %v6455
    %6477 = vmatpush.bf16.msra.mxu0 %v6454
    %6478 = vmatmul.bf16.gmra.mxu0 %v5378
    %v6479 = vpop.f32.mrf.mxu0
    %v6480 = vadd.f32 0.0, %v6479
    %v6481 = vpop.f32.mrf.mxu0
    %v6482 = vadd.f32 0.0, %v6481
    %6483 = vdwg.mxu0
    %s6484 = scalar_lea.vmem [#allocation4], 896
    %v6485 = vld [vmem:[%s6484] sm:$0xf]
    %v6486 = vld [vmem:[%s6484 + $0x4] sm:$0xf]
    %v6487 = vld [vmem:[%s6484 + $0x8] sm:$0xf]
    %v6488 = vld [vmem:[%s6484 + $0xc] sm:$0xf]
    %v6489 = vld [vmem:[%s6484 + $0x10] sm:$0xf]
    %v6490 = vld [vmem:[%s6484 + $0x14] sm:$0xf]
    %v6491 = vld [vmem:[%s6484 + $0x18] sm:$0xf]
    %v6492 = vld [vmem:[%s6484 + $0x1c] sm:$0xf]
    %v6493 = vld [vmem:[%s6484 + $0x20] sm:$0xf]
    %v6494 = vld [vmem:[%s6484 + $0x24] sm:$0xf]
    %v6495 = vld [vmem:[%s6484 + $0x28] sm:$0xf]
    %v6496 = vld [vmem:[%s6484 + $0x2c] sm:$0xf]
    %v6497 = vld [vmem:[%s6484 + $0x30] sm:$0xf]
    %v6498 = vld [vmem:[%s6484 + $0x34] sm:$0xf]
    %v6499 = vld [vmem:[%s6484 + $0x38] sm:$0xf]
    %v6500 = vld [vmem:[%s6484 + $0x3c] sm:$0xf]
    %v6517 = vunpack.c.l.b16 %v6485
    %v6518 = vunpack.c.l.b16 %v6486
    %v6519 = vunpack.c.l.b16 %v6487
    %v6520 = vunpack.c.l.b16 %v6488
    %v6521 = vunpack.c.l.b16 %v6489
    %v6522 = vunpack.c.l.b16 %v6490
    %v6523 = vunpack.c.l.b16 %v6491
    %v6524 = vunpack.c.l.b16 %v6492
    %v6525 = vunpack.c.l.b16 %v6493
    %v6526 = vunpack.c.l.b16 %v6494
    %v6527 = vunpack.c.l.b16 %v6495
    %v6528 = vunpack.c.l.b16 %v6496
    %v6529 = vunpack.c.l.b16 %v6497
    %v6530 = vunpack.c.l.b16 %v6498
    %v6531 = vunpack.c.l.b16 %v6499
    %v6532 = vunpack.c.l.b16 %v6500
    %v6533 = vpack.c.b16 %v6518, %v6517
    %v6534 = vpack.c.b16 %v6520, %v6519
    %v6535 = vpack.c.b16 %v6522, %v6521
    %v6536 = vpack.c.b16 %v6524, %v6523
    %v6537 = vpack.c.b16 %v6526, %v6525
    %v6538 = vpack.c.b16 %v6528, %v6527
    %v6539 = vpack.c.b16 %v6530, %v6529
    %v6540 = vpack.c.b16 %v6532, %v6531
    %6549 = vmatpush.bf16.msra.mxu0 %v6540
    %6550 = vmatpush.bf16.msra.mxu0 %v6539
    %6551 = vmatpush.bf16.msra.mxu0 %v6538
    %6552 = vmatpush.bf16.msra.mxu0 %v6537
    %6553 = vmatpush.bf16.msra.mxu0 %v6536
    %6554 = vmatpush.bf16.msra.mxu0 %v6535
    %6555 = vmatpush.bf16.msra.mxu0 %v6534
    %6556 = vmatpush.bf16.msra.mxu0 %v6533
    %6557 = vmatmul.bf16.gmra.mxu0 %v5378
    %v6558 = vpop.f32.mrf.mxu0
    %v6559 = vadd.f32 0.0, %v6558
    %v6560 = vpop.f32.mrf.mxu0
    %v6561 = vadd.f32 0.0, %v6560
    %6562 = vdwg.mxu0
    %s6563 = scalar_lea.vmem [#allocation4], 960
    %v6564 = vld [vmem:[%s6563] sm:$0xf]
    %v6565 = vld [vmem:[%s6563 + $0x4] sm:$0xf]
    %v6566 = vld [vmem:[%s6563 + $0x8] sm:$0xf]
    %v6567 = vld [vmem:[%s6563 + $0xc] sm:$0xf]
    %v6568 = vld [vmem:[%s6563 + $0x10] sm:$0xf]
    %v6569 = vld [vmem:[%s6563 + $0x14] sm:$0xf]
    %v6570 = vld [vmem:[%s6563 + $0x18] sm:$0xf]
    %v6571 = vld [vmem:[%s6563 + $0x1c] sm:$0xf]
    %v6572 = vld [vmem:[%s6563 + $0x20] sm:$0xf]
    %v6573 = vld [vmem:[%s6563 + $0x24] sm:$0xf]
    %v6574 = vld [vmem:[%s6563 + $0x28] sm:$0xf]
    %v6575 = vld [vmem:[%s6563 + $0x2c] sm:$0xf]
    %v6576 = vld [vmem:[%s6563 + $0x30] sm:$0xf]
    %v6577 = vld [vmem:[%s6563 + $0x34] sm:$0xf]
    %v6578 = vld [vmem:[%s6563 + $0x38] sm:$0xf]
    %v6579 = vld [vmem:[%s6563 + $0x3c] sm:$0xf]
    %v6596 = vunpack.c.l.b16 %v6564
    %v6597 = vunpack.c.l.b16 %v6565
    %v6598 = vunpack.c.l.b16 %v6566
    %v6599 = vunpack.c.l.b16 %v6567
    %v6600 = vunpack.c.l.b16 %v6568
    %v6601 = vunpack.c.l.b16 %v6569
    %v6602 = vunpack.c.l.b16 %v6570
    %v6603 = vunpack.c.l.b16 %v6571
    %v6604 = vunpack.c.l.b16 %v6572
    %v6605 = vunpack.c.l.b16 %v6573
    %v6606 = vunpack.c.l.b16 %v6574
    %v6607 = vunpack.c.l.b16 %v6575
    %v6608 = vunpack.c.l.b16 %v6576
    %v6609 = vunpack.c.l.b16 %v6577
    %v6610 = vunpack.c.l.b16 %v6578
    %v6611 = vunpack.c.l.b16 %v6579
    %v6612 = vpack.c.b16 %v6597, %v6596
    %v6613 = vpack.c.b16 %v6599, %v6598
    %v6614 = vpack.c.b16 %v6601, %v6600
    %v6615 = vpack.c.b16 %v6603, %v6602
    %v6616 = vpack.c.b16 %v6605, %v6604
    %v6617 = vpack.c.b16 %v6607, %v6606
    %v6618 = vpack.c.b16 %v6609, %v6608
    %v6619 = vpack.c.b16 %v6611, %v6610
    %6628 = vmatpush.bf16.msra.mxu0 %v6619
    %6629 = vmatpush.bf16.msra.mxu0 %v6618
    %6630 = vmatpush.bf16.msra.mxu0 %v6617
    %6631 = vmatpush.bf16.msra.mxu0 %v6616
    %6632 = vmatpush.bf16.msra.mxu0 %v6615
    %6633 = vmatpush.bf16.msra.mxu0 %v6614
    %6634 = vmatpush.bf16.msra.mxu0 %v6613
    %6635 = vmatpush.bf16.msra.mxu0 %v6612
    %6636 = vmatmul.bf16.gmra.mxu0 %v5378
    %v6637 = vpop.f32.mrf.mxu0
    %v6638 = vadd.f32 0.0, %v6637
    %v6639 = vpop.f32.mrf.mxu0
    %v6640 = vadd.f32 0.0, %v6639
    %6641 = vdwg.mxu0
    %v6642 = vpack.c.bf16 %v5455, %v5453
    %v6643 = vpack.c.bf16 %v5534, %v5532
    %v6644 = vpack.c.bf16 %v5613, %v5611
    %v6645 = vpack.c.bf16 %v5692, %v5690
    %v6646 = vpack.c.bf16 %v5771, %v5769
    %v6647 = vpack.c.bf16 %v5850, %v5848
    %v6648 = vpack.c.bf16 %v5929, %v5927
    %v6649 = vpack.c.bf16 %v6008, %v6006
    %v6650 = vpack.c.bf16 %v6087, %v6085
    %v6651 = vpack.c.bf16 %v6166, %v6164
    %v6652 = vpack.c.bf16 %v6245, %v6243
    %v6653 = vpack.c.bf16 %v6324, %v6322
    %v6654 = vpack.c.bf16 %v6403, %v6401
    %v6655 = vpack.c.bf16 %v6482, %v6480
    %v6656 = vpack.c.bf16 %v6561, %v6559
    %v6657 = vpack.c.bf16 %v6640, %v6638
    %v6658 = vld [vmem:[%s7] sm:$0xff]
    %v6659 = vld [vmem:[%s7 + $0x8] sm:$0xff]
    %v6660 = vld [vmem:[%s7 + $0x10] sm:$0xff]
    %v6661 = vld [vmem:[%s7 + $0x18] sm:$0xff]
    %v6662 = vld [vmem:[%s8] sm:$0xff]
    %v6663 = vld [vmem:[%s8 + $0x8] sm:$0xff]
    %v6664 = vld [vmem:[%s8 + $0x10] sm:$0xff]
    %v6665 = vld [vmem:[%s8 + $0x18] sm:$0xff]
    %6667 = vset.pattern.permute.xlu0 0
    %6668 = vperm.xlu0 %6667, %v6662
    %v6669 = vpop.permute.xlu0 %6668
    %6672 = vset.pattern.permute.xlu0 0
    %6673 = vperm.xlu0 %6672, %v6663
    %v6674 = vpop.permute.xlu0 %6673
    %6677 = vset.pattern.permute.xlu0 0
    %6678 = vperm.xlu0 %6677, %v6664
    %v6679 = vpop.permute.xlu0 %6678
    %6682 = vset.pattern.permute.xlu0 0
    %6683 = vperm.xlu0 %6682, %v6665
    %v6684 = vpop.permute.xlu0 %6683
    %v6690 = vunpack.c.l.b16 %v6658
    %v6691 = vunpack.c.h.b16 %v6658
    %v6692 = vunpack.c.l.b16 %v6659
    %v6693 = vunpack.c.h.b16 %v6659
    %v6694 = vunpack.c.l.b16 %v6660
    %v6695 = vunpack.c.h.b16 %v6660
    %v6696 = vunpack.c.l.b16 %v6661
    %v6697 = vunpack.c.h.b16 %v6661
    %v6698 = vpack.c.b16 %v6692, %v6690
    %v6699 = vpack.c.b16 %v6693, %v6691
    %v6700 = vpack.c.b16 %v6696, %v6694
    %v6701 = vpack.c.b16 %v6697, %v6695
    %6706 = vmatpush.bf16.msra.mxu0 %v6649
    %6707 = vmatpush.bf16.msra.mxu0 %v6648
    %6708 = vmatpush.bf16.msra.mxu0 %v6647
    %6709 = vmatpush.bf16.msra.mxu0 %v6646
    %6710 = vmatpush.bf16.msra.mxu0 %v6645
    %6711 = vmatpush.bf16.msra.mxu0 %v6644
    %6712 = vmatpush.bf16.msra.mxu0 %v6643
    %6713 = vmatpush.bf16.msra.mxu0 %v6642
    %6714 = vmatmul.bf16.gmra.mxu0 %v6698
    %v6715 = vpop.f32.mrf.mxu0
    %v6716 = vadd.f32 %v6669, %v6715
    %v6717 = vpop.f32.mrf.mxu0
    %v6718 = vadd.f32 %v6674, %v6717
    %6719 = vmatmul.bf16.gmra.mxu0 %v6700
    %v6720 = vpop.f32.mrf.mxu0
    %v6721 = vadd.f32 %v6679, %v6720
    %v6722 = vpop.f32.mrf.mxu0
    %v6723 = vadd.f32 %v6684, %v6722
    %6724 = vdwg.mxu0
    %6725 = vmatpush.bf16.msra.mxu0 %v6657
    %6726 = vmatpush.bf16.msra.mxu0 %v6656
    %6727 = vmatpush.bf16.msra.mxu0 %v6655
    %6728 = vmatpush.bf16.msra.mxu0 %v6654
    %6729 = vmatpush.bf16.msra.mxu0 %v6653
    %6730 = vmatpush.bf16.msra.mxu0 %v6652
    %6731 = vmatpush.bf16.msra.mxu0 %v6651
    %6732 = vmatpush.bf16.msra.mxu0 %v6650
    %6733 = vmatmul.bf16.gmra.mxu0 %v6699
    %v6734 = vpop.f32.mrf.mxu0
    %v6735 = vadd.f32 %v6716, %v6734
    %v6736 = vpop.f32.mrf.mxu0
    %v6737 = vadd.f32 %v6718, %v6736
    %6738 = vmatmul.bf16.gmra.mxu0 %v6701
    %v6739 = vpop.f32.mrf.mxu0
    %v6740 = vadd.f32 %v6721, %v6739
    %v6741 = vpop.f32.mrf.mxu0
    %v6742 = vadd.f32 %v6723, %v6741
    %6743 = vdwg.mxu0
    %vm6744 = vcmask 261120
    %v6745 = vsel %vm6744, %v6735, 0.0
    %6746 = vadd.xlane.f32.xlu0 %v6745
    %v6747 = vpop.xlane.xlu0 %6746
    %v6748 = vsel %vm6744, %v6737, 0.0
    %6749 = vadd.xlane.f32.xlu0 %v6748
    %v6750 = vpop.xlane.xlu0 %6749
    %v6751 = vsel %vm6744, %v6740, 0.0
    %6752 = vadd.xlane.f32.xlu0 %v6751
    %v6753 = vpop.xlane.xlu0 %6752
    %v6754 = vsel %vm6744, %v6742, 0.0
    %6755 = vadd.xlane.f32.xlu0 %v6754
    %v6756 = vpop.xlane.xlu0 %6755
    %v6757 = vrcp.pop 32.0
    %v6758 = vmul.f32 32.0, %v6757
    %v6759 = vsub.f32 1.0, %v6758
    %v6760 = vmul.f32 %v6757, %v6759
    %v6761 = vadd.f32 %v6757, %v6760
    %vm6762 = vweird.f32 %v6757
    %v6763 = vsel %vm6762, %v6757, %v6761
    %v6764 = vmul.f32 %v6747, %v6763
    %v6765 = vmul.f32 %v6750, %v6763
    %v6766 = vmul.f32 %v6753, %v6763
    %v6767 = vmul.f32 %v6756, %v6763
    %v6768 = vsub.f32 %v6735, %v6764
    %v6769 = vsub.f32 %v6737, %v6765
    %v6770 = vsub.f32 %v6740, %v6766
    %v6771 = vsub.f32 %v6742, %v6767
    %v6772 = vmul.f32 %v6768, %v6768
    %v6773 = vmul.f32 %v6769, %v6769
    %v6774 = vmul.f32 %v6770, %v6770
    %v6775 = vmul.f32 %v6771, %v6771
    %v6776 = vsel %vm6744, %v6772, 0.0
    %6777 = vadd.xlane.f32.xlu0 %v6776
    %v6778 = vpop.xlane.xlu0 %6777
    %v6779 = vsel %vm6744, %v6773, 0.0
    %6780 = vadd.xlane.f32.xlu0 %v6779
    %v6781 = vpop.xlane.xlu0 %6780
    %v6782 = vsel %vm6744, %v6774, 0.0
    %6783 = vadd.xlane.f32.xlu0 %v6782
    %v6784 = vpop.xlane.xlu0 %6783
    %v6785 = vsel %vm6744, %v6775, 0.0
    %6786 = vadd.xlane.f32.xlu0 %v6785
    %v6787 = vpop.xlane.xlu0 %6786
    %v6788 = vmul.f32 %v6778, %v6763
    %v6789 = vmul.f32 %v6781, %v6763
    %v6790 = vmul.f32 %v6784, %v6763
    %v6791 = vmul.f32 %v6787, %v6763
    %v6792 = vld [vmem:[%s9] sm:$0xff]
    %v6793 = vld [vmem:[%s9 + $0x8] sm:$0xff]
    %v6794 = vld [vmem:[%s9 + $0x10] sm:$0xff]
    %v6795 = vld [vmem:[%s9 + $0x18] sm:$0xff]
    %v6796 = vadd.f32 %v6788, 1e-05
    %v6797 = vadd.f32 %v6789, 1e-05
    %v6798 = vadd.f32 %v6790, 1e-05
    %v6799 = vadd.f32 %v6791, 1e-05
    %v6800 = vrsqrt.pop %v6796
    %v6801 = vmul.f32 %v6800, %v6796
    %v6802 = vmul.f32 %v6801, %v6800
    %v6803 = vmul.f32 0.5, %v6802
    %v6804 = vsub.f32 1.5, %v6803
    %v6805 = vmul.f32 %v6800, %v6804
    %vm6806 = vweird.f32 %v6796
    %vm6807 = vweird.f32 %v6800
    %vm6808 = vmor %vm6806, %vm6807
    %v6809 = vsel %vm6808, %v6800, %v6805
    %v6810 = vrsqrt.pop %v6797
    %v6811 = vmul.f32 %v6810, %v6797
    %v6812 = vmul.f32 %v6811, %v6810
    %v6813 = vmul.f32 0.5, %v6812
    %v6814 = vsub.f32 1.5, %v6813
    %v6815 = vmul.f32 %v6810, %v6814
    %vm6816 = vweird.f32 %v6797
    %vm6817 = vweird.f32 %v6810
    %vm6818 = vmor %vm6816, %vm6817
    %v6819 = vsel %vm6818, %v6810, %v6815
    %v6820 = vrsqrt.pop %v6798
    %v6821 = vmul.f32 %v6820, %v6798
    %v6822 = vmul.f32 %v6821, %v6820
    %v6823 = vmul.f32 0.5, %v6822
    %v6824 = vsub.f32 1.5, %v6823
    %v6825 = vmul.f32 %v6820, %v6824
    %vm6826 = vweird.f32 %v6798
    %vm6827 = vweird.f32 %v6820
    %vm6828 = vmor %vm6826, %vm6827
    %v6829 = vsel %vm6828, %v6820, %v6825
    %v6830 = vrsqrt.pop %v6799
    %v6831 = vmul.f32 %v6830, %v6799
    %v6832 = vmul.f32 %v6831, %v6830
    %v6833 = vmul.f32 0.5, %v6832
    %v6834 = vsub.f32 1.5, %v6833
    %v6835 = vmul.f32 %v6830, %v6834
    %vm6836 = vweird.f32 %v6799
    %vm6837 = vweird.f32 %v6830
    %vm6838 = vmor %vm6836, %vm6837
    %v6839 = vsel %vm6838, %v6830, %v6835
    %v6840 = vmul.f32 %v6792, %v6809
    %v6841 = vmul.f32 %v6793, %v6819
    %v6842 = vmul.f32 %v6794, %v6829
    %v6843 = vmul.f32 %v6795, %v6839
    %v6844 = vld [vmem:[%s10] sm:$0xff]
    %v6845 = vld [vmem:[%s10 + $0x8] sm:$0xff]
    %v6846 = vld [vmem:[%s10 + $0x10] sm:$0xff]
    %v6847 = vld [vmem:[%s10 + $0x18] sm:$0xff]
    %v6848 = vmul.f32 %v6764, %v6840
    %v6849 = vmul.f32 %v6765, %v6841
    %v6850 = vmul.f32 %v6766, %v6842
    %v6851 = vmul.f32 %v6767, %v6843
    %v6852 = vsub.f32 %v6844, %v6848
    %v6853 = vsub.f32 %v6845, %v6849
    %v6854 = vsub.f32 %v6846, %v6850
    %v6855 = vsub.f32 %v6847, %v6851
    %6857 = vset.pattern.permute.xlu0 0
    %6858 = vperm.xlu0 %6857, %v6840
    %v6859 = vpop.permute.xlu0 %6858
    %6862 = vset.pattern.permute.xlu0 0
    %6863 = vperm.xlu0 %6862, %v6841
    %v6864 = vpop.permute.xlu0 %6863
    %6867 = vset.pattern.permute.xlu0 0
    %6868 = vperm.xlu0 %6867, %v6842
    %v6869 = vpop.permute.xlu0 %6868
    %6872 = vset.pattern.permute.xlu0 0
    %6873 = vperm.xlu0 %6872, %v6843
    %v6874 = vpop.permute.xlu0 %6873
    %v6876 = vmul.f32 %v6735, %v6859
    %v6877 = vmul.f32 %v6737, %v6864
    %v6878 = vmul.f32 %v6740, %v6869
    %v6879 = vmul.f32 %v6742, %v6874
    %6881 = vset.pattern.permute.xlu0 0
    %6882 = vperm.xlu0 %6881, %v6852
    %v6883 = vpop.permute.xlu0 %6882
    %6886 = vset.pattern.permute.xlu0 0
    %6887 = vperm.xlu0 %6886, %v6853
    %v6888 = vpop.permute.xlu0 %6887
    %6891 = vset.pattern.permute.xlu0 0
    %6892 = vperm.xlu0 %6891, %v6854
    %v6893 = vpop.permute.xlu0 %6892
    %6896 = vset.pattern.permute.xlu0 0
    %6897 = vperm.xlu0 %6896, %v6855
    %v6898 = vpop.permute.xlu0 %6897
    %v6900 = vadd.f32 %v6876, %v6883
    %v6901 = vadd.f32 %v6877, %v6888
    %v6902 = vadd.f32 %v6878, %v6893
    %v6903 = vadd.f32 %v6879, %v6898
    %v6904 = vmax.f32 %v6900, 0.0
    %v6905 = vmax.f32 %v6901, 0.0
    %v6906 = vmax.f32 %v6902, 0.0
    %v6907 = vmax.f32 %v6903, 0.0
    %v6908 = vpack.c.bf16 %v6905, %v6904
    %v6909 = vpack.c.bf16 %v6907, %v6906
    %v6910 = vld [vmem:[#allocation6] sm:$0xf]
    %v6911 = vld [vmem:[#allocation6 + $0x4] sm:$0xf]
    %v6912 = vld [vmem:[#allocation6 + $0x8] sm:$0xf]
    %v6913 = vld [vmem:[#allocation6 + $0xc] sm:$0xf]
    %v6918 = vunpack.c.l.b16 %v6910
    %v6919 = vunpack.c.l.b16 %v6911
    %v6920 = vunpack.c.l.b16 %v6912
    %v6921 = vunpack.c.l.b16 %v6913
    %v6922 = vpack.c.b16 %v6919, %v6918
    %v6923 = vpack.c.b16 %v6921, %v6920
    %v6927 = vsel %vm6744, %v6908, 0
    %v6930 = vsel %vm6744, %v6909, 0
    %6932 = vmatpush.bf16.msra.mxu0 0
    %6933 = vmatpush.bf16.msra.mxu0 0
    %6934 = vmatpush.bf16.msra.mxu0 0
    %6935 = vmatpush.bf16.msra.mxu0 0
    %6936 = vmatpush.bf16.msra.mxu0 0
    %6937 = vmatpush.bf16.msra.mxu0 0
    %6938 = vmatpush.bf16.msra.mxu0 %v6923
    %6939 = vmatpush.bf16.msra.mxu0 %v6922
    %6940 = vmatmul.bf16.gmra.mxu0 %v6927
    %v6941 = vpop.f32.mrf.mxu0
    %v6942 = vadd.f32 0.0, %v6941
    %v6943 = vpop.f32.mrf.mxu0
    %v6944 = vadd.f32 0.0, %v6943
    %6945 = vmatmul.bf16.gmra.mxu0 %v6930
    %v6946 = vpop.f32.mrf.mxu0
    %v6947 = vadd.f32 0.0, %v6946
    %v6948 = vpop.f32.mrf.mxu0
    %v6949 = vadd.f32 0.0, %v6948
    %6950 = vdwg.mxu0
    %s6951 = scalar_lea.vmem [#allocation6], 16
    %v6952 = vld [vmem:[%s6951] sm:$0xf]
    %v6953 = vld [vmem:[%s6951 + $0x4] sm:$0xf]
    %v6954 = vld [vmem:[%s6951 + $0x8] sm:$0xf]
    %v6955 = vld [vmem:[%s6951 + $0xc] sm:$0xf]
    %v6960 = vunpack.c.l.b16 %v6952
    %v6961 = vunpack.c.l.b16 %v6953
    %v6962 = vunpack.c.l.b16 %v6954
    %v6963 = vunpack.c.l.b16 %v6955
    %v6964 = vpack.c.b16 %v6961, %v6960
    %v6965 = vpack.c.b16 %v6963, %v6962
    %6968 = vmatpush.bf16.msra.mxu0 0
    %6969 = vmatpush.bf16.msra.mxu0 0
    %6970 = vmatpush.bf16.msra.mxu0 0
    %6971 = vmatpush.bf16.msra.mxu0 0
    %6972 = vmatpush.bf16.msra.mxu0 0
    %6973 = vmatpush.bf16.msra.mxu0 0
    %6974 = vmatpush.bf16.msra.mxu0 %v6965
    %6975 = vmatpush.bf16.msra.mxu0 %v6964
    %6976 = vmatmul.bf16.gmra.mxu0 %v6927
    %v6977 = vpop.f32.mrf.mxu0
    %v6978 = vadd.f32 0.0, %v6977
    %v6979 = vpop.f32.mrf.mxu0
    %v6980 = vadd.f32 0.0, %v6979
    %6981 = vmatmul.bf16.gmra.mxu0 %v6930
    %v6982 = vpop.f32.mrf.mxu0
    %v6983 = vadd.f32 0.0, %v6982
    %v6984 = vpop.f32.mrf.mxu0
    %v6985 = vadd.f32 0.0, %v6984
    %6986 = vdwg.mxu0
    %s6987 = scalar_lea.vmem [#allocation6], 32
    %v6988 = vld [vmem:[%s6987] sm:$0xf]
    %v6989 = vld [vmem:[%s6987 + $0x4] sm:$0xf]
    %v6990 = vld [vmem:[%s6987 + $0x8] sm:$0xf]
    %v6991 = vld [vmem:[%s6987 + $0xc] sm:$0xf]
    %v6996 = vunpack.c.l.b16 %v6988
    %v6997 = vunpack.c.l.b16 %v6989
    %v6998 = vunpack.c.l.b16 %v6990
    %v6999 = vunpack.c.l.b16 %v6991
    %v7000 = vpack.c.b16 %v6997, %v6996
    %v7001 = vpack.c.b16 %v6999, %v6998
    %7004 = vmatpush.bf16.msra.mxu0 0
    %7005 = vmatpush.bf16.msra.mxu0 0
    %7006 = vmatpush.bf16.msra.mxu0 0
    %7007 = vmatpush.bf16.msra.mxu0 0
    %7008 = vmatpush.bf16.msra.mxu0 0
    %7009 = vmatpush.bf16.msra.mxu0 0
    %7010 = vmatpush.bf16.msra.mxu0 %v7001
    %7011 = vmatpush.bf16.msra.mxu0 %v7000
    %7012 = vmatmul.bf16.gmra.mxu0 %v6927
    %v7013 = vpop.f32.mrf.mxu0
    %v7014 = vadd.f32 0.0, %v7013
    %v7015 = vpop.f32.mrf.mxu0
    %v7016 = vadd.f32 0.0, %v7015
    %7017 = vmatmul.bf16.gmra.mxu0 %v6930
    %v7018 = vpop.f32.mrf.mxu0
    %v7019 = vadd.f32 0.0, %v7018
    %v7020 = vpop.f32.mrf.mxu0
    %v7021 = vadd.f32 0.0, %v7020
    %7022 = vdwg.mxu0
    %s7023 = scalar_lea.vmem [#allocation6], 48
    %v7024 = vld [vmem:[%s7023] sm:$0xf]
    %v7025 = vld [vmem:[%s7023 + $0x4] sm:$0xf]
    %v7026 = vld [vmem:[%s7023 + $0x8] sm:$0xf]
    %v7027 = vld [vmem:[%s7023 + $0xc] sm:$0xf]
    %v7032 = vunpack.c.l.b16 %v7024
    %v7033 = vunpack.c.l.b16 %v7025
    %v7034 = vunpack.c.l.b16 %v7026
    %v7035 = vunpack.c.l.b16 %v7027
    %v7036 = vpack.c.b16 %v7033, %v7032
    %v7037 = vpack.c.b16 %v7035, %v7034
    %7040 = vmatpush.bf16.msra.mxu0 0
    %7041 = vmatpush.bf16.msra.mxu0 0
    %7042 = vmatpush.bf16.msra.mxu0 0
    %7043 = vmatpush.bf16.msra.mxu0 0
    %7044 = vmatpush.bf16.msra.mxu0 0
    %7045 = vmatpush.bf16.msra.mxu0 0
    %7046 = vmatpush.bf16.msra.mxu0 %v7037
    %7047 = vmatpush.bf16.msra.mxu0 %v7036
    %7048 = vmatmul.bf16.gmra.mxu0 %v6927
    %v7049 = vpop.f32.mrf.mxu0
    %v7050 = vadd.f32 0.0, %v7049
    %v7051 = vpop.f32.mrf.mxu0
    %v7052 = vadd.f32 0.0, %v7051
    %7053 = vmatmul.bf16.gmra.mxu0 %v6930
    %v7054 = vpop.f32.mrf.mxu0
    %v7055 = vadd.f32 0.0, %v7054
    %v7056 = vpop.f32.mrf.mxu0
    %v7057 = vadd.f32 0.0, %v7056
    %7058 = vdwg.mxu0
    %s7059 = scalar_lea.vmem [#allocation6], 64
    %v7060 = vld [vmem:[%s7059] sm:$0xf]
    %v7061 = vld [vmem:[%s7059 + $0x4] sm:$0xf]
    %v7062 = vld [vmem:[%s7059 + $0x8] sm:$0xf]
    %v7063 = vld [vmem:[%s7059 + $0xc] sm:$0xf]
    %v7068 = vunpack.c.l.b16 %v7060
    %v7069 = vunpack.c.l.b16 %v7061
    %v7070 = vunpack.c.l.b16 %v7062
    %v7071 = vunpack.c.l.b16 %v7063
    %v7072 = vpack.c.b16 %v7069, %v7068
    %v7073 = vpack.c.b16 %v7071, %v7070
    %7076 = vmatpush.bf16.msra.mxu0 0
    %7077 = vmatpush.bf16.msra.mxu0 0
    %7078 = vmatpush.bf16.msra.mxu0 0
    %7079 = vmatpush.bf16.msra.mxu0 0
    %7080 = vmatpush.bf16.msra.mxu0 0
    %7081 = vmatpush.bf16.msra.mxu0 0
    %7082 = vmatpush.bf16.msra.mxu0 %v7073
    %7083 = vmatpush.bf16.msra.mxu0 %v7072
    %7084 = vmatmul.bf16.gmra.mxu0 %v6927
    %v7085 = vpop.f32.mrf.mxu0
    %v7086 = vadd.f32 0.0, %v7085
    %v7087 = vpop.f32.mrf.mxu0
    %v7088 = vadd.f32 0.0, %v7087
    %7089 = vmatmul.bf16.gmra.mxu0 %v6930
    %v7090 = vpop.f32.mrf.mxu0
    %v7091 = vadd.f32 0.0, %v7090
    %v7092 = vpop.f32.mrf.mxu0
    %v7093 = vadd.f32 0.0, %v7092
    %7094 = vdwg.mxu0
    %s7095 = scalar_lea.vmem [#allocation6], 80
    %v7096 = vld [vmem:[%s7095] sm:$0xf]
    %v7097 = vld [vmem:[%s7095 + $0x4] sm:$0xf]
    %v7098 = vld [vmem:[%s7095 + $0x8] sm:$0xf]
    %v7099 = vld [vmem:[%s7095 + $0xc] sm:$0xf]
    %v7104 = vunpack.c.l.b16 %v7096
    %v7105 = vunpack.c.l.b16 %v7097
    %v7106 = vunpack.c.l.b16 %v7098
    %v7107 = vunpack.c.l.b16 %v7099
    %v7108 = vpack.c.b16 %v7105, %v7104
    %v7109 = vpack.c.b16 %v7107, %v7106
    %7112 = vmatpush.bf16.msra.mxu0 0
    %7113 = vmatpush.bf16.msra.mxu0 0
    %7114 = vmatpush.bf16.msra.mxu0 0
    %7115 = vmatpush.bf16.msra.mxu0 0
    %7116 = vmatpush.bf16.msra.mxu0 0
    %7117 = vmatpush.bf16.msra.mxu0 0
    %7118 = vmatpush.bf16.msra.mxu0 %v7109
    %7119 = vmatpush.bf16.msra.mxu0 %v7108
    %7120 = vmatmul.bf16.gmra.mxu0 %v6927
    %v7121 = vpop.f32.mrf.mxu0
    %v7122 = vadd.f32 0.0, %v7121
    %v7123 = vpop.f32.mrf.mxu0
    %v7124 = vadd.f32 0.0, %v7123
    %7125 = vmatmul.bf16.gmra.mxu0 %v6930
    %v7126 = vpop.f32.mrf.mxu0
    %v7127 = vadd.f32 0.0, %v7126
    %v7128 = vpop.f32.mrf.mxu0
    %v7129 = vadd.f32 0.0, %v7128
    %7130 = vdwg.mxu0
    %s7131 = scalar_lea.vmem [#allocation6], 96
    %v7132 = vld [vmem:[%s7131] sm:$0xf]
    %v7133 = vld [vmem:[%s7131 + $0x4] sm:$0xf]
    %v7134 = vld [vmem:[%s7131 + $0x8] sm:$0xf]
    %v7135 = vld [vmem:[%s7131 + $0xc] sm:$0xf]
    %v7140 = vunpack.c.l.b16 %v7132
    %v7141 = vunpack.c.l.b16 %v7133
    %v7142 = vunpack.c.l.b16 %v7134
    %v7143 = vunpack.c.l.b16 %v7135
    %v7144 = vpack.c.b16 %v7141, %v7140
    %v7145 = vpack.c.b16 %v7143, %v7142
    %7148 = vmatpush.bf16.msra.mxu0 0
    %7149 = vmatpush.bf16.msra.mxu0 0
    %7150 = vmatpush.bf16.msra.mxu0 0
    %7151 = vmatpush.bf16.msra.mxu0 0
    %7152 = vmatpush.bf16.msra.mxu0 0
    %7153 = vmatpush.bf16.msra.mxu0 0
    %7154 = vmatpush.bf16.msra.mxu0 %v7145
    %7155 = vmatpush.bf16.msra.mxu0 %v7144
    %7156 = vmatmul.bf16.gmra.mxu0 %v6927
    %v7157 = vpop.f32.mrf.mxu0
    %v7158 = vadd.f32 0.0, %v7157
    %v7159 = vpop.f32.mrf.mxu0
    %v7160 = vadd.f32 0.0, %v7159
    %7161 = vmatmul.bf16.gmra.mxu0 %v6930
    %v7162 = vpop.f32.mrf.mxu0
    %v7163 = vadd.f32 0.0, %v7162
    %v7164 = vpop.f32.mrf.mxu0
    %v7165 = vadd.f32 0.0, %v7164
    %7166 = vdwg.mxu0
    %s7167 = scalar_lea.vmem [#allocation6], 112
    %v7168 = vld [vmem:[%s7167] sm:$0xf]
    %v7169 = vld [vmem:[%s7167 + $0x4] sm:$0xf]
    %v7170 = vld [vmem:[%s7167 + $0x8] sm:$0xf]
    %v7171 = vld [vmem:[%s7167 + $0xc] sm:$0xf]
    %v7176 = vunpack.c.l.b16 %v7168
    %v7177 = vunpack.c.l.b16 %v7169
    %v7178 = vunpack.c.l.b16 %v7170
    %v7179 = vunpack.c.l.b16 %v7171
    %v7180 = vpack.c.b16 %v7177, %v7176
    %v7181 = vpack.c.b16 %v7179, %v7178
    %7184 = vmatpush.bf16.msra.mxu0 0
    %7185 = vmatpush.bf16.msra.mxu0 0
    %7186 = vmatpush.bf16.msra.mxu0 0
    %7187 = vmatpush.bf16.msra.mxu0 0
    %7188 = vmatpush.bf16.msra.mxu0 0
    %7189 = vmatpush.bf16.msra.mxu0 0
    %7190 = vmatpush.bf16.msra.mxu0 %v7181
    %7191 = vmatpush.bf16.msra.mxu0 %v7180
    %7192 = vmatmul.bf16.gmra.mxu0 %v6927
    %v7193 = vpop.f32.mrf.mxu0
    %v7194 = vadd.f32 0.0, %v7193
    %v7195 = vpop.f32.mrf.mxu0
    %v7196 = vadd.f32 0.0, %v7195
    %7197 = vmatmul.bf16.gmra.mxu0 %v6930
    %v7198 = vpop.f32.mrf.mxu0
    %v7199 = vadd.f32 0.0, %v7198
    %v7200 = vpop.f32.mrf.mxu0
    %v7201 = vadd.f32 0.0, %v7200
    %7202 = vdwg.mxu0
    %s7203 = scalar_lea.vmem [#allocation6], 128
    %v7204 = vld [vmem:[%s7203] sm:$0xf]
    %v7205 = vld [vmem:[%s7203 + $0x4] sm:$0xf]
    %v7206 = vld [vmem:[%s7203 + $0x8] sm:$0xf]
    %v7207 = vld [vmem:[%s7203 + $0xc] sm:$0xf]
    %v7212 = vunpack.c.l.b16 %v7204
    %v7213 = vunpack.c.l.b16 %v7205
    %v7214 = vunpack.c.l.b16 %v7206
    %v7215 = vunpack.c.l.b16 %v7207
    %v7216 = vpack.c.b16 %v7213, %v7212
    %v7217 = vpack.c.b16 %v7215, %v7214
    %7220 = vmatpush.bf16.msra.mxu0 0
    %7221 = vmatpush.bf16.msra.mxu0 0
    %7222 = vmatpush.bf16.msra.mxu0 0
    %7223 = vmatpush.bf16.msra.mxu0 0
    %7224 = vmatpush.bf16.msra.mxu0 0
    %7225 = vmatpush.bf16.msra.mxu0 0
    %7226 = vmatpush.bf16.msra.mxu0 %v7217
    %7227 = vmatpush.bf16.msra.mxu0 %v7216
    %7228 = vmatmul.bf16.gmra.mxu0 %v6927
    %v7229 = vpop.f32.mrf.mxu0
    %v7230 = vadd.f32 0.0, %v7229
    %v7231 = vpop.f32.mrf.mxu0
    %v7232 = vadd.f32 0.0, %v7231
    %7233 = vmatmul.bf16.gmra.mxu0 %v6930
    %v7234 = vpop.f32.mrf.mxu0
    %v7235 = vadd.f32 0.0, %v7234
    %v7236 = vpop.f32.mrf.mxu0
    %v7237 = vadd.f32 0.0, %v7236
    %7238 = vdwg.mxu0
    %s7239 = scalar_lea.vmem [#allocation6], 144
    %v7240 = vld [vmem:[%s7239] sm:$0xf]
    %v7241 = vld [vmem:[%s7239 + $0x4] sm:$0xf]
    %v7242 = vld [vmem:[%s7239 + $0x8] sm:$0xf]
    %v7243 = vld [vmem:[%s7239 + $0xc] sm:$0xf]
    %v7248 = vunpack.c.l.b16 %v7240
    %v7249 = vunpack.c.l.b16 %v7241
    %v7250 = vunpack.c.l.b16 %v7242
    %v7251 = vunpack.c.l.b16 %v7243
    %v7252 = vpack.c.b16 %v7249, %v7248
    %v7253 = vpack.c.b16 %v7251, %v7250
    %7256 = vmatpush.bf16.msra.mxu0 0
    %7257 = vmatpush.bf16.msra.mxu0 0
    %7258 = vmatpush.bf16.msra.mxu0 0
    %7259 = vmatpush.bf16.msra.mxu0 0
    %7260 = vmatpush.bf16.msra.mxu0 0
    %7261 = vmatpush.bf16.msra.mxu0 0
    %7262 = vmatpush.bf16.msra.mxu0 %v7253
    %7263 = vmatpush.bf16.msra.mxu0 %v7252
    %7264 = vmatmul.bf16.gmra.mxu0 %v6927
    %v7265 = vpop.f32.mrf.mxu0
    %v7266 = vadd.f32 0.0, %v7265
    %v7267 = vpop.f32.mrf.mxu0
    %v7268 = vadd.f32 0.0, %v7267
    %7269 = vmatmul.bf16.gmra.mxu0 %v6930
    %v7270 = vpop.f32.mrf.mxu0
    %v7271 = vadd.f32 0.0, %v7270
    %v7272 = vpop.f32.mrf.mxu0
    %v7273 = vadd.f32 0.0, %v7272
    %7274 = vdwg.mxu0
    %s7275 = scalar_lea.vmem [#allocation6], 160
    %v7276 = vld [vmem:[%s7275] sm:$0xf]
    %v7277 = vld [vmem:[%s7275 + $0x4] sm:$0xf]
    %v7278 = vld [vmem:[%s7275 + $0x8] sm:$0xf]
    %v7279 = vld [vmem:[%s7275 + $0xc] sm:$0xf]
    %v7284 = vunpack.c.l.b16 %v7276
    %v7285 = vunpack.c.l.b16 %v7277
    %v7286 = vunpack.c.l.b16 %v7278
    %v7287 = vunpack.c.l.b16 %v7279
    %v7288 = vpack.c.b16 %v7285, %v7284
    %v7289 = vpack.c.b16 %v7287, %v7286
    %7292 = vmatpush.bf16.msra.mxu0 0
    %7293 = vmatpush.bf16.msra.mxu0 0
    %7294 = vmatpush.bf16.msra.mxu0 0
    %7295 = vmatpush.bf16.msra.mxu0 0
    %7296 = vmatpush.bf16.msra.mxu0 0
    %7297 = vmatpush.bf16.msra.mxu0 0
    %7298 = vmatpush.bf16.msra.mxu0 %v7289
    %7299 = vmatpush.bf16.msra.mxu0 %v7288
    %7300 = vmatmul.bf16.gmra.mxu0 %v6927
    %v7301 = vpop.f32.mrf.mxu0
    %v7302 = vadd.f32 0.0, %v7301
    %v7303 = vpop.f32.mrf.mxu0
    %v7304 = vadd.f32 0.0, %v7303
    %7305 = vmatmul.bf16.gmra.mxu0 %v6930
    %v7306 = vpop.f32.mrf.mxu0
    %v7307 = vadd.f32 0.0, %v7306
    %v7308 = vpop.f32.mrf.mxu0
    %v7309 = vadd.f32 0.0, %v7308
    %7310 = vdwg.mxu0
    %s7311 = scalar_lea.vmem [#allocation6], 176
    %v7312 = vld [vmem:[%s7311] sm:$0xf]
    %v7313 = vld [vmem:[%s7311 + $0x4] sm:$0xf]
    %v7314 = vld [vmem:[%s7311 + $0x8] sm:$0xf]
    %v7315 = vld [vmem:[%s7311 + $0xc] sm:$0xf]
    %v7320 = vunpack.c.l.b16 %v7312
    %v7321 = vunpack.c.l.b16 %v7313
    %v7322 = vunpack.c.l.b16 %v7314
    %v7323 = vunpack.c.l.b16 %v7315
    %v7324 = vpack.c.b16 %v7321, %v7320
    %v7325 = vpack.c.b16 %v7323, %v7322
    %7328 = vmatpush.bf16.msra.mxu0 0
    %7329 = vmatpush.bf16.msra.mxu0 0
    %7330 = vmatpush.bf16.msra.mxu0 0
    %7331 = vmatpush.bf16.msra.mxu0 0
    %7332 = vmatpush.bf16.msra.mxu0 0
    %7333 = vmatpush.bf16.msra.mxu0 0
    %7334 = vmatpush.bf16.msra.mxu0 %v7325
    %7335 = vmatpush.bf16.msra.mxu0 %v7324
    %7336 = vmatmul.bf16.gmra.mxu0 %v6927
    %v7337 = vpop.f32.mrf.mxu0
    %v7338 = vadd.f32 0.0, %v7337
    %v7339 = vpop.f32.mrf.mxu0
    %v7340 = vadd.f32 0.0, %v7339
    %7341 = vmatmul.bf16.gmra.mxu0 %v6930
    %v7342 = vpop.f32.mrf.mxu0
    %v7343 = vadd.f32 0.0, %v7342
    %v7344 = vpop.f32.mrf.mxu0
    %v7345 = vadd.f32 0.0, %v7344
    %7346 = vdwg.mxu0
    %s7347 = scalar_lea.vmem [#allocation6], 192
    %v7348 = vld [vmem:[%s7347] sm:$0xf]
    %v7349 = vld [vmem:[%s7347 + $0x4] sm:$0xf]
    %v7350 = vld [vmem:[%s7347 + $0x8] sm:$0xf]
    %v7351 = vld [vmem:[%s7347 + $0xc] sm:$0xf]
    %v7356 = vunpack.c.l.b16 %v7348
    %v7357 = vunpack.c.l.b16 %v7349
    %v7358 = vunpack.c.l.b16 %v7350
    %v7359 = vunpack.c.l.b16 %v7351
    %v7360 = vpack.c.b16 %v7357, %v7356
    %v7361 = vpack.c.b16 %v7359, %v7358
    %7364 = vmatpush.bf16.msra.mxu0 0
    %7365 = vmatpush.bf16.msra.mxu0 0
    %7366 = vmatpush.bf16.msra.mxu0 0
    %7367 = vmatpush.bf16.msra.mxu0 0
    %7368 = vmatpush.bf16.msra.mxu0 0
    %7369 = vmatpush.bf16.msra.mxu0 0
    %7370 = vmatpush.bf16.msra.mxu0 %v7361
    %7371 = vmatpush.bf16.msra.mxu0 %v7360
    %7372 = vmatmul.bf16.gmra.mxu0 %v6927
    %v7373 = vpop.f32.mrf.mxu0
    %v7374 = vadd.f32 0.0, %v7373
    %v7375 = vpop.f32.mrf.mxu0
    %v7376 = vadd.f32 0.0, %v7375
    %7377 = vmatmul.bf16.gmra.mxu0 %v6930
    %v7378 = vpop.f32.mrf.mxu0
    %v7379 = vadd.f32 0.0, %v7378
    %v7380 = vpop.f32.mrf.mxu0
    %v7381 = vadd.f32 0.0, %v7380
    %7382 = vdwg.mxu0
    %s7383 = scalar_lea.vmem [#allocation6], 208
    %v7384 = vld [vmem:[%s7383] sm:$0xf]
    %v7385 = vld [vmem:[%s7383 + $0x4] sm:$0xf]
    %v7386 = vld [vmem:[%s7383 + $0x8] sm:$0xf]
    %v7387 = vld [vmem:[%s7383 + $0xc] sm:$0xf]
    %v7392 = vunpack.c.l.b16 %v7384
    %v7393 = vunpack.c.l.b16 %v7385
    %v7394 = vunpack.c.l.b16 %v7386
    %v7395 = vunpack.c.l.b16 %v7387
    %v7396 = vpack.c.b16 %v7393, %v7392
    %v7397 = vpack.c.b16 %v7395, %v7394
    %7400 = vmatpush.bf16.msra.mxu0 0
    %7401 = vmatpush.bf16.msra.mxu0 0
    %7402 = vmatpush.bf16.msra.mxu0 0
    %7403 = vmatpush.bf16.msra.mxu0 0
    %7404 = vmatpush.bf16.msra.mxu0 0
    %7405 = vmatpush.bf16.msra.mxu0 0
    %7406 = vmatpush.bf16.msra.mxu0 %v7397
    %7407 = vmatpush.bf16.msra.mxu0 %v7396
    %7408 = vmatmul.bf16.gmra.mxu0 %v6927
    %v7409 = vpop.f32.mrf.mxu0
    %v7410 = vadd.f32 0.0, %v7409
    %v7411 = vpop.f32.mrf.mxu0
    %v7412 = vadd.f32 0.0, %v7411
    %7413 = vmatmul.bf16.gmra.mxu0 %v6930
    %v7414 = vpop.f32.mrf.mxu0
    %v7415 = vadd.f32 0.0, %v7414
    %v7416 = vpop.f32.mrf.mxu0
    %v7417 = vadd.f32 0.0, %v7416
    %7418 = vdwg.mxu0
    %s7419 = scalar_lea.vmem [#allocation6], 224
    %v7420 = vld [vmem:[%s7419] sm:$0xf]
    %v7421 = vld [vmem:[%s7419 + $0x4] sm:$0xf]
    %v7422 = vld [vmem:[%s7419 + $0x8] sm:$0xf]
    %v7423 = vld [vmem:[%s7419 + $0xc] sm:$0xf]
    %v7428 = vunpack.c.l.b16 %v7420
    %v7429 = vunpack.c.l.b16 %v7421
    %v7430 = vunpack.c.l.b16 %v7422
    %v7431 = vunpack.c.l.b16 %v7423
    %v7432 = vpack.c.b16 %v7429, %v7428
    %v7433 = vpack.c.b16 %v7431, %v7430
    %7436 = vmatpush.bf16.msra.mxu0 0
    %7437 = vmatpush.bf16.msra.mxu0 0
    %7438 = vmatpush.bf16.msra.mxu0 0
    %7439 = vmatpush.bf16.msra.mxu0 0
    %7440 = vmatpush.bf16.msra.mxu0 0
    %7441 = vmatpush.bf16.msra.mxu0 0
    %7442 = vmatpush.bf16.msra.mxu0 %v7433
    %7443 = vmatpush.bf16.msra.mxu0 %v7432
    %7444 = vmatmul.bf16.gmra.mxu0 %v6927
    %v7445 = vpop.f32.mrf.mxu0
    %v7446 = vadd.f32 0.0, %v7445
    %v7447 = vpop.f32.mrf.mxu0
    %v7448 = vadd.f32 0.0, %v7447
    %7449 = vmatmul.bf16.gmra.mxu0 %v6930
    %v7450 = vpop.f32.mrf.mxu0
    %v7451 = vadd.f32 0.0, %v7450
    %v7452 = vpop.f32.mrf.mxu0
    %v7453 = vadd.f32 0.0, %v7452
    %7454 = vdwg.mxu0
    %s7455 = scalar_lea.vmem [#allocation6], 240
    %v7456 = vld [vmem:[%s7455] sm:$0xf]
    %v7457 = vld [vmem:[%s7455 + $0x4] sm:$0xf]
    %v7458 = vld [vmem:[%s7455 + $0x8] sm:$0xf]
    %v7459 = vld [vmem:[%s7455 + $0xc] sm:$0xf]
    %v7464 = vunpack.c.l.b16 %v7456
    %v7465 = vunpack.c.l.b16 %v7457
    %v7466 = vunpack.c.l.b16 %v7458
    %v7467 = vunpack.c.l.b16 %v7459
    %v7468 = vpack.c.b16 %v7465, %v7464
    %v7469 = vpack.c.b16 %v7467, %v7466
    %7472 = vmatpush.bf16.msra.mxu0 0
    %7473 = vmatpush.bf16.msra.mxu0 0
    %7474 = vmatpush.bf16.msra.mxu0 0
    %7475 = vmatpush.bf16.msra.mxu0 0
    %7476 = vmatpush.bf16.msra.mxu0 0
    %7477 = vmatpush.bf16.msra.mxu0 0
    %7478 = vmatpush.bf16.msra.mxu0 %v7469
    %7479 = vmatpush.bf16.msra.mxu0 %v7468
    %7480 = vmatmul.bf16.gmra.mxu0 %v6927
    %v7481 = vpop.f32.mrf.mxu0
    %v7482 = vadd.f32 0.0, %v7481
    %v7483 = vpop.f32.mrf.mxu0
    %v7484 = vadd.f32 0.0, %v7483
    %7485 = vmatmul.bf16.gmra.mxu0 %v6930
    %v7486 = vpop.f32.mrf.mxu0
    %v7487 = vadd.f32 0.0, %v7486
    %v7488 = vpop.f32.mrf.mxu0
    %v7489 = vadd.f32 0.0, %v7488
    %7490 = vdwg.mxu0
    %v7491 = vpack.c.bf16 %v6944, %v6942
    %v7492 = vpack.c.bf16 %v6949, %v6947
    %v7493 = vpack.c.bf16 %v6980, %v6978
    %v7494 = vpack.c.bf16 %v6985, %v6983
    %v7495 = vpack.c.bf16 %v7016, %v7014
    %v7496 = vpack.c.bf16 %v7021, %v7019
    %v7497 = vpack.c.bf16 %v7052, %v7050
    %v7498 = vpack.c.bf16 %v7057, %v7055
    %v7499 = vpack.c.bf16 %v7088, %v7086
    %v7500 = vpack.c.bf16 %v7093, %v7091
    %v7501 = vpack.c.bf16 %v7124, %v7122
    %v7502 = vpack.c.bf16 %v7129, %v7127
    %v7503 = vpack.c.bf16 %v7160, %v7158
    %v7504 = vpack.c.bf16 %v7165, %v7163
    %v7505 = vpack.c.bf16 %v7196, %v7194
    %v7506 = vpack.c.bf16 %v7201, %v7199
    %v7507 = vpack.c.bf16 %v7232, %v7230
    %v7508 = vpack.c.bf16 %v7237, %v7235
    %v7509 = vpack.c.bf16 %v7268, %v7266
    %v7510 = vpack.c.bf16 %v7273, %v7271
    %v7511 = vpack.c.bf16 %v7304, %v7302
    %v7512 = vpack.c.bf16 %v7309, %v7307
    %v7513 = vpack.c.bf16 %v7340, %v7338
    %v7514 = vpack.c.bf16 %v7345, %v7343
    %v7515 = vpack.c.bf16 %v7376, %v7374
    %v7516 = vpack.c.bf16 %v7381, %v7379
    %v7517 = vpack.c.bf16 %v7412, %v7410
    %v7518 = vpack.c.bf16 %v7417, %v7415
    %v7519 = vpack.c.bf16 %v7448, %v7446
    %v7520 = vpack.c.bf16 %v7453, %v7451
    %v7521 = vpack.c.bf16 %v7484, %v7482
    %v7522 = vpack.c.bf16 %v7489, %v7487
    %v7523 = vld [vmem:[%s12] sm:$0xff]
    %v7524 = vld [vmem:[%s12 + $0x8] sm:$0xff]
    %v7525 = vld [vmem:[%s12 + $0x10] sm:$0xff]
    %v7526 = vld [vmem:[%s12 + $0x18] sm:$0xff]
    %v7527 = vld [vmem:[%s12 + $0x20] sm:$0xff]
    %v7528 = vld [vmem:[%s12 + $0x28] sm:$0xff]
    %v7529 = vld [vmem:[%s12 + $0x30] sm:$0xff]
    %v7530 = vld [vmem:[%s12 + $0x38] sm:$0xff]
    %v7531 = vld [vmem:[%s12 + $0x40] sm:$0xff]
    %v7532 = vld [vmem:[%s12 + $0x48] sm:$0xff]
    %v7533 = vld [vmem:[%s12 + $0x50] sm:$0xff]
    %v7534 = vld [vmem:[%s12 + $0x58] sm:$0xff]
    %v7535 = vld [vmem:[%s12 + $0x60] sm:$0xff]
    %v7536 = vld [vmem:[%s12 + $0x68] sm:$0xff]
    %v7537 = vld [vmem:[%s12 + $0x70] sm:$0xff]
    %v7538 = vld [vmem:[%s12 + $0x78] sm:$0xff]
    %v7539 = vld [vmem:[%s13] sm:$0xff]
    %v7540 = vld [vmem:[%s13 + $0x8] sm:$0xff]
    %v7541 = vld [vmem:[%s13 + $0x10] sm:$0xff]
    %v7542 = vld [vmem:[%s13 + $0x18] sm:$0xff]
    %v7543 = vld [vmem:[%s13 + $0x20] sm:$0xff]
    %v7544 = vld [vmem:[%s13 + $0x28] sm:$0xff]
    %v7545 = vld [vmem:[%s13 + $0x30] sm:$0xff]
    %v7546 = vld [vmem:[%s13 + $0x38] sm:$0xff]
    %7548 = vset.pattern.permute.xlu0 0
    %7549 = vperm.xlu0 %7548, %v7539
    %v7550 = vpop.permute.xlu0 %7549
    %7553 = vset.pattern.permute.xlu0 0
    %7554 = vperm.xlu0 %7553, %v7540
    %v7555 = vpop.permute.xlu0 %7554
    %7558 = vset.pattern.permute.xlu0 0
    %7559 = vperm.xlu0 %7558, %v7541
    %v7560 = vpop.permute.xlu0 %7559
    %7563 = vset.pattern.permute.xlu0 0
    %7564 = vperm.xlu0 %7563, %v7542
    %v7565 = vpop.permute.xlu0 %7564
    %7568 = vset.pattern.permute.xlu0 0
    %7569 = vperm.xlu0 %7568, %v7543
    %v7570 = vpop.permute.xlu0 %7569
    %7573 = vset.pattern.permute.xlu0 0
    %7574 = vperm.xlu0 %7573, %v7544
    %v7575 = vpop.permute.xlu0 %7574
    %7578 = vset.pattern.permute.xlu0 0
    %7579 = vperm.xlu0 %7578, %v7545
    %v7580 = vpop.permute.xlu0 %7579
    %7583 = vset.pattern.permute.xlu0 0
    %7584 = vperm.xlu0 %7583, %v7546
    %v7585 = vpop.permute.xlu0 %7584
    %v7603 = vunpack.c.l.b16 %v7523
    %v7604 = vunpack.c.h.b16 %v7523
    %v7605 = vunpack.c.l.b16 %v7524
    %v7606 = vunpack.c.h.b16 %v7524
    %v7607 = vunpack.c.l.b16 %v7525
    %v7608 = vunpack.c.h.b16 %v7525
    %v7609 = vunpack.c.l.b16 %v7526
    %v7610 = vunpack.c.h.b16 %v7526
    %v7611 = vunpack.c.l.b16 %v7527
    %v7612 = vunpack.c.h.b16 %v7527
    %v7613 = vunpack.c.l.b16 %v7528
    %v7614 = vunpack.c.h.b16 %v7528
    %v7615 = vunpack.c.l.b16 %v7529
    %v7616 = vunpack.c.h.b16 %v7529
    %v7617 = vunpack.c.l.b16 %v7530
    %v7618 = vunpack.c.h.b16 %v7530
    %v7619 = vunpack.c.l.b16 %v7531
    %v7620 = vunpack.c.h.b16 %v7531
    %v7621 = vunpack.c.l.b16 %v7532
    %v7622 = vunpack.c.h.b16 %v7532
    %v7623 = vunpack.c.l.b16 %v7533
    %v7624 = vunpack.c.h.b16 %v7533
    %v7625 = vunpack.c.l.b16 %v7534
    %v7626 = vunpack.c.h.b16 %v7534
    %v7627 = vunpack.c.l.b16 %v7535
    %v7628 = vunpack.c.h.b16 %v7535
    %v7629 = vunpack.c.l.b16 %v7536
    %v7630 = vunpack.c.h.b16 %v7536
    %v7631 = vunpack.c.l.b16 %v7537
    %v7632 = vunpack.c.h.b16 %v7537
    %v7633 = vunpack.c.l.b16 %v7538
    %v7634 = vunpack.c.h.b16 %v7538
    %v7635 = vpack.c.b16 %v7607, %v7603
    %v7636 = vpack.c.b16 %v7608, %v7604
    %v7637 = vpack.c.b16 %v7609, %v7605
    %v7638 = vpack.c.b16 %v7610, %v7606
    %v7639 = vpack.c.b16 %v7615, %v7611
    %v7640 = vpack.c.b16 %v7616, %v7612
    %v7641 = vpack.c.b16 %v7617, %v7613
    %v7642 = vpack.c.b16 %v7618, %v7614
    %v7643 = vpack.c.b16 %v7623, %v7619
    %v7644 = vpack.c.b16 %v7624, %v7620
    %v7645 = vpack.c.b16 %v7625, %v7621
    %v7646 = vpack.c.b16 %v7626, %v7622
    %v7647 = vpack.c.b16 %v7631, %v7627
    %v7648 = vpack.c.b16 %v7632, %v7628
    %v7649 = vpack.c.b16 %v7633, %v7629
    %v7650 = vpack.c.b16 %v7634, %v7630
    %7667 = vmatpush.bf16.msra.mxu0 %v7498
    %7668 = vmatpush.bf16.msra.mxu0 %v7497
    %7669 = vmatpush.bf16.msra.mxu0 %v7496
    %7670 = vmatpush.bf16.msra.mxu0 %v7495
    %7671 = vmatpush.bf16.msra.mxu0 %v7494
    %7672 = vmatpush.bf16.msra.mxu0 %v7493
    %7673 = vmatpush.bf16.msra.mxu0 %v7492
    %7674 = vmatpush.bf16.msra.mxu0 %v7491
    %7675 = vmatmul.bf16.gmra.mxu0 %v7635
    %v7676 = vpop.f32.mrf.mxu0
    %v7677 = vadd.f32 %v7550, %v7676
    %v7678 = vpop.f32.mrf.mxu0
    %v7679 = vadd.f32 %v7555, %v7678
    %7680 = vmatmul.bf16.gmra.mxu0 %v7639
    %v7681 = vpop.f32.mrf.mxu0
    %v7682 = vadd.f32 %v7560, %v7681
    %v7683 = vpop.f32.mrf.mxu0
    %v7684 = vadd.f32 %v7565, %v7683
    %7685 = vmatmul.bf16.gmra.mxu0 %v7643
    %v7686 = vpop.f32.mrf.mxu0
    %v7687 = vadd.f32 %v7570, %v7686
    %v7688 = vpop.f32.mrf.mxu0
    %v7689 = vadd.f32 %v7575, %v7688
    %7690 = vmatmul.bf16.gmra.mxu0 %v7647
    %v7691 = vpop.f32.mrf.mxu0
    %v7692 = vadd.f32 %v7580, %v7691
    %v7693 = vpop.f32.mrf.mxu0
    %v7694 = vadd.f32 %v7585, %v7693
    %7695 = vdwg.mxu0
    %7696 = vmatpush.bf16.msra.mxu0 %v7506
    %7697 = vmatpush.bf16.msra.mxu0 %v7505
    %7698 = vmatpush.bf16.msra.mxu0 %v7504
    %7699 = vmatpush.bf16.msra.mxu0 %v7503
    %7700 = vmatpush.bf16.msra.mxu0 %v7502
    %7701 = vmatpush.bf16.msra.mxu0 %v7501
    %7702 = vmatpush.bf16.msra.mxu0 %v7500
    %7703 = vmatpush.bf16.msra.mxu0 %v7499
    %7704 = vmatmul.bf16.gmra.mxu0 %v7636
    %v7705 = vpop.f32.mrf.mxu0
    %v7706 = vadd.f32 %v7677, %v7705
    %v7707 = vpop.f32.mrf.mxu0
    %v7708 = vadd.f32 %v7679, %v7707
    %7709 = vmatmul.bf16.gmra.mxu0 %v7640
    %v7710 = vpop.f32.mrf.mxu0
    %v7711 = vadd.f32 %v7682, %v7710
    %v7712 = vpop.f32.mrf.mxu0
    %v7713 = vadd.f32 %v7684, %v7712
    %7714 = vmatmul.bf16.gmra.mxu0 %v7644
    %v7715 = vpop.f32.mrf.mxu0
    %v7716 = vadd.f32 %v7687, %v7715
    %v7717 = vpop.f32.mrf.mxu0
    %v7718 = vadd.f32 %v7689, %v7717
    %7719 = vmatmul.bf16.gmra.mxu0 %v7648
    %v7720 = vpop.f32.mrf.mxu0
    %v7721 = vadd.f32 %v7692, %v7720
    %v7722 = vpop.f32.mrf.mxu0
    %v7723 = vadd.f32 %v7694, %v7722
    %7724 = vdwg.mxu0
    %7725 = vmatpush.bf16.msra.mxu0 %v7514
    %7726 = vmatpush.bf16.msra.mxu0 %v7513
    %7727 = vmatpush.bf16.msra.mxu0 %v7512
    %7728 = vmatpush.bf16.msra.mxu0 %v7511
    %7729 = vmatpush.bf16.msra.mxu0 %v7510
    %7730 = vmatpush.bf16.msra.mxu0 %v7509
    %7731 = vmatpush.bf16.msra.mxu0 %v7508
    %7732 = vmatpush.bf16.msra.mxu0 %v7507
    %7733 = vmatmul.bf16.gmra.mxu0 %v7637
    %v7734 = vpop.f32.mrf.mxu0
    %v7735 = vadd.f32 %v7706, %v7734
    %v7736 = vpop.f32.mrf.mxu0
    %v7737 = vadd.f32 %v7708, %v7736
    %7738 = vmatmul.bf16.gmra.mxu0 %v7641
    %v7739 = vpop.f32.mrf.mxu0
    %v7740 = vadd.f32 %v7711, %v7739
    %v7741 = vpop.f32.mrf.mxu0
    %v7742 = vadd.f32 %v7713, %v7741
    %7743 = vmatmul.bf16.gmra.mxu0 %v7645
    %v7744 = vpop.f32.mrf.mxu0
    %v7745 = vadd.f32 %v7716, %v7744
    %v7746 = vpop.f32.mrf.mxu0
    %v7747 = vadd.f32 %v7718, %v7746
    %7748 = vmatmul.bf16.gmra.mxu0 %v7649
    %v7749 = vpop.f32.mrf.mxu0
    %v7750 = vadd.f32 %v7721, %v7749
    %v7751 = vpop.f32.mrf.mxu0
    %v7752 = vadd.f32 %v7723, %v7751
    %7753 = vdwg.mxu0
    %7754 = vmatpush.bf16.msra.mxu0 %v7522
    %7755 = vmatpush.bf16.msra.mxu0 %v7521
    %7756 = vmatpush.bf16.msra.mxu0 %v7520
    %7757 = vmatpush.bf16.msra.mxu0 %v7519
    %7758 = vmatpush.bf16.msra.mxu0 %v7518
    %7759 = vmatpush.bf16.msra.mxu0 %v7517
    %7760 = vmatpush.bf16.msra.mxu0 %v7516
    %7761 = vmatpush.bf16.msra.mxu0 %v7515
    %7762 = vmatmul.bf16.gmra.mxu0 %v7638
    %v7763 = vpop.f32.mrf.mxu0
    %v7764 = vadd.f32 %v7735, %v7763
    %v7765 = vpop.f32.mrf.mxu0
    %v7766 = vadd.f32 %v7737, %v7765
    %7767 = vmatmul.bf16.gmra.mxu0 %v7642
    %v7768 = vpop.f32.mrf.mxu0
    %v7769 = vadd.f32 %v7740, %v7768
    %v7770 = vpop.f32.mrf.mxu0
    %v7771 = vadd.f32 %v7742, %v7770
    %7772 = vmatmul.bf16.gmra.mxu0 %v7646
    %v7773 = vpop.f32.mrf.mxu0
    %v7774 = vadd.f32 %v7745, %v7773
    %v7775 = vpop.f32.mrf.mxu0
    %v7776 = vadd.f32 %v7747, %v7775
    %7777 = vmatmul.bf16.gmra.mxu0 %v7650
    %v7778 = vpop.f32.mrf.mxu0
    %v7779 = vadd.f32 %v7750, %v7778
    %v7780 = vpop.f32.mrf.mxu0
    %v7781 = vadd.f32 %v7752, %v7780
    %7782 = vdwg.mxu0
    %vm7783 = vcmask 64512
    %v7784 = vsel %vm7783, %v7764, 0.0
    %7785 = vadd.xlane.f32.xlu0 %v7784
    %v7786 = vpop.xlane.xlu0 %7785
    %v7787 = vsel %vm7783, %v7766, 0.0
    %7788 = vadd.xlane.f32.xlu0 %v7787
    %v7789 = vpop.xlane.xlu0 %7788
    %v7790 = vsel %vm7783, %v7769, 0.0
    %7791 = vadd.xlane.f32.xlu0 %v7790
    %v7792 = vpop.xlane.xlu0 %7791
    %v7793 = vsel %vm7783, %v7771, 0.0
    %7794 = vadd.xlane.f32.xlu0 %v7793
    %v7795 = vpop.xlane.xlu0 %7794
    %v7796 = vsel %vm7783, %v7774, 0.0
    %7797 = vadd.xlane.f32.xlu0 %v7796
    %v7798 = vpop.xlane.xlu0 %7797
    %v7799 = vsel %vm7783, %v7776, 0.0
    %7800 = vadd.xlane.f32.xlu0 %v7799
    %v7801 = vpop.xlane.xlu0 %7800
    %v7802 = vsel %vm7783, %v7779, 0.0
    %7803 = vadd.xlane.f32.xlu0 %v7802
    %v7804 = vpop.xlane.xlu0 %7803
    %v7805 = vsel %vm7783, %v7781, 0.0
    %7806 = vadd.xlane.f32.xlu0 %v7805
    %v7807 = vpop.xlane.xlu0 %7806
    %v7808 = vrcp.pop 8.0
    %v7809 = vmul.f32 8.0, %v7808
    %v7810 = vsub.f32 1.0, %v7809
    %v7811 = vmul.f32 %v7808, %v7810
    %v7812 = vadd.f32 %v7808, %v7811
    %vm7813 = vweird.f32 %v7808
    %v7814 = vsel %vm7813, %v7808, %v7812
    %v7815 = vmul.f32 %v7786, %v7814
    %v7816 = vmul.f32 %v7789, %v7814
    %v7817 = vmul.f32 %v7792, %v7814
    %v7818 = vmul.f32 %v7795, %v7814
    %v7819 = vmul.f32 %v7798, %v7814
    %v7820 = vmul.f32 %v7801, %v7814
    %v7821 = vmul.f32 %v7804, %v7814
    %v7822 = vmul.f32 %v7807, %v7814
    %v7823 = vsub.f32 %v7764, %v7815
    %v7824 = vsub.f32 %v7766, %v7816
    %v7825 = vsub.f32 %v7769, %v7817
    %v7826 = vsub.f32 %v7771, %v7818
    %v7827 = vsub.f32 %v7774, %v7819
    %v7828 = vsub.f32 %v7776, %v7820
    %v7829 = vsub.f32 %v7779, %v7821
    %v7830 = vsub.f32 %v7781, %v7822
    %v7831 = vmul.f32 %v7823, %v7823
    %v7832 = vmul.f32 %v7824, %v7824
    %v7833 = vmul.f32 %v7825, %v7825
    %v7834 = vmul.f32 %v7826, %v7826
    %v7835 = vmul.f32 %v7827, %v7827
    %v7836 = vmul.f32 %v7828, %v7828
    %v7837 = vmul.f32 %v7829, %v7829
    %v7838 = vmul.f32 %v7830, %v7830
    %v7839 = vsel %vm7783, %v7831, 0.0
    %7840 = vadd.xlane.f32.xlu0 %v7839
    %v7841 = vpop.xlane.xlu0 %7840
    %v7842 = vsel %vm7783, %v7832, 0.0
    %7843 = vadd.xlane.f32.xlu0 %v7842
    %v7844 = vpop.xlane.xlu0 %7843
    %v7845 = vsel %vm7783, %v7833, 0.0
    %7846 = vadd.xlane.f32.xlu0 %v7845
    %v7847 = vpop.xlane.xlu0 %7846
    %v7848 = vsel %vm7783, %v7834, 0.0
    %7849 = vadd.xlane.f32.xlu0 %v7848
    %v7850 = vpop.xlane.xlu0 %7849
    %v7851 = vsel %vm7783, %v7835, 0.0
    %7852 = vadd.xlane.f32.xlu0 %v7851
    %v7853 = vpop.xlane.xlu0 %7852
    %v7854 = vsel %vm7783, %v7836, 0.0
    %7855 = vadd.xlane.f32.xlu0 %v7854
    %v7856 = vpop.xlane.xlu0 %7855
    %v7857 = vsel %vm7783, %v7837, 0.0
    %7858 = vadd.xlane.f32.xlu0 %v7857
    %v7859 = vpop.xlane.xlu0 %7858
    %v7860 = vsel %vm7783, %v7838, 0.0
    %7861 = vadd.xlane.f32.xlu0 %v7860
    %v7862 = vpop.xlane.xlu0 %7861
    %v7863 = vmul.f32 %v7841, %v7814
    %v7864 = vmul.f32 %v7844, %v7814
    %v7865 = vmul.f32 %v7847, %v7814
    %v7866 = vmul.f32 %v7850, %v7814
    %v7867 = vmul.f32 %v7853, %v7814
    %v7868 = vmul.f32 %v7856, %v7814
    %v7869 = vmul.f32 %v7859, %v7814
    %v7870 = vmul.f32 %v7862, %v7814
    %v7871 = vld [vmem:[%s14] sm:$0xff]
    %v7872 = vld [vmem:[%s14 + $0x8] sm:$0xff]
    %v7873 = vld [vmem:[%s14 + $0x10] sm:$0xff]
    %v7874 = vld [vmem:[%s14 + $0x18] sm:$0xff]
    %v7875 = vld [vmem:[%s14 + $0x20] sm:$0xff]
    %v7876 = vld [vmem:[%s14 + $0x28] sm:$0xff]
    %v7877 = vld [vmem:[%s14 + $0x30] sm:$0xff]
    %v7878 = vld [vmem:[%s14 + $0x38] sm:$0xff]
    %v7879 = vadd.f32 %v7863, 1e-05
    %v7880 = vadd.f32 %v7864, 1e-05
    %v7881 = vadd.f32 %v7865, 1e-05
    %v7882 = vadd.f32 %v7866, 1e-05
    %v7883 = vadd.f32 %v7867, 1e-05
    %v7884 = vadd.f32 %v7868, 1e-05
    %v7885 = vadd.f32 %v7869, 1e-05
    %v7886 = vadd.f32 %v7870, 1e-05
    %v7887 = vrsqrt.pop %v7879
    %v7888 = vmul.f32 %v7887, %v7879
    %v7889 = vmul.f32 %v7888, %v7887
    %v7890 = vmul.f32 0.5, %v7889
    %v7891 = vsub.f32 1.5, %v7890
    %v7892 = vmul.f32 %v7887, %v7891
    %vm7893 = vweird.f32 %v7879
    %vm7894 = vweird.f32 %v7887
    %vm7895 = vmor %vm7893, %vm7894
    %v7896 = vsel %vm7895, %v7887, %v7892
    %v7897 = vrsqrt.pop %v7880
    %v7898 = vmul.f32 %v7897, %v7880
    %v7899 = vmul.f32 %v7898, %v7897
    %v7900 = vmul.f32 0.5, %v7899
    %v7901 = vsub.f32 1.5, %v7900
    %v7902 = vmul.f32 %v7897, %v7901
    %vm7903 = vweird.f32 %v7880
    %vm7904 = vweird.f32 %v7897
    %vm7905 = vmor %vm7903, %vm7904
    %v7906 = vsel %vm7905, %v7897, %v7902
    %v7907 = vrsqrt.pop %v7881
    %v7908 = vmul.f32 %v7907, %v7881
    %v7909 = vmul.f32 %v7908, %v7907
    %v7910 = vmul.f32 0.5, %v7909
    %v7911 = vsub.f32 1.5, %v7910
    %v7912 = vmul.f32 %v7907, %v7911
    %vm7913 = vweird.f32 %v7881
    %vm7914 = vweird.f32 %v7907
    %vm7915 = vmor %vm7913, %vm7914
    %v7916 = vsel %vm7915, %v7907, %v7912
    %v7917 = vrsqrt.pop %v7882
    %v7918 = vmul.f32 %v7917, %v7882
    %v7919 = vmul.f32 %v7918, %v7917
    %v7920 = vmul.f32 0.5, %v7919
    %v7921 = vsub.f32 1.5, %v7920
    %v7922 = vmul.f32 %v7917, %v7921
    %vm7923 = vweird.f32 %v7882
    %vm7924 = vweird.f32 %v7917
    %vm7925 = vmor %vm7923, %vm7924
    %v7926 = vsel %vm7925, %v7917, %v7922
    %v7927 = vrsqrt.pop %v7883
    %v7928 = vmul.f32 %v7927, %v7883
    %v7929 = vmul.f32 %v7928, %v7927
    %v7930 = vmul.f32 0.5, %v7929
    %v7931 = vsub.f32 1.5, %v7930
    %v7932 = vmul.f32 %v7927, %v7931
    %vm7933 = vweird.f32 %v7883
    %vm7934 = vweird.f32 %v7927
    %vm7935 = vmor %vm7933, %vm7934
    %v7936 = vsel %vm7935, %v7927, %v7932
    %v7937 = vrsqrt.pop %v7884
    %v7938 = vmul.f32 %v7937, %v7884
    %v7939 = vmul.f32 %v7938, %v7937
    %v7940 = vmul.f32 0.5, %v7939
    %v7941 = vsub.f32 1.5, %v7940
    %v7942 = vmul.f32 %v7937, %v7941
    %vm7943 = vweird.f32 %v7884
    %vm7944 = vweird.f32 %v7937
    %vm7945 = vmor %vm7943, %vm7944
    %v7946 = vsel %vm7945, %v7937, %v7942
    %v7947 = vrsqrt.pop %v7885
    %v7948 = vmul.f32 %v7947, %v7885
    %v7949 = vmul.f32 %v7948, %v7947
    %v7950 = vmul.f32 0.5, %v7949
    %v7951 = vsub.f32 1.5, %v7950
    %v7952 = vmul.f32 %v7947, %v7951
    %vm7953 = vweird.f32 %v7885
    %vm7954 = vweird.f32 %v7947
    %vm7955 = vmor %vm7953, %vm7954
    %v7956 = vsel %vm7955, %v7947, %v7952
    %v7957 = vrsqrt.pop %v7886
    %v7958 = vmul.f32 %v7957, %v7886
    %v7959 = vmul.f32 %v7958, %v7957
    %v7960 = vmul.f32 0.5, %v7959
    %v7961 = vsub.f32 1.5, %v7960
    %v7962 = vmul.f32 %v7957, %v7961
    %vm7963 = vweird.f32 %v7886
    %vm7964 = vweird.f32 %v7957
    %vm7965 = vmor %vm7963, %vm7964
    %v7966 = vsel %vm7965, %v7957, %v7962
    %v7967 = vmul.f32 %v7871, %v7896
    %v7968 = vmul.f32 %v7872, %v7906
    %v7969 = vmul.f32 %v7873, %v7916
    %v7970 = vmul.f32 %v7874, %v7926
    %v7971 = vmul.f32 %v7875, %v7936
    %v7972 = vmul.f32 %v7876, %v7946
    %v7973 = vmul.f32 %v7877, %v7956
    %v7974 = vmul.f32 %v7878, %v7966
    %v7975 = vld [vmem:[%s15] sm:$0xff]
    %v7976 = vld [vmem:[%s15 + $0x8] sm:$0xff]
    %v7977 = vld [vmem:[%s15 + $0x10] sm:$0xff]
    %v7978 = vld [vmem:[%s15 + $0x18] sm:$0xff]
    %v7979 = vld [vmem:[%s15 + $0x20] sm:$0xff]
    %v7980 = vld [vmem:[%s15 + $0x28] sm:$0xff]
    %v7981 = vld [vmem:[%s15 + $0x30] sm:$0xff]
    %v7982 = vld [vmem:[%s15 + $0x38] sm:$0xff]
    %v7983 = vmul.f32 %v7815, %v7967
    %v7984 = vmul.f32 %v7816, %v7968
    %v7985 = vmul.f32 %v7817, %v7969
    %v7986 = vmul.f32 %v7818, %v7970
    %v7987 = vmul.f32 %v7819, %v7971
    %v7988 = vmul.f32 %v7820, %v7972
    %v7989 = vmul.f32 %v7821, %v7973
    %v7990 = vmul.f32 %v7822, %v7974
    %v7991 = vsub.f32 %v7975, %v7983
    %v7992 = vsub.f32 %v7976, %v7984
    %v7993 = vsub.f32 %v7977, %v7985
    %v7994 = vsub.f32 %v7978, %v7986
    %v7995 = vsub.f32 %v7979, %v7987
    %v7996 = vsub.f32 %v7980, %v7988
    %v7997 = vsub.f32 %v7981, %v7989
    %v7998 = vsub.f32 %v7982, %v7990
    %8000 = vset.pattern.permute.xlu0 0
    %8001 = vperm.xlu0 %8000, %v7967
    %v8002 = vpop.permute.xlu0 %8001
    %8005 = vset.pattern.permute.xlu0 0
    %8006 = vperm.xlu0 %8005, %v7968
    %v8007 = vpop.permute.xlu0 %8006
    %8010 = vset.pattern.permute.xlu0 0
    %8011 = vperm.xlu0 %8010, %v7969
    %v8012 = vpop.permute.xlu0 %8011
    %8015 = vset.pattern.permute.xlu0 0
    %8016 = vperm.xlu0 %8015, %v7970
    %v8017 = vpop.permute.xlu0 %8016
    %8020 = vset.pattern.permute.xlu0 0
    %8021 = vperm.xlu0 %8020, %v7971
    %v8022 = vpop.permute.xlu0 %8021
    %8025 = vset.pattern.permute.xlu0 0
    %8026 = vperm.xlu0 %8025, %v7972
    %v8027 = vpop.permute.xlu0 %8026
    %8030 = vset.pattern.permute.xlu0 0
    %8031 = vperm.xlu0 %8030, %v7973
    %v8032 = vpop.permute.xlu0 %8031
    %8035 = vset.pattern.permute.xlu0 0
    %8036 = vperm.xlu0 %8035, %v7974
    %v8037 = vpop.permute.xlu0 %8036
    %v8039 = vmul.f32 %v7764, %v8002
    %v8040 = vmul.f32 %v7766, %v8007
    %v8041 = vmul.f32 %v7769, %v8012
    %v8042 = vmul.f32 %v7771, %v8017
    %v8043 = vmul.f32 %v7774, %v8022
    %v8044 = vmul.f32 %v7776, %v8027
    %v8045 = vmul.f32 %v7779, %v8032
    %v8046 = vmul.f32 %v7781, %v8037
    %8048 = vset.pattern.permute.xlu0 0
    %8049 = vperm.xlu0 %8048, %v7991
    %v8050 = vpop.permute.xlu0 %8049
    %8053 = vset.pattern.permute.xlu0 0
    %8054 = vperm.xlu0 %8053, %v7992
    %v8055 = vpop.permute.xlu0 %8054
    %8058 = vset.pattern.permute.xlu0 0
    %8059 = vperm.xlu0 %8058, %v7993
    %v8060 = vpop.permute.xlu0 %8059
    %8063 = vset.pattern.permute.xlu0 0
    %8064 = vperm.xlu0 %8063, %v7994
    %v8065 = vpop.permute.xlu0 %8064
    %8068 = vset.pattern.permute.xlu0 0
    %8069 = vperm.xlu0 %8068, %v7995
    %v8070 = vpop.permute.xlu0 %8069
    %8073 = vset.pattern.permute.xlu0 0
    %8074 = vperm.xlu0 %8073, %v7996
    %v8075 = vpop.permute.xlu0 %8074
    %8078 = vset.pattern.permute.xlu0 0
    %8079 = vperm.xlu0 %8078, %v7997
    %v8080 = vpop.permute.xlu0 %8079
    %8083 = vset.pattern.permute.xlu0 0
    %8084 = vperm.xlu0 %8083, %v7998
    %v8085 = vpop.permute.xlu0 %8084
    %v8087 = vadd.f32 %v8039, %v8050
    %v8088 = vadd.f32 %v8040, %v8055
    %v8089 = vadd.f32 %v8041, %v8060
    %v8090 = vadd.f32 %v8042, %v8065
    %v8091 = vadd.f32 %v8043, %v8070
    %v8092 = vadd.f32 %v8044, %v8075
    %v8093 = vadd.f32 %v8045, %v8080
    %v8094 = vadd.f32 %v8046, %v8085
    %v8095 = vmax.f32 %v8087, 0.0
    %v8096 = vmax.f32 %v8088, 0.0
    %v8097 = vmax.f32 %v8089, 0.0
    %v8098 = vmax.f32 %v8090, 0.0
    %v8099 = vmax.f32 %v8091, 0.0
    %v8100 = vmax.f32 %v8092, 0.0
    %v8101 = vmax.f32 %v8093, 0.0
    %v8102 = vmax.f32 %v8094, 0.0
    %v8103 = vpack.c.bf16 %v8096, %v8095
    %v8104 = vpack.c.bf16 %v8098, %v8097
    %v8105 = vpack.c.bf16 %v8100, %v8099
    %v8106 = vpack.c.bf16 %v8102, %v8101
    %v8107 = vld [vmem:[%s16] sm:$0xf]
    %v8108 = vld [vmem:[%s16 + $0x4] sm:$0xf]
    %v8109 = vld [vmem:[%s16 + $0x8] sm:$0xf]
    %v8110 = vld [vmem:[%s16 + $0xc] sm:$0xf]
    %v8111 = vld [vmem:[%s17] sm:$0xff]
    %v8112 = vld [vmem:[%s17 + $0x8] sm:$0xff]
    %v8113 = vld [vmem:[%s17 + $0x10] sm:$0xff]
    %v8114 = vld [vmem:[%s17 + $0x18] sm:$0xff]
    %8116 = vset.pattern.permute.xlu0 0
    %8117 = vperm.xlu0 %8116, %v8111
    %v8118 = vpop.permute.xlu0 %8117
    %8121 = vset.pattern.permute.xlu0 0
    %8122 = vperm.xlu0 %8121, %v8112
    %v8123 = vpop.permute.xlu0 %8122
    %8126 = vset.pattern.permute.xlu0 0
    %8127 = vperm.xlu0 %8126, %v8113
    %v8128 = vpop.permute.xlu0 %8127
    %8131 = vset.pattern.permute.xlu0 0
    %8132 = vperm.xlu0 %8131, %v8114
    %v8133 = vpop.permute.xlu0 %8132
    %v8139 = vunpack.c.l.b16 %v8107
    %v8140 = vunpack.c.l.b16 %v8108
    %v8141 = vunpack.c.l.b16 %v8109
    %v8142 = vunpack.c.l.b16 %v8110
    %v8143 = vpack.c.b16 %v8140, %v8139
    %v8144 = vpack.c.b16 %v8142, %v8141
    %vm8145 = vcmask 523264
    %v8147 = vsel %vm8145, %v8143, 0
    %v8150 = vsel %vm8145, %v8144, 0
    %8152 = vmatpush.bf16.msra.mxu0 0
    %8153 = vmatpush.bf16.msra.mxu0 0
    %8154 = vmatpush.bf16.msra.mxu0 0
    %8155 = vmatpush.bf16.msra.mxu0 0
    %8156 = vmatpush.bf16.msra.mxu0 %v8106
    %8157 = vmatpush.bf16.msra.mxu0 %v8105
    %8158 = vmatpush.bf16.msra.mxu0 %v8104
    %8159 = vmatpush.bf16.msra.mxu0 %v8103
    %8160 = vmatmul.bf16.gmra.mxu0 %v8147
    %v8161 = vpop.f32.mrf.mxu0
    %v8162 = vadd.f32 %v8118, %v8161
    %v8163 = vpop.f32.mrf.mxu0
    %v8164 = vadd.f32 %v8123, %v8163
    %8165 = vmatmul.bf16.gmra.mxu0 %v8150
    %v8166 = vpop.f32.mrf.mxu0
    %v8167 = vadd.f32 %v8128, %v8166
    %v8168 = vpop.f32.mrf.mxu0
    %v8169 = vadd.f32 %v8133, %v8168
    %8170 = vdwg.mxu0
    %8171 = vst.msk [vmem:[%s18] sm:$0xff] %vm7783, %v8162
    %8172 = vst.msk [vmem:[%s18 + $0x8] sm:$0xff] %vm7783, %v8164
    %8173 = vst.msk [vmem:[%s18 + $0x10] sm:$0xff] %vm7783, %v8167
    %8174 = vst.msk [vmem:[%s18 + $0x18] sm:$0xff] %vm7783, %v8169
    // Predicated region
    $region86: #{vq_encoder_forward.1} parent=1 // pred_check
      _
    $region87: #{vq_encoder_forward.1} parent=1 // pred_check_branch
      %8176 = sbr.rel (0) target = $region89
    $region88: #{vq_encoder_forward.1} parent=1 // pred_region
      _
    $region89: #{vq_encoder_forward.1} parent=1 // pred_fallthru
      _
    // Predicated region
    $region90: #{vq_encoder_forward.1} parent=1 // pred_check
      _
    $region91: #{vq_encoder_forward.1} parent=1 // pred_check_branch
      %8178 = sbr.rel (0) target = $region93
    $region92: #{vq_encoder_forward.1} parent=1 // pred_region
      _
    $region93: #{vq_encoder_forward.1} parent=1 // pred_fallthru
      _
    %8179 = vsyncpa [#allocation3], 1
    %8180 = vsyncpa [#allocation5], 1

</llo_original>
